<compile_context>
chip_gen: v7x
topology: tpu7x:2x2x1
jax: 0.10.0
libtpu: 0.0.40
codegen_flags: <defaults>
</compile_context>

<pallas_src>
import jax
import jax.numpy as jnp
import numpy as np
from jax.experimental import pallas as pl
from jax.experimental.pallas import tpu as pltpu

K_CONV = 7
PAD = (K_CONV - 1) // 2          # 3
K_POOL = 3
BN_EPS = 1e-5


def cella_kernel(w_ref, b_ref, x_ref, o_ref, xpad_ref):
    # w_ref   : VMEM (49, 1, Cl)         depthwise 7x7 taps (BN scale folded), compute dtype
    # b_ref   : VMEM (1, Cl)             folded BN bias, float32
    # x_ref   : VMEM (H, W, Cl)          un-padded input block, compute dtype
    # o_ref   : VMEM (H, W, Cl)          output block
    # xpad_ref: VMEM (H+6, W+6, Cl)      scratch: zero-padded slab shared by conv & pool
    H, W, Cl = o_ref.shape
    dt = x_ref.dtype

    # ---- build the zero-padded slab in VMEM (replaces the HBM jnp.pad pass) ----
    xpad_ref[...] = jnp.zeros_like(xpad_ref)
    xpad_ref[PAD:PAD + H, PAD:PAD + W, :] = x_ref[...]

    # ---- depthwise 7x7 conv: single f32 accumulator, bias folded into the init ----
    # (the 32 output vregs of `acc` already give the VALU plenty of ILP; a wider
    #  accumulator split blew the 64-vreg file.)
    acc = jnp.broadcast_to(b_ref[...], (H, W, Cl)).astype(jnp.float32)
    for t in range(K_CONV * K_CONV):
        kh, kw = divmod(t, K_CONV)
        tap = xpad_ref[kh:kh + H, kw:kw + W, :]          # compute dtype
        # per-tap weight row load -> (1, 1, Cl); broadcast stays on the load/XLU path.
        # TODO(synk): on v5e, if the vld slot (not VALU) binds, regenerate the 7 kw
        #             shifts from one row band with pltpu.roll instead of 7 slices.
        acc = acc + tap * w_ref[t:t + 1]                 # multiply in dt, accumulate f32
    o_ref[...] = acc.astype(o_ref.dtype)                 # park y1; frees the acc vregs

    # ---- poke a -inf ring into the pool's pad cells (pool pad=1 -> padded rows 2 /
    #      H+3 and cols 2 / W+3).  The conv above already consumed these cells as
    #      zeros; ref ops are ordered, and the scratch is fully rewritten next step.
    #      This replaces the 8 iota-masked jnp.where's of the previous revision. ----
    ninf_row = jnp.full((1, W + 2, Cl), -jnp.inf, dt)
    ninf_col = jnp.full((H + 2, 1, Cl), -jnp.inf, dt)
    xpad_ref[2:3, 2:W + 4, :] = ninf_row
    xpad_ref[H + 3:H + 4, 2:W + 4, :] = ninf_row
    xpad_ref[2:H + 4, 2:3, :] = ninf_col
    xpad_ref[2:H + 4, W + 3:W + 4, :] = ninf_col

    # ---- separable 3x3 max-pool, stride 1: horizontal 3-max then vertical 3-max ----
    hmax = jnp.maximum(
        jnp.maximum(xpad_ref[2:H + 4, 2:2 + W, :], xpad_ref[2:H + 4, 3:3 + W, :]),
        xpad_ref[2:H + 4, 4:4 + W, :])                                   # (H+2, W, Cl)
    y2 = jnp.maximum(jnp.maximum(hmax[0:H], hmax[1:H + 1]), hmax[2:H + 2])  # (H, W, Cl)

    # ---- relu(y1 + y2) ----
    o_ref[...] = jnp.maximum(o_ref[...] + y2, 0.0).astype(o_ref.dtype)


def _fold_bn(w_dw, gamma, beta, run_mean, run_var):
    """Fold eval-mode BN into depthwise weights (scale) and a per-channel bias (f32)."""
    C = w_dw.shape[0]
    scale = gamma * jax.lax.rsqrt(run_var + BN_EPS)                       # (C,)
    bias = beta - run_mean * scale                                        # (C,)
    w_tap = (w_dw.reshape(C, K_CONV * K_CONV) * scale[:, None]).T         # (49, C)
    return w_tap, bias


def cella_forward(x, w_dw, gamma, beta, run_mean, run_var):
    """CellA forward (stride=1 path).

    x: (N, C, H, W); w_dw: (C, 7, 7) depthwise weights; BN params/stats: (C,).
    Streaming/compute dtype follows x.dtype (pass bf16 x on v6e/v7x for the 2x
    VALU / bandwidth win); the conv always accumulates in float32.
    """
    N, C, H, W = x.shape
    cdt = x.dtype

    w_tap, bias = _fold_bn(w_dw.astype(jnp.float32), gamma, beta, run_mean, run_var)

    # lane-densify: fold (N, C) onto the lane axis, tiled into <=128-lane blocks.
    NC = N * C
    lane_blk = NC if NC <= 128 else 128
    assert NC % lane_blk == 0, "N*C must be <=128 or a multiple of 128"
    n_blk = NC // lane_blk

    x_l = jnp.transpose(x, (2, 3, 0, 1)).reshape(H, W, NC)                # (H, W, N*C)
    w_l = jnp.tile(w_tap, (1, N)).reshape(K_CONV * K_CONV, 1, NC).astype(cdt)
    b_l = jnp.tile(bias, (N,)).reshape(1, NC).astype(jnp.float32)

    out_l = pl.pallas_call(
        cella_kernel,
        out_shape=jax.ShapeDtypeStruct((H, W, NC), cdt),
        grid=(n_blk,),
        in_specs=[
            pl.BlockSpec((K_CONV * K_CONV, 1, lane_blk), lambda cb: (0, 0, cb)),
            pl.BlockSpec((1, lane_blk), lambda cb: (0, cb)),
            pl.BlockSpec((H, W, lane_blk), lambda cb: (0, 0, cb)),
        ],
        out_specs=pl.BlockSpec((H, W, lane_blk), lambda cb: (0, 0, cb)),
        scratch_shapes=[pltpu.VMEM((H + 2 * PAD, W + 2 * PAD, lane_blk), cdt)],
        compiler_params=pltpu.CompilerParams(
            dimension_semantics=("parallel",)),
    )(w_l, b_l, x_l)

    return jnp.transpose(out_l.reshape(H, W, N, C), (2, 3, 0, 1))


def cella_reference(x, w_dw, gamma, beta, run_mean, run_var):
    """Pure-JAX reference mirroring the PyTorch forward (eval mode)."""
    N, C, H, W = x.shape
    w = w_dw.reshape(C, 1, K_CONV, K_CONV)                    # OIHW, groups=C
    y1 = jax.lax.conv_general_dilated(
        x, w, window_strides=(1, 1), padding=((PAD, PAD), (PAD, PAD)),
        dimension_numbers=("NCHW", "OIHW", "NCHW"),
        feature_group_count=C)
    scale = gamma * jax.lax.rsqrt(run_var + BN_EPS)
    bias = beta - run_mean * scale
    y1 = y1 * scale[None, :, None, None] + bias[None, :, None, None]
    y2 = jax.lax.reduce_window(
        x, -jnp.inf, jax.lax.max,
        window_dimensions=(1, 1, K_POOL, K_POOL), window_strides=(1, 1, 1, 1),
        padding=((0, 0), (0, 0), (1, 1), (1, 1)))
    return jnp.maximum(y1 + y2, 0.0)


if __name__ == "__main__":
    # small shapes consistent with the module: stride=1 requires in_planes == out_planes
    N, C, H, W = 2, 4, 16, 16

    key = jax.random.PRNGKey(0)
    k1, k2, k3, k4, k5, k6 = jax.random.split(key, 6)

    x = jax.random.normal(k1, (N, C, H, W), dtype=jnp.float32)
    # depthwise conv weights: groups=in_planes, out_planes=in_planes -> (C,1,7,7) ~ (C,7,7)
    w_dw = jax.random.normal(k2, (C, K_CONV, K_CONV), dtype=jnp.float32) * 0.1
    # BatchNorm2d parameters / running stats (deterministic, non-trivial)
    gamma = 1.0 + 0.1 * jax.random.normal(k3, (C,), dtype=jnp.float32)
    beta = 0.1 * jax.random.normal(k4, (C,), dtype=jnp.float32)
    run_mean = 0.1 * jax.random.normal(k5, (C,), dtype=jnp.float32)
    run_var = jnp.abs(jax.random.normal(k6, (C,), dtype=jnp.float32)) + 0.5

    fwd = jax.jit(cella_forward)
    out = jax.block_until_ready(fwd(x, w_dw, gamma, beta, run_mean, run_var))

    ref = cella_reference(x, w_dw, gamma, beta, run_mean, run_var)
    np.testing.assert_allclose(np.asarray(out), np.asarray(ref),
                               rtol=1e-5, atol=1e-5)

    print("KERNEL_OK")
</pallas_src>

<mosaic_0001>
module attributes {stable_mosaic.version = 11 : i64} {
  func.func @cella_kernel(%arg0: i32, %arg1: memref<49x1x8xf32, #tpu.memory_space<vmem>>, %arg2: memref<1x8xf32, #tpu.memory_space<vmem>>, %arg3: memref<16x16x8xf32, #tpu.memory_space<vmem>>, %arg4: memref<16x16x8xf32, #tpu.memory_space<vmem>>, %arg5: memref<22x22x8xf32, #tpu.memory_space<vmem>>) attributes {dimension_semantics = [#tpu.dimension_semantics<parallel>], iteration_bounds = array<i64: 1>, scalar_prefetch = 0 : i64, scratch_operands = 1 : i64, tpu.core_type = #tpu.core_type<tc>, window_params = [{transform_indices = @transform_0, window_bounds = array<i64: 49, 1, 8>}, {transform_indices = @transform_1, window_bounds = array<i64: 1, 8>}, {transform_indices = @transform_2, window_bounds = array<i64: 16, 16, 8>}, {transform_indices = @transform_3, window_bounds = array<i64: 16, 16, 8>}]} {
    %cst = arith.constant 0.000000e+00 : f32
    %0 = vector.broadcast %cst : f32 to vector<22x22x8xf32>
    %c0 = arith.constant 0 : index
    %c0_0 = arith.constant 0 : index
    %c0_1 = arith.constant 0 : index
    %1 = vector.load %arg5[%c0, %c0_0, %c0_1] : memref<22x22x8xf32, #tpu.memory_space<vmem>>, vector<22x22x8xf32>
    tpu.vector_store %arg5[%c0, %c0_0, %c0_1], %0 {strides = array<i32>} : memref<22x22x8xf32, #tpu.memory_space<vmem>>, vector<22x22x8xf32>,
    %c0_2 = arith.constant 0 : index
    %c0_3 = arith.constant 0 : index
    %c0_4 = arith.constant 0 : index
    %2 = vector.load %arg3[%c0_2, %c0_3, %c0_4] : memref<16x16x8xf32, #tpu.memory_space<vmem>>, vector<16x16x8xf32>
    %c3 = arith.constant 3 : index
    %c3_5 = arith.constant 3 : index
    %c0_6 = arith.constant 0 : index
    %3 = vector.load %arg5[%c3, %c3_5, %c0_6] : memref<22x22x8xf32, #tpu.memory_space<vmem>>, vector<16x16x8xf32>
    tpu.vector_store %arg5[%c3, %c3_5, %c0_6], %2 {strides = array<i32>} : memref<22x22x8xf32, #tpu.memory_space<vmem>>, vector<16x16x8xf32>,
    %c0_7 = arith.constant 0 : index
    %c0_8 = arith.constant 0 : index
    %4 = vector.load %arg2[%c0_7, %c0_8] : memref<1x8xf32, #tpu.memory_space<vmem>>, vector<1x8xf32>
    %5 = vector.shape_cast %4 : vector<1x8xf32> to vector<1x1x8xf32>
    %6 = vector.broadcast %5 : vector<1x1x8xf32> to vector<16x16x8xf32>
    %c0_9 = arith.constant 0 : index
    %c0_10 = arith.constant 0 : index
    %c0_11 = arith.constant 0 : index
    %7 = vector.load %arg5[%c0_9, %c0_10, %c0_11] : memref<22x22x8xf32, #tpu.memory_space<vmem>>, vector<16x16x8xf32>
    %c0_12 = arith.constant 0 : index
    %c0_13 = arith.constant 0 : index
    %c0_14 = arith.constant 0 : index
    %8 = vector.load %arg1[%c0_12, %c0_13, %c0_14] : memref<49x1x8xf32, #tpu.memory_space<vmem>>, vector<1x1x8xf32>
    %9 = vector.broadcast %8 : vector<1x1x8xf32> to vector<16x16x8xf32>
    %10 = arith.mulf %7, %9 : vector<16x16x8xf32>
    %11 = arith.addf %6, %10 : vector<16x16x8xf32>
    %c0_15 = arith.constant 0 : index
    %c1 = arith.constant 1 : index
    %c0_16 = arith.constant 0 : index
    %12 = vector.load %arg5[%c0_15, %c1, %c0_16] : memref<22x22x8xf32, #tpu.memory_space<vmem>>, vector<16x16x8xf32>
    %c1_17 = arith.constant 1 : index
    %c0_18 = arith.constant 0 : index
    %c0_19 = arith.constant 0 : index
    %13 = vector.load %arg1[%c1_17, %c0_18, %c0_19] : memref<49x1x8xf32, #tpu.memory_space<vmem>>, vector<1x1x8xf32>
    %14 = vector.broadcast %13 : vector<1x1x8xf32> to vector<16x16x8xf32>
    %15 = arith.mulf %12, %14 : vector<16x16x8xf32>
    %16 = arith.addf %11, %15 : vector<16x16x8xf32>
    %c0_20 = arith.constant 0 : index
    %c2 = arith.constant 2 : index
    %c0_21 = arith.constant 0 : index
    %17 = vector.load %arg5[%c0_20, %c2, %c0_21] : memref<22x22x8xf32, #tpu.memory_space<vmem>>, vector<16x16x8xf32>
    %c2_22 = arith.constant 2 : index
    %c0_23 = arith.constant 0 : index
    %c0_24 = arith.constant 0 : index
    %18 = vector.load %arg1[%c2_22, %c0_23, %c0_24] : memref<49x1x8xf32, #tpu.memory_space<vmem>>, vector<1x1x8xf32>
    %19 = vector.broadcast %18 : vector<1x1x8xf32> to vector<16x16x8xf32>
    %20 = arith.mulf %17, %19 : vector<16x16x8xf32>
    %21 = arith.addf %16, %20 : vector<16x16x8xf32>
    %c0_25 = arith.constant 0 : index
    %c3_26 = arith.constant 3 : index
    %c0_27 = arith.constant 0 : index
    %22 = vector.load %arg5[%c0_25, %c3_26, %c0_27] : memref<22x22x8xf32, #tpu.memory_space<vmem>>, vector<16x16x8xf32>
    %c3_28 = arith.constant 3 : index
    %c0_29 = arith.constant 0 : index
    %c0_30 = arith.constant 0 : index
    %23 = vector.load %arg1[%c3_28, %c0_29, %c0_30] : memref<49x1x8xf32, #tpu.memory_space<vmem>>, vector<1x1x8xf32>
    %24 = vector.broadcast %23 : vector<1x1x8xf32> to vector<16x16x8xf32>
    %25 = arith.mulf %22, %24 : vector<16x16x8xf32>
    %26 = arith.addf %21, %25 : vector<16x16x8xf32>
    %c0_31 = arith.constant 0 : index
    %c4 = arith.constant 4 : index
    %c0_32 = arith.constant 0 : index
    %27 = vector.load %arg5[%c0_31, %c4, %c0_32] : memref<22x22x8xf32, #tpu.memory_space<vmem>>, vector<16x16x8xf32>
    %c4_33 = arith.constant 4 : index
    %c0_34 = arith.constant 0 : index
    %c0_35 = arith.constant 0 : index
    %28 = vector.load %arg1[%c4_33, %c0_34, %c0_35] : memref<49x1x8xf32, #tpu.memory_space<vmem>>, vector<1x1x8xf32>
    %29 = vector.broadcast %28 : vector<1x1x8xf32> to vector<16x16x8xf32>
    %30 = arith.mulf %27, %29 : vector<16x16x8xf32>
    %31 = arith.addf %26, %30 : vector<16x16x8xf32>
    %c0_36 = arith.constant 0 : index
    %c5 = arith.constant 5 : index
    %c0_37 = arith.constant 0 : index
    %32 = vector.load %arg5[%c0_36, %c5, %c0_37] : memref<22x22x8xf32, #tpu.memory_space<vmem>>, vector<16x16x8xf32>
    %c5_38 = arith.constant 5 : index
    %c0_39 = arith.constant 0 : index
    %c0_40 = arith.constant 0 : index
    %33 = vector.load %arg1[%c5_38, %c0_39, %c0_40] : memref<49x1x8xf32, #tpu.memory_space<vmem>>, vector<1x1x8xf32>
    %34 = vector.broadcast %33 : vector<1x1x8xf32> to vector<16x16x8xf32>
    %35 = arith.mulf %32, %34 : vector<16x16x8xf32>
    %36 = arith.addf %31, %35 : vector<16x16x8xf32>
    %c0_41 = arith.constant 0 : index
    %c6 = arith.constant 6 : index
    %c0_42 = arith.constant 0 : index
    %37 = vector.load %arg5[%c0_41, %c6, %c0_42] : memref<22x22x8xf32, #tpu.memory_space<vmem>>, vector<16x16x8xf32>
    %c6_43 = arith.constant 6 : index
    %c0_44 = arith.constant 0 : index
    %c0_45 = arith.constant 0 : index
    %38 = vector.load %arg1[%c6_43, %c0_44, %c0_45] : memref<49x1x8xf32, #tpu.memory_space<vmem>>, vector<1x1x8xf32>
    %39 = vector.broadcast %38 : vector<1x1x8xf32> to vector<16x16x8xf32>
    %40 = arith.mulf %37, %39 : vector<16x16x8xf32>
    %41 = arith.addf %36, %40 : vector<16x16x8xf32>
    %c1_46 = arith.constant 1 : index
    %c0_47 = arith.constant 0 : index
    %c0_48 = arith.constant 0 : index
    %42 = vector.load %arg5[%c1_46, %c0_47, %c0_48] : memref<22x22x8xf32, #tpu.memory_space<vmem>>, vector<16x16x8xf32>
    %c7 = arith.constant 7 : index
    %c0_49 = arith.constant 0 : index
    %c0_50 = arith.constant 0 : index
    %43 = vector.load %arg1[%c7, %c0_49, %c0_50] : memref<49x1x8xf32, #tpu.memory_space<vmem>>, vector<1x1x8xf32>
    %44 = vector.broadcast %43 : vector<1x1x8xf32> to vector<16x16x8xf32>
    %45 = arith.mulf %42, %44 : vector<16x16x8xf32>
    %46 = arith.addf %41, %45 : vector<16x16x8xf32>
    %c1_51 = arith.constant 1 : index
    %c1_52 = arith.constant 1 : index
    %c0_53 = arith.constant 0 : index
    %47 = vector.load %arg5[%c1_51, %c1_52, %c0_53] : memref<22x22x8xf32, #tpu.memory_space<vmem>>, vector<16x16x8xf32>
    %c8 = arith.constant 8 : index
    %c0_54 = arith.constant 0 : index
    %c0_55 = arith.constant 0 : index
    %48 = vector.load %arg1[%c8, %c0_54, %c0_55] : memref<49x1x8xf32, #tpu.memory_space<vmem>>, vector<1x1x8xf32>
    %49 = vector.broadcast %48 : vector<1x1x8xf32> to vector<16x16x8xf32>
    %50 = arith.mulf %47, %49 : vector<16x16x8xf32>
    %51 = arith.addf %46, %50 : vector<16x16x8xf32>
    %c1_56 = arith.constant 1 : index
    %c2_57 = arith.constant 2 : index
    %c0_58 = arith.constant 0 : index
    %52 = vector.load %arg5[%c1_56, %c2_57, %c0_58] : memref<22x22x8xf32, #tpu.memory_space<vmem>>, vector<16x16x8xf32>
    %c9 = arith.constant 9 : index
    %c0_59 = arith.constant 0 : index
    %c0_60 = arith.constant 0 : index
    %53 = vector.load %arg1[%c9, %c0_59, %c0_60] : memref<49x1x8xf32, #tpu.memory_space<vmem>>, vector<1x1x8xf32>
    %54 = vector.broadcast %53 : vector<1x1x8xf32> to vector<16x16x8xf32>
    %55 = arith.mulf %52, %54 : vector<16x16x8xf32>
    %56 = arith.addf %51, %55 : vector<16x16x8xf32>
    %c1_61 = arith.constant 1 : index
    %c3_62 = arith.constant 3 : index
    %c0_63 = arith.constant 0 : index
    %57 = vector.load %arg5[%c1_61, %c3_62, %c0_63] : memref<22x22x8xf32, #tpu.memory_space<vmem>>, vector<16x16x8xf32>
    %c10 = arith.constant 10 : index
    %c0_64 = arith.constant 0 : index
    %c0_65 = arith.constant 0 : index
    %58 = vector.load %arg1[%c10, %c0_64, %c0_65] : memref<49x1x8xf32, #tpu.memory_space<vmem>>, vector<1x1x8xf32>
    %59 = vector.broadcast %58 : vector<1x1x8xf32> to vector<16x16x8xf32>
    %60 = arith.mulf %57, %59 : vector<16x16x8xf32>
    %61 = arith.addf %56, %60 : vector<16x16x8xf32>
    %c1_66 = arith.constant 1 : index
    %c4_67 = arith.constant 4 : index
    %c0_68 = arith.constant 0 : index
    %62 = vector.load %arg5[%c1_66, %c4_67, %c0_68] : memref<22x22x8xf32, #tpu.memory_space<vmem>>, vector<16x16x8xf32>
    %c11 = arith.constant 11 : index
    %c0_69 = arith.constant 0 : index
    %c0_70 = arith.constant 0 : index
    %63 = vector.load %arg1[%c11, %c0_69, %c0_70] : memref<49x1x8xf32, #tpu.memory_space<vmem>>, vector<1x1x8xf32>
    %64 = vector.broadcast %63 : vector<1x1x8xf32> to vector<16x16x8xf32>
    %65 = arith.mulf %62, %64 : vector<16x16x8xf32>
    %66 = arith.addf %61, %65 : vector<16x16x8xf32>
    %c1_71 = arith.constant 1 : index
    %c5_72 = arith.constant 5 : index
    %c0_73 = arith.constant 0 : index
    %67 = vector.load %arg5[%c1_71, %c5_72, %c0_73] : memref<22x22x8xf32, #tpu.memory_space<vmem>>, vector<16x16x8xf32>
    %c12 = arith.constant 12 : index
    %c0_74 = arith.constant 0 : index
    %c0_75 = arith.constant 0 : index
    %68 = vector.load %arg1[%c12, %c0_74, %c0_75] : memref<49x1x8xf32, #tpu.memory_space<vmem>>, vector<1x1x8xf32>
    %69 = vector.broadcast %68 : vector<1x1x8xf32> to vector<16x16x8xf32>
    %70 = arith.mulf %67, %69 : vector<16x16x8xf32>
    %71 = arith.addf %66, %70 : vector<16x16x8xf32>
    %c1_76 = arith.constant 1 : index
    %c6_77 = arith.constant 6 : index
    %c0_78 = arith.constant 0 : index
    %72 = vector.load %arg5[%c1_76, %c6_77, %c0_78] : memref<22x22x8xf32, #tpu.memory_space<vmem>>, vector<16x16x8xf32>
    %c13 = arith.constant 13 : index
    %c0_79 = arith.constant 0 : index
    %c0_80 = arith.constant 0 : index
    %73 = vector.load %arg1[%c13, %c0_79, %c0_80] : memref<49x1x8xf32, #tpu.memory_space<vmem>>, vector<1x1x8xf32>
    %74 = vector.broadcast %73 : vector<1x1x8xf32> to vector<16x16x8xf32>
    %75 = arith.mulf %72, %74 : vector<16x16x8xf32>
    %76 = arith.addf %71, %75 : vector<16x16x8xf32>
    %c2_81 = arith.constant 2 : index
    %c0_82 = arith.constant 0 : index
    %c0_83 = arith.constant 0 : index
    %77 = vector.load %arg5[%c2_81, %c0_82, %c0_83] : memref<22x22x8xf32, #tpu.memory_space<vmem>>, vector<16x16x8xf32>
    %c14 = arith.constant 14 : index
    %c0_84 = arith.constant 0 : index
    %c0_85 = arith.constant 0 : index
    %78 = vector.load %arg1[%c14, %c0_84, %c0_85] : memref<49x1x8xf32, #tpu.memory_space<vmem>>, vector<1x1x8xf32>
    %79 = vector.broadcast %78 : vector<1x1x8xf32> to vector<16x16x8xf32>
    %80 = arith.mulf %77, %79 : vector<16x16x8xf32>
    %81 = arith.addf %76, %80 : vector<16x16x8xf32>
    %c2_86 = arith.constant 2 : index
    %c1_87 = arith.constant 1 : index
    %c0_88 = arith.constant 0 : index
    %82 = vector.load %arg5[%c2_86, %c1_87, %c0_88] : memref<22x22x8xf32, #tpu.memory_space<vmem>>, vector<16x16x8xf32>
    %c15 = arith.constant 15 : index
    %c0_89 = arith.constant 0 : index
    %c0_90 = arith.constant 0 : index
    %83 = vector.load %arg1[%c15, %c0_89, %c0_90] : memref<49x1x8xf32, #tpu.memory_space<vmem>>, vector<1x1x8xf32>
    %84 = vector.broadcast %83 : vector<1x1x8xf32> to vector<16x16x8xf32>
    %85 = arith.mulf %82, %84 : vector<16x16x8xf32>
    %86 = arith.addf %81, %85 : vector<16x16x8xf32>
    %c2_91 = arith.constant 2 : index
    %c2_92 = arith.constant 2 : index
    %c0_93 = arith.constant 0 : index
    %87 = vector.load %arg5[%c2_91, %c2_92, %c0_93] : memref<22x22x8xf32, #tpu.memory_space<vmem>>, vector<16x16x8xf32>
    %c16 = arith.constant 16 : index
    %c0_94 = arith.constant 0 : index
    %c0_95 = arith.constant 0 : index
    %88 = vector.load %arg1[%c16, %c0_94, %c0_95] : memref<49x1x8xf32, #tpu.memory_space<vmem>>, vector<1x1x8xf32>
    %89 = vector.broadcast %88 : vector<1x1x8xf32> to vector<16x16x8xf32>
    %90 = arith.mulf %87, %89 : vector<16x16x8xf32>
    %91 = arith.addf %86, %90 : vector<16x16x8xf32>
    %c2_96 = arith.constant 2 : index
    %c3_97 = arith.constant 3 : index
    %c0_98 = arith.constant 0 : index
    %92 = vector.load %arg5[%c2_96, %c3_97, %c0_98] : memref<22x22x8xf32, #tpu.memory_space<vmem>>, vector<16x16x8xf32>
    %c17 = arith.constant 17 : index
    %c0_99 = arith.constant 0 : index
    %c0_100 = arith.constant 0 : index
    %93 = vector.load %arg1[%c17, %c0_99, %c0_100] : memref<49x1x8xf32, #tpu.memory_space<vmem>>, vector<1x1x8xf32>
    %94 = vector.broadcast %93 : vector<1x1x8xf32> to vector<16x16x8xf32>
    %95 = arith.mulf %92, %94 : vector<16x16x8xf32>
    %96 = arith.addf %91, %95 : vector<16x16x8xf32>
    %c2_101 = arith.constant 2 : index
    %c4_102 = arith.constant 4 : index
    %c0_103 = arith.constant 0 : index
    %97 = vector.load %arg5[%c2_101, %c4_102, %c0_103] : memref<22x22x8xf32, #tpu.memory_space<vmem>>, vector<16x16x8xf32>
    %c18 = arith.constant 18 : index
    %c0_104 = arith.constant 0 : index
    %c0_105 = arith.constant 0 : index
    %98 = vector.load %arg1[%c18, %c0_104, %c0_105] : memref<49x1x8xf32, #tpu.memory_space<vmem>>, vector<1x1x8xf32>
    %99 = vector.broadcast %98 : vector<1x1x8xf32> to vector<16x16x8xf32>
    %100 = arith.mulf %97, %99 : vector<16x16x8xf32>
    %101 = arith.addf %96, %100 : vector<16x16x8xf32>
    %c2_106 = arith.constant 2 : index
    %c5_107 = arith.constant 5 : index
    %c0_108 = arith.constant 0 : index
    %102 = vector.load %arg5[%c2_106, %c5_107, %c0_108] : memref<22x22x8xf32, #tpu.memory_space<vmem>>, vector<16x16x8xf32>
    %c19 = arith.constant 19 : index
    %c0_109 = arith.constant 0 : index
    %c0_110 = arith.constant 0 : index
    %103 = vector.load %arg1[%c19, %c0_109, %c0_110] : memref<49x1x8xf32, #tpu.memory_space<vmem>>, vector<1x1x8xf32>
    %104 = vector.broadcast %103 : vector<1x1x8xf32> to vector<16x16x8xf32>
    %105 = arith.mulf %102, %104 : vector<16x16x8xf32>
    %106 = arith.addf %101, %105 : vector<16x16x8xf32>
    %c2_111 = arith.constant 2 : index
    %c6_112 = arith.constant 6 : index
    %c0_113 = arith.constant 0 : index
    %107 = vector.load %arg5[%c2_111, %c6_112, %c0_113] : memref<22x22x8xf32, #tpu.memory_space<vmem>>, vector<16x16x8xf32>
    %c20 = arith.constant 20 : index
    %c0_114 = arith.constant 0 : index
    %c0_115 = arith.constant 0 : index
    %108 = vector.load %arg1[%c20, %c0_114, %c0_115] : memref<49x1x8xf32, #tpu.memory_space<vmem>>, vector<1x1x8xf32>
    %109 = vector.broadcast %108 : vector<1x1x8xf32> to vector<16x16x8xf32>
    %110 = arith.mulf %107, %109 : vector<16x16x8xf32>
    %111 = arith.addf %106, %110 : vector<16x16x8xf32>
    %c3_116 = arith.constant 3 : index
    %c0_117 = arith.constant 0 : index
    %c0_118 = arith.constant 0 : index
    %112 = vector.load %arg5[%c3_116, %c0_117, %c0_118] : memref<22x22x8xf32, #tpu.memory_space<vmem>>, vector<16x16x8xf32>
    %c21 = arith.constant 21 : index
    %c0_119 = arith.constant 0 : index
    %c0_120 = arith.constant 0 : index
    %113 = vector.load %arg1[%c21, %c0_119, %c0_120] : memref<49x1x8xf32, #tpu.memory_space<vmem>>, vector<1x1x8xf32>
    %114 = vector.broadcast %113 : vector<1x1x8xf32> to vector<16x16x8xf32>
    %115 = arith.mulf %112, %114 : vector<16x16x8xf32>
    %116 = arith.addf %111, %115 : vector<16x16x8xf32>
    %c3_121 = arith.constant 3 : index
    %c1_122 = arith.constant 1 : index
    %c0_123 = arith.constant 0 : index
    %117 = vector.load %arg5[%c3_121, %c1_122, %c0_123] : memref<22x22x8xf32, #tpu.memory_space<vmem>>, vector<16x16x8xf32>
    %c22 = arith.constant 22 : index
    %c0_124 = arith.constant 0 : index
    %c0_125 = arith.constant 0 : index
    %118 = vector.load %arg1[%c22, %c0_124, %c0_125] : memref<49x1x8xf32, #tpu.memory_space<vmem>>, vector<1x1x8xf32>
    %119 = vector.broadcast %118 : vector<1x1x8xf32> to vector<16x16x8xf32>
    %120 = arith.mulf %117, %119 : vector<16x16x8xf32>
    %121 = arith.addf %116, %120 : vector<16x16x8xf32>
    %c3_126 = arith.constant 3 : index
    %c2_127 = arith.constant 2 : index
    %c0_128 = arith.constant 0 : index
    %122 = vector.load %arg5[%c3_126, %c2_127, %c0_128] : memref<22x22x8xf32, #tpu.memory_space<vmem>>, vector<16x16x8xf32>
    %c23 = arith.constant 23 : index
    %c0_129 = arith.constant 0 : index
    %c0_130 = arith.constant 0 : index
    %123 = vector.load %arg1[%c23, %c0_129, %c0_130] : memref<49x1x8xf32, #tpu.memory_space<vmem>>, vector<1x1x8xf32>
    %124 = vector.broadcast %123 : vector<1x1x8xf32> to vector<16x16x8xf32>
    %125 = arith.mulf %122, %124 : vector<16x16x8xf32>
    %126 = arith.addf %121, %125 : vector<16x16x8xf32>
    %c3_131 = arith.constant 3 : index
    %c3_132 = arith.constant 3 : index
    %c0_133 = arith.constant 0 : index
    %127 = vector.load %arg5[%c3_131, %c3_132, %c0_133] : memref<22x22x8xf32, #tpu.memory_space<vmem>>, vector<16x16x8xf32>
    %c24 = arith.constant 24 : index
    %c0_134 = arith.constant 0 : index
    %c0_135 = arith.constant 0 : index
    %128 = vector.load %arg1[%c24, %c0_134, %c0_135] : memref<49x1x8xf32, #tpu.memory_space<vmem>>, vector<1x1x8xf32>
    %129 = vector.broadcast %128 : vector<1x1x8xf32> to vector<16x16x8xf32>
    %130 = arith.mulf %127, %129 : vector<16x16x8xf32>
    %131 = arith.addf %126, %130 : vector<16x16x8xf32>
    %c3_136 = arith.constant 3 : index
    %c4_137 = arith.constant 4 : index
    %c0_138 = arith.constant 0 : index
    %132 = vector.load %arg5[%c3_136, %c4_137, %c0_138] : memref<22x22x8xf32, #tpu.memory_space<vmem>>, vector<16x16x8xf32>
    %c25 = arith.constant 25 : index
    %c0_139 = arith.constant 0 : index
    %c0_140 = arith.constant 0 : index
    %133 = vector.load %arg1[%c25, %c0_139, %c0_140] : memref<49x1x8xf32, #tpu.memory_space<vmem>>, vector<1x1x8xf32>
    %134 = vector.broadcast %133 : vector<1x1x8xf32> to vector<16x16x8xf32>
    %135 = arith.mulf %132, %134 : vector<16x16x8xf32>
    %136 = arith.addf %131, %135 : vector<16x16x8xf32>
    %c3_141 = arith.constant 3 : index
    %c5_142 = arith.constant 5 : index
    %c0_143 = arith.constant 0 : index
    %137 = vector.load %arg5[%c3_141, %c5_142, %c0_143] : memref<22x22x8xf32, #tpu.memory_space<vmem>>, vector<16x16x8xf32>
    %c26 = arith.constant 26 : index
    %c0_144 = arith.constant 0 : index
    %c0_145 = arith.constant 0 : index
    %138 = vector.load %arg1[%c26, %c0_144, %c0_145] : memref<49x1x8xf32, #tpu.memory_space<vmem>>, vector<1x1x8xf32>
    %139 = vector.broadcast %138 : vector<1x1x8xf32> to vector<16x16x8xf32>
    %140 = arith.mulf %137, %139 : vector<16x16x8xf32>
    %141 = arith.addf %136, %140 : vector<16x16x8xf32>
    %c3_146 = arith.constant 3 : index
    %c6_147 = arith.constant 6 : index
    %c0_148 = arith.constant 0 : index
    %142 = vector.load %arg5[%c3_146, %c6_147, %c0_148] : memref<22x22x8xf32, #tpu.memory_space<vmem>>, vector<16x16x8xf32>
    %c27 = arith.constant 27 : index
    %c0_149 = arith.constant 0 : index
    %c0_150 = arith.constant 0 : index
    %143 = vector.load %arg1[%c27, %c0_149, %c0_150] : memref<49x1x8xf32, #tpu.memory_space<vmem>>, vector<1x1x8xf32>
    %144 = vector.broadcast %143 : vector<1x1x8xf32> to vector<16x16x8xf32>
    %145 = arith.mulf %142, %144 : vector<16x16x8xf32>
    %146 = arith.addf %141, %145 : vector<16x16x8xf32>
    %c4_151 = arith.constant 4 : index
    %c0_152 = arith.constant 0 : index
    %c0_153 = arith.constant 0 : index
    %147 = vector.load %arg5[%c4_151, %c0_152, %c0_153] : memref<22x22x8xf32, #tpu.memory_space<vmem>>, vector<16x16x8xf32>
    %c28 = arith.constant 28 : index
    %c0_154 = arith.constant 0 : index
    %c0_155 = arith.constant 0 : index
    %148 = vector.load %arg1[%c28, %c0_154, %c0_155] : memref<49x1x8xf32, #tpu.memory_space<vmem>>, vector<1x1x8xf32>
    %149 = vector.broadcast %148 : vector<1x1x8xf32> to vector<16x16x8xf32>
    %150 = arith.mulf %147, %149 : vector<16x16x8xf32>
    %151 = arith.addf %146, %150 : vector<16x16x8xf32>
    %c4_156 = arith.constant 4 : index
    %c1_157 = arith.constant 1 : index
    %c0_158 = arith.constant 0 : index
    %152 = vector.load %arg5[%c4_156, %c1_157, %c0_158] : memref<22x22x8xf32, #tpu.memory_space<vmem>>, vector<16x16x8xf32>
    %c29 = arith.constant 29 : index
    %c0_159 = arith.constant 0 : index
    %c0_160 = arith.constant 0 : index
    %153 = vector.load %arg1[%c29, %c0_159, %c0_160] : memref<49x1x8xf32, #tpu.memory_space<vmem>>, vector<1x1x8xf32>
    %154 = vector.broadcast %153 : vector<1x1x8xf32> to vector<16x16x8xf32>
    %155 = arith.mulf %152, %154 : vector<16x16x8xf32>
    %156 = arith.addf %151, %155 : vector<16x16x8xf32>
    %c4_161 = arith.constant 4 : index
    %c2_162 = arith.constant 2 : index
    %c0_163 = arith.constant 0 : index
    %157 = vector.load %arg5[%c4_161, %c2_162, %c0_163] : memref<22x22x8xf32, #tpu.memory_space<vmem>>, vector<16x16x8xf32>
    %c30 = arith.constant 30 : index
    %c0_164 = arith.constant 0 : index
    %c0_165 = arith.constant 0 : index
    %158 = vector.load %arg1[%c30, %c0_164, %c0_165] : memref<49x1x8xf32, #tpu.memory_space<vmem>>, vector<1x1x8xf32>
    %159 = vector.broadcast %158 : vector<1x1x8xf32> to vector<16x16x8xf32>
    %160 = arith.mulf %157, %159 : vector<16x16x8xf32>
    %161 = arith.addf %156, %160 : vector<16x16x8xf32>
    %c4_166 = arith.constant 4 : index
    %c3_167 = arith.constant 3 : index
    %c0_168 = arith.constant 0 : index
    %162 = vector.load %arg5[%c4_166, %c3_167, %c0_168] : memref<22x22x8xf32, #tpu.memory_space<vmem>>, vector<16x16x8xf32>
    %c31 = arith.constant 31 : index
    %c0_169 = arith.constant 0 : index
    %c0_170 = arith.constant 0 : index
    %163 = vector.load %arg1[%c31, %c0_169, %c0_170] : memref<49x1x8xf32, #tpu.memory_space<vmem>>, vector<1x1x8xf32>
    %164 = vector.broadcast %163 : vector<1x1x8xf32> to vector<16x16x8xf32>
    %165 = arith.mulf %162, %164 : vector<16x16x8xf32>
    %166 = arith.addf %161, %165 : vector<16x16x8xf32>
    %c4_171 = arith.constant 4 : index
    %c4_172 = arith.constant 4 : index
    %c0_173 = arith.constant 0 : index
    %167 = vector.load %arg5[%c4_171, %c4_172, %c0_173] : memref<22x22x8xf32, #tpu.memory_space<vmem>>, vector<16x16x8xf32>
    %c32 = arith.constant 32 : index
    %c0_174 = arith.constant 0 : index
    %c0_175 = arith.constant 0 : index
    %168 = vector.load %arg1[%c32, %c0_174, %c0_175] : memref<49x1x8xf32, #tpu.memory_space<vmem>>, vector<1x1x8xf32>
    %169 = vector.broadcast %168 : vector<1x1x8xf32> to vector<16x16x8xf32>
    %170 = arith.mulf %167, %169 : vector<16x16x8xf32>
    %171 = arith.addf %166, %170 : vector<16x16x8xf32>
    %c4_176 = arith.constant 4 : index
    %c5_177 = arith.constant 5 : index
    %c0_178 = arith.constant 0 : index
    %172 = vector.load %arg5[%c4_176, %c5_177, %c0_178] : memref<22x22x8xf32, #tpu.memory_space<vmem>>, vector<16x16x8xf32>
    %c33 = arith.constant 33 : index
    %c0_179 = arith.constant 0 : index
    %c0_180 = arith.constant 0 : index
    %173 = vector.load %arg1[%c33, %c0_179, %c0_180] : memref<49x1x8xf32, #tpu.memory_space<vmem>>, vector<1x1x8xf32>
    %174 = vector.broadcast %173 : vector<1x1x8xf32> to vector<16x16x8xf32>
    %175 = arith.mulf %172, %174 : vector<16x16x8xf32>
    %176 = arith.addf %171, %175 : vector<16x16x8xf32>
    %c4_181 = arith.constant 4 : index
    %c6_182 = arith.constant 6 : index
    %c0_183 = arith.constant 0 : index
    %177 = vector.load %arg5[%c4_181, %c6_182, %c0_183] : memref<22x22x8xf32, #tpu.memory_space<vmem>>, vector<16x16x8xf32>
    %c34 = arith.constant 34 : index
    %c0_184 = arith.constant 0 : index
    %c0_185 = arith.constant 0 : index
    %178 = vector.load %arg1[%c34, %c0_184, %c0_185] : memref<49x1x8xf32, #tpu.memory_space<vmem>>, vector<1x1x8xf32>
    %179 = vector.broadcast %178 : vector<1x1x8xf32> to vector<16x16x8xf32>
    %180 = arith.mulf %177, %179 : vector<16x16x8xf32>
    %181 = arith.addf %176, %180 : vector<16x16x8xf32>
    %c5_186 = arith.constant 5 : index
    %c0_187 = arith.constant 0 : index
    %c0_188 = arith.constant 0 : index
    %182 = vector.load %arg5[%c5_186, %c0_187, %c0_188] : memref<22x22x8xf32, #tpu.memory_space<vmem>>, vector<16x16x8xf32>
    %c35 = arith.constant 35 : index
    %c0_189 = arith.constant 0 : index
    %c0_190 = arith.constant 0 : index
    %183 = vector.load %arg1[%c35, %c0_189, %c0_190] : memref<49x1x8xf32, #tpu.memory_space<vmem>>, vector<1x1x8xf32>
    %184 = vector.broadcast %183 : vector<1x1x8xf32> to vector<16x16x8xf32>
    %185 = arith.mulf %182, %184 : vector<16x16x8xf32>
    %186 = arith.addf %181, %185 : vector<16x16x8xf32>
    %c5_191 = arith.constant 5 : index
    %c1_192 = arith.constant 1 : index
    %c0_193 = arith.constant 0 : index
    %187 = vector.load %arg5[%c5_191, %c1_192, %c0_193] : memref<22x22x8xf32, #tpu.memory_space<vmem>>, vector<16x16x8xf32>
    %c36 = arith.constant 36 : index
    %c0_194 = arith.constant 0 : index
    %c0_195 = arith.constant 0 : index
    %188 = vector.load %arg1[%c36, %c0_194, %c0_195] : memref<49x1x8xf32, #tpu.memory_space<vmem>>, vector<1x1x8xf32>
    %189 = vector.broadcast %188 : vector<1x1x8xf32> to vector<16x16x8xf32>
    %190 = arith.mulf %187, %189 : vector<16x16x8xf32>
    %191 = arith.addf %186, %190 : vector<16x16x8xf32>
    %c5_196 = arith.constant 5 : index
    %c2_197 = arith.constant 2 : index
    %c0_198 = arith.constant 0 : index
    %192 = vector.load %arg5[%c5_196, %c2_197, %c0_198] : memref<22x22x8xf32, #tpu.memory_space<vmem>>, vector<16x16x8xf32>
    %c37 = arith.constant 37 : index
    %c0_199 = arith.constant 0 : index
    %c0_200 = arith.constant 0 : index
    %193 = vector.load %arg1[%c37, %c0_199, %c0_200] : memref<49x1x8xf32, #tpu.memory_space<vmem>>, vector<1x1x8xf32>
    %194 = vector.broadcast %193 : vector<1x1x8xf32> to vector<16x16x8xf32>
    %195 = arith.mulf %192, %194 : vector<16x16x8xf32>
    %196 = arith.addf %191, %195 : vector<16x16x8xf32>
    %c5_201 = arith.constant 5 : index
    %c3_202 = arith.constant 3 : index
    %c0_203 = arith.constant 0 : index
    %197 = vector.load %arg5[%c5_201, %c3_202, %c0_203] : memref<22x22x8xf32, #tpu.memory_space<vmem>>, vector<16x16x8xf32>
    %c38 = arith.constant 38 : index
    %c0_204 = arith.constant 0 : index
    %c0_205 = arith.constant 0 : index
    %198 = vector.load %arg1[%c38, %c0_204, %c0_205] : memref<49x1x8xf32, #tpu.memory_space<vmem>>, vector<1x1x8xf32>
    %199 = vector.broadcast %198 : vector<1x1x8xf32> to vector<16x16x8xf32>
    %200 = arith.mulf %197, %199 : vector<16x16x8xf32>
    %201 = arith.addf %196, %200 : vector<16x16x8xf32>
    %c5_206 = arith.constant 5 : index
    %c4_207 = arith.constant 4 : index
    %c0_208 = arith.constant 0 : index
    %202 = vector.load %arg5[%c5_206, %c4_207, %c0_208] : memref<22x22x8xf32, #tpu.memory_space<vmem>>, vector<16x16x8xf32>
    %c39 = arith.constant 39 : index
    %c0_209 = arith.constant 0 : index
    %c0_210 = arith.constant 0 : index
    %203 = vector.load %arg1[%c39, %c0_209, %c0_210] : memref<49x1x8xf32, #tpu.memory_space<vmem>>, vector<1x1x8xf32>
    %204 = vector.broadcast %203 : vector<1x1x8xf32> to vector<16x16x8xf32>
    %205 = arith.mulf %202, %204 : vector<16x16x8xf32>
    %206 = arith.addf %201, %205 : vector<16x16x8xf32>
    %c5_211 = arith.constant 5 : index
    %c5_212 = arith.constant 5 : index
    %c0_213 = arith.constant 0 : index
    %207 = vector.load %arg5[%c5_211, %c5_212, %c0_213] : memref<22x22x8xf32, #tpu.memory_space<vmem>>, vector<16x16x8xf32>
    %c40 = arith.constant 40 : index
    %c0_214 = arith.constant 0 : index
    %c0_215 = arith.constant 0 : index
    %208 = vector.load %arg1[%c40, %c0_214, %c0_215] : memref<49x1x8xf32, #tpu.memory_space<vmem>>, vector<1x1x8xf32>
    %209 = vector.broadcast %208 : vector<1x1x8xf32> to vector<16x16x8xf32>
    %210 = arith.mulf %207, %209 : vector<16x16x8xf32>
    %211 = arith.addf %206, %210 : vector<16x16x8xf32>
    %c5_216 = arith.constant 5 : index
    %c6_217 = arith.constant 6 : index
    %c0_218 = arith.constant 0 : index
    %212 = vector.load %arg5[%c5_216, %c6_217, %c0_218] : memref<22x22x8xf32, #tpu.memory_space<vmem>>, vector<16x16x8xf32>
    %c41 = arith.constant 41 : index
    %c0_219 = arith.constant 0 : index
    %c0_220 = arith.constant 0 : index
    %213 = vector.load %arg1[%c41, %c0_219, %c0_220] : memref<49x1x8xf32, #tpu.memory_space<vmem>>, vector<1x1x8xf32>
    %214 = vector.broadcast %213 : vector<1x1x8xf32> to vector<16x16x8xf32>
    %215 = arith.mulf %212, %214 : vector<16x16x8xf32>
    %216 = arith.addf %211, %215 : vector<16x16x8xf32>
    %c6_221 = arith.constant 6 : index
    %c0_222 = arith.constant 0 : index
    %c0_223 = arith.constant 0 : index
    %217 = vector.load %arg5[%c6_221, %c0_222, %c0_223] : memref<22x22x8xf32, #tpu.memory_space<vmem>>, vector<16x16x8xf32>
    %c42 = arith.constant 42 : index
    %c0_224 = arith.constant 0 : index
    %c0_225 = arith.constant 0 : index
    %218 = vector.load %arg1[%c42, %c0_224, %c0_225] : memref<49x1x8xf32, #tpu.memory_space<vmem>>, vector<1x1x8xf32>
    %219 = vector.broadcast %218 : vector<1x1x8xf32> to vector<16x16x8xf32>
    %220 = arith.mulf %217, %219 : vector<16x16x8xf32>
    %221 = arith.addf %216, %220 : vector<16x16x8xf32>
    %c6_226 = arith.constant 6 : index
    %c1_227 = arith.constant 1 : index
    %c0_228 = arith.constant 0 : index
    %222 = vector.load %arg5[%c6_226, %c1_227, %c0_228] : memref<22x22x8xf32, #tpu.memory_space<vmem>>, vector<16x16x8xf32>
    %c43 = arith.constant 43 : index
    %c0_229 = arith.constant 0 : index
    %c0_230 = arith.constant 0 : index
    %223 = vector.load %arg1[%c43, %c0_229, %c0_230] : memref<49x1x8xf32, #tpu.memory_space<vmem>>, vector<1x1x8xf32>
    %224 = vector.broadcast %223 : vector<1x1x8xf32> to vector<16x16x8xf32>
    %225 = arith.mulf %222, %224 : vector<16x16x8xf32>
    %226 = arith.addf %221, %225 : vector<16x16x8xf32>
    %c6_231 = arith.constant 6 : index
    %c2_232 = arith.constant 2 : index
    %c0_233 = arith.constant 0 : index
    %227 = vector.load %arg5[%c6_231, %c2_232, %c0_233] : memref<22x22x8xf32, #tpu.memory_space<vmem>>, vector<16x16x8xf32>
    %c44 = arith.constant 44 : index
    %c0_234 = arith.constant 0 : index
    %c0_235 = arith.constant 0 : index
    %228 = vector.load %arg1[%c44, %c0_234, %c0_235] : memref<49x1x8xf32, #tpu.memory_space<vmem>>, vector<1x1x8xf32>
    %229 = vector.broadcast %228 : vector<1x1x8xf32> to vector<16x16x8xf32>
    %230 = arith.mulf %227, %229 : vector<16x16x8xf32>
    %231 = arith.addf %226, %230 : vector<16x16x8xf32>
    %c6_236 = arith.constant 6 : index
    %c3_237 = arith.constant 3 : index
    %c0_238 = arith.constant 0 : index
    %232 = vector.load %arg5[%c6_236, %c3_237, %c0_238] : memref<22x22x8xf32, #tpu.memory_space<vmem>>, vector<16x16x8xf32>
    %c45 = arith.constant 45 : index
    %c0_239 = arith.constant 0 : index
    %c0_240 = arith.constant 0 : index
    %233 = vector.load %arg1[%c45, %c0_239, %c0_240] : memref<49x1x8xf32, #tpu.memory_space<vmem>>, vector<1x1x8xf32>
    %234 = vector.broadcast %233 : vector<1x1x8xf32> to vector<16x16x8xf32>
    %235 = arith.mulf %232, %234 : vector<16x16x8xf32>
    %236 = arith.addf %231, %235 : vector<16x16x8xf32>
    %c6_241 = arith.constant 6 : index
    %c4_242 = arith.constant 4 : index
    %c0_243 = arith.constant 0 : index
    %237 = vector.load %arg5[%c6_241, %c4_242, %c0_243] : memref<22x22x8xf32, #tpu.memory_space<vmem>>, vector<16x16x8xf32>
    %c46 = arith.constant 46 : index
    %c0_244 = arith.constant 0 : index
    %c0_245 = arith.constant 0 : index
    %238 = vector.load %arg1[%c46, %c0_244, %c0_245] : memref<49x1x8xf32, #tpu.memory_space<vmem>>, vector<1x1x8xf32>
    %239 = vector.broadcast %238 : vector<1x1x8xf32> to vector<16x16x8xf32>
    %240 = arith.mulf %237, %239 : vector<16x16x8xf32>
    %241 = arith.addf %236, %240 : vector<16x16x8xf32>
    %c6_246 = arith.constant 6 : index
    %c5_247 = arith.constant 5 : index
    %c0_248 = arith.constant 0 : index
    %242 = vector.load %arg5[%c6_246, %c5_247, %c0_248] : memref<22x22x8xf32, #tpu.memory_space<vmem>>, vector<16x16x8xf32>
    %c47 = arith.constant 47 : index
    %c0_249 = arith.constant 0 : index
    %c0_250 = arith.constant 0 : index
    %243 = vector.load %arg1[%c47, %c0_249, %c0_250] : memref<49x1x8xf32, #tpu.memory_space<vmem>>, vector<1x1x8xf32>
    %244 = vector.broadcast %243 : vector<1x1x8xf32> to vector<16x16x8xf32>
    %245 = arith.mulf %242, %244 : vector<16x16x8xf32>
    %246 = arith.addf %241, %245 : vector<16x16x8xf32>
    %c6_251 = arith.constant 6 : index
    %c6_252 = arith.constant 6 : index
    %c0_253 = arith.constant 0 : index
    %247 = vector.load %arg5[%c6_251, %c6_252, %c0_253] : memref<22x22x8xf32, #tpu.memory_space<vmem>>, vector<16x16x8xf32>
    %c48 = arith.constant 48 : index
    %c0_254 = arith.constant 0 : index
    %c0_255 = arith.constant 0 : index
    %248 = vector.load %arg1[%c48, %c0_254, %c0_255] : memref<49x1x8xf32, #tpu.memory_space<vmem>>, vector<1x1x8xf32>
    %249 = vector.broadcast %248 : vector<1x1x8xf32> to vector<16x16x8xf32>
    %250 = arith.mulf %247, %249 : vector<16x16x8xf32>
    %251 = arith.addf %246, %250 : vector<16x16x8xf32>
    %c0_256 = arith.constant 0 : index
    %c0_257 = arith.constant 0 : index
    %c0_258 = arith.constant 0 : index
    %252 = vector.load %arg4[%c0_256, %c0_257, %c0_258] : memref<16x16x8xf32, #tpu.memory_space<vmem>>, vector<16x16x8xf32>
    tpu.vector_store %arg4[%c0_256, %c0_257, %c0_258], %251 {strides = array<i32>} : memref<16x16x8xf32, #tpu.memory_space<vmem>>, vector<16x16x8xf32>,
    %cst_259 = arith.constant 0xFF800000 : f32
    %253 = vector.broadcast %cst_259 : f32 to vector<1x18x8xf32>
    %cst_260 = arith.constant 0xFF800000 : f32
    %254 = vector.broadcast %cst_260 : f32 to vector<18x1x8xf32>
    %c2_261 = arith.constant 2 : index
    %c2_262 = arith.constant 2 : index
    %c0_263 = arith.constant 0 : index
    %255 = vector.load %arg5[%c2_261, %c2_262, %c0_263] : memref<22x22x8xf32, #tpu.memory_space<vmem>>, vector<1x18x8xf32>
    tpu.vector_store %arg5[%c2_261, %c2_262, %c0_263], %253 {strides = array<i32>} : memref<22x22x8xf32, #tpu.memory_space<vmem>>, vector<1x18x8xf32>,
    %c19_264 = arith.constant 19 : index
    %c2_265 = arith.constant 2 : index
    %c0_266 = arith.constant 0 : index
    %256 = vector.load %arg5[%c19_264, %c2_265, %c0_266] : memref<22x22x8xf32, #tpu.memory_space<vmem>>, vector<1x18x8xf32>
    tpu.vector_store %arg5[%c19_264, %c2_265, %c0_266], %253 {strides = array<i32>} : memref<22x22x8xf32, #tpu.memory_space<vmem>>, vector<1x18x8xf32>,
    %c2_267 = arith.constant 2 : index
    %c2_268 = arith.constant 2 : index
    %c0_269 = arith.constant 0 : index
    %257 = vector.load %arg5[%c2_267, %c2_268, %c0_269] : memref<22x22x8xf32, #tpu.memory_space<vmem>>, vector<18x1x8xf32>
    tpu.vector_store %arg5[%c2_267, %c2_268, %c0_269], %254 {strides = array<i32>} : memref<22x22x8xf32, #tpu.memory_space<vmem>>, vector<18x1x8xf32>,
    %c2_270 = arith.constant 2 : index
    %c19_271 = arith.constant 19 : index
    %c0_272 = arith.constant 0 : index
    %258 = vector.load %arg5[%c2_270, %c19_271, %c0_272] : memref<22x22x8xf32, #tpu.memory_space<vmem>>, vector<18x1x8xf32>
    tpu.vector_store %arg5[%c2_270, %c19_271, %c0_272], %254 {strides = array<i32>} : memref<22x22x8xf32, #tpu.memory_space<vmem>>, vector<18x1x8xf32>,
    %c2_273 = arith.constant 2 : index
    %c2_274 = arith.constant 2 : index
    %c0_275 = arith.constant 0 : index
    %259 = vector.load %arg5[%c2_273, %c2_274, %c0_275] : memref<22x22x8xf32, #tpu.memory_space<vmem>>, vector<18x16x8xf32>
    %c2_276 = arith.constant 2 : index
    %c3_277 = arith.constant 3 : index
    %c0_278 = arith.constant 0 : index
    %260 = vector.load %arg5[%c2_276, %c3_277, %c0_278] : memref<22x22x8xf32, #tpu.memory_space<vmem>>, vector<18x16x8xf32>
    %261 = arith.maximumf %259, %260 : vector<18x16x8xf32>
    %c2_279 = arith.constant 2 : index
    %c4_280 = arith.constant 4 : index
    %c0_281 = arith.constant 0 : index
    %262 = vector.load %arg5[%c2_279, %c4_280, %c0_281] : memref<22x22x8xf32, #tpu.memory_space<vmem>>, vector<18x16x8xf32>
    %263 = arith.maximumf %261, %262 : vector<18x16x8xf32>
    %264 = vector.extract_strided_slice %263 {offsets = [0, 0, 0], sizes = [16, 16, 8], strides = [1, 1, 1]} : vector<18x16x8xf32> to vector<16x16x8xf32>
    %265 = vector.extract_strided_slice %263 {offsets = [1, 0, 0], sizes = [16, 16, 8], strides = [1, 1, 1]} : vector<18x16x8xf32> to vector<16x16x8xf32>
    %266 = arith.maximumf %264, %265 : vector<16x16x8xf32>
    %267 = vector.extract_strided_slice %263 {offsets = [2, 0, 0], sizes = [16, 16, 8], strides = [1, 1, 1]} : vector<18x16x8xf32> to vector<16x16x8xf32>
    %268 = arith.maximumf %266, %267 : vector<16x16x8xf32>
    %c0_282 = arith.constant 0 : index
    %c0_283 = arith.constant 0 : index
    %c0_284 = arith.constant 0 : index
    %269 = vector.load %arg4[%c0_282, %c0_283, %c0_284] : memref<16x16x8xf32, #tpu.memory_space<vmem>>, vector<16x16x8xf32>
    %270 = arith.addf %269, %268 : vector<16x16x8xf32>
    %cst_285 = arith.constant 0.000000e+00 : f32
    %271 = vector.broadcast %cst_285 : f32 to vector<16x16x8xf32>
    %272 = arith.maximumf %270, %271 : vector<16x16x8xf32>
    %c0_286 = arith.constant 0 : index
    %c0_287 = arith.constant 0 : index
    %c0_288 = arith.constant 0 : index
    %273 = vector.load %arg4[%c0_286, %c0_287, %c0_288] : memref<16x16x8xf32, #tpu.memory_space<vmem>>, vector<16x16x8xf32>
    tpu.vector_store %arg4[%c0_286, %c0_287, %c0_288], %272 {strides = array<i32>} : memref<16x16x8xf32, #tpu.memory_space<vmem>>, vector<16x16x8xf32>,
    return
  }
  func.func @transform_0(%arg0: i32) -> (i32, i32, i32) {
    %c0_i32 = arith.constant 0 : i32
    %c0_i32_0 = arith.constant 0 : i32
    %c0_i32_1 = arith.constant 0 : i32
    return %c0_i32, %c0_i32_0, %arg0 : i32, i32, i32
  }
  func.func @transform_1(%arg0: i32) -> (i32, i32) {
    %c0_i32 = arith.constant 0 : i32
    %c0_i32_0 = arith.constant 0 : i32
    return %c0_i32, %arg0 : i32, i32
  }
  func.func @transform_2(%arg0: i32) -> (i32, i32, i32) {
    %c0_i32 = arith.constant 0 : i32
    %c0_i32_0 = arith.constant 0 : i32
    %c0_i32_1 = arith.constant 0 : i32
    return %c0_i32, %c0_i32_0, %arg0 : i32, i32, i32
  }
  func.func @transform_3(%arg0: i32) -> (i32, i32, i32) {
    %c0_i32 = arith.constant 0 : i32
    %c0_i32_0 = arith.constant 0 : i32
    %c0_i32_1 = arith.constant 0 : i32
    return %c0_i32, %c0_i32_0, %arg0 : i32, i32, i32
  }
}

</mosaic_0001>

<llo_original>
// kernel: tile.18
$region0: #{tile.18}
  #allocation0 [shape = 's32[1]{0}', space=sflag, size = 0x4, scoped, tag = 'scoped memory for tile.18']
  %s0 = inlined_call_operand.vmem [shape: f32[4], index: 0, kind: input, shape index: {}]
  %s1 = inlined_call_operand.vmem [shape: f32[2,4], index: 1, kind: output, shape index: {}]
  // Predicated region
  $region2: #{tile.18} parent=0 // pred_check
    _
  $region3: #{tile.18} parent=0 // pred_check_branch
    %3 = sbr.rel (0) target = $region5
  $region4: #{tile.18} parent=0 // pred_region
    _
  $region5: #{tile.18} parent=0 // pred_fallthru
    _
  %v4 = vld [vmem:[%s0] ss:$0 sm:$0xff]
  %5 = vst [vmem:[%s1] sm:$0x3] %v4

// kernel: tile.19
$region0: #{tile.19}
  %s0 = inlined_call_operand.vmem [shape: f32[2,4], index: 0, kind: input, shape index: {}]
  %s1 = inlined_call_operand.vmem [shape: f32[1,8], index: 1, kind: output, shape index: {}]
  $region1: #{tile.19} parent=0
    #allocation0 [shape = 'u8[4096]{0}', space=vmem, size = 0x1000, scoped, tag = 'scoped mem for output reshape']
    #allocation1 [shape = 'u8[4096]{0}', space=vmem, size = 0x1000, scoped, tag = 'scoped mem for input reshape']
    %s3 = sshllo.u32 0, 2
    %v4 = vld [vmem:[%s0] sm:%s3]
    %5 = vst [vmem:[#allocation1] sm:%s3] %v4
    %v6 = vld [vmem:[#allocation1] sm:$0x1]
    %vm7 = vcmask 31744
    %8 = vst.msk [vmem:[#allocation0] sm:$0x1] %vm7, %v6
    %s9 = scalar_lea.vmem [#allocation1], 1
    %v10 = vld [vmem:[%s9] sm:$0x1]
    %11 = vrot.lane.b32.xlu0 %v10, 4
    %v12 = vpop.permute.xlu0 %11
    %vm13 = vcmask 64544
    %14 = vst.msk [vmem:[#allocation0] sm:$0x1] %vm13, %v12
    %s16 = sshllo.u32 0, 1
    %v18 = vld [vmem:[#allocation0] sm:%s16]
    %s19 = sshllo.u32 0, 1
    %20 = vst [vmem:[%s1] sm:%s19] %v18

// kernel: cella_forward.1
$region0: #{cella_forward.1}
  #allocation0 [shape = 'u32[]', space=smem, size = 0x4, offset = 0x4, fixed_abs, tag = 'smem constant byte address 0x4 - core index']
  #allocation1 [shape = 'u32[144,128]{1,0:T(1,128)}', space=vmem, size = 0x12000, scoped, tag = 'internal scratch']
  #allocation2 [shape = 'f32[22,22,8]{2,1,0:T(8,128)}', space=vmem, size = 0x42000, scoped, tag = 'scratch operand']
  %s0 = inlined_call_operand.vmem [shape: f32[49,1,8], index: 0, kind: input, shape index: {}]
  %s1 = inlined_call_operand.vmem [shape: f32[1,8], index: 1, kind: input, shape index: {}]
  %s2 = inlined_call_operand.vmem [shape: f32[16,16,8], index: 2, kind: input, shape index: {}]
  %s3 = inlined_call_operand.vmem [shape: f32[16,16,8], index: 3, kind: output, shape index: {}]
  %s4 = sld [smem:[#allocation0]]
  $region22: #{cella_forward.1} parent=0
    _
  %s6 = ssub.s32 1, %s4
  %s7 = scalar_select 0, %s6, %s4
  // Predicated region
  $region2: #{cella_forward.1} parent=0 // pred_check
    _
  $region3: #{cella_forward.1} parent=0 // pred_check_branch
    %9 = sbr.rel (0) target = $region5
  $region4: #{cella_forward.1} parent=0 // pred_region
    _
  $region5: #{cella_forward.1} parent=0 // pred_fallthru
    _
  // Predicated region
  $region6: #{cella_forward.1} parent=0 // pred_check
    _
  $region7: #{cella_forward.1} parent=0 // pred_check_branch
    %11 = sbr.rel (0) target = $region9
  $region8: #{cella_forward.1} parent=0 // pred_region
    _
  $region9: #{cella_forward.1} parent=0 // pred_fallthru
    _
  // Predicated region
  $region10: #{cella_forward.1} parent=0 // pred_check
    _
  $region11: #{cella_forward.1} parent=0 // pred_check_branch
    %13 = sbr.rel (0) target = $region13
  $region12: #{cella_forward.1} parent=0 // pred_region
    _
  $region13: #{cella_forward.1} parent=0 // pred_fallthru
    _
  %vm14 = vcmask 64512
  %15 = vst.msk [vmem:[#allocation2] sm:$0xff] %vm14, 0.0
  %16 = vst.msk [vmem:[#allocation2 + $0x8] sm:$0xff] %vm14, 0.0
  %vm17 = vcmask 62464
  %18 = vst.msk [vmem:[#allocation2 + $0x10] sm:$0x3f] %vm17, 0.0
  %19 = vst.msk [vmem:[#allocation2 + $0x18] sm:$0xff] %vm14, 0.0
  %20 = vst.msk [vmem:[#allocation2 + $0x20] sm:$0xff] %vm14, 0.0
  %21 = vst.msk [vmem:[#allocation2 + $0x28] sm:$0x3f] %vm17, 0.0
  %22 = vst.msk [vmem:[#allocation2 + $0x30] sm:$0xff] %vm14, 0.0
  %23 = vst.msk [vmem:[#allocation2 + $0x38] sm:$0xff] %vm14, 0.0
  %24 = vst.msk [vmem:[#allocation2 + $0x40] sm:$0x3f] %vm17, 0.0
  %25 = vst.msk [vmem:[#allocation2 + $0x48] sm:$0xff] %vm14, 0.0
  %26 = vst.msk [vmem:[#allocation2 + $0x50] sm:$0xff] %vm14, 0.0
  %27 = vst.msk [vmem:[#allocation2 + $0x58] sm:$0x3f] %vm17, 0.0
  %28 = vst.msk [vmem:[#allocation2 + $0x60] sm:$0xff] %vm14, 0.0
  %29 = vst.msk [vmem:[#allocation2 + $0x68] sm:$0xff] %vm14, 0.0
  %30 = vst.msk [vmem:[#allocation2 + $0x70] sm:$0x3f] %vm17, 0.0
  %31 = vst.msk [vmem:[#allocation2 + $0x78] sm:$0xff] %vm14, 0.0
  %32 = vst.msk [vmem:[#allocation2 + $0x80] sm:$0xff] %vm14, 0.0
  %33 = vst.msk [vmem:[#allocation2 + $0x88] sm:$0x3f] %vm17, 0.0
  %34 = vst.msk [vmem:[#allocation2 + $0x90] sm:$0xff] %vm14, 0.0
  %35 = vst.msk [vmem:[#allocation2 + $0x98] sm:$0xff] %vm14, 0.0
  %36 = vst.msk [vmem:[#allocation2 + $0xa0] sm:$0x3f] %vm17, 0.0
  %37 = vst.msk [vmem:[#allocation2 + $0xa8] sm:$0xff] %vm14, 0.0
  %38 = vst.msk [vmem:[#allocation2 + $0xb0] sm:$0xff] %vm14, 0.0
  %39 = vst.msk [vmem:[#allocation2 + $0xb8] sm:$0x3f] %vm17, 0.0
  %40 = vst.msk [vmem:[#allocation2 + $0xc0] sm:$0xff] %vm14, 0.0
  %41 = vst.msk [vmem:[#allocation2 + $0xc8] sm:$0xff] %vm14, 0.0
  %42 = vst.msk [vmem:[#allocation2 + $0xd0] sm:$0x3f] %vm17, 0.0
  %43 = vst.msk [vmem:[#allocation2 + $0xd8] sm:$0xff] %vm14, 0.0
  %44 = vst.msk [vmem:[#allocation2 + $0xe0] sm:$0xff] %vm14, 0.0
  %45 = vst.msk [vmem:[#allocation2 + $0xe8] sm:$0x3f] %vm17, 0.0
  %46 = vst.msk [vmem:[#allocation2 + $0xf0] sm:$0xff] %vm14, 0.0
  %47 = vst.msk [vmem:[#allocation2 + $0xf8] sm:$0xff] %vm14, 0.0
  %48 = vst.msk [vmem:[#allocation2 + $0x100] sm:$0x3f] %vm17, 0.0
  %49 = vst.msk [vmem:[#allocation2 + $0x108] sm:$0xff] %vm14, 0.0
  %50 = vst.msk [vmem:[#allocation2 + $0x110] sm:$0xff] %vm14, 0.0
  %51 = vst.msk [vmem:[#allocation2 + $0x118] sm:$0x3f] %vm17, 0.0
  %52 = vst.msk [vmem:[#allocation2 + $0x120] sm:$0xff] %vm14, 0.0
  %53 = vst.msk [vmem:[#allocation2 + $0x128] sm:$0xff] %vm14, 0.0
  %54 = vst.msk [vmem:[#allocation2 + $0x130] sm:$0x3f] %vm17, 0.0
  %55 = vst.msk [vmem:[#allocation2 + $0x138] sm:$0xff] %vm14, 0.0
  %56 = vst.msk [vmem:[#allocation2 + $0x140] sm:$0xff] %vm14, 0.0
  %57 = vst.msk [vmem:[#allocation2 + $0x148] sm:$0x3f] %vm17, 0.0
  %58 = vst.msk [vmem:[#allocation2 + $0x150] sm:$0xff] %vm14, 0.0
  %59 = vst.msk [vmem:[#allocation2 + $0x158] sm:$0xff] %vm14, 0.0
  %60 = vst.msk [vmem:[#allocation2 + $0x160] sm:$0x3f] %vm17, 0.0
  %61 = vst.msk [vmem:[#allocation2 + $0x168] sm:$0xff] %vm14, 0.0
  %62 = vst.msk [vmem:[#allocation2 + $0x170] sm:$0xff] %vm14, 0.0
  %63 = vst.msk [vmem:[#allocation2 + $0x178] sm:$0x3f] %vm17, 0.0
  %64 = vst.msk [vmem:[#allocation2 + $0x180] sm:$0xff] %vm14, 0.0
  %65 = vst.msk [vmem:[#allocation2 + $0x188] sm:$0xff] %vm14, 0.0
  %66 = vst.msk [vmem:[#allocation2 + $0x190] sm:$0x3f] %vm17, 0.0
  %67 = vst.msk [vmem:[#allocation2 + $0x198] sm:$0xff] %vm14, 0.0
  %68 = vst.msk [vmem:[#allocation2 + $0x1a0] sm:$0xff] %vm14, 0.0
  %69 = vst.msk [vmem:[#allocation2 + $0x1a8] sm:$0x3f] %vm17, 0.0
  %70 = vst.msk [vmem:[#allocation2 + $0x1b0] sm:$0xff] %vm14, 0.0
  %71 = vst.msk [vmem:[#allocation2 + $0x1b8] sm:$0xff] %vm14, 0.0
  %72 = vst.msk [vmem:[#allocation2 + $0x1c0] sm:$0x3f] %vm17, 0.0
  %73 = vst.msk [vmem:[#allocation2 + $0x1c8] sm:$0xff] %vm14, 0.0
  %74 = vst.msk [vmem:[#allocation2 + $0x1d0] sm:$0xff] %vm14, 0.0
  %75 = vst.msk [vmem:[#allocation2 + $0x1d8] sm:$0x3f] %vm17, 0.0
  %76 = vst.msk [vmem:[#allocation2 + $0x1e0] sm:$0xff] %vm14, 0.0
  %77 = vst.msk [vmem:[#allocation2 + $0x1e8] sm:$0xff] %vm14, 0.0
  %78 = vst.msk [vmem:[#allocation2 + $0x1f0] sm:$0x3f] %vm17, 0.0
  %79 = vst.msk [vmem:[#allocation2 + $0x1f8] sm:$0xff] %vm14, 0.0
  %80 = vst.msk [vmem:[#allocation2 + $0x200] sm:$0xff] %vm14, 0.0
  %81 = vst.msk [vmem:[#allocation2 + $0x208] sm:$0x3f] %vm17, 0.0
  %v82 = vld [vmem:[%s2] sm:$0xff]
  %v83 = vld [vmem:[%s2 + $0x8] sm:$0xff]
  %v84 = vld [vmem:[%s2 + $0x10] sm:$0xff]
  %v85 = vld [vmem:[%s2 + $0x18] sm:$0xff]
  %v86 = vld [vmem:[%s2 + $0x20] sm:$0xff]
  %v87 = vld [vmem:[%s2 + $0x28] sm:$0xff]
  %v88 = vld [vmem:[%s2 + $0x30] sm:$0xff]
  %v89 = vld [vmem:[%s2 + $0x38] sm:$0xff]
  %v90 = vld [vmem:[%s2 + $0x40] sm:$0xff]
  %v91 = vld [vmem:[%s2 + $0x48] sm:$0xff]
  %v92 = vld [vmem:[%s2 + $0x50] sm:$0xff]
  %v93 = vld [vmem:[%s2 + $0x58] sm:$0xff]
  %v94 = vld [vmem:[%s2 + $0x60] sm:$0xff]
  %v95 = vld [vmem:[%s2 + $0x68] sm:$0xff]
  %v96 = vld [vmem:[%s2 + $0x70] sm:$0xff]
  %v97 = vld [vmem:[%s2 + $0x78] sm:$0xff]
  %v98 = vld [vmem:[%s2 + $0x80] sm:$0xff]
  %v99 = vld [vmem:[%s2 + $0x88] sm:$0xff]
  %v100 = vld [vmem:[%s2 + $0x90] sm:$0xff]
  %v101 = vld [vmem:[%s2 + $0x98] sm:$0xff]
  %v102 = vld [vmem:[%s2 + $0xa0] sm:$0xff]
  %v103 = vld [vmem:[%s2 + $0xa8] sm:$0xff]
  %v104 = vld [vmem:[%s2 + $0xb0] sm:$0xff]
  %v105 = vld [vmem:[%s2 + $0xb8] sm:$0xff]
  %v106 = vld [vmem:[%s2 + $0xc0] sm:$0xff]
  %v107 = vld [vmem:[%s2 + $0xc8] sm:$0xff]
  %v108 = vld [vmem:[%s2 + $0xd0] sm:$0xff]
  %v109 = vld [vmem:[%s2 + $0xd8] sm:$0xff]
  %v110 = vld [vmem:[%s2 + $0xe0] sm:$0xff]
  %v111 = vld [vmem:[%s2 + $0xe8] sm:$0xff]
  %v112 = vld [vmem:[%s2 + $0xf0] sm:$0xff]
  %v113 = vld [vmem:[%s2 + $0xf8] sm:$0xff]
  %s114 = scalar_lea.vmem [#allocation2], 72
  %115 = vst.msk [vmem:[%s114 + $0x3] sm:$0xff] %vm14, %v82
  %116 = vst.msk [vmem:[%s114 + $0xb] sm:$0xff] %vm14, %v83
  %117 = vst.msk [vmem:[%s114 + $0x1b] sm:$0xff] %vm14, %v84
  %118 = vst.msk [vmem:[%s114 + $0x23] sm:$0xff] %vm14, %v85
  %119 = vst.msk [vmem:[%s114 + $0x33] sm:$0xff] %vm14, %v86
  %120 = vst.msk [vmem:[%s114 + $0x3b] sm:$0xff] %vm14, %v87
  %121 = vst.msk [vmem:[%s114 + $0x4b] sm:$0xff] %vm14, %v88
  %122 = vst.msk [vmem:[%s114 + $0x53] sm:$0xff] %vm14, %v89
  %123 = vst.msk [vmem:[%s114 + $0x63] sm:$0xff] %vm14, %v90
  %124 = vst.msk [vmem:[%s114 + $0x6b] sm:$0xff] %vm14, %v91
  %125 = vst.msk [vmem:[%s114 + $0x7b] sm:$0xff] %vm14, %v92
  %126 = vst.msk [vmem:[%s114 + $0x83] sm:$0xff] %vm14, %v93
  %127 = vst.msk [vmem:[%s114 + $0x93] sm:$0xff] %vm14, %v94
  %128 = vst.msk [vmem:[%s114 + $0x9b] sm:$0xff] %vm14, %v95
  %129 = vst.msk [vmem:[%s114 + $0xab] sm:$0xff] %vm14, %v96
  %130 = vst.msk [vmem:[%s114 + $0xb3] sm:$0xff] %vm14, %v97
  %131 = vst.msk [vmem:[%s114 + $0xc3] sm:$0xff] %vm14, %v98
  %132 = vst.msk [vmem:[%s114 + $0xcb] sm:$0xff] %vm14, %v99
  %133 = vst.msk [vmem:[%s114 + $0xdb] sm:$0xff] %vm14, %v100
  %134 = vst.msk [vmem:[%s114 + $0xe3] sm:$0xff] %vm14, %v101
  %135 = vst.msk [vmem:[%s114 + $0xf3] sm:$0xff] %vm14, %v102
  %136 = vst.msk [vmem:[%s114 + $0xfb] sm:$0xff] %vm14, %v103
  %137 = vst.msk [vmem:[%s114 + $0x10b] sm:$0xff] %vm14, %v104
  %138 = vst.msk [vmem:[%s114 + $0x113] sm:$0xff] %vm14, %v105
  %139 = vst.msk [vmem:[%s114 + $0x123] sm:$0xff] %vm14, %v106
  %140 = vst.msk [vmem:[%s114 + $0x12b] sm:$0xff] %vm14, %v107
  %141 = vst.msk [vmem:[%s114 + $0x13b] sm:$0xff] %vm14, %v108
  %142 = vst.msk [vmem:[%s114 + $0x143] sm:$0xff] %vm14, %v109
  %143 = vst.msk [vmem:[%s114 + $0x153] sm:$0xff] %vm14, %v110
  %144 = vst.msk [vmem:[%s114 + $0x15b] sm:$0xff] %vm14, %v111
  %145 = vst.msk [vmem:[%s114 + $0x16b] sm:$0xff] %vm14, %v112
  %146 = vst.msk [vmem:[%s114 + $0x173] sm:$0xff] %vm14, %v113
  %v147 = vld [vmem:[%s1] sm:$0x1]
  %v149 = vlaneseq
  %v150 = vshrl.u32 %v149, 7
  %v151 = vsub.s32 0, %v150
  %v152 = vrot.slane %v147, %v151
  %v154 = vld [vmem:[#allocation2] sm:$0xff]
  %v155 = vld [vmem:[#allocation2 + $0x8] sm:$0xff]
  %v156 = vld [vmem:[#allocation2 + $0x18] sm:$0xff]
  %v157 = vld [vmem:[#allocation2 + $0x20] sm:$0xff]
  %v158 = vld [vmem:[#allocation2 + $0x30] sm:$0xff]
  %v159 = vld [vmem:[#allocation2 + $0x38] sm:$0xff]
  %v160 = vld [vmem:[#allocation2 + $0x48] sm:$0xff]
  %v161 = vld [vmem:[#allocation2 + $0x50] sm:$0xff]
  %v162 = vld [vmem:[#allocation2 + $0x60] sm:$0xff]
  %v163 = vld [vmem:[#allocation2 + $0x68] sm:$0xff]
  %v164 = vld [vmem:[#allocation2 + $0x78] sm:$0xff]
  %v165 = vld [vmem:[#allocation2 + $0x80] sm:$0xff]
  %v166 = vld [vmem:[#allocation2 + $0x90] sm:$0xff]
  %v167 = vld [vmem:[#allocation2 + $0x98] sm:$0xff]
  %v168 = vld [vmem:[#allocation2 + $0xa8] sm:$0xff]
  %v169 = vld [vmem:[#allocation2 + $0xb0] sm:$0xff]
  %v170 = vld [vmem:[#allocation2 + $0xc0] sm:$0xff]
  %v171 = vld [vmem:[#allocation2 + $0xc8] sm:$0xff]
  %v172 = vld [vmem:[#allocation2 + $0xd8] sm:$0xff]
  %v173 = vld [vmem:[#allocation2 + $0xe0] sm:$0xff]
  %v174 = vld [vmem:[#allocation2 + $0xf0] sm:$0xff]
  %v175 = vld [vmem:[#allocation2 + $0xf8] sm:$0xff]
  %v176 = vld [vmem:[#allocation2 + $0x108] sm:$0xff]
  %v177 = vld [vmem:[#allocation2 + $0x110] sm:$0xff]
  %v178 = vld [vmem:[#allocation2 + $0x120] sm:$0xff]
  %v179 = vld [vmem:[#allocation2 + $0x128] sm:$0xff]
  %v180 = vld [vmem:[#allocation2 + $0x138] sm:$0xff]
  %v181 = vld [vmem:[#allocation2 + $0x140] sm:$0xff]
  %v182 = vld [vmem:[#allocation2 + $0x150] sm:$0xff]
  %v183 = vld [vmem:[#allocation2 + $0x158] sm:$0xff]
  %v184 = vld [vmem:[#allocation2 + $0x168] sm:$0xff]
  %v185 = vld [vmem:[#allocation2 + $0x170] sm:$0xff]
  %v186 = vld [vmem:[%s0] sm:$0x1]
  %v188 = vlaneseq
  %v189 = vshrl.u32 %v188, 7
  %v190 = vsub.s32 0, %v189
  %v191 = vrot.slane %v186, %v190
  %v193 = vmul.f32 %v154, %v191
  %v194 = vmul.f32 %v155, %v191
  %v195 = vmul.f32 %v156, %v191
  %v196 = vmul.f32 %v157, %v191
  %v197 = vmul.f32 %v158, %v191
  %v198 = vmul.f32 %v159, %v191
  %v199 = vmul.f32 %v160, %v191
  %v200 = vmul.f32 %v161, %v191
  %v201 = vmul.f32 %v162, %v191
  %v202 = vmul.f32 %v163, %v191
  %v203 = vmul.f32 %v164, %v191
  %v204 = vmul.f32 %v165, %v191
  %v205 = vmul.f32 %v166, %v191
  %v206 = vmul.f32 %v167, %v191
  %v207 = vmul.f32 %v168, %v191
  %v208 = vmul.f32 %v169, %v191
  %v209 = vmul.f32 %v170, %v191
  %v210 = vmul.f32 %v171, %v191
  %v211 = vmul.f32 %v172, %v191
  %v212 = vmul.f32 %v173, %v191
  %v213 = vmul.f32 %v174, %v191
  %v214 = vmul.f32 %v175, %v191
  %v215 = vmul.f32 %v176, %v191
  %v216 = vmul.f32 %v177, %v191
  %v217 = vmul.f32 %v178, %v191
  %v218 = vmul.f32 %v179, %v191
  %v219 = vmul.f32 %v180, %v191
  %v220 = vmul.f32 %v181, %v191
  %v221 = vmul.f32 %v182, %v191
  %v222 = vmul.f32 %v183, %v191
  %v223 = vmul.f32 %v184, %v191
  %v224 = vmul.f32 %v185, %v191
  %v225 = vadd.f32 %v152, %v193
  %v226 = vadd.f32 %v152, %v194
  %v227 = vadd.f32 %v152, %v195
  %v228 = vadd.f32 %v152, %v196
  %v229 = vadd.f32 %v152, %v197
  %v230 = vadd.f32 %v152, %v198
  %v231 = vadd.f32 %v152, %v199
  %v232 = vadd.f32 %v152, %v200
  %v233 = vadd.f32 %v152, %v201
  %v234 = vadd.f32 %v152, %v202
  %v235 = vadd.f32 %v152, %v203
  %v236 = vadd.f32 %v152, %v204
  %v237 = vadd.f32 %v152, %v205
  %v238 = vadd.f32 %v152, %v206
  %v239 = vadd.f32 %v152, %v207
  %v240 = vadd.f32 %v152, %v208
  %v241 = vadd.f32 %v152, %v209
  %v242 = vadd.f32 %v152, %v210
  %v243 = vadd.f32 %v152, %v211
  %v244 = vadd.f32 %v152, %v212
  %v245 = vadd.f32 %v152, %v213
  %v246 = vadd.f32 %v152, %v214
  %v247 = vadd.f32 %v152, %v215
  %v248 = vadd.f32 %v152, %v216
  %v249 = vadd.f32 %v152, %v217
  %v250 = vadd.f32 %v152, %v218
  %v251 = vadd.f32 %v152, %v219
  %v252 = vadd.f32 %v152, %v220
  %v253 = vadd.f32 %v152, %v221
  %v254 = vadd.f32 %v152, %v222
  %v255 = vadd.f32 %v152, %v223
  %v256 = vadd.f32 %v152, %v224
  %v257 = vld [vmem:[#allocation2 + $0x1] sm:$0xff]
  %v258 = vld [vmem:[#allocation2 + $0x9] sm:$0xff]
  %v259 = vld [vmem:[#allocation2 + $0x19] sm:$0xff]
  %v260 = vld [vmem:[#allocation2 + $0x21] sm:$0xff]
  %v261 = vld [vmem:[#allocation2 + $0x31] sm:$0xff]
  %v262 = vld [vmem:[#allocation2 + $0x39] sm:$0xff]
  %v263 = vld [vmem:[#allocation2 + $0x49] sm:$0xff]
  %v264 = vld [vmem:[#allocation2 + $0x51] sm:$0xff]
  %v265 = vld [vmem:[#allocation2 + $0x61] sm:$0xff]
  %v266 = vld [vmem:[#allocation2 + $0x69] sm:$0xff]
  %v267 = vld [vmem:[#allocation2 + $0x79] sm:$0xff]
  %v268 = vld [vmem:[#allocation2 + $0x81] sm:$0xff]
  %v269 = vld [vmem:[#allocation2 + $0x91] sm:$0xff]
  %v270 = vld [vmem:[#allocation2 + $0x99] sm:$0xff]
  %v271 = vld [vmem:[#allocation2 + $0xa9] sm:$0xff]
  %v272 = vld [vmem:[#allocation2 + $0xb1] sm:$0xff]
  %v273 = vld [vmem:[#allocation2 + $0xc1] sm:$0xff]
  %v274 = vld [vmem:[#allocation2 + $0xc9] sm:$0xff]
  %v275 = vld [vmem:[#allocation2 + $0xd9] sm:$0xff]
  %v276 = vld [vmem:[#allocation2 + $0xe1] sm:$0xff]
  %v277 = vld [vmem:[#allocation2 + $0xf1] sm:$0xff]
  %v278 = vld [vmem:[#allocation2 + $0xf9] sm:$0xff]
  %v279 = vld [vmem:[#allocation2 + $0x109] sm:$0xff]
  %v280 = vld [vmem:[#allocation2 + $0x111] sm:$0xff]
  %v281 = vld [vmem:[#allocation2 + $0x121] sm:$0xff]
  %v282 = vld [vmem:[#allocation2 + $0x129] sm:$0xff]
  %v283 = vld [vmem:[#allocation2 + $0x139] sm:$0xff]
  %v284 = vld [vmem:[#allocation2 + $0x141] sm:$0xff]
  %v285 = vld [vmem:[#allocation2 + $0x151] sm:$0xff]
  %v286 = vld [vmem:[#allocation2 + $0x159] sm:$0xff]
  %v287 = vld [vmem:[#allocation2 + $0x169] sm:$0xff]
  %v288 = vld [vmem:[#allocation2 + $0x171] sm:$0xff]
  %s289 = scalar_lea.vmem %s0, 1
  %v290 = vld [vmem:[%s289] sm:$0x1]
  %v292 = vlaneseq
  %v293 = vshrl.u32 %v292, 7
  %v294 = vsub.s32 0, %v293
  %v295 = vrot.slane %v290, %v294
  %v297 = vmul.f32 %v257, %v295
  %v298 = vmul.f32 %v258, %v295
  %v299 = vmul.f32 %v259, %v295
  %v300 = vmul.f32 %v260, %v295
  %v301 = vmul.f32 %v261, %v295
  %v302 = vmul.f32 %v262, %v295
  %v303 = vmul.f32 %v263, %v295
  %v304 = vmul.f32 %v264, %v295
  %v305 = vmul.f32 %v265, %v295
  %v306 = vmul.f32 %v266, %v295
  %v307 = vmul.f32 %v267, %v295
  %v308 = vmul.f32 %v268, %v295
  %v309 = vmul.f32 %v269, %v295
  %v310 = vmul.f32 %v270, %v295
  %v311 = vmul.f32 %v271, %v295
  %v312 = vmul.f32 %v272, %v295
  %v313 = vmul.f32 %v273, %v295
  %v314 = vmul.f32 %v274, %v295
  %v315 = vmul.f32 %v275, %v295
  %v316 = vmul.f32 %v276, %v295
  %v317 = vmul.f32 %v277, %v295
  %v318 = vmul.f32 %v278, %v295
  %v319 = vmul.f32 %v279, %v295
  %v320 = vmul.f32 %v280, %v295
  %v321 = vmul.f32 %v281, %v295
  %v322 = vmul.f32 %v282, %v295
  %v323 = vmul.f32 %v283, %v295
  %v324 = vmul.f32 %v284, %v295
  %v325 = vmul.f32 %v285, %v295
  %v326 = vmul.f32 %v286, %v295
  %v327 = vmul.f32 %v287, %v295
  %v328 = vmul.f32 %v288, %v295
  %v329 = vadd.f32 %v225, %v297
  %v330 = vadd.f32 %v226, %v298
  %v331 = vadd.f32 %v227, %v299
  %v332 = vadd.f32 %v228, %v300
  %v333 = vadd.f32 %v229, %v301
  %v334 = vadd.f32 %v230, %v302
  %v335 = vadd.f32 %v231, %v303
  %v336 = vadd.f32 %v232, %v304
  %v337 = vadd.f32 %v233, %v305
  %v338 = vadd.f32 %v234, %v306
  %v339 = vadd.f32 %v235, %v307
  %v340 = vadd.f32 %v236, %v308
  %v341 = vadd.f32 %v237, %v309
  %v342 = vadd.f32 %v238, %v310
  %v343 = vadd.f32 %v239, %v311
  %v344 = vadd.f32 %v240, %v312
  %v345 = vadd.f32 %v241, %v313
  %v346 = vadd.f32 %v242, %v314
  %v347 = vadd.f32 %v243, %v315
  %v348 = vadd.f32 %v244, %v316
  %v349 = vadd.f32 %v245, %v317
  %v350 = vadd.f32 %v246, %v318
  %v351 = vadd.f32 %v247, %v319
  %v352 = vadd.f32 %v248, %v320
  %v353 = vadd.f32 %v249, %v321
  %v354 = vadd.f32 %v250, %v322
  %v355 = vadd.f32 %v251, %v323
  %v356 = vadd.f32 %v252, %v324
  %v357 = vadd.f32 %v253, %v325
  %v358 = vadd.f32 %v254, %v326
  %v359 = vadd.f32 %v255, %v327
  %v360 = vadd.f32 %v256, %v328
  %v361 = vld [vmem:[#allocation2 + $0x2] sm:$0xff]
  %v362 = vld [vmem:[#allocation2 + $0xa] sm:$0xff]
  %v363 = vld [vmem:[#allocation2 + $0x1a] sm:$0xff]
  %v364 = vld [vmem:[#allocation2 + $0x22] sm:$0xff]
  %v365 = vld [vmem:[#allocation2 + $0x32] sm:$0xff]
  %v366 = vld [vmem:[#allocation2 + $0x3a] sm:$0xff]
  %v367 = vld [vmem:[#allocation2 + $0x4a] sm:$0xff]
  %v368 = vld [vmem:[#allocation2 + $0x52] sm:$0xff]
  %v369 = vld [vmem:[#allocation2 + $0x62] sm:$0xff]
  %v370 = vld [vmem:[#allocation2 + $0x6a] sm:$0xff]
  %v371 = vld [vmem:[#allocation2 + $0x7a] sm:$0xff]
  %v372 = vld [vmem:[#allocation2 + $0x82] sm:$0xff]
  %v373 = vld [vmem:[#allocation2 + $0x92] sm:$0xff]
  %v374 = vld [vmem:[#allocation2 + $0x9a] sm:$0xff]
  %v375 = vld [vmem:[#allocation2 + $0xaa] sm:$0xff]
  %v376 = vld [vmem:[#allocation2 + $0xb2] sm:$0xff]
  %v377 = vld [vmem:[#allocation2 + $0xc2] sm:$0xff]
  %v378 = vld [vmem:[#allocation2 + $0xca] sm:$0xff]
  %v379 = vld [vmem:[#allocation2 + $0xda] sm:$0xff]
  %v380 = vld [vmem:[#allocation2 + $0xe2] sm:$0xff]
  %v381 = vld [vmem:[#allocation2 + $0xf2] sm:$0xff]
  %v382 = vld [vmem:[#allocation2 + $0xfa] sm:$0xff]
  %v383 = vld [vmem:[#allocation2 + $0x10a] sm:$0xff]
  %v384 = vld [vmem:[#allocation2 + $0x112] sm:$0xff]
  %v385 = vld [vmem:[#allocation2 + $0x122] sm:$0xff]
  %v386 = vld [vmem:[#allocation2 + $0x12a] sm:$0xff]
  %v387 = vld [vmem:[#allocation2 + $0x13a] sm:$0xff]
  %v388 = vld [vmem:[#allocation2 + $0x142] sm:$0xff]
  %v389 = vld [vmem:[#allocation2 + $0x152] sm:$0xff]
  %v390 = vld [vmem:[#allocation2 + $0x15a] sm:$0xff]
  %v391 = vld [vmem:[#allocation2 + $0x16a] sm:$0xff]
  %v392 = vld [vmem:[#allocation2 + $0x172] sm:$0xff]
  %s393 = scalar_lea.vmem %s0, 2
  %v394 = vld [vmem:[%s393] sm:$0x1]
  %v396 = vlaneseq
  %v397 = vshrl.u32 %v396, 7
  %v398 = vsub.s32 0, %v397
  %v399 = vrot.slane %v394, %v398
  %v401 = vmul.f32 %v361, %v399
  %v402 = vmul.f32 %v362, %v399
  %v403 = vmul.f32 %v363, %v399
  %v404 = vmul.f32 %v364, %v399
  %v405 = vmul.f32 %v365, %v399
  %v406 = vmul.f32 %v366, %v399
  %v407 = vmul.f32 %v367, %v399
  %v408 = vmul.f32 %v368, %v399
  %v409 = vmul.f32 %v369, %v399
  %v410 = vmul.f32 %v370, %v399
  %v411 = vmul.f32 %v371, %v399
  %v412 = vmul.f32 %v372, %v399
  %v413 = vmul.f32 %v373, %v399
  %v414 = vmul.f32 %v374, %v399
  %v415 = vmul.f32 %v375, %v399
  %v416 = vmul.f32 %v376, %v399
  %v417 = vmul.f32 %v377, %v399
  %v418 = vmul.f32 %v378, %v399
  %v419 = vmul.f32 %v379, %v399
  %v420 = vmul.f32 %v380, %v399
  %v421 = vmul.f32 %v381, %v399
  %v422 = vmul.f32 %v382, %v399
  %v423 = vmul.f32 %v383, %v399
  %v424 = vmul.f32 %v384, %v399
  %v425 = vmul.f32 %v385, %v399
  %v426 = vmul.f32 %v386, %v399
  %v427 = vmul.f32 %v387, %v399
  %v428 = vmul.f32 %v388, %v399
  %v429 = vmul.f32 %v389, %v399
  %v430 = vmul.f32 %v390, %v399
  %v431 = vmul.f32 %v391, %v399
  %v432 = vmul.f32 %v392, %v399
  %v433 = vadd.f32 %v329, %v401
  %v434 = vadd.f32 %v330, %v402
  %v435 = vadd.f32 %v331, %v403
  %v436 = vadd.f32 %v332, %v404
  %v437 = vadd.f32 %v333, %v405
  %v438 = vadd.f32 %v334, %v406
  %v439 = vadd.f32 %v335, %v407
  %v440 = vadd.f32 %v336, %v408
  %v441 = vadd.f32 %v337, %v409
  %v442 = vadd.f32 %v338, %v410
  %v443 = vadd.f32 %v339, %v411
  %v444 = vadd.f32 %v340, %v412
  %v445 = vadd.f32 %v341, %v413
  %v446 = vadd.f32 %v342, %v414
  %v447 = vadd.f32 %v343, %v415
  %v448 = vadd.f32 %v344, %v416
  %v449 = vadd.f32 %v345, %v417
  %v450 = vadd.f32 %v346, %v418
  %v451 = vadd.f32 %v347, %v419
  %v452 = vadd.f32 %v348, %v420
  %v453 = vadd.f32 %v349, %v421
  %v454 = vadd.f32 %v350, %v422
  %v455 = vadd.f32 %v351, %v423
  %v456 = vadd.f32 %v352, %v424
  %v457 = vadd.f32 %v353, %v425
  %v458 = vadd.f32 %v354, %v426
  %v459 = vadd.f32 %v355, %v427
  %v460 = vadd.f32 %v356, %v428
  %v461 = vadd.f32 %v357, %v429
  %v462 = vadd.f32 %v358, %v430
  %v463 = vadd.f32 %v359, %v431
  %v464 = vadd.f32 %v360, %v432
  %v465 = vld [vmem:[#allocation2 + $0x3] sm:$0xff]
  %v466 = vld [vmem:[#allocation2 + $0xb] sm:$0xff]
  %v467 = vld [vmem:[#allocation2 + $0x1b] sm:$0xff]
  %v468 = vld [vmem:[#allocation2 + $0x23] sm:$0xff]
  %v469 = vld [vmem:[#allocation2 + $0x33] sm:$0xff]
  %v470 = vld [vmem:[#allocation2 + $0x3b] sm:$0xff]
  %v471 = vld [vmem:[#allocation2 + $0x4b] sm:$0xff]
  %v472 = vld [vmem:[#allocation2 + $0x53] sm:$0xff]
  %v473 = vld [vmem:[#allocation2 + $0x63] sm:$0xff]
  %v474 = vld [vmem:[#allocation2 + $0x6b] sm:$0xff]
  %v475 = vld [vmem:[#allocation2 + $0x7b] sm:$0xff]
  %v476 = vld [vmem:[#allocation2 + $0x83] sm:$0xff]
  %v477 = vld [vmem:[#allocation2 + $0x93] sm:$0xff]
  %v478 = vld [vmem:[#allocation2 + $0x9b] sm:$0xff]
  %v479 = vld [vmem:[#allocation2 + $0xab] sm:$0xff]
  %v480 = vld [vmem:[#allocation2 + $0xb3] sm:$0xff]
  %v481 = vld [vmem:[#allocation2 + $0xc3] sm:$0xff]
  %v482 = vld [vmem:[#allocation2 + $0xcb] sm:$0xff]
  %v483 = vld [vmem:[#allocation2 + $0xdb] sm:$0xff]
  %v484 = vld [vmem:[#allocation2 + $0xe3] sm:$0xff]
  %v485 = vld [vmem:[#allocation2 + $0xf3] sm:$0xff]
  %v486 = vld [vmem:[#allocation2 + $0xfb] sm:$0xff]
  %v487 = vld [vmem:[#allocation2 + $0x10b] sm:$0xff]
  %v488 = vld [vmem:[#allocation2 + $0x113] sm:$0xff]
  %v489 = vld [vmem:[#allocation2 + $0x123] sm:$0xff]
  %v490 = vld [vmem:[#allocation2 + $0x12b] sm:$0xff]
  %v491 = vld [vmem:[#allocation2 + $0x13b] sm:$0xff]
  %v492 = vld [vmem:[#allocation2 + $0x143] sm:$0xff]
  %v493 = vld [vmem:[#allocation2 + $0x153] sm:$0xff]
  %v494 = vld [vmem:[#allocation2 + $0x15b] sm:$0xff]
  %v495 = vld [vmem:[#allocation2 + $0x16b] sm:$0xff]
  %v496 = vld [vmem:[#allocation2 + $0x173] sm:$0xff]
  %s497 = scalar_lea.vmem %s0, 3
  %v498 = vld [vmem:[%s497] sm:$0x1]
  %v500 = vlaneseq
  %v501 = vshrl.u32 %v500, 7
  %v502 = vsub.s32 0, %v501
  %v503 = vrot.slane %v498, %v502
  %v505 = vmul.f32 %v465, %v503
  %v506 = vmul.f32 %v466, %v503
  %v507 = vmul.f32 %v467, %v503
  %v508 = vmul.f32 %v468, %v503
  %v509 = vmul.f32 %v469, %v503
  %v510 = vmul.f32 %v470, %v503
  %v511 = vmul.f32 %v471, %v503
  %v512 = vmul.f32 %v472, %v503
  %v513 = vmul.f32 %v473, %v503
  %v514 = vmul.f32 %v474, %v503
  %v515 = vmul.f32 %v475, %v503
  %v516 = vmul.f32 %v476, %v503
  %v517 = vmul.f32 %v477, %v503
  %v518 = vmul.f32 %v478, %v503
  %v519 = vmul.f32 %v479, %v503
  %v520 = vmul.f32 %v480, %v503
  %v521 = vmul.f32 %v481, %v503
  %v522 = vmul.f32 %v482, %v503
  %v523 = vmul.f32 %v483, %v503
  %v524 = vmul.f32 %v484, %v503
  %v525 = vmul.f32 %v485, %v503
  %v526 = vmul.f32 %v486, %v503
  %v527 = vmul.f32 %v487, %v503
  %v528 = vmul.f32 %v488, %v503
  %v529 = vmul.f32 %v489, %v503
  %v530 = vmul.f32 %v490, %v503
  %v531 = vmul.f32 %v491, %v503
  %v532 = vmul.f32 %v492, %v503
  %v533 = vmul.f32 %v493, %v503
  %v534 = vmul.f32 %v494, %v503
  %v535 = vmul.f32 %v495, %v503
  %v536 = vmul.f32 %v496, %v503
  %v537 = vadd.f32 %v433, %v505
  %v538 = vadd.f32 %v434, %v506
  %v539 = vadd.f32 %v435, %v507
  %v540 = vadd.f32 %v436, %v508
  %v541 = vadd.f32 %v437, %v509
  %v542 = vadd.f32 %v438, %v510
  %v543 = vadd.f32 %v439, %v511
  %v544 = vadd.f32 %v440, %v512
  %v545 = vadd.f32 %v441, %v513
  %v546 = vadd.f32 %v442, %v514
  %v547 = vadd.f32 %v443, %v515
  %v548 = vadd.f32 %v444, %v516
  %v549 = vadd.f32 %v445, %v517
  %v550 = vadd.f32 %v446, %v518
  %v551 = vadd.f32 %v447, %v519
  %v552 = vadd.f32 %v448, %v520
  %v553 = vadd.f32 %v449, %v521
  %v554 = vadd.f32 %v450, %v522
  %v555 = vadd.f32 %v451, %v523
  %v556 = vadd.f32 %v452, %v524
  %v557 = vadd.f32 %v453, %v525
  %v558 = vadd.f32 %v454, %v526
  %v559 = vadd.f32 %v455, %v527
  %v560 = vadd.f32 %v456, %v528
  %v561 = vadd.f32 %v457, %v529
  %v562 = vadd.f32 %v458, %v530
  %v563 = vadd.f32 %v459, %v531
  %v564 = vadd.f32 %v460, %v532
  %v565 = vadd.f32 %v461, %v533
  %v566 = vadd.f32 %v462, %v534
  %v567 = vadd.f32 %v463, %v535
  %v568 = vadd.f32 %v464, %v536
  %v569 = vld [vmem:[#allocation2 + $0x4] sm:$0xff]
  %v570 = vld [vmem:[#allocation2 + $0xc] sm:$0xff]
  %v571 = vld [vmem:[#allocation2 + $0x1c] sm:$0xff]
  %v572 = vld [vmem:[#allocation2 + $0x24] sm:$0xff]
  %v573 = vld [vmem:[#allocation2 + $0x34] sm:$0xff]
  %v574 = vld [vmem:[#allocation2 + $0x3c] sm:$0xff]
  %v575 = vld [vmem:[#allocation2 + $0x4c] sm:$0xff]
  %v576 = vld [vmem:[#allocation2 + $0x54] sm:$0xff]
  %v577 = vld [vmem:[#allocation2 + $0x64] sm:$0xff]
  %v578 = vld [vmem:[#allocation2 + $0x6c] sm:$0xff]
  %v579 = vld [vmem:[#allocation2 + $0x7c] sm:$0xff]
  %v580 = vld [vmem:[#allocation2 + $0x84] sm:$0xff]
  %v581 = vld [vmem:[#allocation2 + $0x94] sm:$0xff]
  %v582 = vld [vmem:[#allocation2 + $0x9c] sm:$0xff]
  %v583 = vld [vmem:[#allocation2 + $0xac] sm:$0xff]
  %v584 = vld [vmem:[#allocation2 + $0xb4] sm:$0xff]
  %v585 = vld [vmem:[#allocation2 + $0xc4] sm:$0xff]
  %v586 = vld [vmem:[#allocation2 + $0xcc] sm:$0xff]
  %v587 = vld [vmem:[#allocation2 + $0xdc] sm:$0xff]
  %v588 = vld [vmem:[#allocation2 + $0xe4] sm:$0xff]
  %v589 = vld [vmem:[#allocation2 + $0xf4] sm:$0xff]
  %v590 = vld [vmem:[#allocation2 + $0xfc] sm:$0xff]
  %v591 = vld [vmem:[#allocation2 + $0x10c] sm:$0xff]
  %v592 = vld [vmem:[#allocation2 + $0x114] sm:$0xff]
  %v593 = vld [vmem:[#allocation2 + $0x124] sm:$0xff]
  %v594 = vld [vmem:[#allocation2 + $0x12c] sm:$0xff]
  %v595 = vld [vmem:[#allocation2 + $0x13c] sm:$0xff]
  %v596 = vld [vmem:[#allocation2 + $0x144] sm:$0xff]
  %v597 = vld [vmem:[#allocation2 + $0x154] sm:$0xff]
  %v598 = vld [vmem:[#allocation2 + $0x15c] sm:$0xff]
  %v599 = vld [vmem:[#allocation2 + $0x16c] sm:$0xff]
  %v600 = vld [vmem:[#allocation2 + $0x174] sm:$0xff]
  %s601 = scalar_lea.vmem %s0, 4
  %v602 = vld [vmem:[%s601] sm:$0x1]
  %v604 = vlaneseq
  %v605 = vshrl.u32 %v604, 7
  %v606 = vsub.s32 0, %v605
  %v607 = vrot.slane %v602, %v606
  %v609 = vmul.f32 %v569, %v607
  %v610 = vmul.f32 %v570, %v607
  %v611 = vmul.f32 %v571, %v607
  %v612 = vmul.f32 %v572, %v607
  %v613 = vmul.f32 %v573, %v607
  %v614 = vmul.f32 %v574, %v607
  %v615 = vmul.f32 %v575, %v607
  %v616 = vmul.f32 %v576, %v607
  %v617 = vmul.f32 %v577, %v607
  %v618 = vmul.f32 %v578, %v607
  %v619 = vmul.f32 %v579, %v607
  %v620 = vmul.f32 %v580, %v607
  %v621 = vmul.f32 %v581, %v607
  %v622 = vmul.f32 %v582, %v607
  %v623 = vmul.f32 %v583, %v607
  %v624 = vmul.f32 %v584, %v607
  %v625 = vmul.f32 %v585, %v607
  %v626 = vmul.f32 %v586, %v607
  %v627 = vmul.f32 %v587, %v607
  %v628 = vmul.f32 %v588, %v607
  %v629 = vmul.f32 %v589, %v607
  %v630 = vmul.f32 %v590, %v607
  %v631 = vmul.f32 %v591, %v607
  %v632 = vmul.f32 %v592, %v607
  %v633 = vmul.f32 %v593, %v607
  %v634 = vmul.f32 %v594, %v607
  %v635 = vmul.f32 %v595, %v607
  %v636 = vmul.f32 %v596, %v607
  %v637 = vmul.f32 %v597, %v607
  %v638 = vmul.f32 %v598, %v607
  %v639 = vmul.f32 %v599, %v607
  %v640 = vmul.f32 %v600, %v607
  %v641 = vadd.f32 %v537, %v609
  %v642 = vadd.f32 %v538, %v610
  %v643 = vadd.f32 %v539, %v611
  %v644 = vadd.f32 %v540, %v612
  %v645 = vadd.f32 %v541, %v613
  %v646 = vadd.f32 %v542, %v614
  %v647 = vadd.f32 %v543, %v615
  %v648 = vadd.f32 %v544, %v616
  %v649 = vadd.f32 %v545, %v617
  %v650 = vadd.f32 %v546, %v618
  %v651 = vadd.f32 %v547, %v619
  %v652 = vadd.f32 %v548, %v620
  %v653 = vadd.f32 %v549, %v621
  %v654 = vadd.f32 %v550, %v622
  %v655 = vadd.f32 %v551, %v623
  %v656 = vadd.f32 %v552, %v624
  %v657 = vadd.f32 %v553, %v625
  %v658 = vadd.f32 %v554, %v626
  %v659 = vadd.f32 %v555, %v627
  %v660 = vadd.f32 %v556, %v628
  %v661 = vadd.f32 %v557, %v629
  %v662 = vadd.f32 %v558, %v630
  %v663 = vadd.f32 %v559, %v631
  %v664 = vadd.f32 %v560, %v632
  %v665 = vadd.f32 %v561, %v633
  %v666 = vadd.f32 %v562, %v634
  %v667 = vadd.f32 %v563, %v635
  %v668 = vadd.f32 %v564, %v636
  %v669 = vadd.f32 %v565, %v637
  %v670 = vadd.f32 %v566, %v638
  %v671 = vadd.f32 %v567, %v639
  %v672 = vadd.f32 %v568, %v640
  %v673 = vld [vmem:[#allocation2 + $0x5] sm:$0xff]
  %v674 = vld [vmem:[#allocation2 + $0xd] sm:$0xff]
  %v675 = vld [vmem:[#allocation2 + $0x1d] sm:$0xff]
  %v676 = vld [vmem:[#allocation2 + $0x25] sm:$0xff]
  %v677 = vld [vmem:[#allocation2 + $0x35] sm:$0xff]
  %v678 = vld [vmem:[#allocation2 + $0x3d] sm:$0xff]
  %v679 = vld [vmem:[#allocation2 + $0x4d] sm:$0xff]
  %v680 = vld [vmem:[#allocation2 + $0x55] sm:$0xff]
  %v681 = vld [vmem:[#allocation2 + $0x65] sm:$0xff]
  %v682 = vld [vmem:[#allocation2 + $0x6d] sm:$0xff]
  %v683 = vld [vmem:[#allocation2 + $0x7d] sm:$0xff]
  %v684 = vld [vmem:[#allocation2 + $0x85] sm:$0xff]
  %v685 = vld [vmem:[#allocation2 + $0x95] sm:$0xff]
  %v686 = vld [vmem:[#allocation2 + $0x9d] sm:$0xff]
  %v687 = vld [vmem:[#allocation2 + $0xad] sm:$0xff]
  %v688 = vld [vmem:[#allocation2 + $0xb5] sm:$0xff]
  %v689 = vld [vmem:[#allocation2 + $0xc5] sm:$0xff]
  %v690 = vld [vmem:[#allocation2 + $0xcd] sm:$0xff]
  %v691 = vld [vmem:[#allocation2 + $0xdd] sm:$0xff]
  %v692 = vld [vmem:[#allocation2 + $0xe5] sm:$0xff]
  %v693 = vld [vmem:[#allocation2 + $0xf5] sm:$0xff]
  %v694 = vld [vmem:[#allocation2 + $0xfd] sm:$0xff]
  %v695 = vld [vmem:[#allocation2 + $0x10d] sm:$0xff]
  %v696 = vld [vmem:[#allocation2 + $0x115] sm:$0xff]
  %v697 = vld [vmem:[#allocation2 + $0x125] sm:$0xff]
  %v698 = vld [vmem:[#allocation2 + $0x12d] sm:$0xff]
  %v699 = vld [vmem:[#allocation2 + $0x13d] sm:$0xff]
  %v700 = vld [vmem:[#allocation2 + $0x145] sm:$0xff]
  %v701 = vld [vmem:[#allocation2 + $0x155] sm:$0xff]
  %v702 = vld [vmem:[#allocation2 + $0x15d] sm:$0xff]
  %v703 = vld [vmem:[#allocation2 + $0x16d] sm:$0xff]
  %v704 = vld [vmem:[#allocation2 + $0x175] sm:$0xff]
  %s705 = scalar_lea.vmem %s0, 5
  %v706 = vld [vmem:[%s705] sm:$0x1]
  %v708 = vlaneseq
  %v709 = vshrl.u32 %v708, 7
  %v710 = vsub.s32 0, %v709
  %v711 = vrot.slane %v706, %v710
  %v713 = vmul.f32 %v673, %v711
  %v714 = vmul.f32 %v674, %v711
  %v715 = vmul.f32 %v675, %v711
  %v716 = vmul.f32 %v676, %v711
  %v717 = vmul.f32 %v677, %v711
  %v718 = vmul.f32 %v678, %v711
  %v719 = vmul.f32 %v679, %v711
  %v720 = vmul.f32 %v680, %v711
  %v721 = vmul.f32 %v681, %v711
  %v722 = vmul.f32 %v682, %v711
  %v723 = vmul.f32 %v683, %v711
  %v724 = vmul.f32 %v684, %v711
  %v725 = vmul.f32 %v685, %v711
  %v726 = vmul.f32 %v686, %v711
  %v727 = vmul.f32 %v687, %v711
  %v728 = vmul.f32 %v688, %v711
  %v729 = vmul.f32 %v689, %v711
  %v730 = vmul.f32 %v690, %v711
  %v731 = vmul.f32 %v691, %v711
  %v732 = vmul.f32 %v692, %v711
  %v733 = vmul.f32 %v693, %v711
  %v734 = vmul.f32 %v694, %v711
  %v735 = vmul.f32 %v695, %v711
  %v736 = vmul.f32 %v696, %v711
  %v737 = vmul.f32 %v697, %v711
  %v738 = vmul.f32 %v698, %v711
  %v739 = vmul.f32 %v699, %v711
  %v740 = vmul.f32 %v700, %v711
  %v741 = vmul.f32 %v701, %v711
  %v742 = vmul.f32 %v702, %v711
  %v743 = vmul.f32 %v703, %v711
  %v744 = vmul.f32 %v704, %v711
  %v745 = vadd.f32 %v641, %v713
  %v746 = vadd.f32 %v642, %v714
  %v747 = vadd.f32 %v643, %v715
  %v748 = vadd.f32 %v644, %v716
  %v749 = vadd.f32 %v645, %v717
  %v750 = vadd.f32 %v646, %v718
  %v751 = vadd.f32 %v647, %v719
  %v752 = vadd.f32 %v648, %v720
  %v753 = vadd.f32 %v649, %v721
  %v754 = vadd.f32 %v650, %v722
  %v755 = vadd.f32 %v651, %v723
  %v756 = vadd.f32 %v652, %v724
  %v757 = vadd.f32 %v653, %v725
  %v758 = vadd.f32 %v654, %v726
  %v759 = vadd.f32 %v655, %v727
  %v760 = vadd.f32 %v656, %v728
  %v761 = vadd.f32 %v657, %v729
  %v762 = vadd.f32 %v658, %v730
  %v763 = vadd.f32 %v659, %v731
  %v764 = vadd.f32 %v660, %v732
  %v765 = vadd.f32 %v661, %v733
  %v766 = vadd.f32 %v662, %v734
  %v767 = vadd.f32 %v663, %v735
  %v768 = vadd.f32 %v664, %v736
  %v769 = vadd.f32 %v665, %v737
  %v770 = vadd.f32 %v666, %v738
  %v771 = vadd.f32 %v667, %v739
  %v772 = vadd.f32 %v668, %v740
  %v773 = vadd.f32 %v669, %v741
  %v774 = vadd.f32 %v670, %v742
  %v775 = vadd.f32 %v671, %v743
  %v776 = vadd.f32 %v672, %v744
  %v777 = vld [vmem:[#allocation2 + $0x6] sm:$0xff]
  %v778 = vld [vmem:[#allocation2 + $0xe] sm:$0xff]
  %v779 = vld [vmem:[#allocation2 + $0x1e] sm:$0xff]
  %v780 = vld [vmem:[#allocation2 + $0x26] sm:$0xff]
  %v781 = vld [vmem:[#allocation2 + $0x36] sm:$0xff]
  %v782 = vld [vmem:[#allocation2 + $0x3e] sm:$0xff]
  %v783 = vld [vmem:[#allocation2 + $0x4e] sm:$0xff]
  %v784 = vld [vmem:[#allocation2 + $0x56] sm:$0xff]
  %v785 = vld [vmem:[#allocation2 + $0x66] sm:$0xff]
  %v786 = vld [vmem:[#allocation2 + $0x6e] sm:$0xff]
  %v787 = vld [vmem:[#allocation2 + $0x7e] sm:$0xff]
  %v788 = vld [vmem:[#allocation2 + $0x86] sm:$0xff]
  %v789 = vld [vmem:[#allocation2 + $0x96] sm:$0xff]
  %v790 = vld [vmem:[#allocation2 + $0x9e] sm:$0xff]
  %v791 = vld [vmem:[#allocation2 + $0xae] sm:$0xff]
  %v792 = vld [vmem:[#allocation2 + $0xb6] sm:$0xff]
  %v793 = vld [vmem:[#allocation2 + $0xc6] sm:$0xff]
  %v794 = vld [vmem:[#allocation2 + $0xce] sm:$0xff]
  %v795 = vld [vmem:[#allocation2 + $0xde] sm:$0xff]
  %v796 = vld [vmem:[#allocation2 + $0xe6] sm:$0xff]
  %v797 = vld [vmem:[#allocation2 + $0xf6] sm:$0xff]
  %v798 = vld [vmem:[#allocation2 + $0xfe] sm:$0xff]
  %v799 = vld [vmem:[#allocation2 + $0x10e] sm:$0xff]
  %v800 = vld [vmem:[#allocation2 + $0x116] sm:$0xff]
  %v801 = vld [vmem:[#allocation2 + $0x126] sm:$0xff]
  %v802 = vld [vmem:[#allocation2 + $0x12e] sm:$0xff]
  %v803 = vld [vmem:[#allocation2 + $0x13e] sm:$0xff]
  %v804 = vld [vmem:[#allocation2 + $0x146] sm:$0xff]
  %v805 = vld [vmem:[#allocation2 + $0x156] sm:$0xff]
  %v806 = vld [vmem:[#allocation2 + $0x15e] sm:$0xff]
  %v807 = vld [vmem:[#allocation2 + $0x16e] sm:$0xff]
  %v808 = vld [vmem:[#allocation2 + $0x176] sm:$0xff]
  %s809 = scalar_lea.vmem %s0, 6
  %v810 = vld [vmem:[%s809] sm:$0x1]
  %v812 = vlaneseq
  %v813 = vshrl.u32 %v812, 7
  %v814 = vsub.s32 0, %v813
  %v815 = vrot.slane %v810, %v814
  %v817 = vmul.f32 %v777, %v815
  %v818 = vmul.f32 %v778, %v815
  %v819 = vmul.f32 %v779, %v815
  %v820 = vmul.f32 %v780, %v815
  %v821 = vmul.f32 %v781, %v815
  %v822 = vmul.f32 %v782, %v815
  %v823 = vmul.f32 %v783, %v815
  %v824 = vmul.f32 %v784, %v815
  %v825 = vmul.f32 %v785, %v815
  %v826 = vmul.f32 %v786, %v815
  %v827 = vmul.f32 %v787, %v815
  %v828 = vmul.f32 %v788, %v815
  %v829 = vmul.f32 %v789, %v815
  %v830 = vmul.f32 %v790, %v815
  %v831 = vmul.f32 %v791, %v815
  %v832 = vmul.f32 %v792, %v815
  %v833 = vmul.f32 %v793, %v815
  %v834 = vmul.f32 %v794, %v815
  %v835 = vmul.f32 %v795, %v815
  %v836 = vmul.f32 %v796, %v815
  %v837 = vmul.f32 %v797, %v815
  %v838 = vmul.f32 %v798, %v815
  %v839 = vmul.f32 %v799, %v815
  %v840 = vmul.f32 %v800, %v815
  %v841 = vmul.f32 %v801, %v815
  %v842 = vmul.f32 %v802, %v815
  %v843 = vmul.f32 %v803, %v815
  %v844 = vmul.f32 %v804, %v815
  %v845 = vmul.f32 %v805, %v815
  %v846 = vmul.f32 %v806, %v815
  %v847 = vmul.f32 %v807, %v815
  %v848 = vmul.f32 %v808, %v815
  %v849 = vadd.f32 %v745, %v817
  %v850 = vadd.f32 %v746, %v818
  %v851 = vadd.f32 %v747, %v819
  %v852 = vadd.f32 %v748, %v820
  %v853 = vadd.f32 %v749, %v821
  %v854 = vadd.f32 %v750, %v822
  %v855 = vadd.f32 %v751, %v823
  %v856 = vadd.f32 %v752, %v824
  %v857 = vadd.f32 %v753, %v825
  %v858 = vadd.f32 %v754, %v826
  %v859 = vadd.f32 %v755, %v827
  %v860 = vadd.f32 %v756, %v828
  %v861 = vadd.f32 %v757, %v829
  %v862 = vadd.f32 %v758, %v830
  %v863 = vadd.f32 %v759, %v831
  %v864 = vadd.f32 %v760, %v832
  %v865 = vadd.f32 %v761, %v833
  %v866 = vadd.f32 %v762, %v834
  %v867 = vadd.f32 %v763, %v835
  %v868 = vadd.f32 %v764, %v836
  %v869 = vadd.f32 %v765, %v837
  %v870 = vadd.f32 %v766, %v838
  %v871 = vadd.f32 %v767, %v839
  %v872 = vadd.f32 %v768, %v840
  %v873 = vadd.f32 %v769, %v841
  %v874 = vadd.f32 %v770, %v842
  %v875 = vadd.f32 %v771, %v843
  %v876 = vadd.f32 %v772, %v844
  %v877 = vadd.f32 %v773, %v845
  %v878 = vadd.f32 %v774, %v846
  %v879 = vadd.f32 %v775, %v847
  %v880 = vadd.f32 %v776, %v848
  %s881 = scalar_lea.vmem [#allocation2], 24
  %v882 = vld [vmem:[%s881] sm:$0xff]
  %v883 = vld [vmem:[%s881 + $0x8] sm:$0xff]
  %v884 = vld [vmem:[%s881 + $0x18] sm:$0xff]
  %v885 = vld [vmem:[%s881 + $0x20] sm:$0xff]
  %v886 = vld [vmem:[%s881 + $0x30] sm:$0xff]
  %v887 = vld [vmem:[%s881 + $0x38] sm:$0xff]
  %v888 = vld [vmem:[%s881 + $0x48] sm:$0xff]
  %v889 = vld [vmem:[%s881 + $0x50] sm:$0xff]
  %v890 = vld [vmem:[%s881 + $0x60] sm:$0xff]
  %v891 = vld [vmem:[%s881 + $0x68] sm:$0xff]
  %v892 = vld [vmem:[%s881 + $0x78] sm:$0xff]
  %v893 = vld [vmem:[%s881 + $0x80] sm:$0xff]
  %v894 = vld [vmem:[%s881 + $0x90] sm:$0xff]
  %v895 = vld [vmem:[%s881 + $0x98] sm:$0xff]
  %v896 = vld [vmem:[%s881 + $0xa8] sm:$0xff]
  %v897 = vld [vmem:[%s881 + $0xb0] sm:$0xff]
  %v898 = vld [vmem:[%s881 + $0xc0] sm:$0xff]
  %v899 = vld [vmem:[%s881 + $0xc8] sm:$0xff]
  %v900 = vld [vmem:[%s881 + $0xd8] sm:$0xff]
  %v901 = vld [vmem:[%s881 + $0xe0] sm:$0xff]
  %v902 = vld [vmem:[%s881 + $0xf0] sm:$0xff]
  %v903 = vld [vmem:[%s881 + $0xf8] sm:$0xff]
  %v904 = vld [vmem:[%s881 + $0x108] sm:$0xff]
  %v905 = vld [vmem:[%s881 + $0x110] sm:$0xff]
  %v906 = vld [vmem:[%s881 + $0x120] sm:$0xff]
  %v907 = vld [vmem:[%s881 + $0x128] sm:$0xff]
  %v908 = vld [vmem:[%s881 + $0x138] sm:$0xff]
  %v909 = vld [vmem:[%s881 + $0x140] sm:$0xff]
  %v910 = vld [vmem:[%s881 + $0x150] sm:$0xff]
  %v911 = vld [vmem:[%s881 + $0x158] sm:$0xff]
  %v912 = vld [vmem:[%s881 + $0x168] sm:$0xff]
  %v913 = vld [vmem:[%s881 + $0x170] sm:$0xff]
  %s914 = scalar_lea.vmem %s0, 7
  %v915 = vld [vmem:[%s914] sm:$0x1]
  %v917 = vlaneseq
  %v918 = vshrl.u32 %v917, 7
  %v919 = vsub.s32 0, %v918
  %v920 = vrot.slane %v915, %v919
  %v922 = vmul.f32 %v882, %v920
  %v923 = vmul.f32 %v883, %v920
  %v924 = vmul.f32 %v884, %v920
  %v925 = vmul.f32 %v885, %v920
  %v926 = vmul.f32 %v886, %v920
  %v927 = vmul.f32 %v887, %v920
  %v928 = vmul.f32 %v888, %v920
  %v929 = vmul.f32 %v889, %v920
  %v930 = vmul.f32 %v890, %v920
  %v931 = vmul.f32 %v891, %v920
  %v932 = vmul.f32 %v892, %v920
  %v933 = vmul.f32 %v893, %v920
  %v934 = vmul.f32 %v894, %v920
  %v935 = vmul.f32 %v895, %v920
  %v936 = vmul.f32 %v896, %v920
  %v937 = vmul.f32 %v897, %v920
  %v938 = vmul.f32 %v898, %v920
  %v939 = vmul.f32 %v899, %v920
  %v940 = vmul.f32 %v900, %v920
  %v941 = vmul.f32 %v901, %v920
  %v942 = vmul.f32 %v902, %v920
  %v943 = vmul.f32 %v903, %v920
  %v944 = vmul.f32 %v904, %v920
  %v945 = vmul.f32 %v905, %v920
  %v946 = vmul.f32 %v906, %v920
  %v947 = vmul.f32 %v907, %v920
  %v948 = vmul.f32 %v908, %v920
  %v949 = vmul.f32 %v909, %v920
  %v950 = vmul.f32 %v910, %v920
  %v951 = vmul.f32 %v911, %v920
  %v952 = vmul.f32 %v912, %v920
  %v953 = vmul.f32 %v913, %v920
  %v954 = vadd.f32 %v849, %v922
  %v955 = vadd.f32 %v850, %v923
  %v956 = vadd.f32 %v851, %v924
  %v957 = vadd.f32 %v852, %v925
  %v958 = vadd.f32 %v853, %v926
  %v959 = vadd.f32 %v854, %v927
  %v960 = vadd.f32 %v855, %v928
  %v961 = vadd.f32 %v856, %v929
  %v962 = vadd.f32 %v857, %v930
  %v963 = vadd.f32 %v858, %v931
  %v964 = vadd.f32 %v859, %v932
  %v965 = vadd.f32 %v860, %v933
  %v966 = vadd.f32 %v861, %v934
  %v967 = vadd.f32 %v862, %v935
  %v968 = vadd.f32 %v863, %v936
  %v969 = vadd.f32 %v864, %v937
  %v970 = vadd.f32 %v865, %v938
  %v971 = vadd.f32 %v866, %v939
  %v972 = vadd.f32 %v867, %v940
  %v973 = vadd.f32 %v868, %v941
  %v974 = vadd.f32 %v869, %v942
  %v975 = vadd.f32 %v870, %v943
  %v976 = vadd.f32 %v871, %v944
  %v977 = vadd.f32 %v872, %v945
  %v978 = vadd.f32 %v873, %v946
  %v979 = vadd.f32 %v874, %v947
  %v980 = vadd.f32 %v875, %v948
  %v981 = vadd.f32 %v876, %v949
  %v982 = vadd.f32 %v877, %v950
  %v983 = vadd.f32 %v878, %v951
  %v984 = vadd.f32 %v879, %v952
  %v985 = vadd.f32 %v880, %v953
  %v986 = vld [vmem:[%s881 + $0x1] sm:$0xff]
  %v987 = vld [vmem:[%s881 + $0x9] sm:$0xff]
  %v988 = vld [vmem:[%s881 + $0x19] sm:$0xff]
  %v989 = vld [vmem:[%s881 + $0x21] sm:$0xff]
  %v990 = vld [vmem:[%s881 + $0x31] sm:$0xff]
  %v991 = vld [vmem:[%s881 + $0x39] sm:$0xff]
  %v992 = vld [vmem:[%s881 + $0x49] sm:$0xff]
  %v993 = vld [vmem:[%s881 + $0x51] sm:$0xff]
  %v994 = vld [vmem:[%s881 + $0x61] sm:$0xff]
  %v995 = vld [vmem:[%s881 + $0x69] sm:$0xff]
  %v996 = vld [vmem:[%s881 + $0x79] sm:$0xff]
  %v997 = vld [vmem:[%s881 + $0x81] sm:$0xff]
  %v998 = vld [vmem:[%s881 + $0x91] sm:$0xff]
  %v999 = vld [vmem:[%s881 + $0x99] sm:$0xff]
  %v1000 = vld [vmem:[%s881 + $0xa9] sm:$0xff]
  %v1001 = vld [vmem:[%s881 + $0xb1] sm:$0xff]
  %v1002 = vld [vmem:[%s881 + $0xc1] sm:$0xff]
  %v1003 = vld [vmem:[%s881 + $0xc9] sm:$0xff]
  %v1004 = vld [vmem:[%s881 + $0xd9] sm:$0xff]
  %v1005 = vld [vmem:[%s881 + $0xe1] sm:$0xff]
  %v1006 = vld [vmem:[%s881 + $0xf1] sm:$0xff]
  %v1007 = vld [vmem:[%s881 + $0xf9] sm:$0xff]
  %v1008 = vld [vmem:[%s881 + $0x109] sm:$0xff]
  %v1009 = vld [vmem:[%s881 + $0x111] sm:$0xff]
  %v1010 = vld [vmem:[%s881 + $0x121] sm:$0xff]
  %v1011 = vld [vmem:[%s881 + $0x129] sm:$0xff]
  %v1012 = vld [vmem:[%s881 + $0x139] sm:$0xff]
  %v1013 = vld [vmem:[%s881 + $0x141] sm:$0xff]
  %v1014 = vld [vmem:[%s881 + $0x151] sm:$0xff]
  %v1015 = vld [vmem:[%s881 + $0x159] sm:$0xff]
  %v1016 = vld [vmem:[%s881 + $0x169] sm:$0xff]
  %v1017 = vld [vmem:[%s881 + $0x171] sm:$0xff]
  %s1018 = scalar_lea.vmem %s0, 8
  %v1019 = vld [vmem:[%s1018] sm:$0x1]
  %v1021 = vlaneseq
  %v1022 = vshrl.u32 %v1021, 7
  %v1023 = vsub.s32 0, %v1022
  %v1024 = vrot.slane %v1019, %v1023
  %v1026 = vmul.f32 %v986, %v1024
  %v1027 = vmul.f32 %v987, %v1024
  %v1028 = vmul.f32 %v988, %v1024
  %v1029 = vmul.f32 %v989, %v1024
  %v1030 = vmul.f32 %v990, %v1024
  %v1031 = vmul.f32 %v991, %v1024
  %v1032 = vmul.f32 %v992, %v1024
  %v1033 = vmul.f32 %v993, %v1024
  %v1034 = vmul.f32 %v994, %v1024
  %v1035 = vmul.f32 %v995, %v1024
  %v1036 = vmul.f32 %v996, %v1024
  %v1037 = vmul.f32 %v997, %v1024
  %v1038 = vmul.f32 %v998, %v1024
  %v1039 = vmul.f32 %v999, %v1024
  %v1040 = vmul.f32 %v1000, %v1024
  %v1041 = vmul.f32 %v1001, %v1024
  %v1042 = vmul.f32 %v1002, %v1024
  %v1043 = vmul.f32 %v1003, %v1024
  %v1044 = vmul.f32 %v1004, %v1024
  %v1045 = vmul.f32 %v1005, %v1024
  %v1046 = vmul.f32 %v1006, %v1024
  %v1047 = vmul.f32 %v1007, %v1024
  %v1048 = vmul.f32 %v1008, %v1024
  %v1049 = vmul.f32 %v1009, %v1024
  %v1050 = vmul.f32 %v1010, %v1024
  %v1051 = vmul.f32 %v1011, %v1024
  %v1052 = vmul.f32 %v1012, %v1024
  %v1053 = vmul.f32 %v1013, %v1024
  %v1054 = vmul.f32 %v1014, %v1024
  %v1055 = vmul.f32 %v1015, %v1024
  %v1056 = vmul.f32 %v1016, %v1024
  %v1057 = vmul.f32 %v1017, %v1024
  %v1058 = vadd.f32 %v954, %v1026
  %v1059 = vadd.f32 %v955, %v1027
  %v1060 = vadd.f32 %v956, %v1028
  %v1061 = vadd.f32 %v957, %v1029
  %v1062 = vadd.f32 %v958, %v1030
  %v1063 = vadd.f32 %v959, %v1031
  %v1064 = vadd.f32 %v960, %v1032
  %v1065 = vadd.f32 %v961, %v1033
  %v1066 = vadd.f32 %v962, %v1034
  %v1067 = vadd.f32 %v963, %v1035
  %v1068 = vadd.f32 %v964, %v1036
  %v1069 = vadd.f32 %v965, %v1037
  %v1070 = vadd.f32 %v966, %v1038
  %v1071 = vadd.f32 %v967, %v1039
  %v1072 = vadd.f32 %v968, %v1040
  %v1073 = vadd.f32 %v969, %v1041
  %v1074 = vadd.f32 %v970, %v1042
  %v1075 = vadd.f32 %v971, %v1043
  %v1076 = vadd.f32 %v972, %v1044
  %v1077 = vadd.f32 %v973, %v1045
  %v1078 = vadd.f32 %v974, %v1046
  %v1079 = vadd.f32 %v975, %v1047
  %v1080 = vadd.f32 %v976, %v1048
  %v1081 = vadd.f32 %v977, %v1049
  %v1082 = vadd.f32 %v978, %v1050
  %v1083 = vadd.f32 %v979, %v1051
  %v1084 = vadd.f32 %v980, %v1052
  %v1085 = vadd.f32 %v981, %v1053
  %v1086 = vadd.f32 %v982, %v1054
  %v1087 = vadd.f32 %v983, %v1055
  %v1088 = vadd.f32 %v984, %v1056
  %v1089 = vadd.f32 %v985, %v1057
  %v1090 = vld [vmem:[%s881 + $0x2] sm:$0xff]
  %v1091 = vld [vmem:[%s881 + $0xa] sm:$0xff]
  %v1092 = vld [vmem:[%s881 + $0x1a] sm:$0xff]
  %v1093 = vld [vmem:[%s881 + $0x22] sm:$0xff]
  %v1094 = vld [vmem:[%s881 + $0x32] sm:$0xff]
  %v1095 = vld [vmem:[%s881 + $0x3a] sm:$0xff]
  %v1096 = vld [vmem:[%s881 + $0x4a] sm:$0xff]
  %v1097 = vld [vmem:[%s881 + $0x52] sm:$0xff]
  %v1098 = vld [vmem:[%s881 + $0x62] sm:$0xff]
  %v1099 = vld [vmem:[%s881 + $0x6a] sm:$0xff]
  %v1100 = vld [vmem:[%s881 + $0x7a] sm:$0xff]
  %v1101 = vld [vmem:[%s881 + $0x82] sm:$0xff]
  %v1102 = vld [vmem:[%s881 + $0x92] sm:$0xff]
  %v1103 = vld [vmem:[%s881 + $0x9a] sm:$0xff]
  %v1104 = vld [vmem:[%s881 + $0xaa] sm:$0xff]
  %v1105 = vld [vmem:[%s881 + $0xb2] sm:$0xff]
  %v1106 = vld [vmem:[%s881 + $0xc2] sm:$0xff]
  %v1107 = vld [vmem:[%s881 + $0xca] sm:$0xff]
  %v1108 = vld [vmem:[%s881 + $0xda] sm:$0xff]
  %v1109 = vld [vmem:[%s881 + $0xe2] sm:$0xff]
  %v1110 = vld [vmem:[%s881 + $0xf2] sm:$0xff]
  %v1111 = vld [vmem:[%s881 + $0xfa] sm:$0xff]
  %v1112 = vld [vmem:[%s881 + $0x10a] sm:$0xff]
  %v1113 = vld [vmem:[%s881 + $0x112] sm:$0xff]
  %v1114 = vld [vmem:[%s881 + $0x122] sm:$0xff]
  %v1115 = vld [vmem:[%s881 + $0x12a] sm:$0xff]
  %v1116 = vld [vmem:[%s881 + $0x13a] sm:$0xff]
  %v1117 = vld [vmem:[%s881 + $0x142] sm:$0xff]
  %v1118 = vld [vmem:[%s881 + $0x152] sm:$0xff]
  %v1119 = vld [vmem:[%s881 + $0x15a] sm:$0xff]
  %v1120 = vld [vmem:[%s881 + $0x16a] sm:$0xff]
  %v1121 = vld [vmem:[%s881 + $0x172] sm:$0xff]
  %s1122 = scalar_lea.vmem %s0, 9
  %v1123 = vld [vmem:[%s1122] sm:$0x1]
  %v1125 = vlaneseq
  %v1126 = vshrl.u32 %v1125, 7
  %v1127 = vsub.s32 0, %v1126
  %v1128 = vrot.slane %v1123, %v1127
  %v1130 = vmul.f32 %v1090, %v1128
  %v1131 = vmul.f32 %v1091, %v1128
  %v1132 = vmul.f32 %v1092, %v1128
  %v1133 = vmul.f32 %v1093, %v1128
  %v1134 = vmul.f32 %v1094, %v1128
  %v1135 = vmul.f32 %v1095, %v1128
  %v1136 = vmul.f32 %v1096, %v1128
  %v1137 = vmul.f32 %v1097, %v1128
  %v1138 = vmul.f32 %v1098, %v1128
  %v1139 = vmul.f32 %v1099, %v1128
  %v1140 = vmul.f32 %v1100, %v1128
  %v1141 = vmul.f32 %v1101, %v1128
  %v1142 = vmul.f32 %v1102, %v1128
  %v1143 = vmul.f32 %v1103, %v1128
  %v1144 = vmul.f32 %v1104, %v1128
  %v1145 = vmul.f32 %v1105, %v1128
  %v1146 = vmul.f32 %v1106, %v1128
  %v1147 = vmul.f32 %v1107, %v1128
  %v1148 = vmul.f32 %v1108, %v1128
  %v1149 = vmul.f32 %v1109, %v1128
  %v1150 = vmul.f32 %v1110, %v1128
  %v1151 = vmul.f32 %v1111, %v1128
  %v1152 = vmul.f32 %v1112, %v1128
  %v1153 = vmul.f32 %v1113, %v1128
  %v1154 = vmul.f32 %v1114, %v1128
  %v1155 = vmul.f32 %v1115, %v1128
  %v1156 = vmul.f32 %v1116, %v1128
  %v1157 = vmul.f32 %v1117, %v1128
  %v1158 = vmul.f32 %v1118, %v1128
  %v1159 = vmul.f32 %v1119, %v1128
  %v1160 = vmul.f32 %v1120, %v1128
  %v1161 = vmul.f32 %v1121, %v1128
  %v1162 = vadd.f32 %v1058, %v1130
  %v1163 = vadd.f32 %v1059, %v1131
  %v1164 = vadd.f32 %v1060, %v1132
  %v1165 = vadd.f32 %v1061, %v1133
  %v1166 = vadd.f32 %v1062, %v1134
  %v1167 = vadd.f32 %v1063, %v1135
  %v1168 = vadd.f32 %v1064, %v1136
  %v1169 = vadd.f32 %v1065, %v1137
  %v1170 = vadd.f32 %v1066, %v1138
  %v1171 = vadd.f32 %v1067, %v1139
  %v1172 = vadd.f32 %v1068, %v1140
  %v1173 = vadd.f32 %v1069, %v1141
  %v1174 = vadd.f32 %v1070, %v1142
  %v1175 = vadd.f32 %v1071, %v1143
  %v1176 = vadd.f32 %v1072, %v1144
  %v1177 = vadd.f32 %v1073, %v1145
  %v1178 = vadd.f32 %v1074, %v1146
  %v1179 = vadd.f32 %v1075, %v1147
  %v1180 = vadd.f32 %v1076, %v1148
  %v1181 = vadd.f32 %v1077, %v1149
  %v1182 = vadd.f32 %v1078, %v1150
  %v1183 = vadd.f32 %v1079, %v1151
  %v1184 = vadd.f32 %v1080, %v1152
  %v1185 = vadd.f32 %v1081, %v1153
  %v1186 = vadd.f32 %v1082, %v1154
  %v1187 = vadd.f32 %v1083, %v1155
  %v1188 = vadd.f32 %v1084, %v1156
  %v1189 = vadd.f32 %v1085, %v1157
  %v1190 = vadd.f32 %v1086, %v1158
  %v1191 = vadd.f32 %v1087, %v1159
  %v1192 = vadd.f32 %v1088, %v1160
  %v1193 = vadd.f32 %v1089, %v1161
  %v1194 = vld [vmem:[%s881 + $0x3] sm:$0xff]
  %v1195 = vld [vmem:[%s881 + $0xb] sm:$0xff]
  %v1196 = vld [vmem:[%s881 + $0x1b] sm:$0xff]
  %v1197 = vld [vmem:[%s881 + $0x23] sm:$0xff]
  %v1198 = vld [vmem:[%s881 + $0x33] sm:$0xff]
  %v1199 = vld [vmem:[%s881 + $0x3b] sm:$0xff]
  %v1200 = vld [vmem:[%s881 + $0x4b] sm:$0xff]
  %v1201 = vld [vmem:[%s881 + $0x53] sm:$0xff]
  %v1202 = vld [vmem:[%s881 + $0x63] sm:$0xff]
  %v1203 = vld [vmem:[%s881 + $0x6b] sm:$0xff]
  %v1204 = vld [vmem:[%s881 + $0x7b] sm:$0xff]
  %v1205 = vld [vmem:[%s881 + $0x83] sm:$0xff]
  %v1206 = vld [vmem:[%s881 + $0x93] sm:$0xff]
  %v1207 = vld [vmem:[%s881 + $0x9b] sm:$0xff]
  %v1208 = vld [vmem:[%s881 + $0xab] sm:$0xff]
  %v1209 = vld [vmem:[%s881 + $0xb3] sm:$0xff]
  %v1210 = vld [vmem:[%s881 + $0xc3] sm:$0xff]
  %v1211 = vld [vmem:[%s881 + $0xcb] sm:$0xff]
  %v1212 = vld [vmem:[%s881 + $0xdb] sm:$0xff]
  %v1213 = vld [vmem:[%s881 + $0xe3] sm:$0xff]
  %v1214 = vld [vmem:[%s881 + $0xf3] sm:$0xff]
  %v1215 = vld [vmem:[%s881 + $0xfb] sm:$0xff]
  %v1216 = vld [vmem:[%s881 + $0x10b] sm:$0xff]
  %v1217 = vld [vmem:[%s881 + $0x113] sm:$0xff]
  %v1218 = vld [vmem:[%s881 + $0x123] sm:$0xff]
  %v1219 = vld [vmem:[%s881 + $0x12b] sm:$0xff]
  %v1220 = vld [vmem:[%s881 + $0x13b] sm:$0xff]
  %v1221 = vld [vmem:[%s881 + $0x143] sm:$0xff]
  %v1222 = vld [vmem:[%s881 + $0x153] sm:$0xff]
  %v1223 = vld [vmem:[%s881 + $0x15b] sm:$0xff]
  %v1224 = vld [vmem:[%s881 + $0x16b] sm:$0xff]
  %v1225 = vld [vmem:[%s881 + $0x173] sm:$0xff]
  %s1226 = scalar_lea.vmem %s0, 10
  %v1227 = vld [vmem:[%s1226] sm:$0x1]
  %v1229 = vlaneseq
  %v1230 = vshrl.u32 %v1229, 7
  %v1231 = vsub.s32 0, %v1230
  %v1232 = vrot.slane %v1227, %v1231
  %v1234 = vmul.f32 %v1194, %v1232
  %v1235 = vmul.f32 %v1195, %v1232
  %v1236 = vmul.f32 %v1196, %v1232
  %v1237 = vmul.f32 %v1197, %v1232
  %v1238 = vmul.f32 %v1198, %v1232
  %v1239 = vmul.f32 %v1199, %v1232
  %v1240 = vmul.f32 %v1200, %v1232
  %v1241 = vmul.f32 %v1201, %v1232
  %v1242 = vmul.f32 %v1202, %v1232
  %v1243 = vmul.f32 %v1203, %v1232
  %v1244 = vmul.f32 %v1204, %v1232
  %v1245 = vmul.f32 %v1205, %v1232
  %v1246 = vmul.f32 %v1206, %v1232
  %v1247 = vmul.f32 %v1207, %v1232
  %v1248 = vmul.f32 %v1208, %v1232
  %v1249 = vmul.f32 %v1209, %v1232
  %v1250 = vmul.f32 %v1210, %v1232
  %v1251 = vmul.f32 %v1211, %v1232
  %v1252 = vmul.f32 %v1212, %v1232
  %v1253 = vmul.f32 %v1213, %v1232
  %v1254 = vmul.f32 %v1214, %v1232
  %v1255 = vmul.f32 %v1215, %v1232
  %v1256 = vmul.f32 %v1216, %v1232
  %v1257 = vmul.f32 %v1217, %v1232
  %v1258 = vmul.f32 %v1218, %v1232
  %v1259 = vmul.f32 %v1219, %v1232
  %v1260 = vmul.f32 %v1220, %v1232
  %v1261 = vmul.f32 %v1221, %v1232
  %v1262 = vmul.f32 %v1222, %v1232
  %v1263 = vmul.f32 %v1223, %v1232
  %v1264 = vmul.f32 %v1224, %v1232
  %v1265 = vmul.f32 %v1225, %v1232
  %v1266 = vadd.f32 %v1162, %v1234
  %v1267 = vadd.f32 %v1163, %v1235
  %v1268 = vadd.f32 %v1164, %v1236
  %v1269 = vadd.f32 %v1165, %v1237
  %v1270 = vadd.f32 %v1166, %v1238
  %v1271 = vadd.f32 %v1167, %v1239
  %v1272 = vadd.f32 %v1168, %v1240
  %v1273 = vadd.f32 %v1169, %v1241
  %v1274 = vadd.f32 %v1170, %v1242
  %v1275 = vadd.f32 %v1171, %v1243
  %v1276 = vadd.f32 %v1172, %v1244
  %v1277 = vadd.f32 %v1173, %v1245
  %v1278 = vadd.f32 %v1174, %v1246
  %v1279 = vadd.f32 %v1175, %v1247
  %v1280 = vadd.f32 %v1176, %v1248
  %v1281 = vadd.f32 %v1177, %v1249
  %v1282 = vadd.f32 %v1178, %v1250
  %v1283 = vadd.f32 %v1179, %v1251
  %v1284 = vadd.f32 %v1180, %v1252
  %v1285 = vadd.f32 %v1181, %v1253
  %v1286 = vadd.f32 %v1182, %v1254
  %v1287 = vadd.f32 %v1183, %v1255
  %v1288 = vadd.f32 %v1184, %v1256
  %v1289 = vadd.f32 %v1185, %v1257
  %v1290 = vadd.f32 %v1186, %v1258
  %v1291 = vadd.f32 %v1187, %v1259
  %v1292 = vadd.f32 %v1188, %v1260
  %v1293 = vadd.f32 %v1189, %v1261
  %v1294 = vadd.f32 %v1190, %v1262
  %v1295 = vadd.f32 %v1191, %v1263
  %v1296 = vadd.f32 %v1192, %v1264
  %v1297 = vadd.f32 %v1193, %v1265
  %v1298 = vld [vmem:[%s881 + $0x4] sm:$0xff]
  %v1299 = vld [vmem:[%s881 + $0xc] sm:$0xff]
  %v1300 = vld [vmem:[%s881 + $0x1c] sm:$0xff]
  %v1301 = vld [vmem:[%s881 + $0x24] sm:$0xff]
  %v1302 = vld [vmem:[%s881 + $0x34] sm:$0xff]
  %v1303 = vld [vmem:[%s881 + $0x3c] sm:$0xff]
  %v1304 = vld [vmem:[%s881 + $0x4c] sm:$0xff]
  %v1305 = vld [vmem:[%s881 + $0x54] sm:$0xff]
  %v1306 = vld [vmem:[%s881 + $0x64] sm:$0xff]
  %v1307 = vld [vmem:[%s881 + $0x6c] sm:$0xff]
  %v1308 = vld [vmem:[%s881 + $0x7c] sm:$0xff]
  %v1309 = vld [vmem:[%s881 + $0x84] sm:$0xff]
  %v1310 = vld [vmem:[%s881 + $0x94] sm:$0xff]
  %v1311 = vld [vmem:[%s881 + $0x9c] sm:$0xff]
  %v1312 = vld [vmem:[%s881 + $0xac] sm:$0xff]
  %v1313 = vld [vmem:[%s881 + $0xb4] sm:$0xff]
  %v1314 = vld [vmem:[%s881 + $0xc4] sm:$0xff]
  %v1315 = vld [vmem:[%s881 + $0xcc] sm:$0xff]
  %v1316 = vld [vmem:[%s881 + $0xdc] sm:$0xff]
  %v1317 = vld [vmem:[%s881 + $0xe4] sm:$0xff]
  %v1318 = vld [vmem:[%s881 + $0xf4] sm:$0xff]
  %v1319 = vld [vmem:[%s881 + $0xfc] sm:$0xff]
  %v1320 = vld [vmem:[%s881 + $0x10c] sm:$0xff]
  %v1321 = vld [vmem:[%s881 + $0x114] sm:$0xff]
  %v1322 = vld [vmem:[%s881 + $0x124] sm:$0xff]
  %v1323 = vld [vmem:[%s881 + $0x12c] sm:$0xff]
  %v1324 = vld [vmem:[%s881 + $0x13c] sm:$0xff]
  %v1325 = vld [vmem:[%s881 + $0x144] sm:$0xff]
  %v1326 = vld [vmem:[%s881 + $0x154] sm:$0xff]
  %v1327 = vld [vmem:[%s881 + $0x15c] sm:$0xff]
  %v1328 = vld [vmem:[%s881 + $0x16c] sm:$0xff]
  %v1329 = vld [vmem:[%s881 + $0x174] sm:$0xff]
  %s1330 = scalar_lea.vmem %s0, 11
  %v1331 = vld [vmem:[%s1330] sm:$0x1]
  %v1333 = vlaneseq
  %v1334 = vshrl.u32 %v1333, 7
  %v1335 = vsub.s32 0, %v1334
  %v1336 = vrot.slane %v1331, %v1335
  %v1338 = vmul.f32 %v1298, %v1336
  %v1339 = vmul.f32 %v1299, %v1336
  %v1340 = vmul.f32 %v1300, %v1336
  %v1341 = vmul.f32 %v1301, %v1336
  %v1342 = vmul.f32 %v1302, %v1336
  %v1343 = vmul.f32 %v1303, %v1336
  %v1344 = vmul.f32 %v1304, %v1336
  %v1345 = vmul.f32 %v1305, %v1336
  %v1346 = vmul.f32 %v1306, %v1336
  %v1347 = vmul.f32 %v1307, %v1336
  %v1348 = vmul.f32 %v1308, %v1336
  %v1349 = vmul.f32 %v1309, %v1336
  %v1350 = vmul.f32 %v1310, %v1336
  %v1351 = vmul.f32 %v1311, %v1336
  %v1352 = vmul.f32 %v1312, %v1336
  %v1353 = vmul.f32 %v1313, %v1336
  %v1354 = vmul.f32 %v1314, %v1336
  %v1355 = vmul.f32 %v1315, %v1336
  %v1356 = vmul.f32 %v1316, %v1336
  %v1357 = vmul.f32 %v1317, %v1336
  %v1358 = vmul.f32 %v1318, %v1336
  %v1359 = vmul.f32 %v1319, %v1336
  %v1360 = vmul.f32 %v1320, %v1336
  %v1361 = vmul.f32 %v1321, %v1336
  %v1362 = vmul.f32 %v1322, %v1336
  %v1363 = vmul.f32 %v1323, %v1336
  %v1364 = vmul.f32 %v1324, %v1336
  %v1365 = vmul.f32 %v1325, %v1336
  %v1366 = vmul.f32 %v1326, %v1336
  %v1367 = vmul.f32 %v1327, %v1336
  %v1368 = vmul.f32 %v1328, %v1336
  %v1369 = vmul.f32 %v1329, %v1336
  %v1370 = vadd.f32 %v1266, %v1338
  %v1371 = vadd.f32 %v1267, %v1339
  %v1372 = vadd.f32 %v1268, %v1340
  %v1373 = vadd.f32 %v1269, %v1341
  %v1374 = vadd.f32 %v1270, %v1342
  %v1375 = vadd.f32 %v1271, %v1343
  %v1376 = vadd.f32 %v1272, %v1344
  %v1377 = vadd.f32 %v1273, %v1345
  %v1378 = vadd.f32 %v1274, %v1346
  %v1379 = vadd.f32 %v1275, %v1347
  %v1380 = vadd.f32 %v1276, %v1348
  %v1381 = vadd.f32 %v1277, %v1349
  %v1382 = vadd.f32 %v1278, %v1350
  %v1383 = vadd.f32 %v1279, %v1351
  %v1384 = vadd.f32 %v1280, %v1352
  %v1385 = vadd.f32 %v1281, %v1353
  %v1386 = vadd.f32 %v1282, %v1354
  %v1387 = vadd.f32 %v1283, %v1355
  %v1388 = vadd.f32 %v1284, %v1356
  %v1389 = vadd.f32 %v1285, %v1357
  %v1390 = vadd.f32 %v1286, %v1358
  %v1391 = vadd.f32 %v1287, %v1359
  %v1392 = vadd.f32 %v1288, %v1360
  %v1393 = vadd.f32 %v1289, %v1361
  %v1394 = vadd.f32 %v1290, %v1362
  %v1395 = vadd.f32 %v1291, %v1363
  %v1396 = vadd.f32 %v1292, %v1364
  %v1397 = vadd.f32 %v1293, %v1365
  %v1398 = vadd.f32 %v1294, %v1366
  %v1399 = vadd.f32 %v1295, %v1367
  %v1400 = vadd.f32 %v1296, %v1368
  %v1401 = vadd.f32 %v1297, %v1369
  %v1402 = vld [vmem:[%s881 + $0x5] sm:$0xff]
  %v1403 = vld [vmem:[%s881 + $0xd] sm:$0xff]
  %v1404 = vld [vmem:[%s881 + $0x1d] sm:$0xff]
  %v1405 = vld [vmem:[%s881 + $0x25] sm:$0xff]
  %v1406 = vld [vmem:[%s881 + $0x35] sm:$0xff]
  %v1407 = vld [vmem:[%s881 + $0x3d] sm:$0xff]
  %v1408 = vld [vmem:[%s881 + $0x4d] sm:$0xff]
  %v1409 = vld [vmem:[%s881 + $0x55] sm:$0xff]
  %v1410 = vld [vmem:[%s881 + $0x65] sm:$0xff]
  %v1411 = vld [vmem:[%s881 + $0x6d] sm:$0xff]
  %v1412 = vld [vmem:[%s881 + $0x7d] sm:$0xff]
  %v1413 = vld [vmem:[%s881 + $0x85] sm:$0xff]
  %v1414 = vld [vmem:[%s881 + $0x95] sm:$0xff]
  %v1415 = vld [vmem:[%s881 + $0x9d] sm:$0xff]
  %v1416 = vld [vmem:[%s881 + $0xad] sm:$0xff]
  %v1417 = vld [vmem:[%s881 + $0xb5] sm:$0xff]
  %v1418 = vld [vmem:[%s881 + $0xc5] sm:$0xff]
  %v1419 = vld [vmem:[%s881 + $0xcd] sm:$0xff]
  %v1420 = vld [vmem:[%s881 + $0xdd] sm:$0xff]
  %v1421 = vld [vmem:[%s881 + $0xe5] sm:$0xff]
  %v1422 = vld [vmem:[%s881 + $0xf5] sm:$0xff]
  %v1423 = vld [vmem:[%s881 + $0xfd] sm:$0xff]
  %v1424 = vld [vmem:[%s881 + $0x10d] sm:$0xff]
  %v1425 = vld [vmem:[%s881 + $0x115] sm:$0xff]
  %v1426 = vld [vmem:[%s881 + $0x125] sm:$0xff]
  %v1427 = vld [vmem:[%s881 + $0x12d] sm:$0xff]
  %v1428 = vld [vmem:[%s881 + $0x13d] sm:$0xff]
  %v1429 = vld [vmem:[%s881 + $0x145] sm:$0xff]
  %v1430 = vld [vmem:[%s881 + $0x155] sm:$0xff]
  %v1431 = vld [vmem:[%s881 + $0x15d] sm:$0xff]
  %v1432 = vld [vmem:[%s881 + $0x16d] sm:$0xff]
  %v1433 = vld [vmem:[%s881 + $0x175] sm:$0xff]
  %s1434 = scalar_lea.vmem %s0, 12
  %v1435 = vld [vmem:[%s1434] sm:$0x1]
  %v1437 = vlaneseq
  %v1438 = vshrl.u32 %v1437, 7
  %v1439 = vsub.s32 0, %v1438
  %v1440 = vrot.slane %v1435, %v1439
  %v1442 = vmul.f32 %v1402, %v1440
  %v1443 = vmul.f32 %v1403, %v1440
  %v1444 = vmul.f32 %v1404, %v1440
  %v1445 = vmul.f32 %v1405, %v1440
  %v1446 = vmul.f32 %v1406, %v1440
  %v1447 = vmul.f32 %v1407, %v1440
  %v1448 = vmul.f32 %v1408, %v1440
  %v1449 = vmul.f32 %v1409, %v1440
  %v1450 = vmul.f32 %v1410, %v1440
  %v1451 = vmul.f32 %v1411, %v1440
  %v1452 = vmul.f32 %v1412, %v1440
  %v1453 = vmul.f32 %v1413, %v1440
  %v1454 = vmul.f32 %v1414, %v1440
  %v1455 = vmul.f32 %v1415, %v1440
  %v1456 = vmul.f32 %v1416, %v1440
  %v1457 = vmul.f32 %v1417, %v1440
  %v1458 = vmul.f32 %v1418, %v1440
  %v1459 = vmul.f32 %v1419, %v1440
  %v1460 = vmul.f32 %v1420, %v1440
  %v1461 = vmul.f32 %v1421, %v1440
  %v1462 = vmul.f32 %v1422, %v1440
  %v1463 = vmul.f32 %v1423, %v1440
  %v1464 = vmul.f32 %v1424, %v1440
  %v1465 = vmul.f32 %v1425, %v1440
  %v1466 = vmul.f32 %v1426, %v1440
  %v1467 = vmul.f32 %v1427, %v1440
  %v1468 = vmul.f32 %v1428, %v1440
  %v1469 = vmul.f32 %v1429, %v1440
  %v1470 = vmul.f32 %v1430, %v1440
  %v1471 = vmul.f32 %v1431, %v1440
  %v1472 = vmul.f32 %v1432, %v1440
  %v1473 = vmul.f32 %v1433, %v1440
  %v1474 = vadd.f32 %v1370, %v1442
  %v1475 = vadd.f32 %v1371, %v1443
  %v1476 = vadd.f32 %v1372, %v1444
  %v1477 = vadd.f32 %v1373, %v1445
  %v1478 = vadd.f32 %v1374, %v1446
  %v1479 = vadd.f32 %v1375, %v1447
  %v1480 = vadd.f32 %v1376, %v1448
  %v1481 = vadd.f32 %v1377, %v1449
  %v1482 = vadd.f32 %v1378, %v1450
  %v1483 = vadd.f32 %v1379, %v1451
  %v1484 = vadd.f32 %v1380, %v1452
  %v1485 = vadd.f32 %v1381, %v1453
  %v1486 = vadd.f32 %v1382, %v1454
  %v1487 = vadd.f32 %v1383, %v1455
  %v1488 = vadd.f32 %v1384, %v1456
  %v1489 = vadd.f32 %v1385, %v1457
  %v1490 = vadd.f32 %v1386, %v1458
  %v1491 = vadd.f32 %v1387, %v1459
  %v1492 = vadd.f32 %v1388, %v1460
  %v1493 = vadd.f32 %v1389, %v1461
  %v1494 = vadd.f32 %v1390, %v1462
  %v1495 = vadd.f32 %v1391, %v1463
  %v1496 = vadd.f32 %v1392, %v1464
  %v1497 = vadd.f32 %v1393, %v1465
  %v1498 = vadd.f32 %v1394, %v1466
  %v1499 = vadd.f32 %v1395, %v1467
  %v1500 = vadd.f32 %v1396, %v1468
  %v1501 = vadd.f32 %v1397, %v1469
  %v1502 = vadd.f32 %v1398, %v1470
  %v1503 = vadd.f32 %v1399, %v1471
  %v1504 = vadd.f32 %v1400, %v1472
  %v1505 = vadd.f32 %v1401, %v1473
  %v1506 = vld [vmem:[%s881 + $0x6] sm:$0xff]
  %v1507 = vld [vmem:[%s881 + $0xe] sm:$0xff]
  %v1508 = vld [vmem:[%s881 + $0x1e] sm:$0xff]
  %v1509 = vld [vmem:[%s881 + $0x26] sm:$0xff]
  %v1510 = vld [vmem:[%s881 + $0x36] sm:$0xff]
  %v1511 = vld [vmem:[%s881 + $0x3e] sm:$0xff]
  %v1512 = vld [vmem:[%s881 + $0x4e] sm:$0xff]
  %v1513 = vld [vmem:[%s881 + $0x56] sm:$0xff]
  %v1514 = vld [vmem:[%s881 + $0x66] sm:$0xff]
  %v1515 = vld [vmem:[%s881 + $0x6e] sm:$0xff]
  %v1516 = vld [vmem:[%s881 + $0x7e] sm:$0xff]
  %v1517 = vld [vmem:[%s881 + $0x86] sm:$0xff]
  %v1518 = vld [vmem:[%s881 + $0x96] sm:$0xff]
  %v1519 = vld [vmem:[%s881 + $0x9e] sm:$0xff]
  %v1520 = vld [vmem:[%s881 + $0xae] sm:$0xff]
  %v1521 = vld [vmem:[%s881 + $0xb6] sm:$0xff]
  %v1522 = vld [vmem:[%s881 + $0xc6] sm:$0xff]
  %v1523 = vld [vmem:[%s881 + $0xce] sm:$0xff]
  %v1524 = vld [vmem:[%s881 + $0xde] sm:$0xff]
  %v1525 = vld [vmem:[%s881 + $0xe6] sm:$0xff]
  %v1526 = vld [vmem:[%s881 + $0xf6] sm:$0xff]
  %v1527 = vld [vmem:[%s881 + $0xfe] sm:$0xff]
  %v1528 = vld [vmem:[%s881 + $0x10e] sm:$0xff]
  %v1529 = vld [vmem:[%s881 + $0x116] sm:$0xff]
  %v1530 = vld [vmem:[%s881 + $0x126] sm:$0xff]
  %v1531 = vld [vmem:[%s881 + $0x12e] sm:$0xff]
  %v1532 = vld [vmem:[%s881 + $0x13e] sm:$0xff]
  %v1533 = vld [vmem:[%s881 + $0x146] sm:$0xff]
  %v1534 = vld [vmem:[%s881 + $0x156] sm:$0xff]
  %v1535 = vld [vmem:[%s881 + $0x15e] sm:$0xff]
  %v1536 = vld [vmem:[%s881 + $0x16e] sm:$0xff]
  %v1537 = vld [vmem:[%s881 + $0x176] sm:$0xff]
  %s1538 = scalar_lea.vmem %s0, 13
  %v1539 = vld [vmem:[%s1538] sm:$0x1]
  %v1541 = vlaneseq
  %v1542 = vshrl.u32 %v1541, 7
  %v1543 = vsub.s32 0, %v1542
  %v1544 = vrot.slane %v1539, %v1543
  %v1546 = vmul.f32 %v1506, %v1544
  %v1547 = vmul.f32 %v1507, %v1544
  %v1548 = vmul.f32 %v1508, %v1544
  %v1549 = vmul.f32 %v1509, %v1544
  %v1550 = vmul.f32 %v1510, %v1544
  %v1551 = vmul.f32 %v1511, %v1544
  %v1552 = vmul.f32 %v1512, %v1544
  %v1553 = vmul.f32 %v1513, %v1544
  %v1554 = vmul.f32 %v1514, %v1544
  %v1555 = vmul.f32 %v1515, %v1544
  %v1556 = vmul.f32 %v1516, %v1544
  %v1557 = vmul.f32 %v1517, %v1544
  %v1558 = vmul.f32 %v1518, %v1544
  %v1559 = vmul.f32 %v1519, %v1544
  %v1560 = vmul.f32 %v1520, %v1544
  %v1561 = vmul.f32 %v1521, %v1544
  %v1562 = vmul.f32 %v1522, %v1544
  %v1563 = vmul.f32 %v1523, %v1544
  %v1564 = vmul.f32 %v1524, %v1544
  %v1565 = vmul.f32 %v1525, %v1544
  %v1566 = vmul.f32 %v1526, %v1544
  %v1567 = vmul.f32 %v1527, %v1544
  %v1568 = vmul.f32 %v1528, %v1544
  %v1569 = vmul.f32 %v1529, %v1544
  %v1570 = vmul.f32 %v1530, %v1544
  %v1571 = vmul.f32 %v1531, %v1544
  %v1572 = vmul.f32 %v1532, %v1544
  %v1573 = vmul.f32 %v1533, %v1544
  %v1574 = vmul.f32 %v1534, %v1544
  %v1575 = vmul.f32 %v1535, %v1544
  %v1576 = vmul.f32 %v1536, %v1544
  %v1577 = vmul.f32 %v1537, %v1544
  %v1578 = vadd.f32 %v1474, %v1546
  %v1579 = vadd.f32 %v1475, %v1547
  %v1580 = vadd.f32 %v1476, %v1548
  %v1581 = vadd.f32 %v1477, %v1549
  %v1582 = vadd.f32 %v1478, %v1550
  %v1583 = vadd.f32 %v1479, %v1551
  %v1584 = vadd.f32 %v1480, %v1552
  %v1585 = vadd.f32 %v1481, %v1553
  %v1586 = vadd.f32 %v1482, %v1554
  %v1587 = vadd.f32 %v1483, %v1555
  %v1588 = vadd.f32 %v1484, %v1556
  %v1589 = vadd.f32 %v1485, %v1557
  %v1590 = vadd.f32 %v1486, %v1558
  %v1591 = vadd.f32 %v1487, %v1559
  %v1592 = vadd.f32 %v1488, %v1560
  %v1593 = vadd.f32 %v1489, %v1561
  %v1594 = vadd.f32 %v1490, %v1562
  %v1595 = vadd.f32 %v1491, %v1563
  %v1596 = vadd.f32 %v1492, %v1564
  %v1597 = vadd.f32 %v1493, %v1565
  %v1598 = vadd.f32 %v1494, %v1566
  %v1599 = vadd.f32 %v1495, %v1567
  %v1600 = vadd.f32 %v1496, %v1568
  %v1601 = vadd.f32 %v1497, %v1569
  %v1602 = vadd.f32 %v1498, %v1570
  %v1603 = vadd.f32 %v1499, %v1571
  %v1604 = vadd.f32 %v1500, %v1572
  %v1605 = vadd.f32 %v1501, %v1573
  %v1606 = vadd.f32 %v1502, %v1574
  %v1607 = vadd.f32 %v1503, %v1575
  %v1608 = vadd.f32 %v1504, %v1576
  %v1609 = vadd.f32 %v1505, %v1577
  %s1610 = scalar_lea.vmem [#allocation2], 48
  %v1611 = vld [vmem:[%s1610] sm:$0xff]
  %v1612 = vld [vmem:[%s1610 + $0x8] sm:$0xff]
  %v1613 = vld [vmem:[%s1610 + $0x18] sm:$0xff]
  %v1614 = vld [vmem:[%s1610 + $0x20] sm:$0xff]
  %v1615 = vld [vmem:[%s1610 + $0x30] sm:$0xff]
  %v1616 = vld [vmem:[%s1610 + $0x38] sm:$0xff]
  %v1617 = vld [vmem:[%s1610 + $0x48] sm:$0xff]
  %v1618 = vld [vmem:[%s1610 + $0x50] sm:$0xff]
  %v1619 = vld [vmem:[%s1610 + $0x60] sm:$0xff]
  %v1620 = vld [vmem:[%s1610 + $0x68] sm:$0xff]
  %v1621 = vld [vmem:[%s1610 + $0x78] sm:$0xff]
  %v1622 = vld [vmem:[%s1610 + $0x80] sm:$0xff]
  %v1623 = vld [vmem:[%s1610 + $0x90] sm:$0xff]
  %v1624 = vld [vmem:[%s1610 + $0x98] sm:$0xff]
  %v1625 = vld [vmem:[%s1610 + $0xa8] sm:$0xff]
  %v1626 = vld [vmem:[%s1610 + $0xb0] sm:$0xff]
  %v1627 = vld [vmem:[%s1610 + $0xc0] sm:$0xff]
  %v1628 = vld [vmem:[%s1610 + $0xc8] sm:$0xff]
  %v1629 = vld [vmem:[%s1610 + $0xd8] sm:$0xff]
  %v1630 = vld [vmem:[%s1610 + $0xe0] sm:$0xff]
  %v1631 = vld [vmem:[%s1610 + $0xf0] sm:$0xff]
  %v1632 = vld [vmem:[%s1610 + $0xf8] sm:$0xff]
  %v1633 = vld [vmem:[%s1610 + $0x108] sm:$0xff]
  %v1634 = vld [vmem:[%s1610 + $0x110] sm:$0xff]
  %v1635 = vld [vmem:[%s1610 + $0x120] sm:$0xff]
  %v1636 = vld [vmem:[%s1610 + $0x128] sm:$0xff]
  %v1637 = vld [vmem:[%s1610 + $0x138] sm:$0xff]
  %v1638 = vld [vmem:[%s1610 + $0x140] sm:$0xff]
  %v1639 = vld [vmem:[%s1610 + $0x150] sm:$0xff]
  %v1640 = vld [vmem:[%s1610 + $0x158] sm:$0xff]
  %v1641 = vld [vmem:[%s1610 + $0x168] sm:$0xff]
  %v1642 = vld [vmem:[%s1610 + $0x170] sm:$0xff]
  %s1643 = scalar_lea.vmem %s0, 14
  %v1644 = vld [vmem:[%s1643] sm:$0x1]
  %v1646 = vlaneseq
  %v1647 = vshrl.u32 %v1646, 7
  %v1648 = vsub.s32 0, %v1647
  %v1649 = vrot.slane %v1644, %v1648
  %v1651 = vmul.f32 %v1611, %v1649
  %v1652 = vmul.f32 %v1612, %v1649
  %v1653 = vmul.f32 %v1613, %v1649
  %v1654 = vmul.f32 %v1614, %v1649
  %v1655 = vmul.f32 %v1615, %v1649
  %v1656 = vmul.f32 %v1616, %v1649
  %v1657 = vmul.f32 %v1617, %v1649
  %v1658 = vmul.f32 %v1618, %v1649
  %v1659 = vmul.f32 %v1619, %v1649
  %v1660 = vmul.f32 %v1620, %v1649
  %v1661 = vmul.f32 %v1621, %v1649
  %v1662 = vmul.f32 %v1622, %v1649
  %v1663 = vmul.f32 %v1623, %v1649
  %v1664 = vmul.f32 %v1624, %v1649
  %v1665 = vmul.f32 %v1625, %v1649
  %v1666 = vmul.f32 %v1626, %v1649
  %v1667 = vmul.f32 %v1627, %v1649
  %v1668 = vmul.f32 %v1628, %v1649
  %v1669 = vmul.f32 %v1629, %v1649
  %v1670 = vmul.f32 %v1630, %v1649
  %v1671 = vmul.f32 %v1631, %v1649
  %v1672 = vmul.f32 %v1632, %v1649
  %v1673 = vmul.f32 %v1633, %v1649
  %v1674 = vmul.f32 %v1634, %v1649
  %v1675 = vmul.f32 %v1635, %v1649
  %v1676 = vmul.f32 %v1636, %v1649
  %v1677 = vmul.f32 %v1637, %v1649
  %v1678 = vmul.f32 %v1638, %v1649
  %v1679 = vmul.f32 %v1639, %v1649
  %v1680 = vmul.f32 %v1640, %v1649
  %v1681 = vmul.f32 %v1641, %v1649
  %v1682 = vmul.f32 %v1642, %v1649
  %v1683 = vadd.f32 %v1578, %v1651
  %v1684 = vadd.f32 %v1579, %v1652
  %v1685 = vadd.f32 %v1580, %v1653
  %v1686 = vadd.f32 %v1581, %v1654
  %v1687 = vadd.f32 %v1582, %v1655
  %v1688 = vadd.f32 %v1583, %v1656
  %v1689 = vadd.f32 %v1584, %v1657
  %v1690 = vadd.f32 %v1585, %v1658
  %v1691 = vadd.f32 %v1586, %v1659
  %v1692 = vadd.f32 %v1587, %v1660
  %v1693 = vadd.f32 %v1588, %v1661
  %v1694 = vadd.f32 %v1589, %v1662
  %v1695 = vadd.f32 %v1590, %v1663
  %v1696 = vadd.f32 %v1591, %v1664
  %v1697 = vadd.f32 %v1592, %v1665
  %v1698 = vadd.f32 %v1593, %v1666
  %v1699 = vadd.f32 %v1594, %v1667
  %v1700 = vadd.f32 %v1595, %v1668
  %v1701 = vadd.f32 %v1596, %v1669
  %v1702 = vadd.f32 %v1597, %v1670
  %v1703 = vadd.f32 %v1598, %v1671
  %v1704 = vadd.f32 %v1599, %v1672
  %v1705 = vadd.f32 %v1600, %v1673
  %v1706 = vadd.f32 %v1601, %v1674
  %v1707 = vadd.f32 %v1602, %v1675
  %v1708 = vadd.f32 %v1603, %v1676
  %v1709 = vadd.f32 %v1604, %v1677
  %v1710 = vadd.f32 %v1605, %v1678
  %v1711 = vadd.f32 %v1606, %v1679
  %v1712 = vadd.f32 %v1607, %v1680
  %v1713 = vadd.f32 %v1608, %v1681
  %v1714 = vadd.f32 %v1609, %v1682
  %v1715 = vld [vmem:[%s1610 + $0x1] sm:$0xff]
  %v1716 = vld [vmem:[%s1610 + $0x9] sm:$0xff]
  %v1717 = vld [vmem:[%s1610 + $0x19] sm:$0xff]
  %v1718 = vld [vmem:[%s1610 + $0x21] sm:$0xff]
  %v1719 = vld [vmem:[%s1610 + $0x31] sm:$0xff]
  %v1720 = vld [vmem:[%s1610 + $0x39] sm:$0xff]
  %v1721 = vld [vmem:[%s1610 + $0x49] sm:$0xff]
  %v1722 = vld [vmem:[%s1610 + $0x51] sm:$0xff]
  %v1723 = vld [vmem:[%s1610 + $0x61] sm:$0xff]
  %v1724 = vld [vmem:[%s1610 + $0x69] sm:$0xff]
  %v1725 = vld [vmem:[%s1610 + $0x79] sm:$0xff]
  %v1726 = vld [vmem:[%s1610 + $0x81] sm:$0xff]
  %v1727 = vld [vmem:[%s1610 + $0x91] sm:$0xff]
  %v1728 = vld [vmem:[%s1610 + $0x99] sm:$0xff]
  %v1729 = vld [vmem:[%s1610 + $0xa9] sm:$0xff]
  %v1730 = vld [vmem:[%s1610 + $0xb1] sm:$0xff]
  %v1731 = vld [vmem:[%s1610 + $0xc1] sm:$0xff]
  %v1732 = vld [vmem:[%s1610 + $0xc9] sm:$0xff]
  %v1733 = vld [vmem:[%s1610 + $0xd9] sm:$0xff]
  %v1734 = vld [vmem:[%s1610 + $0xe1] sm:$0xff]
  %v1735 = vld [vmem:[%s1610 + $0xf1] sm:$0xff]
  %v1736 = vld [vmem:[%s1610 + $0xf9] sm:$0xff]
  %v1737 = vld [vmem:[%s1610 + $0x109] sm:$0xff]
  %v1738 = vld [vmem:[%s1610 + $0x111] sm:$0xff]
  %v1739 = vld [vmem:[%s1610 + $0x121] sm:$0xff]
  %v1740 = vld [vmem:[%s1610 + $0x129] sm:$0xff]
  %v1741 = vld [vmem:[%s1610 + $0x139] sm:$0xff]
  %v1742 = vld [vmem:[%s1610 + $0x141] sm:$0xff]
  %v1743 = vld [vmem:[%s1610 + $0x151] sm:$0xff]
  %v1744 = vld [vmem:[%s1610 + $0x159] sm:$0xff]
  %v1745 = vld [vmem:[%s1610 + $0x169] sm:$0xff]
  %v1746 = vld [vmem:[%s1610 + $0x171] sm:$0xff]
  %s1747 = scalar_lea.vmem %s0, 15
  %v1748 = vld [vmem:[%s1747] sm:$0x1]
  %v1750 = vlaneseq
  %v1751 = vshrl.u32 %v1750, 7
  %v1752 = vsub.s32 0, %v1751
  %v1753 = vrot.slane %v1748, %v1752
  %v1755 = vmul.f32 %v1715, %v1753
  %v1756 = vmul.f32 %v1716, %v1753
  %v1757 = vmul.f32 %v1717, %v1753
  %v1758 = vmul.f32 %v1718, %v1753
  %v1759 = vmul.f32 %v1719, %v1753
  %v1760 = vmul.f32 %v1720, %v1753
  %v1761 = vmul.f32 %v1721, %v1753
  %v1762 = vmul.f32 %v1722, %v1753
  %v1763 = vmul.f32 %v1723, %v1753
  %v1764 = vmul.f32 %v1724, %v1753
  %v1765 = vmul.f32 %v1725, %v1753
  %v1766 = vmul.f32 %v1726, %v1753
  %v1767 = vmul.f32 %v1727, %v1753
  %v1768 = vmul.f32 %v1728, %v1753
  %v1769 = vmul.f32 %v1729, %v1753
  %v1770 = vmul.f32 %v1730, %v1753
  %v1771 = vmul.f32 %v1731, %v1753
  %v1772 = vmul.f32 %v1732, %v1753
  %v1773 = vmul.f32 %v1733, %v1753
  %v1774 = vmul.f32 %v1734, %v1753
  %v1775 = vmul.f32 %v1735, %v1753
  %v1776 = vmul.f32 %v1736, %v1753
  %v1777 = vmul.f32 %v1737, %v1753
  %v1778 = vmul.f32 %v1738, %v1753
  %v1779 = vmul.f32 %v1739, %v1753
  %v1780 = vmul.f32 %v1740, %v1753
  %v1781 = vmul.f32 %v1741, %v1753
  %v1782 = vmul.f32 %v1742, %v1753
  %v1783 = vmul.f32 %v1743, %v1753
  %v1784 = vmul.f32 %v1744, %v1753
  %v1785 = vmul.f32 %v1745, %v1753
  %v1786 = vmul.f32 %v1746, %v1753
  %v1787 = vadd.f32 %v1683, %v1755
  %v1788 = vadd.f32 %v1684, %v1756
  %v1789 = vadd.f32 %v1685, %v1757
  %v1790 = vadd.f32 %v1686, %v1758
  %v1791 = vadd.f32 %v1687, %v1759
  %v1792 = vadd.f32 %v1688, %v1760
  %v1793 = vadd.f32 %v1689, %v1761
  %v1794 = vadd.f32 %v1690, %v1762
  %v1795 = vadd.f32 %v1691, %v1763
  %v1796 = vadd.f32 %v1692, %v1764
  %v1797 = vadd.f32 %v1693, %v1765
  %v1798 = vadd.f32 %v1694, %v1766
  %v1799 = vadd.f32 %v1695, %v1767
  %v1800 = vadd.f32 %v1696, %v1768
  %v1801 = vadd.f32 %v1697, %v1769
  %v1802 = vadd.f32 %v1698, %v1770
  %v1803 = vadd.f32 %v1699, %v1771
  %v1804 = vadd.f32 %v1700, %v1772
  %v1805 = vadd.f32 %v1701, %v1773
  %v1806 = vadd.f32 %v1702, %v1774
  %v1807 = vadd.f32 %v1703, %v1775
  %v1808 = vadd.f32 %v1704, %v1776
  %v1809 = vadd.f32 %v1705, %v1777
  %v1810 = vadd.f32 %v1706, %v1778
  %v1811 = vadd.f32 %v1707, %v1779
  %v1812 = vadd.f32 %v1708, %v1780
  %v1813 = vadd.f32 %v1709, %v1781
  %v1814 = vadd.f32 %v1710, %v1782
  %v1815 = vadd.f32 %v1711, %v1783
  %v1816 = vadd.f32 %v1712, %v1784
  %v1817 = vadd.f32 %v1713, %v1785
  %v1818 = vadd.f32 %v1714, %v1786
  %v1819 = vld [vmem:[%s1610 + $0x2] sm:$0xff]
  %v1820 = vld [vmem:[%s1610 + $0xa] sm:$0xff]
  %v1821 = vld [vmem:[%s1610 + $0x1a] sm:$0xff]
  %v1822 = vld [vmem:[%s1610 + $0x22] sm:$0xff]
  %v1823 = vld [vmem:[%s1610 + $0x32] sm:$0xff]
  %v1824 = vld [vmem:[%s1610 + $0x3a] sm:$0xff]
  %v1825 = vld [vmem:[%s1610 + $0x4a] sm:$0xff]
  %v1826 = vld [vmem:[%s1610 + $0x52] sm:$0xff]
  %v1827 = vld [vmem:[%s1610 + $0x62] sm:$0xff]
  %v1828 = vld [vmem:[%s1610 + $0x6a] sm:$0xff]
  %v1829 = vld [vmem:[%s1610 + $0x7a] sm:$0xff]
  %v1830 = vld [vmem:[%s1610 + $0x82] sm:$0xff]
  %v1831 = vld [vmem:[%s1610 + $0x92] sm:$0xff]
  %v1832 = vld [vmem:[%s1610 + $0x9a] sm:$0xff]
  %v1833 = vld [vmem:[%s1610 + $0xaa] sm:$0xff]
  %v1834 = vld [vmem:[%s1610 + $0xb2] sm:$0xff]
  %v1835 = vld [vmem:[%s1610 + $0xc2] sm:$0xff]
  %v1836 = vld [vmem:[%s1610 + $0xca] sm:$0xff]
  %v1837 = vld [vmem:[%s1610 + $0xda] sm:$0xff]
  %v1838 = vld [vmem:[%s1610 + $0xe2] sm:$0xff]
  %v1839 = vld [vmem:[%s1610 + $0xf2] sm:$0xff]
  %v1840 = vld [vmem:[%s1610 + $0xfa] sm:$0xff]
  %v1841 = vld [vmem:[%s1610 + $0x10a] sm:$0xff]
  %v1842 = vld [vmem:[%s1610 + $0x112] sm:$0xff]
  %v1843 = vld [vmem:[%s1610 + $0x122] sm:$0xff]
  %v1844 = vld [vmem:[%s1610 + $0x12a] sm:$0xff]
  %v1845 = vld [vmem:[%s1610 + $0x13a] sm:$0xff]
  %v1846 = vld [vmem:[%s1610 + $0x142] sm:$0xff]
  %v1847 = vld [vmem:[%s1610 + $0x152] sm:$0xff]
  %v1848 = vld [vmem:[%s1610 + $0x15a] sm:$0xff]
  %v1849 = vld [vmem:[%s1610 + $0x16a] sm:$0xff]
  %v1850 = vld [vmem:[%s1610 + $0x172] sm:$0xff]
  %s1851 = scalar_lea.vmem %s0, 16
  %v1852 = vld [vmem:[%s1851] sm:$0x1]
  %v1854 = vlaneseq
  %v1855 = vshrl.u32 %v1854, 7
  %v1856 = vsub.s32 0, %v1855
  %v1857 = vrot.slane %v1852, %v1856
  %v1859 = vmul.f32 %v1819, %v1857
  %v1860 = vmul.f32 %v1820, %v1857
  %v1861 = vmul.f32 %v1821, %v1857
  %v1862 = vmul.f32 %v1822, %v1857
  %v1863 = vmul.f32 %v1823, %v1857
  %v1864 = vmul.f32 %v1824, %v1857
  %v1865 = vmul.f32 %v1825, %v1857
  %v1866 = vmul.f32 %v1826, %v1857
  %v1867 = vmul.f32 %v1827, %v1857
  %v1868 = vmul.f32 %v1828, %v1857
  %v1869 = vmul.f32 %v1829, %v1857
  %v1870 = vmul.f32 %v1830, %v1857
  %v1871 = vmul.f32 %v1831, %v1857
  %v1872 = vmul.f32 %v1832, %v1857
  %v1873 = vmul.f32 %v1833, %v1857
  %v1874 = vmul.f32 %v1834, %v1857
  %v1875 = vmul.f32 %v1835, %v1857
  %v1876 = vmul.f32 %v1836, %v1857
  %v1877 = vmul.f32 %v1837, %v1857
  %v1878 = vmul.f32 %v1838, %v1857
  %v1879 = vmul.f32 %v1839, %v1857
  %v1880 = vmul.f32 %v1840, %v1857
  %v1881 = vmul.f32 %v1841, %v1857
  %v1882 = vmul.f32 %v1842, %v1857
  %v1883 = vmul.f32 %v1843, %v1857
  %v1884 = vmul.f32 %v1844, %v1857
  %v1885 = vmul.f32 %v1845, %v1857
  %v1886 = vmul.f32 %v1846, %v1857
  %v1887 = vmul.f32 %v1847, %v1857
  %v1888 = vmul.f32 %v1848, %v1857
  %v1889 = vmul.f32 %v1849, %v1857
  %v1890 = vmul.f32 %v1850, %v1857
  %v1891 = vadd.f32 %v1787, %v1859
  %v1892 = vadd.f32 %v1788, %v1860
  %v1893 = vadd.f32 %v1789, %v1861
  %v1894 = vadd.f32 %v1790, %v1862
  %v1895 = vadd.f32 %v1791, %v1863
  %v1896 = vadd.f32 %v1792, %v1864
  %v1897 = vadd.f32 %v1793, %v1865
  %v1898 = vadd.f32 %v1794, %v1866
  %v1899 = vadd.f32 %v1795, %v1867
  %v1900 = vadd.f32 %v1796, %v1868
  %v1901 = vadd.f32 %v1797, %v1869
  %v1902 = vadd.f32 %v1798, %v1870
  %v1903 = vadd.f32 %v1799, %v1871
  %v1904 = vadd.f32 %v1800, %v1872
  %v1905 = vadd.f32 %v1801, %v1873
  %v1906 = vadd.f32 %v1802, %v1874
  %v1907 = vadd.f32 %v1803, %v1875
  %v1908 = vadd.f32 %v1804, %v1876
  %v1909 = vadd.f32 %v1805, %v1877
  %v1910 = vadd.f32 %v1806, %v1878
  %v1911 = vadd.f32 %v1807, %v1879
  %v1912 = vadd.f32 %v1808, %v1880
  %v1913 = vadd.f32 %v1809, %v1881
  %v1914 = vadd.f32 %v1810, %v1882
  %v1915 = vadd.f32 %v1811, %v1883
  %v1916 = vadd.f32 %v1812, %v1884
  %v1917 = vadd.f32 %v1813, %v1885
  %v1918 = vadd.f32 %v1814, %v1886
  %v1919 = vadd.f32 %v1815, %v1887
  %v1920 = vadd.f32 %v1816, %v1888
  %v1921 = vadd.f32 %v1817, %v1889
  %v1922 = vadd.f32 %v1818, %v1890
  %v1923 = vld [vmem:[%s1610 + $0x3] sm:$0xff]
  %v1924 = vld [vmem:[%s1610 + $0xb] sm:$0xff]
  %v1925 = vld [vmem:[%s1610 + $0x1b] sm:$0xff]
  %v1926 = vld [vmem:[%s1610 + $0x23] sm:$0xff]
  %v1927 = vld [vmem:[%s1610 + $0x33] sm:$0xff]
  %v1928 = vld [vmem:[%s1610 + $0x3b] sm:$0xff]
  %v1929 = vld [vmem:[%s1610 + $0x4b] sm:$0xff]
  %v1930 = vld [vmem:[%s1610 + $0x53] sm:$0xff]
  %v1931 = vld [vmem:[%s1610 + $0x63] sm:$0xff]
  %v1932 = vld [vmem:[%s1610 + $0x6b] sm:$0xff]
  %v1933 = vld [vmem:[%s1610 + $0x7b] sm:$0xff]
  %v1934 = vld [vmem:[%s1610 + $0x83] sm:$0xff]
  %v1935 = vld [vmem:[%s1610 + $0x93] sm:$0xff]
  %v1936 = vld [vmem:[%s1610 + $0x9b] sm:$0xff]
  %v1937 = vld [vmem:[%s1610 + $0xab] sm:$0xff]
  %v1938 = vld [vmem:[%s1610 + $0xb3] sm:$0xff]
  %v1939 = vld [vmem:[%s1610 + $0xc3] sm:$0xff]
  %v1940 = vld [vmem:[%s1610 + $0xcb] sm:$0xff]
  %v1941 = vld [vmem:[%s1610 + $0xdb] sm:$0xff]
  %v1942 = vld [vmem:[%s1610 + $0xe3] sm:$0xff]
  %v1943 = vld [vmem:[%s1610 + $0xf3] sm:$0xff]
  %v1944 = vld [vmem:[%s1610 + $0xfb] sm:$0xff]
  %v1945 = vld [vmem:[%s1610 + $0x10b] sm:$0xff]
  %v1946 = vld [vmem:[%s1610 + $0x113] sm:$0xff]
  %v1947 = vld [vmem:[%s1610 + $0x123] sm:$0xff]
  %v1948 = vld [vmem:[%s1610 + $0x12b] sm:$0xff]
  %v1949 = vld [vmem:[%s1610 + $0x13b] sm:$0xff]
  %v1950 = vld [vmem:[%s1610 + $0x143] sm:$0xff]
  %v1951 = vld [vmem:[%s1610 + $0x153] sm:$0xff]
  %v1952 = vld [vmem:[%s1610 + $0x15b] sm:$0xff]
  %v1953 = vld [vmem:[%s1610 + $0x16b] sm:$0xff]
  %v1954 = vld [vmem:[%s1610 + $0x173] sm:$0xff]
  %s1955 = scalar_lea.vmem %s0, 17
  %v1956 = vld [vmem:[%s1955] sm:$0x1]
  %v1958 = vlaneseq
  %v1959 = vshrl.u32 %v1958, 7
  %v1960 = vsub.s32 0, %v1959
  %v1961 = vrot.slane %v1956, %v1960
  %v1963 = vmul.f32 %v1923, %v1961
  %v1964 = vmul.f32 %v1924, %v1961
  %v1965 = vmul.f32 %v1925, %v1961
  %v1966 = vmul.f32 %v1926, %v1961
  %v1967 = vmul.f32 %v1927, %v1961
  %v1968 = vmul.f32 %v1928, %v1961
  %v1969 = vmul.f32 %v1929, %v1961
  %v1970 = vmul.f32 %v1930, %v1961
  %v1971 = vmul.f32 %v1931, %v1961
  %v1972 = vmul.f32 %v1932, %v1961
  %v1973 = vmul.f32 %v1933, %v1961
  %v1974 = vmul.f32 %v1934, %v1961
  %v1975 = vmul.f32 %v1935, %v1961
  %v1976 = vmul.f32 %v1936, %v1961
  %v1977 = vmul.f32 %v1937, %v1961
  %v1978 = vmul.f32 %v1938, %v1961
  %v1979 = vmul.f32 %v1939, %v1961
  %v1980 = vmul.f32 %v1940, %v1961
  %v1981 = vmul.f32 %v1941, %v1961
  %v1982 = vmul.f32 %v1942, %v1961
  %v1983 = vmul.f32 %v1943, %v1961
  %v1984 = vmul.f32 %v1944, %v1961
  %v1985 = vmul.f32 %v1945, %v1961
  %v1986 = vmul.f32 %v1946, %v1961
  %v1987 = vmul.f32 %v1947, %v1961
  %v1988 = vmul.f32 %v1948, %v1961
  %v1989 = vmul.f32 %v1949, %v1961
  %v1990 = vmul.f32 %v1950, %v1961
  %v1991 = vmul.f32 %v1951, %v1961
  %v1992 = vmul.f32 %v1952, %v1961
  %v1993 = vmul.f32 %v1953, %v1961
  %v1994 = vmul.f32 %v1954, %v1961
  %v1995 = vadd.f32 %v1891, %v1963
  %v1996 = vadd.f32 %v1892, %v1964
  %v1997 = vadd.f32 %v1893, %v1965
  %v1998 = vadd.f32 %v1894, %v1966
  %v1999 = vadd.f32 %v1895, %v1967
  %v2000 = vadd.f32 %v1896, %v1968
  %v2001 = vadd.f32 %v1897, %v1969
  %v2002 = vadd.f32 %v1898, %v1970
  %v2003 = vadd.f32 %v1899, %v1971
  %v2004 = vadd.f32 %v1900, %v1972
  %v2005 = vadd.f32 %v1901, %v1973
  %v2006 = vadd.f32 %v1902, %v1974
  %v2007 = vadd.f32 %v1903, %v1975
  %v2008 = vadd.f32 %v1904, %v1976
  %v2009 = vadd.f32 %v1905, %v1977
  %v2010 = vadd.f32 %v1906, %v1978
  %v2011 = vadd.f32 %v1907, %v1979
  %v2012 = vadd.f32 %v1908, %v1980
  %v2013 = vadd.f32 %v1909, %v1981
  %v2014 = vadd.f32 %v1910, %v1982
  %v2015 = vadd.f32 %v1911, %v1983
  %v2016 = vadd.f32 %v1912, %v1984
  %v2017 = vadd.f32 %v1913, %v1985
  %v2018 = vadd.f32 %v1914, %v1986
  %v2019 = vadd.f32 %v1915, %v1987
  %v2020 = vadd.f32 %v1916, %v1988
  %v2021 = vadd.f32 %v1917, %v1989
  %v2022 = vadd.f32 %v1918, %v1990
  %v2023 = vadd.f32 %v1919, %v1991
  %v2024 = vadd.f32 %v1920, %v1992
  %v2025 = vadd.f32 %v1921, %v1993
  %v2026 = vadd.f32 %v1922, %v1994
  %v2027 = vld [vmem:[%s1610 + $0x4] sm:$0xff]
  %v2028 = vld [vmem:[%s1610 + $0xc] sm:$0xff]
  %v2029 = vld [vmem:[%s1610 + $0x1c] sm:$0xff]
  %v2030 = vld [vmem:[%s1610 + $0x24] sm:$0xff]
  %v2031 = vld [vmem:[%s1610 + $0x34] sm:$0xff]
  %v2032 = vld [vmem:[%s1610 + $0x3c] sm:$0xff]
  %v2033 = vld [vmem:[%s1610 + $0x4c] sm:$0xff]
  %v2034 = vld [vmem:[%s1610 + $0x54] sm:$0xff]
  %v2035 = vld [vmem:[%s1610 + $0x64] sm:$0xff]
  %v2036 = vld [vmem:[%s1610 + $0x6c] sm:$0xff]
  %v2037 = vld [vmem:[%s1610 + $0x7c] sm:$0xff]
  %v2038 = vld [vmem:[%s1610 + $0x84] sm:$0xff]
  %v2039 = vld [vmem:[%s1610 + $0x94] sm:$0xff]
  %v2040 = vld [vmem:[%s1610 + $0x9c] sm:$0xff]
  %v2041 = vld [vmem:[%s1610 + $0xac] sm:$0xff]
  %v2042 = vld [vmem:[%s1610 + $0xb4] sm:$0xff]
  %v2043 = vld [vmem:[%s1610 + $0xc4] sm:$0xff]
  %v2044 = vld [vmem:[%s1610 + $0xcc] sm:$0xff]
  %v2045 = vld [vmem:[%s1610 + $0xdc] sm:$0xff]
  %v2046 = vld [vmem:[%s1610 + $0xe4] sm:$0xff]
  %v2047 = vld [vmem:[%s1610 + $0xf4] sm:$0xff]
  %v2048 = vld [vmem:[%s1610 + $0xfc] sm:$0xff]
  %v2049 = vld [vmem:[%s1610 + $0x10c] sm:$0xff]
  %v2050 = vld [vmem:[%s1610 + $0x114] sm:$0xff]
  %v2051 = vld [vmem:[%s1610 + $0x124] sm:$0xff]
  %v2052 = vld [vmem:[%s1610 + $0x12c] sm:$0xff]
  %v2053 = vld [vmem:[%s1610 + $0x13c] sm:$0xff]
  %v2054 = vld [vmem:[%s1610 + $0x144] sm:$0xff]
  %v2055 = vld [vmem:[%s1610 + $0x154] sm:$0xff]
  %v2056 = vld [vmem:[%s1610 + $0x15c] sm:$0xff]
  %v2057 = vld [vmem:[%s1610 + $0x16c] sm:$0xff]
  %v2058 = vld [vmem:[%s1610 + $0x174] sm:$0xff]
  %s2059 = scalar_lea.vmem %s0, 18
  %v2060 = vld [vmem:[%s2059] sm:$0x1]
  %v2062 = vlaneseq
  %v2063 = vshrl.u32 %v2062, 7
  %v2064 = vsub.s32 0, %v2063
  %v2065 = vrot.slane %v2060, %v2064
  %v2067 = vmul.f32 %v2027, %v2065
  %v2068 = vmul.f32 %v2028, %v2065
  %v2069 = vmul.f32 %v2029, %v2065
  %v2070 = vmul.f32 %v2030, %v2065
  %v2071 = vmul.f32 %v2031, %v2065
  %v2072 = vmul.f32 %v2032, %v2065
  %v2073 = vmul.f32 %v2033, %v2065
  %v2074 = vmul.f32 %v2034, %v2065
  %v2075 = vmul.f32 %v2035, %v2065
  %v2076 = vmul.f32 %v2036, %v2065
  %v2077 = vmul.f32 %v2037, %v2065
  %v2078 = vmul.f32 %v2038, %v2065
  %v2079 = vmul.f32 %v2039, %v2065
  %v2080 = vmul.f32 %v2040, %v2065
  %v2081 = vmul.f32 %v2041, %v2065
  %v2082 = vmul.f32 %v2042, %v2065
  %v2083 = vmul.f32 %v2043, %v2065
  %v2084 = vmul.f32 %v2044, %v2065
  %v2085 = vmul.f32 %v2045, %v2065
  %v2086 = vmul.f32 %v2046, %v2065
  %v2087 = vmul.f32 %v2047, %v2065
  %v2088 = vmul.f32 %v2048, %v2065
  %v2089 = vmul.f32 %v2049, %v2065
  %v2090 = vmul.f32 %v2050, %v2065
  %v2091 = vmul.f32 %v2051, %v2065
  %v2092 = vmul.f32 %v2052, %v2065
  %v2093 = vmul.f32 %v2053, %v2065
  %v2094 = vmul.f32 %v2054, %v2065
  %v2095 = vmul.f32 %v2055, %v2065
  %v2096 = vmul.f32 %v2056, %v2065
  %v2097 = vmul.f32 %v2057, %v2065
  %v2098 = vmul.f32 %v2058, %v2065
  %v2099 = vadd.f32 %v1995, %v2067
  %v2100 = vadd.f32 %v1996, %v2068
  %v2101 = vadd.f32 %v1997, %v2069
  %v2102 = vadd.f32 %v1998, %v2070
  %v2103 = vadd.f32 %v1999, %v2071
  %v2104 = vadd.f32 %v2000, %v2072
  %v2105 = vadd.f32 %v2001, %v2073
  %v2106 = vadd.f32 %v2002, %v2074
  %v2107 = vadd.f32 %v2003, %v2075
  %v2108 = vadd.f32 %v2004, %v2076
  %v2109 = vadd.f32 %v2005, %v2077
  %v2110 = vadd.f32 %v2006, %v2078
  %v2111 = vadd.f32 %v2007, %v2079
  %v2112 = vadd.f32 %v2008, %v2080
  %v2113 = vadd.f32 %v2009, %v2081
  %v2114 = vadd.f32 %v2010, %v2082
  %v2115 = vadd.f32 %v2011, %v2083
  %v2116 = vadd.f32 %v2012, %v2084
  %v2117 = vadd.f32 %v2013, %v2085
  %v2118 = vadd.f32 %v2014, %v2086
  %v2119 = vadd.f32 %v2015, %v2087
  %v2120 = vadd.f32 %v2016, %v2088
  %v2121 = vadd.f32 %v2017, %v2089
  %v2122 = vadd.f32 %v2018, %v2090
  %v2123 = vadd.f32 %v2019, %v2091
  %v2124 = vadd.f32 %v2020, %v2092
  %v2125 = vadd.f32 %v2021, %v2093
  %v2126 = vadd.f32 %v2022, %v2094
  %v2127 = vadd.f32 %v2023, %v2095
  %v2128 = vadd.f32 %v2024, %v2096
  %v2129 = vadd.f32 %v2025, %v2097
  %v2130 = vadd.f32 %v2026, %v2098
  %v2131 = vld [vmem:[%s1610 + $0x5] sm:$0xff]
  %v2132 = vld [vmem:[%s1610 + $0xd] sm:$0xff]
  %v2133 = vld [vmem:[%s1610 + $0x1d] sm:$0xff]
  %v2134 = vld [vmem:[%s1610 + $0x25] sm:$0xff]
  %v2135 = vld [vmem:[%s1610 + $0x35] sm:$0xff]
  %v2136 = vld [vmem:[%s1610 + $0x3d] sm:$0xff]
  %v2137 = vld [vmem:[%s1610 + $0x4d] sm:$0xff]
  %v2138 = vld [vmem:[%s1610 + $0x55] sm:$0xff]
  %v2139 = vld [vmem:[%s1610 + $0x65] sm:$0xff]
  %v2140 = vld [vmem:[%s1610 + $0x6d] sm:$0xff]
  %v2141 = vld [vmem:[%s1610 + $0x7d] sm:$0xff]
  %v2142 = vld [vmem:[%s1610 + $0x85] sm:$0xff]
  %v2143 = vld [vmem:[%s1610 + $0x95] sm:$0xff]
  %v2144 = vld [vmem:[%s1610 + $0x9d] sm:$0xff]
  %v2145 = vld [vmem:[%s1610 + $0xad] sm:$0xff]
  %v2146 = vld [vmem:[%s1610 + $0xb5] sm:$0xff]
  %v2147 = vld [vmem:[%s1610 + $0xc5] sm:$0xff]
  %v2148 = vld [vmem:[%s1610 + $0xcd] sm:$0xff]
  %v2149 = vld [vmem:[%s1610 + $0xdd] sm:$0xff]
  %v2150 = vld [vmem:[%s1610 + $0xe5] sm:$0xff]
  %v2151 = vld [vmem:[%s1610 + $0xf5] sm:$0xff]
  %v2152 = vld [vmem:[%s1610 + $0xfd] sm:$0xff]
  %v2153 = vld [vmem:[%s1610 + $0x10d] sm:$0xff]
  %v2154 = vld [vmem:[%s1610 + $0x115] sm:$0xff]
  %v2155 = vld [vmem:[%s1610 + $0x125] sm:$0xff]
  %v2156 = vld [vmem:[%s1610 + $0x12d] sm:$0xff]
  %v2157 = vld [vmem:[%s1610 + $0x13d] sm:$0xff]
  %v2158 = vld [vmem:[%s1610 + $0x145] sm:$0xff]
  %v2159 = vld [vmem:[%s1610 + $0x155] sm:$0xff]
  %v2160 = vld [vmem:[%s1610 + $0x15d] sm:$0xff]
  %v2161 = vld [vmem:[%s1610 + $0x16d] sm:$0xff]
  %v2162 = vld [vmem:[%s1610 + $0x175] sm:$0xff]
  %s2163 = scalar_lea.vmem %s0, 19
  %v2164 = vld [vmem:[%s2163] sm:$0x1]
  %v2166 = vlaneseq
  %v2167 = vshrl.u32 %v2166, 7
  %v2168 = vsub.s32 0, %v2167
  %v2169 = vrot.slane %v2164, %v2168
  %v2171 = vmul.f32 %v2131, %v2169
  %v2172 = vmul.f32 %v2132, %v2169
  %v2173 = vmul.f32 %v2133, %v2169
  %v2174 = vmul.f32 %v2134, %v2169
  %v2175 = vmul.f32 %v2135, %v2169
  %v2176 = vmul.f32 %v2136, %v2169
  %v2177 = vmul.f32 %v2137, %v2169
  %v2178 = vmul.f32 %v2138, %v2169
  %v2179 = vmul.f32 %v2139, %v2169
  %v2180 = vmul.f32 %v2140, %v2169
  %v2181 = vmul.f32 %v2141, %v2169
  %v2182 = vmul.f32 %v2142, %v2169
  %v2183 = vmul.f32 %v2143, %v2169
  %v2184 = vmul.f32 %v2144, %v2169
  %v2185 = vmul.f32 %v2145, %v2169
  %v2186 = vmul.f32 %v2146, %v2169
  %v2187 = vmul.f32 %v2147, %v2169
  %v2188 = vmul.f32 %v2148, %v2169
  %v2189 = vmul.f32 %v2149, %v2169
  %v2190 = vmul.f32 %v2150, %v2169
  %v2191 = vmul.f32 %v2151, %v2169
  %v2192 = vmul.f32 %v2152, %v2169
  %v2193 = vmul.f32 %v2153, %v2169
  %v2194 = vmul.f32 %v2154, %v2169
  %v2195 = vmul.f32 %v2155, %v2169
  %v2196 = vmul.f32 %v2156, %v2169
  %v2197 = vmul.f32 %v2157, %v2169
  %v2198 = vmul.f32 %v2158, %v2169
  %v2199 = vmul.f32 %v2159, %v2169
  %v2200 = vmul.f32 %v2160, %v2169
  %v2201 = vmul.f32 %v2161, %v2169
  %v2202 = vmul.f32 %v2162, %v2169
  %v2203 = vadd.f32 %v2099, %v2171
  %v2204 = vadd.f32 %v2100, %v2172
  %v2205 = vadd.f32 %v2101, %v2173
  %v2206 = vadd.f32 %v2102, %v2174
  %v2207 = vadd.f32 %v2103, %v2175
  %v2208 = vadd.f32 %v2104, %v2176
  %v2209 = vadd.f32 %v2105, %v2177
  %v2210 = vadd.f32 %v2106, %v2178
  %v2211 = vadd.f32 %v2107, %v2179
  %v2212 = vadd.f32 %v2108, %v2180
  %v2213 = vadd.f32 %v2109, %v2181
  %v2214 = vadd.f32 %v2110, %v2182
  %v2215 = vadd.f32 %v2111, %v2183
  %v2216 = vadd.f32 %v2112, %v2184
  %v2217 = vadd.f32 %v2113, %v2185
  %v2218 = vadd.f32 %v2114, %v2186
  %v2219 = vadd.f32 %v2115, %v2187
  %v2220 = vadd.f32 %v2116, %v2188
  %v2221 = vadd.f32 %v2117, %v2189
  %v2222 = vadd.f32 %v2118, %v2190
  %v2223 = vadd.f32 %v2119, %v2191
  %v2224 = vadd.f32 %v2120, %v2192
  %v2225 = vadd.f32 %v2121, %v2193
  %v2226 = vadd.f32 %v2122, %v2194
  %v2227 = vadd.f32 %v2123, %v2195
  %v2228 = vadd.f32 %v2124, %v2196
  %v2229 = vadd.f32 %v2125, %v2197
  %v2230 = vadd.f32 %v2126, %v2198
  %v2231 = vadd.f32 %v2127, %v2199
  %v2232 = vadd.f32 %v2128, %v2200
  %v2233 = vadd.f32 %v2129, %v2201
  %v2234 = vadd.f32 %v2130, %v2202
  %v2235 = vld [vmem:[%s1610 + $0x6] sm:$0xff]
  %v2236 = vld [vmem:[%s1610 + $0xe] sm:$0xff]
  %v2237 = vld [vmem:[%s1610 + $0x1e] sm:$0xff]
  %v2238 = vld [vmem:[%s1610 + $0x26] sm:$0xff]
  %v2239 = vld [vmem:[%s1610 + $0x36] sm:$0xff]
  %v2240 = vld [vmem:[%s1610 + $0x3e] sm:$0xff]
  %v2241 = vld [vmem:[%s1610 + $0x4e] sm:$0xff]
  %v2242 = vld [vmem:[%s1610 + $0x56] sm:$0xff]
  %v2243 = vld [vmem:[%s1610 + $0x66] sm:$0xff]
  %v2244 = vld [vmem:[%s1610 + $0x6e] sm:$0xff]
  %v2245 = vld [vmem:[%s1610 + $0x7e] sm:$0xff]
  %v2246 = vld [vmem:[%s1610 + $0x86] sm:$0xff]
  %v2247 = vld [vmem:[%s1610 + $0x96] sm:$0xff]
  %v2248 = vld [vmem:[%s1610 + $0x9e] sm:$0xff]
  %v2249 = vld [vmem:[%s1610 + $0xae] sm:$0xff]
  %v2250 = vld [vmem:[%s1610 + $0xb6] sm:$0xff]
  %v2251 = vld [vmem:[%s1610 + $0xc6] sm:$0xff]
  %v2252 = vld [vmem:[%s1610 + $0xce] sm:$0xff]
  %v2253 = vld [vmem:[%s1610 + $0xde] sm:$0xff]
  %v2254 = vld [vmem:[%s1610 + $0xe6] sm:$0xff]
  %v2255 = vld [vmem:[%s1610 + $0xf6] sm:$0xff]
  %v2256 = vld [vmem:[%s1610 + $0xfe] sm:$0xff]
  %v2257 = vld [vmem:[%s1610 + $0x10e] sm:$0xff]
  %v2258 = vld [vmem:[%s1610 + $0x116] sm:$0xff]
  %v2259 = vld [vmem:[%s1610 + $0x126] sm:$0xff]
  %v2260 = vld [vmem:[%s1610 + $0x12e] sm:$0xff]
  %v2261 = vld [vmem:[%s1610 + $0x13e] sm:$0xff]
  %v2262 = vld [vmem:[%s1610 + $0x146] sm:$0xff]
  %v2263 = vld [vmem:[%s1610 + $0x156] sm:$0xff]
  %v2264 = vld [vmem:[%s1610 + $0x15e] sm:$0xff]
  %v2265 = vld [vmem:[%s1610 + $0x16e] sm:$0xff]
  %v2266 = vld [vmem:[%s1610 + $0x176] sm:$0xff]
  %s2267 = scalar_lea.vmem %s0, 20
  %v2268 = vld [vmem:[%s2267] sm:$0x1]
  %v2270 = vlaneseq
  %v2271 = vshrl.u32 %v2270, 7
  %v2272 = vsub.s32 0, %v2271
  %v2273 = vrot.slane %v2268, %v2272
  %v2275 = vmul.f32 %v2235, %v2273
  %v2276 = vmul.f32 %v2236, %v2273
  %v2277 = vmul.f32 %v2237, %v2273
  %v2278 = vmul.f32 %v2238, %v2273
  %v2279 = vmul.f32 %v2239, %v2273
  %v2280 = vmul.f32 %v2240, %v2273
  %v2281 = vmul.f32 %v2241, %v2273
  %v2282 = vmul.f32 %v2242, %v2273
  %v2283 = vmul.f32 %v2243, %v2273
  %v2284 = vmul.f32 %v2244, %v2273
  %v2285 = vmul.f32 %v2245, %v2273
  %v2286 = vmul.f32 %v2246, %v2273
  %v2287 = vmul.f32 %v2247, %v2273
  %v2288 = vmul.f32 %v2248, %v2273
  %v2289 = vmul.f32 %v2249, %v2273
  %v2290 = vmul.f32 %v2250, %v2273
  %v2291 = vmul.f32 %v2251, %v2273
  %v2292 = vmul.f32 %v2252, %v2273
  %v2293 = vmul.f32 %v2253, %v2273
  %v2294 = vmul.f32 %v2254, %v2273
  %v2295 = vmul.f32 %v2255, %v2273
  %v2296 = vmul.f32 %v2256, %v2273
  %v2297 = vmul.f32 %v2257, %v2273
  %v2298 = vmul.f32 %v2258, %v2273
  %v2299 = vmul.f32 %v2259, %v2273
  %v2300 = vmul.f32 %v2260, %v2273
  %v2301 = vmul.f32 %v2261, %v2273
  %v2302 = vmul.f32 %v2262, %v2273
  %v2303 = vmul.f32 %v2263, %v2273
  %v2304 = vmul.f32 %v2264, %v2273
  %v2305 = vmul.f32 %v2265, %v2273
  %v2306 = vmul.f32 %v2266, %v2273
  %v2307 = vadd.f32 %v2203, %v2275
  %v2308 = vadd.f32 %v2204, %v2276
  %v2309 = vadd.f32 %v2205, %v2277
  %v2310 = vadd.f32 %v2206, %v2278
  %v2311 = vadd.f32 %v2207, %v2279
  %v2312 = vadd.f32 %v2208, %v2280
  %v2313 = vadd.f32 %v2209, %v2281
  %v2314 = vadd.f32 %v2210, %v2282
  %v2315 = vadd.f32 %v2211, %v2283
  %v2316 = vadd.f32 %v2212, %v2284
  %v2317 = vadd.f32 %v2213, %v2285
  %v2318 = vadd.f32 %v2214, %v2286
  %v2319 = vadd.f32 %v2215, %v2287
  %v2320 = vadd.f32 %v2216, %v2288
  %v2321 = vadd.f32 %v2217, %v2289
  %v2322 = vadd.f32 %v2218, %v2290
  %v2323 = vadd.f32 %v2219, %v2291
  %v2324 = vadd.f32 %v2220, %v2292
  %v2325 = vadd.f32 %v2221, %v2293
  %v2326 = vadd.f32 %v2222, %v2294
  %v2327 = vadd.f32 %v2223, %v2295
  %v2328 = vadd.f32 %v2224, %v2296
  %v2329 = vadd.f32 %v2225, %v2297
  %v2330 = vadd.f32 %v2226, %v2298
  %v2331 = vadd.f32 %v2227, %v2299
  %v2332 = vadd.f32 %v2228, %v2300
  %v2333 = vadd.f32 %v2229, %v2301
  %v2334 = vadd.f32 %v2230, %v2302
  %v2335 = vadd.f32 %v2231, %v2303
  %v2336 = vadd.f32 %v2232, %v2304
  %v2337 = vadd.f32 %v2233, %v2305
  %v2338 = vadd.f32 %v2234, %v2306
  %v2339 = vld [vmem:[%s114] sm:$0xff]
  %v2340 = vld [vmem:[%s114 + $0x8] sm:$0xff]
  %v2341 = vld [vmem:[%s114 + $0x18] sm:$0xff]
  %v2342 = vld [vmem:[%s114 + $0x20] sm:$0xff]
  %v2343 = vld [vmem:[%s114 + $0x30] sm:$0xff]
  %v2344 = vld [vmem:[%s114 + $0x38] sm:$0xff]
  %v2345 = vld [vmem:[%s114 + $0x48] sm:$0xff]
  %v2346 = vld [vmem:[%s114 + $0x50] sm:$0xff]
  %v2347 = vld [vmem:[%s114 + $0x60] sm:$0xff]
  %v2348 = vld [vmem:[%s114 + $0x68] sm:$0xff]
  %v2349 = vld [vmem:[%s114 + $0x78] sm:$0xff]
  %v2350 = vld [vmem:[%s114 + $0x80] sm:$0xff]
  %v2351 = vld [vmem:[%s114 + $0x90] sm:$0xff]
  %v2352 = vld [vmem:[%s114 + $0x98] sm:$0xff]
  %v2353 = vld [vmem:[%s114 + $0xa8] sm:$0xff]
  %v2354 = vld [vmem:[%s114 + $0xb0] sm:$0xff]
  %v2355 = vld [vmem:[%s114 + $0xc0] sm:$0xff]
  %v2356 = vld [vmem:[%s114 + $0xc8] sm:$0xff]
  %v2357 = vld [vmem:[%s114 + $0xd8] sm:$0xff]
  %v2358 = vld [vmem:[%s114 + $0xe0] sm:$0xff]
  %v2359 = vld [vmem:[%s114 + $0xf0] sm:$0xff]
  %v2360 = vld [vmem:[%s114 + $0xf8] sm:$0xff]
  %v2361 = vld [vmem:[%s114 + $0x108] sm:$0xff]
  %v2362 = vld [vmem:[%s114 + $0x110] sm:$0xff]
  %v2363 = vld [vmem:[%s114 + $0x120] sm:$0xff]
  %v2364 = vld [vmem:[%s114 + $0x128] sm:$0xff]
  %v2365 = vld [vmem:[%s114 + $0x138] sm:$0xff]
  %v2366 = vld [vmem:[%s114 + $0x140] sm:$0xff]
  %v2367 = vld [vmem:[%s114 + $0x150] sm:$0xff]
  %v2368 = vld [vmem:[%s114 + $0x158] sm:$0xff]
  %v2369 = vld [vmem:[%s114 + $0x168] sm:$0xff]
  %v2370 = vld [vmem:[%s114 + $0x170] sm:$0xff]
  %s2371 = scalar_lea.vmem %s0, 21
  %v2372 = vld [vmem:[%s2371] sm:$0x1]
  %v2374 = vlaneseq
  %v2375 = vshrl.u32 %v2374, 7
  %v2376 = vsub.s32 0, %v2375
  %v2377 = vrot.slane %v2372, %v2376
  %v2379 = vmul.f32 %v2339, %v2377
  %v2380 = vmul.f32 %v2340, %v2377
  %v2381 = vmul.f32 %v2341, %v2377
  %v2382 = vmul.f32 %v2342, %v2377
  %v2383 = vmul.f32 %v2343, %v2377
  %v2384 = vmul.f32 %v2344, %v2377
  %v2385 = vmul.f32 %v2345, %v2377
  %v2386 = vmul.f32 %v2346, %v2377
  %v2387 = vmul.f32 %v2347, %v2377
  %v2388 = vmul.f32 %v2348, %v2377
  %v2389 = vmul.f32 %v2349, %v2377
  %v2390 = vmul.f32 %v2350, %v2377
  %v2391 = vmul.f32 %v2351, %v2377
  %v2392 = vmul.f32 %v2352, %v2377
  %v2393 = vmul.f32 %v2353, %v2377
  %v2394 = vmul.f32 %v2354, %v2377
  %v2395 = vmul.f32 %v2355, %v2377
  %v2396 = vmul.f32 %v2356, %v2377
  %v2397 = vmul.f32 %v2357, %v2377
  %v2398 = vmul.f32 %v2358, %v2377
  %v2399 = vmul.f32 %v2359, %v2377
  %v2400 = vmul.f32 %v2360, %v2377
  %v2401 = vmul.f32 %v2361, %v2377
  %v2402 = vmul.f32 %v2362, %v2377
  %v2403 = vmul.f32 %v2363, %v2377
  %v2404 = vmul.f32 %v2364, %v2377
  %v2405 = vmul.f32 %v2365, %v2377
  %v2406 = vmul.f32 %v2366, %v2377
  %v2407 = vmul.f32 %v2367, %v2377
  %v2408 = vmul.f32 %v2368, %v2377
  %v2409 = vmul.f32 %v2369, %v2377
  %v2410 = vmul.f32 %v2370, %v2377
  %v2411 = vadd.f32 %v2307, %v2379
  %v2412 = vadd.f32 %v2308, %v2380
  %v2413 = vadd.f32 %v2309, %v2381
  %v2414 = vadd.f32 %v2310, %v2382
  %v2415 = vadd.f32 %v2311, %v2383
  %v2416 = vadd.f32 %v2312, %v2384
  %v2417 = vadd.f32 %v2313, %v2385
  %v2418 = vadd.f32 %v2314, %v2386
  %v2419 = vadd.f32 %v2315, %v2387
  %v2420 = vadd.f32 %v2316, %v2388
  %v2421 = vadd.f32 %v2317, %v2389
  %v2422 = vadd.f32 %v2318, %v2390
  %v2423 = vadd.f32 %v2319, %v2391
  %v2424 = vadd.f32 %v2320, %v2392
  %v2425 = vadd.f32 %v2321, %v2393
  %v2426 = vadd.f32 %v2322, %v2394
  %v2427 = vadd.f32 %v2323, %v2395
  %v2428 = vadd.f32 %v2324, %v2396
  %v2429 = vadd.f32 %v2325, %v2397
  %v2430 = vadd.f32 %v2326, %v2398
  %v2431 = vadd.f32 %v2327, %v2399
  %v2432 = vadd.f32 %v2328, %v2400
  %v2433 = vadd.f32 %v2329, %v2401
  %v2434 = vadd.f32 %v2330, %v2402
  %v2435 = vadd.f32 %v2331, %v2403
  %v2436 = vadd.f32 %v2332, %v2404
  %v2437 = vadd.f32 %v2333, %v2405
  %v2438 = vadd.f32 %v2334, %v2406
  %v2439 = vadd.f32 %v2335, %v2407
  %v2440 = vadd.f32 %v2336, %v2408
  %v2441 = vadd.f32 %v2337, %v2409
  %v2442 = vadd.f32 %v2338, %v2410
  %v2443 = vld [vmem:[%s114 + $0x1] sm:$0xff]
  %v2444 = vld [vmem:[%s114 + $0x9] sm:$0xff]
  %v2445 = vld [vmem:[%s114 + $0x19] sm:$0xff]
  %v2446 = vld [vmem:[%s114 + $0x21] sm:$0xff]
  %v2447 = vld [vmem:[%s114 + $0x31] sm:$0xff]
  %v2448 = vld [vmem:[%s114 + $0x39] sm:$0xff]
  %v2449 = vld [vmem:[%s114 + $0x49] sm:$0xff]
  %v2450 = vld [vmem:[%s114 + $0x51] sm:$0xff]
  %v2451 = vld [vmem:[%s114 + $0x61] sm:$0xff]
  %v2452 = vld [vmem:[%s114 + $0x69] sm:$0xff]
  %v2453 = vld [vmem:[%s114 + $0x79] sm:$0xff]
  %v2454 = vld [vmem:[%s114 + $0x81] sm:$0xff]
  %v2455 = vld [vmem:[%s114 + $0x91] sm:$0xff]
  %v2456 = vld [vmem:[%s114 + $0x99] sm:$0xff]
  %v2457 = vld [vmem:[%s114 + $0xa9] sm:$0xff]
  %v2458 = vld [vmem:[%s114 + $0xb1] sm:$0xff]
  %v2459 = vld [vmem:[%s114 + $0xc1] sm:$0xff]
  %v2460 = vld [vmem:[%s114 + $0xc9] sm:$0xff]
  %v2461 = vld [vmem:[%s114 + $0xd9] sm:$0xff]
  %v2462 = vld [vmem:[%s114 + $0xe1] sm:$0xff]
  %v2463 = vld [vmem:[%s114 + $0xf1] sm:$0xff]
  %v2464 = vld [vmem:[%s114 + $0xf9] sm:$0xff]
  %v2465 = vld [vmem:[%s114 + $0x109] sm:$0xff]
  %v2466 = vld [vmem:[%s114 + $0x111] sm:$0xff]
  %v2467 = vld [vmem:[%s114 + $0x121] sm:$0xff]
  %v2468 = vld [vmem:[%s114 + $0x129] sm:$0xff]
  %v2469 = vld [vmem:[%s114 + $0x139] sm:$0xff]
  %v2470 = vld [vmem:[%s114 + $0x141] sm:$0xff]
  %v2471 = vld [vmem:[%s114 + $0x151] sm:$0xff]
  %v2472 = vld [vmem:[%s114 + $0x159] sm:$0xff]
  %v2473 = vld [vmem:[%s114 + $0x169] sm:$0xff]
  %v2474 = vld [vmem:[%s114 + $0x171] sm:$0xff]
  %s2475 = scalar_lea.vmem %s0, 22
  %v2476 = vld [vmem:[%s2475] sm:$0x1]
  %v2478 = vlaneseq
  %v2479 = vshrl.u32 %v2478, 7
  %v2480 = vsub.s32 0, %v2479
  %v2481 = vrot.slane %v2476, %v2480
  %v2483 = vmul.f32 %v2443, %v2481
  %v2484 = vmul.f32 %v2444, %v2481
  %v2485 = vmul.f32 %v2445, %v2481
  %v2486 = vmul.f32 %v2446, %v2481
  %v2487 = vmul.f32 %v2447, %v2481
  %v2488 = vmul.f32 %v2448, %v2481
  %v2489 = vmul.f32 %v2449, %v2481
  %v2490 = vmul.f32 %v2450, %v2481
  %v2491 = vmul.f32 %v2451, %v2481
  %v2492 = vmul.f32 %v2452, %v2481
  %v2493 = vmul.f32 %v2453, %v2481
  %v2494 = vmul.f32 %v2454, %v2481
  %v2495 = vmul.f32 %v2455, %v2481
  %v2496 = vmul.f32 %v2456, %v2481
  %v2497 = vmul.f32 %v2457, %v2481
  %v2498 = vmul.f32 %v2458, %v2481
  %v2499 = vmul.f32 %v2459, %v2481
  %v2500 = vmul.f32 %v2460, %v2481
  %v2501 = vmul.f32 %v2461, %v2481
  %v2502 = vmul.f32 %v2462, %v2481
  %v2503 = vmul.f32 %v2463, %v2481
  %v2504 = vmul.f32 %v2464, %v2481
  %v2505 = vmul.f32 %v2465, %v2481
  %v2506 = vmul.f32 %v2466, %v2481
  %v2507 = vmul.f32 %v2467, %v2481
  %v2508 = vmul.f32 %v2468, %v2481
  %v2509 = vmul.f32 %v2469, %v2481
  %v2510 = vmul.f32 %v2470, %v2481
  %v2511 = vmul.f32 %v2471, %v2481
  %v2512 = vmul.f32 %v2472, %v2481
  %v2513 = vmul.f32 %v2473, %v2481
  %v2514 = vmul.f32 %v2474, %v2481
  %v2515 = vadd.f32 %v2411, %v2483
  %v2516 = vadd.f32 %v2412, %v2484
  %v2517 = vadd.f32 %v2413, %v2485
  %v2518 = vadd.f32 %v2414, %v2486
  %v2519 = vadd.f32 %v2415, %v2487
  %v2520 = vadd.f32 %v2416, %v2488
  %v2521 = vadd.f32 %v2417, %v2489
  %v2522 = vadd.f32 %v2418, %v2490
  %v2523 = vadd.f32 %v2419, %v2491
  %v2524 = vadd.f32 %v2420, %v2492
  %v2525 = vadd.f32 %v2421, %v2493
  %v2526 = vadd.f32 %v2422, %v2494
  %v2527 = vadd.f32 %v2423, %v2495
  %v2528 = vadd.f32 %v2424, %v2496
  %v2529 = vadd.f32 %v2425, %v2497
  %v2530 = vadd.f32 %v2426, %v2498
  %v2531 = vadd.f32 %v2427, %v2499
  %v2532 = vadd.f32 %v2428, %v2500
  %v2533 = vadd.f32 %v2429, %v2501
  %v2534 = vadd.f32 %v2430, %v2502
  %v2535 = vadd.f32 %v2431, %v2503
  %v2536 = vadd.f32 %v2432, %v2504
  %v2537 = vadd.f32 %v2433, %v2505
  %v2538 = vadd.f32 %v2434, %v2506
  %v2539 = vadd.f32 %v2435, %v2507
  %v2540 = vadd.f32 %v2436, %v2508
  %v2541 = vadd.f32 %v2437, %v2509
  %v2542 = vadd.f32 %v2438, %v2510
  %v2543 = vadd.f32 %v2439, %v2511
  %v2544 = vadd.f32 %v2440, %v2512
  %v2545 = vadd.f32 %v2441, %v2513
  %v2546 = vadd.f32 %v2442, %v2514
  %v2547 = vld [vmem:[%s114 + $0x2] sm:$0xff]
  %v2548 = vld [vmem:[%s114 + $0xa] sm:$0xff]
  %v2549 = vld [vmem:[%s114 + $0x1a] sm:$0xff]
  %v2550 = vld [vmem:[%s114 + $0x22] sm:$0xff]
  %v2551 = vld [vmem:[%s114 + $0x32] sm:$0xff]
  %v2552 = vld [vmem:[%s114 + $0x3a] sm:$0xff]
  %v2553 = vld [vmem:[%s114 + $0x4a] sm:$0xff]
  %v2554 = vld [vmem:[%s114 + $0x52] sm:$0xff]
  %v2555 = vld [vmem:[%s114 + $0x62] sm:$0xff]
  %v2556 = vld [vmem:[%s114 + $0x6a] sm:$0xff]
  %v2557 = vld [vmem:[%s114 + $0x7a] sm:$0xff]
  %v2558 = vld [vmem:[%s114 + $0x82] sm:$0xff]
  %v2559 = vld [vmem:[%s114 + $0x92] sm:$0xff]
  %v2560 = vld [vmem:[%s114 + $0x9a] sm:$0xff]
  %v2561 = vld [vmem:[%s114 + $0xaa] sm:$0xff]
  %v2562 = vld [vmem:[%s114 + $0xb2] sm:$0xff]
  %v2563 = vld [vmem:[%s114 + $0xc2] sm:$0xff]
  %v2564 = vld [vmem:[%s114 + $0xca] sm:$0xff]
  %v2565 = vld [vmem:[%s114 + $0xda] sm:$0xff]
  %v2566 = vld [vmem:[%s114 + $0xe2] sm:$0xff]
  %v2567 = vld [vmem:[%s114 + $0xf2] sm:$0xff]
  %v2568 = vld [vmem:[%s114 + $0xfa] sm:$0xff]
  %v2569 = vld [vmem:[%s114 + $0x10a] sm:$0xff]
  %v2570 = vld [vmem:[%s114 + $0x112] sm:$0xff]
  %v2571 = vld [vmem:[%s114 + $0x122] sm:$0xff]
  %v2572 = vld [vmem:[%s114 + $0x12a] sm:$0xff]
  %v2573 = vld [vmem:[%s114 + $0x13a] sm:$0xff]
  %v2574 = vld [vmem:[%s114 + $0x142] sm:$0xff]
  %v2575 = vld [vmem:[%s114 + $0x152] sm:$0xff]
  %v2576 = vld [vmem:[%s114 + $0x15a] sm:$0xff]
  %v2577 = vld [vmem:[%s114 + $0x16a] sm:$0xff]
  %v2578 = vld [vmem:[%s114 + $0x172] sm:$0xff]
  %s2579 = scalar_lea.vmem %s0, 23
  %v2580 = vld [vmem:[%s2579] sm:$0x1]
  %v2582 = vlaneseq
  %v2583 = vshrl.u32 %v2582, 7
  %v2584 = vsub.s32 0, %v2583
  %v2585 = vrot.slane %v2580, %v2584
  %v2587 = vmul.f32 %v2547, %v2585
  %v2588 = vmul.f32 %v2548, %v2585
  %v2589 = vmul.f32 %v2549, %v2585
  %v2590 = vmul.f32 %v2550, %v2585
  %v2591 = vmul.f32 %v2551, %v2585
  %v2592 = vmul.f32 %v2552, %v2585
  %v2593 = vmul.f32 %v2553, %v2585
  %v2594 = vmul.f32 %v2554, %v2585
  %v2595 = vmul.f32 %v2555, %v2585
  %v2596 = vmul.f32 %v2556, %v2585
  %v2597 = vmul.f32 %v2557, %v2585
  %v2598 = vmul.f32 %v2558, %v2585
  %v2599 = vmul.f32 %v2559, %v2585
  %v2600 = vmul.f32 %v2560, %v2585
  %v2601 = vmul.f32 %v2561, %v2585
  %v2602 = vmul.f32 %v2562, %v2585
  %v2603 = vmul.f32 %v2563, %v2585
  %v2604 = vmul.f32 %v2564, %v2585
  %v2605 = vmul.f32 %v2565, %v2585
  %v2606 = vmul.f32 %v2566, %v2585
  %v2607 = vmul.f32 %v2567, %v2585
  %v2608 = vmul.f32 %v2568, %v2585
  %v2609 = vmul.f32 %v2569, %v2585
  %v2610 = vmul.f32 %v2570, %v2585
  %v2611 = vmul.f32 %v2571, %v2585
  %v2612 = vmul.f32 %v2572, %v2585
  %v2613 = vmul.f32 %v2573, %v2585
  %v2614 = vmul.f32 %v2574, %v2585
  %v2615 = vmul.f32 %v2575, %v2585
  %v2616 = vmul.f32 %v2576, %v2585
  %v2617 = vmul.f32 %v2577, %v2585
  %v2618 = vmul.f32 %v2578, %v2585
  %v2619 = vadd.f32 %v2515, %v2587
  %v2620 = vadd.f32 %v2516, %v2588
  %v2621 = vadd.f32 %v2517, %v2589
  %v2622 = vadd.f32 %v2518, %v2590
  %v2623 = vadd.f32 %v2519, %v2591
  %v2624 = vadd.f32 %v2520, %v2592
  %v2625 = vadd.f32 %v2521, %v2593
  %v2626 = vadd.f32 %v2522, %v2594
  %v2627 = vadd.f32 %v2523, %v2595
  %v2628 = vadd.f32 %v2524, %v2596
  %v2629 = vadd.f32 %v2525, %v2597
  %v2630 = vadd.f32 %v2526, %v2598
  %v2631 = vadd.f32 %v2527, %v2599
  %v2632 = vadd.f32 %v2528, %v2600
  %v2633 = vadd.f32 %v2529, %v2601
  %v2634 = vadd.f32 %v2530, %v2602
  %v2635 = vadd.f32 %v2531, %v2603
  %v2636 = vadd.f32 %v2532, %v2604
  %v2637 = vadd.f32 %v2533, %v2605
  %v2638 = vadd.f32 %v2534, %v2606
  %v2639 = vadd.f32 %v2535, %v2607
  %v2640 = vadd.f32 %v2536, %v2608
  %v2641 = vadd.f32 %v2537, %v2609
  %v2642 = vadd.f32 %v2538, %v2610
  %v2643 = vadd.f32 %v2539, %v2611
  %v2644 = vadd.f32 %v2540, %v2612
  %v2645 = vadd.f32 %v2541, %v2613
  %v2646 = vadd.f32 %v2542, %v2614
  %v2647 = vadd.f32 %v2543, %v2615
  %v2648 = vadd.f32 %v2544, %v2616
  %v2649 = vadd.f32 %v2545, %v2617
  %v2650 = vadd.f32 %v2546, %v2618
  %v2651 = vld [vmem:[%s114 + $0x3] sm:$0xff]
  %v2652 = vld [vmem:[%s114 + $0xb] sm:$0xff]
  %v2653 = vld [vmem:[%s114 + $0x1b] sm:$0xff]
  %v2654 = vld [vmem:[%s114 + $0x23] sm:$0xff]
  %v2655 = vld [vmem:[%s114 + $0x33] sm:$0xff]
  %v2656 = vld [vmem:[%s114 + $0x3b] sm:$0xff]
  %v2657 = vld [vmem:[%s114 + $0x4b] sm:$0xff]
  %v2658 = vld [vmem:[%s114 + $0x53] sm:$0xff]
  %v2659 = vld [vmem:[%s114 + $0x63] sm:$0xff]
  %v2660 = vld [vmem:[%s114 + $0x6b] sm:$0xff]
  %v2661 = vld [vmem:[%s114 + $0x7b] sm:$0xff]
  %v2662 = vld [vmem:[%s114 + $0x83] sm:$0xff]
  %v2663 = vld [vmem:[%s114 + $0x93] sm:$0xff]
  %v2664 = vld [vmem:[%s114 + $0x9b] sm:$0xff]
  %v2665 = vld [vmem:[%s114 + $0xab] sm:$0xff]
  %v2666 = vld [vmem:[%s114 + $0xb3] sm:$0xff]
  %v2667 = vld [vmem:[%s114 + $0xc3] sm:$0xff]
  %v2668 = vld [vmem:[%s114 + $0xcb] sm:$0xff]
  %v2669 = vld [vmem:[%s114 + $0xdb] sm:$0xff]
  %v2670 = vld [vmem:[%s114 + $0xe3] sm:$0xff]
  %v2671 = vld [vmem:[%s114 + $0xf3] sm:$0xff]
  %v2672 = vld [vmem:[%s114 + $0xfb] sm:$0xff]
  %v2673 = vld [vmem:[%s114 + $0x10b] sm:$0xff]
  %v2674 = vld [vmem:[%s114 + $0x113] sm:$0xff]
  %v2675 = vld [vmem:[%s114 + $0x123] sm:$0xff]
  %v2676 = vld [vmem:[%s114 + $0x12b] sm:$0xff]
  %v2677 = vld [vmem:[%s114 + $0x13b] sm:$0xff]
  %v2678 = vld [vmem:[%s114 + $0x143] sm:$0xff]
  %v2679 = vld [vmem:[%s114 + $0x153] sm:$0xff]
  %v2680 = vld [vmem:[%s114 + $0x15b] sm:$0xff]
  %v2681 = vld [vmem:[%s114 + $0x16b] sm:$0xff]
  %v2682 = vld [vmem:[%s114 + $0x173] sm:$0xff]
  %s2683 = scalar_lea.vmem %s0, 24
  %v2684 = vld [vmem:[%s2683] sm:$0x1]
  %v2686 = vlaneseq
  %v2687 = vshrl.u32 %v2686, 7
  %v2688 = vsub.s32 0, %v2687
  %v2689 = vrot.slane %v2684, %v2688
  %v2691 = vmul.f32 %v2651, %v2689
  %v2692 = vmul.f32 %v2652, %v2689
  %v2693 = vmul.f32 %v2653, %v2689
  %v2694 = vmul.f32 %v2654, %v2689
  %v2695 = vmul.f32 %v2655, %v2689
  %v2696 = vmul.f32 %v2656, %v2689
  %v2697 = vmul.f32 %v2657, %v2689
  %v2698 = vmul.f32 %v2658, %v2689
  %v2699 = vmul.f32 %v2659, %v2689
  %v2700 = vmul.f32 %v2660, %v2689
  %v2701 = vmul.f32 %v2661, %v2689
  %v2702 = vmul.f32 %v2662, %v2689
  %v2703 = vmul.f32 %v2663, %v2689
  %v2704 = vmul.f32 %v2664, %v2689
  %v2705 = vmul.f32 %v2665, %v2689
  %v2706 = vmul.f32 %v2666, %v2689
  %v2707 = vmul.f32 %v2667, %v2689
  %v2708 = vmul.f32 %v2668, %v2689
  %v2709 = vmul.f32 %v2669, %v2689
  %v2710 = vmul.f32 %v2670, %v2689
  %v2711 = vmul.f32 %v2671, %v2689
  %v2712 = vmul.f32 %v2672, %v2689
  %v2713 = vmul.f32 %v2673, %v2689
  %v2714 = vmul.f32 %v2674, %v2689
  %v2715 = vmul.f32 %v2675, %v2689
  %v2716 = vmul.f32 %v2676, %v2689
  %v2717 = vmul.f32 %v2677, %v2689
  %v2718 = vmul.f32 %v2678, %v2689
  %v2719 = vmul.f32 %v2679, %v2689
  %v2720 = vmul.f32 %v2680, %v2689
  %v2721 = vmul.f32 %v2681, %v2689
  %v2722 = vmul.f32 %v2682, %v2689
  %v2723 = vadd.f32 %v2619, %v2691
  %v2724 = vadd.f32 %v2620, %v2692
  %v2725 = vadd.f32 %v2621, %v2693
  %v2726 = vadd.f32 %v2622, %v2694
  %v2727 = vadd.f32 %v2623, %v2695
  %v2728 = vadd.f32 %v2624, %v2696
  %v2729 = vadd.f32 %v2625, %v2697
  %v2730 = vadd.f32 %v2626, %v2698
  %v2731 = vadd.f32 %v2627, %v2699
  %v2732 = vadd.f32 %v2628, %v2700
  %v2733 = vadd.f32 %v2629, %v2701
  %v2734 = vadd.f32 %v2630, %v2702
  %v2735 = vadd.f32 %v2631, %v2703
  %v2736 = vadd.f32 %v2632, %v2704
  %v2737 = vadd.f32 %v2633, %v2705
  %v2738 = vadd.f32 %v2634, %v2706
  %v2739 = vadd.f32 %v2635, %v2707
  %v2740 = vadd.f32 %v2636, %v2708
  %v2741 = vadd.f32 %v2637, %v2709
  %v2742 = vadd.f32 %v2638, %v2710
  %v2743 = vadd.f32 %v2639, %v2711
  %v2744 = vadd.f32 %v2640, %v2712
  %v2745 = vadd.f32 %v2641, %v2713
  %v2746 = vadd.f32 %v2642, %v2714
  %v2747 = vadd.f32 %v2643, %v2715
  %v2748 = vadd.f32 %v2644, %v2716
  %v2749 = vadd.f32 %v2645, %v2717
  %v2750 = vadd.f32 %v2646, %v2718
  %v2751 = vadd.f32 %v2647, %v2719
  %v2752 = vadd.f32 %v2648, %v2720
  %v2753 = vadd.f32 %v2649, %v2721
  %v2754 = vadd.f32 %v2650, %v2722
  %v2755 = vld [vmem:[%s114 + $0x4] sm:$0xff]
  %v2756 = vld [vmem:[%s114 + $0xc] sm:$0xff]
  %v2757 = vld [vmem:[%s114 + $0x1c] sm:$0xff]
  %v2758 = vld [vmem:[%s114 + $0x24] sm:$0xff]
  %v2759 = vld [vmem:[%s114 + $0x34] sm:$0xff]
  %v2760 = vld [vmem:[%s114 + $0x3c] sm:$0xff]
  %v2761 = vld [vmem:[%s114 + $0x4c] sm:$0xff]
  %v2762 = vld [vmem:[%s114 + $0x54] sm:$0xff]
  %v2763 = vld [vmem:[%s114 + $0x64] sm:$0xff]
  %v2764 = vld [vmem:[%s114 + $0x6c] sm:$0xff]
  %v2765 = vld [vmem:[%s114 + $0x7c] sm:$0xff]
  %v2766 = vld [vmem:[%s114 + $0x84] sm:$0xff]
  %v2767 = vld [vmem:[%s114 + $0x94] sm:$0xff]
  %v2768 = vld [vmem:[%s114 + $0x9c] sm:$0xff]
  %v2769 = vld [vmem:[%s114 + $0xac] sm:$0xff]
  %v2770 = vld [vmem:[%s114 + $0xb4] sm:$0xff]
  %v2771 = vld [vmem:[%s114 + $0xc4] sm:$0xff]
  %v2772 = vld [vmem:[%s114 + $0xcc] sm:$0xff]
  %v2773 = vld [vmem:[%s114 + $0xdc] sm:$0xff]
  %v2774 = vld [vmem:[%s114 + $0xe4] sm:$0xff]
  %v2775 = vld [vmem:[%s114 + $0xf4] sm:$0xff]
  %v2776 = vld [vmem:[%s114 + $0xfc] sm:$0xff]
  %v2777 = vld [vmem:[%s114 + $0x10c] sm:$0xff]
  %v2778 = vld [vmem:[%s114 + $0x114] sm:$0xff]
  %v2779 = vld [vmem:[%s114 + $0x124] sm:$0xff]
  %v2780 = vld [vmem:[%s114 + $0x12c] sm:$0xff]
  %v2781 = vld [vmem:[%s114 + $0x13c] sm:$0xff]
  %v2782 = vld [vmem:[%s114 + $0x144] sm:$0xff]
  %v2783 = vld [vmem:[%s114 + $0x154] sm:$0xff]
  %v2784 = vld [vmem:[%s114 + $0x15c] sm:$0xff]
  %v2785 = vld [vmem:[%s114 + $0x16c] sm:$0xff]
  %v2786 = vld [vmem:[%s114 + $0x174] sm:$0xff]
  %s2787 = scalar_lea.vmem %s0, 25
  %v2788 = vld [vmem:[%s2787] sm:$0x1]
  %v2790 = vlaneseq
  %v2791 = vshrl.u32 %v2790, 7
  %v2792 = vsub.s32 0, %v2791
  %v2793 = vrot.slane %v2788, %v2792
  %v2795 = vmul.f32 %v2755, %v2793
  %v2796 = vmul.f32 %v2756, %v2793
  %v2797 = vmul.f32 %v2757, %v2793
  %v2798 = vmul.f32 %v2758, %v2793
  %v2799 = vmul.f32 %v2759, %v2793
  %v2800 = vmul.f32 %v2760, %v2793
  %v2801 = vmul.f32 %v2761, %v2793
  %v2802 = vmul.f32 %v2762, %v2793
  %v2803 = vmul.f32 %v2763, %v2793
  %v2804 = vmul.f32 %v2764, %v2793
  %v2805 = vmul.f32 %v2765, %v2793
  %v2806 = vmul.f32 %v2766, %v2793
  %v2807 = vmul.f32 %v2767, %v2793
  %v2808 = vmul.f32 %v2768, %v2793
  %v2809 = vmul.f32 %v2769, %v2793
  %v2810 = vmul.f32 %v2770, %v2793
  %v2811 = vmul.f32 %v2771, %v2793
  %v2812 = vmul.f32 %v2772, %v2793
  %v2813 = vmul.f32 %v2773, %v2793
  %v2814 = vmul.f32 %v2774, %v2793
  %v2815 = vmul.f32 %v2775, %v2793
  %v2816 = vmul.f32 %v2776, %v2793
  %v2817 = vmul.f32 %v2777, %v2793
  %v2818 = vmul.f32 %v2778, %v2793
  %v2819 = vmul.f32 %v2779, %v2793
  %v2820 = vmul.f32 %v2780, %v2793
  %v2821 = vmul.f32 %v2781, %v2793
  %v2822 = vmul.f32 %v2782, %v2793
  %v2823 = vmul.f32 %v2783, %v2793
  %v2824 = vmul.f32 %v2784, %v2793
  %v2825 = vmul.f32 %v2785, %v2793
  %v2826 = vmul.f32 %v2786, %v2793
  %v2827 = vadd.f32 %v2723, %v2795
  %v2828 = vadd.f32 %v2724, %v2796
  %v2829 = vadd.f32 %v2725, %v2797
  %v2830 = vadd.f32 %v2726, %v2798
  %v2831 = vadd.f32 %v2727, %v2799
  %v2832 = vadd.f32 %v2728, %v2800
  %v2833 = vadd.f32 %v2729, %v2801
  %v2834 = vadd.f32 %v2730, %v2802
  %v2835 = vadd.f32 %v2731, %v2803
  %v2836 = vadd.f32 %v2732, %v2804
  %v2837 = vadd.f32 %v2733, %v2805
  %v2838 = vadd.f32 %v2734, %v2806
  %v2839 = vadd.f32 %v2735, %v2807
  %v2840 = vadd.f32 %v2736, %v2808
  %v2841 = vadd.f32 %v2737, %v2809
  %v2842 = vadd.f32 %v2738, %v2810
  %v2843 = vadd.f32 %v2739, %v2811
  %v2844 = vadd.f32 %v2740, %v2812
  %v2845 = vadd.f32 %v2741, %v2813
  %v2846 = vadd.f32 %v2742, %v2814
  %v2847 = vadd.f32 %v2743, %v2815
  %v2848 = vadd.f32 %v2744, %v2816
  %v2849 = vadd.f32 %v2745, %v2817
  %v2850 = vadd.f32 %v2746, %v2818
  %v2851 = vadd.f32 %v2747, %v2819
  %v2852 = vadd.f32 %v2748, %v2820
  %v2853 = vadd.f32 %v2749, %v2821
  %v2854 = vadd.f32 %v2750, %v2822
  %v2855 = vadd.f32 %v2751, %v2823
  %v2856 = vadd.f32 %v2752, %v2824
  %v2857 = vadd.f32 %v2753, %v2825
  %v2858 = vadd.f32 %v2754, %v2826
  %v2859 = vld [vmem:[%s114 + $0x5] sm:$0xff]
  %v2860 = vld [vmem:[%s114 + $0xd] sm:$0xff]
  %v2861 = vld [vmem:[%s114 + $0x1d] sm:$0xff]
  %v2862 = vld [vmem:[%s114 + $0x25] sm:$0xff]
  %v2863 = vld [vmem:[%s114 + $0x35] sm:$0xff]
  %v2864 = vld [vmem:[%s114 + $0x3d] sm:$0xff]
  %v2865 = vld [vmem:[%s114 + $0x4d] sm:$0xff]
  %v2866 = vld [vmem:[%s114 + $0x55] sm:$0xff]
  %v2867 = vld [vmem:[%s114 + $0x65] sm:$0xff]
  %v2868 = vld [vmem:[%s114 + $0x6d] sm:$0xff]
  %v2869 = vld [vmem:[%s114 + $0x7d] sm:$0xff]
  %v2870 = vld [vmem:[%s114 + $0x85] sm:$0xff]
  %v2871 = vld [vmem:[%s114 + $0x95] sm:$0xff]
  %v2872 = vld [vmem:[%s114 + $0x9d] sm:$0xff]
  %v2873 = vld [vmem:[%s114 + $0xad] sm:$0xff]
  %v2874 = vld [vmem:[%s114 + $0xb5] sm:$0xff]
  %v2875 = vld [vmem:[%s114 + $0xc5] sm:$0xff]
  %v2876 = vld [vmem:[%s114 + $0xcd] sm:$0xff]
  %v2877 = vld [vmem:[%s114 + $0xdd] sm:$0xff]
  %v2878 = vld [vmem:[%s114 + $0xe5] sm:$0xff]
  %v2879 = vld [vmem:[%s114 + $0xf5] sm:$0xff]
  %v2880 = vld [vmem:[%s114 + $0xfd] sm:$0xff]
  %v2881 = vld [vmem:[%s114 + $0x10d] sm:$0xff]
  %v2882 = vld [vmem:[%s114 + $0x115] sm:$0xff]
  %v2883 = vld [vmem:[%s114 + $0x125] sm:$0xff]
  %v2884 = vld [vmem:[%s114 + $0x12d] sm:$0xff]
  %v2885 = vld [vmem:[%s114 + $0x13d] sm:$0xff]
  %v2886 = vld [vmem:[%s114 + $0x145] sm:$0xff]
  %v2887 = vld [vmem:[%s114 + $0x155] sm:$0xff]
  %v2888 = vld [vmem:[%s114 + $0x15d] sm:$0xff]
  %v2889 = vld [vmem:[%s114 + $0x16d] sm:$0xff]
  %v2890 = vld [vmem:[%s114 + $0x175] sm:$0xff]
  %s2891 = scalar_lea.vmem %s0, 26
  %v2892 = vld [vmem:[%s2891] sm:$0x1]
  %v2894 = vlaneseq
  %v2895 = vshrl.u32 %v2894, 7
  %v2896 = vsub.s32 0, %v2895
  %v2897 = vrot.slane %v2892, %v2896
  %v2899 = vmul.f32 %v2859, %v2897
  %v2900 = vmul.f32 %v2860, %v2897
  %v2901 = vmul.f32 %v2861, %v2897
  %v2902 = vmul.f32 %v2862, %v2897
  %v2903 = vmul.f32 %v2863, %v2897
  %v2904 = vmul.f32 %v2864, %v2897
  %v2905 = vmul.f32 %v2865, %v2897
  %v2906 = vmul.f32 %v2866, %v2897
  %v2907 = vmul.f32 %v2867, %v2897
  %v2908 = vmul.f32 %v2868, %v2897
  %v2909 = vmul.f32 %v2869, %v2897
  %v2910 = vmul.f32 %v2870, %v2897
  %v2911 = vmul.f32 %v2871, %v2897
  %v2912 = vmul.f32 %v2872, %v2897
  %v2913 = vmul.f32 %v2873, %v2897
  %v2914 = vmul.f32 %v2874, %v2897
  %v2915 = vmul.f32 %v2875, %v2897
  %v2916 = vmul.f32 %v2876, %v2897
  %v2917 = vmul.f32 %v2877, %v2897
  %v2918 = vmul.f32 %v2878, %v2897
  %v2919 = vmul.f32 %v2879, %v2897
  %v2920 = vmul.f32 %v2880, %v2897
  %v2921 = vmul.f32 %v2881, %v2897
  %v2922 = vmul.f32 %v2882, %v2897
  %v2923 = vmul.f32 %v2883, %v2897
  %v2924 = vmul.f32 %v2884, %v2897
  %v2925 = vmul.f32 %v2885, %v2897
  %v2926 = vmul.f32 %v2886, %v2897
  %v2927 = vmul.f32 %v2887, %v2897
  %v2928 = vmul.f32 %v2888, %v2897
  %v2929 = vmul.f32 %v2889, %v2897
  %v2930 = vmul.f32 %v2890, %v2897
  %v2931 = vadd.f32 %v2827, %v2899
  %v2932 = vadd.f32 %v2828, %v2900
  %v2933 = vadd.f32 %v2829, %v2901
  %v2934 = vadd.f32 %v2830, %v2902
  %v2935 = vadd.f32 %v2831, %v2903
  %v2936 = vadd.f32 %v2832, %v2904
  %v2937 = vadd.f32 %v2833, %v2905
  %v2938 = vadd.f32 %v2834, %v2906
  %v2939 = vadd.f32 %v2835, %v2907
  %v2940 = vadd.f32 %v2836, %v2908
  %v2941 = vadd.f32 %v2837, %v2909
  %v2942 = vadd.f32 %v2838, %v2910
  %v2943 = vadd.f32 %v2839, %v2911
  %v2944 = vadd.f32 %v2840, %v2912
  %v2945 = vadd.f32 %v2841, %v2913
  %v2946 = vadd.f32 %v2842, %v2914
  %v2947 = vadd.f32 %v2843, %v2915
  %v2948 = vadd.f32 %v2844, %v2916
  %v2949 = vadd.f32 %v2845, %v2917
  %v2950 = vadd.f32 %v2846, %v2918
  %v2951 = vadd.f32 %v2847, %v2919
  %v2952 = vadd.f32 %v2848, %v2920
  %v2953 = vadd.f32 %v2849, %v2921
  %v2954 = vadd.f32 %v2850, %v2922
  %v2955 = vadd.f32 %v2851, %v2923
  %v2956 = vadd.f32 %v2852, %v2924
  %v2957 = vadd.f32 %v2853, %v2925
  %v2958 = vadd.f32 %v2854, %v2926
  %v2959 = vadd.f32 %v2855, %v2927
  %v2960 = vadd.f32 %v2856, %v2928
  %v2961 = vadd.f32 %v2857, %v2929
  %v2962 = vadd.f32 %v2858, %v2930
  %v2963 = vld [vmem:[%s114 + $0x6] sm:$0xff]
  %v2964 = vld [vmem:[%s114 + $0xe] sm:$0xff]
  %v2965 = vld [vmem:[%s114 + $0x1e] sm:$0xff]
  %v2966 = vld [vmem:[%s114 + $0x26] sm:$0xff]
  %v2967 = vld [vmem:[%s114 + $0x36] sm:$0xff]
  %v2968 = vld [vmem:[%s114 + $0x3e] sm:$0xff]
  %v2969 = vld [vmem:[%s114 + $0x4e] sm:$0xff]
  %v2970 = vld [vmem:[%s114 + $0x56] sm:$0xff]
  %v2971 = vld [vmem:[%s114 + $0x66] sm:$0xff]
  %v2972 = vld [vmem:[%s114 + $0x6e] sm:$0xff]
  %v2973 = vld [vmem:[%s114 + $0x7e] sm:$0xff]
  %v2974 = vld [vmem:[%s114 + $0x86] sm:$0xff]
  %v2975 = vld [vmem:[%s114 + $0x96] sm:$0xff]
  %v2976 = vld [vmem:[%s114 + $0x9e] sm:$0xff]
  %v2977 = vld [vmem:[%s114 + $0xae] sm:$0xff]
  %v2978 = vld [vmem:[%s114 + $0xb6] sm:$0xff]
  %v2979 = vld [vmem:[%s114 + $0xc6] sm:$0xff]
  %v2980 = vld [vmem:[%s114 + $0xce] sm:$0xff]
  %v2981 = vld [vmem:[%s114 + $0xde] sm:$0xff]
  %v2982 = vld [vmem:[%s114 + $0xe6] sm:$0xff]
  %v2983 = vld [vmem:[%s114 + $0xf6] sm:$0xff]
  %v2984 = vld [vmem:[%s114 + $0xfe] sm:$0xff]
  %v2985 = vld [vmem:[%s114 + $0x10e] sm:$0xff]
  %v2986 = vld [vmem:[%s114 + $0x116] sm:$0xff]
  %v2987 = vld [vmem:[%s114 + $0x126] sm:$0xff]
  %v2988 = vld [vmem:[%s114 + $0x12e] sm:$0xff]
  %v2989 = vld [vmem:[%s114 + $0x13e] sm:$0xff]
  %v2990 = vld [vmem:[%s114 + $0x146] sm:$0xff]
  %v2991 = vld [vmem:[%s114 + $0x156] sm:$0xff]
  %v2992 = vld [vmem:[%s114 + $0x15e] sm:$0xff]
  %v2993 = vld [vmem:[%s114 + $0x16e] sm:$0xff]
  %v2994 = vld [vmem:[%s114 + $0x176] sm:$0xff]
  %s2995 = scalar_lea.vmem %s0, 27
  %v2996 = vld [vmem:[%s2995] sm:$0x1]
  %v2998 = vlaneseq
  %v2999 = vshrl.u32 %v2998, 7
  %v3000 = vsub.s32 0, %v2999
  %v3001 = vrot.slane %v2996, %v3000
  %v3003 = vmul.f32 %v2963, %v3001
  %v3004 = vmul.f32 %v2964, %v3001
  %v3005 = vmul.f32 %v2965, %v3001
  %v3006 = vmul.f32 %v2966, %v3001
  %v3007 = vmul.f32 %v2967, %v3001
  %v3008 = vmul.f32 %v2968, %v3001
  %v3009 = vmul.f32 %v2969, %v3001
  %v3010 = vmul.f32 %v2970, %v3001
  %v3011 = vmul.f32 %v2971, %v3001
  %v3012 = vmul.f32 %v2972, %v3001
  %v3013 = vmul.f32 %v2973, %v3001
  %v3014 = vmul.f32 %v2974, %v3001
  %v3015 = vmul.f32 %v2975, %v3001
  %v3016 = vmul.f32 %v2976, %v3001
  %v3017 = vmul.f32 %v2977, %v3001
  %v3018 = vmul.f32 %v2978, %v3001
  %v3019 = vmul.f32 %v2979, %v3001
  %v3020 = vmul.f32 %v2980, %v3001
  %v3021 = vmul.f32 %v2981, %v3001
  %v3022 = vmul.f32 %v2982, %v3001
  %v3023 = vmul.f32 %v2983, %v3001
  %v3024 = vmul.f32 %v2984, %v3001
  %v3025 = vmul.f32 %v2985, %v3001
  %v3026 = vmul.f32 %v2986, %v3001
  %v3027 = vmul.f32 %v2987, %v3001
  %v3028 = vmul.f32 %v2988, %v3001
  %v3029 = vmul.f32 %v2989, %v3001
  %v3030 = vmul.f32 %v2990, %v3001
  %v3031 = vmul.f32 %v2991, %v3001
  %v3032 = vmul.f32 %v2992, %v3001
  %v3033 = vmul.f32 %v2993, %v3001
  %v3034 = vmul.f32 %v2994, %v3001
  %v3035 = vadd.f32 %v2931, %v3003
  %v3036 = vadd.f32 %v2932, %v3004
  %v3037 = vadd.f32 %v2933, %v3005
  %v3038 = vadd.f32 %v2934, %v3006
  %v3039 = vadd.f32 %v2935, %v3007
  %v3040 = vadd.f32 %v2936, %v3008
  %v3041 = vadd.f32 %v2937, %v3009
  %v3042 = vadd.f32 %v2938, %v3010
  %v3043 = vadd.f32 %v2939, %v3011
  %v3044 = vadd.f32 %v2940, %v3012
  %v3045 = vadd.f32 %v2941, %v3013
  %v3046 = vadd.f32 %v2942, %v3014
  %v3047 = vadd.f32 %v2943, %v3015
  %v3048 = vadd.f32 %v2944, %v3016
  %v3049 = vadd.f32 %v2945, %v3017
  %v3050 = vadd.f32 %v2946, %v3018
  %v3051 = vadd.f32 %v2947, %v3019
  %v3052 = vadd.f32 %v2948, %v3020
  %v3053 = vadd.f32 %v2949, %v3021
  %v3054 = vadd.f32 %v2950, %v3022
  %v3055 = vadd.f32 %v2951, %v3023
  %v3056 = vadd.f32 %v2952, %v3024
  %v3057 = vadd.f32 %v2953, %v3025
  %v3058 = vadd.f32 %v2954, %v3026
  %v3059 = vadd.f32 %v2955, %v3027
  %v3060 = vadd.f32 %v2956, %v3028
  %v3061 = vadd.f32 %v2957, %v3029
  %v3062 = vadd.f32 %v2958, %v3030
  %v3063 = vadd.f32 %v2959, %v3031
  %v3064 = vadd.f32 %v2960, %v3032
  %v3065 = vadd.f32 %v2961, %v3033
  %v3066 = vadd.f32 %v2962, %v3034
  %s3067 = scalar_lea.vmem [#allocation2], 96
  %v3068 = vld [vmem:[%s3067] sm:$0xff]
  %v3069 = vld [vmem:[%s3067 + $0x8] sm:$0xff]
  %v3070 = vld [vmem:[%s3067 + $0x18] sm:$0xff]
  %v3071 = vld [vmem:[%s3067 + $0x20] sm:$0xff]
  %v3072 = vld [vmem:[%s3067 + $0x30] sm:$0xff]
  %v3073 = vld [vmem:[%s3067 + $0x38] sm:$0xff]
  %v3074 = vld [vmem:[%s3067 + $0x48] sm:$0xff]
  %v3075 = vld [vmem:[%s3067 + $0x50] sm:$0xff]
  %v3076 = vld [vmem:[%s3067 + $0x60] sm:$0xff]
  %v3077 = vld [vmem:[%s3067 + $0x68] sm:$0xff]
  %v3078 = vld [vmem:[%s3067 + $0x78] sm:$0xff]
  %v3079 = vld [vmem:[%s3067 + $0x80] sm:$0xff]
  %v3080 = vld [vmem:[%s3067 + $0x90] sm:$0xff]
  %v3081 = vld [vmem:[%s3067 + $0x98] sm:$0xff]
  %v3082 = vld [vmem:[%s3067 + $0xa8] sm:$0xff]
  %v3083 = vld [vmem:[%s3067 + $0xb0] sm:$0xff]
  %v3084 = vld [vmem:[%s3067 + $0xc0] sm:$0xff]
  %v3085 = vld [vmem:[%s3067 + $0xc8] sm:$0xff]
  %v3086 = vld [vmem:[%s3067 + $0xd8] sm:$0xff]
  %v3087 = vld [vmem:[%s3067 + $0xe0] sm:$0xff]
  %v3088 = vld [vmem:[%s3067 + $0xf0] sm:$0xff]
  %v3089 = vld [vmem:[%s3067 + $0xf8] sm:$0xff]
  %v3090 = vld [vmem:[%s3067 + $0x108] sm:$0xff]
  %v3091 = vld [vmem:[%s3067 + $0x110] sm:$0xff]
  %v3092 = vld [vmem:[%s3067 + $0x120] sm:$0xff]
  %v3093 = vld [vmem:[%s3067 + $0x128] sm:$0xff]
  %v3094 = vld [vmem:[%s3067 + $0x138] sm:$0xff]
  %v3095 = vld [vmem:[%s3067 + $0x140] sm:$0xff]
  %v3096 = vld [vmem:[%s3067 + $0x150] sm:$0xff]
  %v3097 = vld [vmem:[%s3067 + $0x158] sm:$0xff]
  %v3098 = vld [vmem:[%s3067 + $0x168] sm:$0xff]
  %v3099 = vld [vmem:[%s3067 + $0x170] sm:$0xff]
  %s3100 = scalar_lea.vmem %s0, 28
  %v3101 = vld [vmem:[%s3100] sm:$0x1]
  %v3103 = vlaneseq
  %v3104 = vshrl.u32 %v3103, 7
  %v3105 = vsub.s32 0, %v3104
  %v3106 = vrot.slane %v3101, %v3105
  %v3108 = vmul.f32 %v3068, %v3106
  %v3109 = vmul.f32 %v3069, %v3106
  %v3110 = vmul.f32 %v3070, %v3106
  %v3111 = vmul.f32 %v3071, %v3106
  %v3112 = vmul.f32 %v3072, %v3106
  %v3113 = vmul.f32 %v3073, %v3106
  %v3114 = vmul.f32 %v3074, %v3106
  %v3115 = vmul.f32 %v3075, %v3106
  %v3116 = vmul.f32 %v3076, %v3106
  %v3117 = vmul.f32 %v3077, %v3106
  %v3118 = vmul.f32 %v3078, %v3106
  %v3119 = vmul.f32 %v3079, %v3106
  %v3120 = vmul.f32 %v3080, %v3106
  %v3121 = vmul.f32 %v3081, %v3106
  %v3122 = vmul.f32 %v3082, %v3106
  %v3123 = vmul.f32 %v3083, %v3106
  %v3124 = vmul.f32 %v3084, %v3106
  %v3125 = vmul.f32 %v3085, %v3106
  %v3126 = vmul.f32 %v3086, %v3106
  %v3127 = vmul.f32 %v3087, %v3106
  %v3128 = vmul.f32 %v3088, %v3106
  %v3129 = vmul.f32 %v3089, %v3106
  %v3130 = vmul.f32 %v3090, %v3106
  %v3131 = vmul.f32 %v3091, %v3106
  %v3132 = vmul.f32 %v3092, %v3106
  %v3133 = vmul.f32 %v3093, %v3106
  %v3134 = vmul.f32 %v3094, %v3106
  %v3135 = vmul.f32 %v3095, %v3106
  %v3136 = vmul.f32 %v3096, %v3106
  %v3137 = vmul.f32 %v3097, %v3106
  %v3138 = vmul.f32 %v3098, %v3106
  %v3139 = vmul.f32 %v3099, %v3106
  %v3140 = vadd.f32 %v3035, %v3108
  %v3141 = vadd.f32 %v3036, %v3109
  %v3142 = vadd.f32 %v3037, %v3110
  %v3143 = vadd.f32 %v3038, %v3111
  %v3144 = vadd.f32 %v3039, %v3112
  %v3145 = vadd.f32 %v3040, %v3113
  %v3146 = vadd.f32 %v3041, %v3114
  %v3147 = vadd.f32 %v3042, %v3115
  %v3148 = vadd.f32 %v3043, %v3116
  %v3149 = vadd.f32 %v3044, %v3117
  %v3150 = vadd.f32 %v3045, %v3118
  %v3151 = vadd.f32 %v3046, %v3119
  %v3152 = vadd.f32 %v3047, %v3120
  %v3153 = vadd.f32 %v3048, %v3121
  %v3154 = vadd.f32 %v3049, %v3122
  %v3155 = vadd.f32 %v3050, %v3123
  %v3156 = vadd.f32 %v3051, %v3124
  %v3157 = vadd.f32 %v3052, %v3125
  %v3158 = vadd.f32 %v3053, %v3126
  %v3159 = vadd.f32 %v3054, %v3127
  %v3160 = vadd.f32 %v3055, %v3128
  %v3161 = vadd.f32 %v3056, %v3129
  %v3162 = vadd.f32 %v3057, %v3130
  %v3163 = vadd.f32 %v3058, %v3131
  %v3164 = vadd.f32 %v3059, %v3132
  %v3165 = vadd.f32 %v3060, %v3133
  %v3166 = vadd.f32 %v3061, %v3134
  %v3167 = vadd.f32 %v3062, %v3135
  %v3168 = vadd.f32 %v3063, %v3136
  %v3169 = vadd.f32 %v3064, %v3137
  %v3170 = vadd.f32 %v3065, %v3138
  %v3171 = vadd.f32 %v3066, %v3139
  %v3172 = vld [vmem:[%s3067 + $0x1] sm:$0xff]
  %v3173 = vld [vmem:[%s3067 + $0x9] sm:$0xff]
  %v3174 = vld [vmem:[%s3067 + $0x19] sm:$0xff]
  %v3175 = vld [vmem:[%s3067 + $0x21] sm:$0xff]
  %v3176 = vld [vmem:[%s3067 + $0x31] sm:$0xff]
  %v3177 = vld [vmem:[%s3067 + $0x39] sm:$0xff]
  %v3178 = vld [vmem:[%s3067 + $0x49] sm:$0xff]
  %v3179 = vld [vmem:[%s3067 + $0x51] sm:$0xff]
  %v3180 = vld [vmem:[%s3067 + $0x61] sm:$0xff]
  %v3181 = vld [vmem:[%s3067 + $0x69] sm:$0xff]
  %v3182 = vld [vmem:[%s3067 + $0x79] sm:$0xff]
  %v3183 = vld [vmem:[%s3067 + $0x81] sm:$0xff]
  %v3184 = vld [vmem:[%s3067 + $0x91] sm:$0xff]
  %v3185 = vld [vmem:[%s3067 + $0x99] sm:$0xff]
  %v3186 = vld [vmem:[%s3067 + $0xa9] sm:$0xff]
  %v3187 = vld [vmem:[%s3067 + $0xb1] sm:$0xff]
  %v3188 = vld [vmem:[%s3067 + $0xc1] sm:$0xff]
  %v3189 = vld [vmem:[%s3067 + $0xc9] sm:$0xff]
  %v3190 = vld [vmem:[%s3067 + $0xd9] sm:$0xff]
  %v3191 = vld [vmem:[%s3067 + $0xe1] sm:$0xff]
  %v3192 = vld [vmem:[%s3067 + $0xf1] sm:$0xff]
  %v3193 = vld [vmem:[%s3067 + $0xf9] sm:$0xff]
  %v3194 = vld [vmem:[%s3067 + $0x109] sm:$0xff]
  %v3195 = vld [vmem:[%s3067 + $0x111] sm:$0xff]
  %v3196 = vld [vmem:[%s3067 + $0x121] sm:$0xff]
  %v3197 = vld [vmem:[%s3067 + $0x129] sm:$0xff]
  %v3198 = vld [vmem:[%s3067 + $0x139] sm:$0xff]
  %v3199 = vld [vmem:[%s3067 + $0x141] sm:$0xff]
  %v3200 = vld [vmem:[%s3067 + $0x151] sm:$0xff]
  %v3201 = vld [vmem:[%s3067 + $0x159] sm:$0xff]
  %v3202 = vld [vmem:[%s3067 + $0x169] sm:$0xff]
  %v3203 = vld [vmem:[%s3067 + $0x171] sm:$0xff]
  %s3204 = scalar_lea.vmem %s0, 29
  %v3205 = vld [vmem:[%s3204] sm:$0x1]
  %v3207 = vlaneseq
  %v3208 = vshrl.u32 %v3207, 7
  %v3209 = vsub.s32 0, %v3208
  %v3210 = vrot.slane %v3205, %v3209
  %v3212 = vmul.f32 %v3172, %v3210
  %v3213 = vmul.f32 %v3173, %v3210
  %v3214 = vmul.f32 %v3174, %v3210
  %v3215 = vmul.f32 %v3175, %v3210
  %v3216 = vmul.f32 %v3176, %v3210
  %v3217 = vmul.f32 %v3177, %v3210
  %v3218 = vmul.f32 %v3178, %v3210
  %v3219 = vmul.f32 %v3179, %v3210
  %v3220 = vmul.f32 %v3180, %v3210
  %v3221 = vmul.f32 %v3181, %v3210
  %v3222 = vmul.f32 %v3182, %v3210
  %v3223 = vmul.f32 %v3183, %v3210
  %v3224 = vmul.f32 %v3184, %v3210
  %v3225 = vmul.f32 %v3185, %v3210
  %v3226 = vmul.f32 %v3186, %v3210
  %v3227 = vmul.f32 %v3187, %v3210
  %v3228 = vmul.f32 %v3188, %v3210
  %v3229 = vmul.f32 %v3189, %v3210
  %v3230 = vmul.f32 %v3190, %v3210
  %v3231 = vmul.f32 %v3191, %v3210
  %v3232 = vmul.f32 %v3192, %v3210
  %v3233 = vmul.f32 %v3193, %v3210
  %v3234 = vmul.f32 %v3194, %v3210
  %v3235 = vmul.f32 %v3195, %v3210
  %v3236 = vmul.f32 %v3196, %v3210
  %v3237 = vmul.f32 %v3197, %v3210
  %v3238 = vmul.f32 %v3198, %v3210
  %v3239 = vmul.f32 %v3199, %v3210
  %v3240 = vmul.f32 %v3200, %v3210
  %v3241 = vmul.f32 %v3201, %v3210
  %v3242 = vmul.f32 %v3202, %v3210
  %v3243 = vmul.f32 %v3203, %v3210
  %v3244 = vadd.f32 %v3140, %v3212
  %v3245 = vadd.f32 %v3141, %v3213
  %v3246 = vadd.f32 %v3142, %v3214
  %v3247 = vadd.f32 %v3143, %v3215
  %v3248 = vadd.f32 %v3144, %v3216
  %v3249 = vadd.f32 %v3145, %v3217
  %v3250 = vadd.f32 %v3146, %v3218
  %v3251 = vadd.f32 %v3147, %v3219
  %v3252 = vadd.f32 %v3148, %v3220
  %v3253 = vadd.f32 %v3149, %v3221
  %v3254 = vadd.f32 %v3150, %v3222
  %v3255 = vadd.f32 %v3151, %v3223
  %v3256 = vadd.f32 %v3152, %v3224
  %v3257 = vadd.f32 %v3153, %v3225
  %v3258 = vadd.f32 %v3154, %v3226
  %v3259 = vadd.f32 %v3155, %v3227
  %v3260 = vadd.f32 %v3156, %v3228
  %v3261 = vadd.f32 %v3157, %v3229
  %v3262 = vadd.f32 %v3158, %v3230
  %v3263 = vadd.f32 %v3159, %v3231
  %v3264 = vadd.f32 %v3160, %v3232
  %v3265 = vadd.f32 %v3161, %v3233
  %v3266 = vadd.f32 %v3162, %v3234
  %v3267 = vadd.f32 %v3163, %v3235
  %v3268 = vadd.f32 %v3164, %v3236
  %v3269 = vadd.f32 %v3165, %v3237
  %v3270 = vadd.f32 %v3166, %v3238
  %v3271 = vadd.f32 %v3167, %v3239
  %v3272 = vadd.f32 %v3168, %v3240
  %v3273 = vadd.f32 %v3169, %v3241
  %v3274 = vadd.f32 %v3170, %v3242
  %v3275 = vadd.f32 %v3171, %v3243
  %v3276 = vld [vmem:[%s3067 + $0x2] sm:$0xff]
  %v3277 = vld [vmem:[%s3067 + $0xa] sm:$0xff]
  %v3278 = vld [vmem:[%s3067 + $0x1a] sm:$0xff]
  %v3279 = vld [vmem:[%s3067 + $0x22] sm:$0xff]
  %v3280 = vld [vmem:[%s3067 + $0x32] sm:$0xff]
  %v3281 = vld [vmem:[%s3067 + $0x3a] sm:$0xff]
  %v3282 = vld [vmem:[%s3067 + $0x4a] sm:$0xff]
  %v3283 = vld [vmem:[%s3067 + $0x52] sm:$0xff]
  %v3284 = vld [vmem:[%s3067 + $0x62] sm:$0xff]
  %v3285 = vld [vmem:[%s3067 + $0x6a] sm:$0xff]
  %v3286 = vld [vmem:[%s3067 + $0x7a] sm:$0xff]
  %v3287 = vld [vmem:[%s3067 + $0x82] sm:$0xff]
  %v3288 = vld [vmem:[%s3067 + $0x92] sm:$0xff]
  %v3289 = vld [vmem:[%s3067 + $0x9a] sm:$0xff]
  %v3290 = vld [vmem:[%s3067 + $0xaa] sm:$0xff]
  %v3291 = vld [vmem:[%s3067 + $0xb2] sm:$0xff]
  %v3292 = vld [vmem:[%s3067 + $0xc2] sm:$0xff]
  %v3293 = vld [vmem:[%s3067 + $0xca] sm:$0xff]
  %v3294 = vld [vmem:[%s3067 + $0xda] sm:$0xff]
  %v3295 = vld [vmem:[%s3067 + $0xe2] sm:$0xff]
  %v3296 = vld [vmem:[%s3067 + $0xf2] sm:$0xff]
  %v3297 = vld [vmem:[%s3067 + $0xfa] sm:$0xff]
  %v3298 = vld [vmem:[%s3067 + $0x10a] sm:$0xff]
  %v3299 = vld [vmem:[%s3067 + $0x112] sm:$0xff]
  %v3300 = vld [vmem:[%s3067 + $0x122] sm:$0xff]
  %v3301 = vld [vmem:[%s3067 + $0x12a] sm:$0xff]
  %v3302 = vld [vmem:[%s3067 + $0x13a] sm:$0xff]
  %v3303 = vld [vmem:[%s3067 + $0x142] sm:$0xff]
  %v3304 = vld [vmem:[%s3067 + $0x152] sm:$0xff]
  %v3305 = vld [vmem:[%s3067 + $0x15a] sm:$0xff]
  %v3306 = vld [vmem:[%s3067 + $0x16a] sm:$0xff]
  %v3307 = vld [vmem:[%s3067 + $0x172] sm:$0xff]
  %s3308 = scalar_lea.vmem %s0, 30
  %v3309 = vld [vmem:[%s3308] sm:$0x1]
  %v3311 = vlaneseq
  %v3312 = vshrl.u32 %v3311, 7
  %v3313 = vsub.s32 0, %v3312
  %v3314 = vrot.slane %v3309, %v3313
  %v3316 = vmul.f32 %v3276, %v3314
  %v3317 = vmul.f32 %v3277, %v3314
  %v3318 = vmul.f32 %v3278, %v3314
  %v3319 = vmul.f32 %v3279, %v3314
  %v3320 = vmul.f32 %v3280, %v3314
  %v3321 = vmul.f32 %v3281, %v3314
  %v3322 = vmul.f32 %v3282, %v3314
  %v3323 = vmul.f32 %v3283, %v3314
  %v3324 = vmul.f32 %v3284, %v3314
  %v3325 = vmul.f32 %v3285, %v3314
  %v3326 = vmul.f32 %v3286, %v3314
  %v3327 = vmul.f32 %v3287, %v3314
  %v3328 = vmul.f32 %v3288, %v3314
  %v3329 = vmul.f32 %v3289, %v3314
  %v3330 = vmul.f32 %v3290, %v3314
  %v3331 = vmul.f32 %v3291, %v3314
  %v3332 = vmul.f32 %v3292, %v3314
  %v3333 = vmul.f32 %v3293, %v3314
  %v3334 = vmul.f32 %v3294, %v3314
  %v3335 = vmul.f32 %v3295, %v3314
  %v3336 = vmul.f32 %v3296, %v3314
  %v3337 = vmul.f32 %v3297, %v3314
  %v3338 = vmul.f32 %v3298, %v3314
  %v3339 = vmul.f32 %v3299, %v3314
  %v3340 = vmul.f32 %v3300, %v3314
  %v3341 = vmul.f32 %v3301, %v3314
  %v3342 = vmul.f32 %v3302, %v3314
  %v3343 = vmul.f32 %v3303, %v3314
  %v3344 = vmul.f32 %v3304, %v3314
  %v3345 = vmul.f32 %v3305, %v3314
  %v3346 = vmul.f32 %v3306, %v3314
  %v3347 = vmul.f32 %v3307, %v3314
  %v3348 = vadd.f32 %v3244, %v3316
  %v3349 = vadd.f32 %v3245, %v3317
  %v3350 = vadd.f32 %v3246, %v3318
  %v3351 = vadd.f32 %v3247, %v3319
  %v3352 = vadd.f32 %v3248, %v3320
  %v3353 = vadd.f32 %v3249, %v3321
  %v3354 = vadd.f32 %v3250, %v3322
  %v3355 = vadd.f32 %v3251, %v3323
  %v3356 = vadd.f32 %v3252, %v3324
  %v3357 = vadd.f32 %v3253, %v3325
  %v3358 = vadd.f32 %v3254, %v3326
  %v3359 = vadd.f32 %v3255, %v3327
  %v3360 = vadd.f32 %v3256, %v3328
  %v3361 = vadd.f32 %v3257, %v3329
  %v3362 = vadd.f32 %v3258, %v3330
  %v3363 = vadd.f32 %v3259, %v3331
  %v3364 = vadd.f32 %v3260, %v3332
  %v3365 = vadd.f32 %v3261, %v3333
  %v3366 = vadd.f32 %v3262, %v3334
  %v3367 = vadd.f32 %v3263, %v3335
  %v3368 = vadd.f32 %v3264, %v3336
  %v3369 = vadd.f32 %v3265, %v3337
  %v3370 = vadd.f32 %v3266, %v3338
  %v3371 = vadd.f32 %v3267, %v3339
  %v3372 = vadd.f32 %v3268, %v3340
  %v3373 = vadd.f32 %v3269, %v3341
  %v3374 = vadd.f32 %v3270, %v3342
  %v3375 = vadd.f32 %v3271, %v3343
  %v3376 = vadd.f32 %v3272, %v3344
  %v3377 = vadd.f32 %v3273, %v3345
  %v3378 = vadd.f32 %v3274, %v3346
  %v3379 = vadd.f32 %v3275, %v3347
  %v3380 = vld [vmem:[%s3067 + $0x3] sm:$0xff]
  %v3381 = vld [vmem:[%s3067 + $0xb] sm:$0xff]
  %v3382 = vld [vmem:[%s3067 + $0x1b] sm:$0xff]
  %v3383 = vld [vmem:[%s3067 + $0x23] sm:$0xff]
  %v3384 = vld [vmem:[%s3067 + $0x33] sm:$0xff]
  %v3385 = vld [vmem:[%s3067 + $0x3b] sm:$0xff]
  %v3386 = vld [vmem:[%s3067 + $0x4b] sm:$0xff]
  %v3387 = vld [vmem:[%s3067 + $0x53] sm:$0xff]
  %v3388 = vld [vmem:[%s3067 + $0x63] sm:$0xff]
  %v3389 = vld [vmem:[%s3067 + $0x6b] sm:$0xff]
  %v3390 = vld [vmem:[%s3067 + $0x7b] sm:$0xff]
  %v3391 = vld [vmem:[%s3067 + $0x83] sm:$0xff]
  %v3392 = vld [vmem:[%s3067 + $0x93] sm:$0xff]
  %v3393 = vld [vmem:[%s3067 + $0x9b] sm:$0xff]
  %v3394 = vld [vmem:[%s3067 + $0xab] sm:$0xff]
  %v3395 = vld [vmem:[%s3067 + $0xb3] sm:$0xff]
  %v3396 = vld [vmem:[%s3067 + $0xc3] sm:$0xff]
  %v3397 = vld [vmem:[%s3067 + $0xcb] sm:$0xff]
  %v3398 = vld [vmem:[%s3067 + $0xdb] sm:$0xff]
  %v3399 = vld [vmem:[%s3067 + $0xe3] sm:$0xff]
  %v3400 = vld [vmem:[%s3067 + $0xf3] sm:$0xff]
  %v3401 = vld [vmem:[%s3067 + $0xfb] sm:$0xff]
  %v3402 = vld [vmem:[%s3067 + $0x10b] sm:$0xff]
  %v3403 = vld [vmem:[%s3067 + $0x113] sm:$0xff]
  %v3404 = vld [vmem:[%s3067 + $0x123] sm:$0xff]
  %v3405 = vld [vmem:[%s3067 + $0x12b] sm:$0xff]
  %v3406 = vld [vmem:[%s3067 + $0x13b] sm:$0xff]
  %v3407 = vld [vmem:[%s3067 + $0x143] sm:$0xff]
  %v3408 = vld [vmem:[%s3067 + $0x153] sm:$0xff]
  %v3409 = vld [vmem:[%s3067 + $0x15b] sm:$0xff]
  %v3410 = vld [vmem:[%s3067 + $0x16b] sm:$0xff]
  %v3411 = vld [vmem:[%s3067 + $0x173] sm:$0xff]
  %s3412 = scalar_lea.vmem %s0, 31
  %v3413 = vld [vmem:[%s3412] sm:$0x1]
  %v3415 = vlaneseq
  %v3416 = vshrl.u32 %v3415, 7
  %v3417 = vsub.s32 0, %v3416
  %v3418 = vrot.slane %v3413, %v3417
  %v3420 = vmul.f32 %v3380, %v3418
  %v3421 = vmul.f32 %v3381, %v3418
  %v3422 = vmul.f32 %v3382, %v3418
  %v3423 = vmul.f32 %v3383, %v3418
  %v3424 = vmul.f32 %v3384, %v3418
  %v3425 = vmul.f32 %v3385, %v3418
  %v3426 = vmul.f32 %v3386, %v3418
  %v3427 = vmul.f32 %v3387, %v3418
  %v3428 = vmul.f32 %v3388, %v3418
  %v3429 = vmul.f32 %v3389, %v3418
  %v3430 = vmul.f32 %v3390, %v3418
  %v3431 = vmul.f32 %v3391, %v3418
  %v3432 = vmul.f32 %v3392, %v3418
  %v3433 = vmul.f32 %v3393, %v3418
  %v3434 = vmul.f32 %v3394, %v3418
  %v3435 = vmul.f32 %v3395, %v3418
  %v3436 = vmul.f32 %v3396, %v3418
  %v3437 = vmul.f32 %v3397, %v3418
  %v3438 = vmul.f32 %v3398, %v3418
  %v3439 = vmul.f32 %v3399, %v3418
  %v3440 = vmul.f32 %v3400, %v3418
  %v3441 = vmul.f32 %v3401, %v3418
  %v3442 = vmul.f32 %v3402, %v3418
  %v3443 = vmul.f32 %v3403, %v3418
  %v3444 = vmul.f32 %v3404, %v3418
  %v3445 = vmul.f32 %v3405, %v3418
  %v3446 = vmul.f32 %v3406, %v3418
  %v3447 = vmul.f32 %v3407, %v3418
  %v3448 = vmul.f32 %v3408, %v3418
  %v3449 = vmul.f32 %v3409, %v3418
  %v3450 = vmul.f32 %v3410, %v3418
  %v3451 = vmul.f32 %v3411, %v3418
  %v3452 = vadd.f32 %v3348, %v3420
  %v3453 = vadd.f32 %v3349, %v3421
  %v3454 = vadd.f32 %v3350, %v3422
  %v3455 = vadd.f32 %v3351, %v3423
  %v3456 = vadd.f32 %v3352, %v3424
  %v3457 = vadd.f32 %v3353, %v3425
  %v3458 = vadd.f32 %v3354, %v3426
  %v3459 = vadd.f32 %v3355, %v3427
  %v3460 = vadd.f32 %v3356, %v3428
  %v3461 = vadd.f32 %v3357, %v3429
  %v3462 = vadd.f32 %v3358, %v3430
  %v3463 = vadd.f32 %v3359, %v3431
  %v3464 = vadd.f32 %v3360, %v3432
  %v3465 = vadd.f32 %v3361, %v3433
  %v3466 = vadd.f32 %v3362, %v3434
  %v3467 = vadd.f32 %v3363, %v3435
  %v3468 = vadd.f32 %v3364, %v3436
  %v3469 = vadd.f32 %v3365, %v3437
  %v3470 = vadd.f32 %v3366, %v3438
  %v3471 = vadd.f32 %v3367, %v3439
  %v3472 = vadd.f32 %v3368, %v3440
  %v3473 = vadd.f32 %v3369, %v3441
  %v3474 = vadd.f32 %v3370, %v3442
  %v3475 = vadd.f32 %v3371, %v3443
  %v3476 = vadd.f32 %v3372, %v3444
  %v3477 = vadd.f32 %v3373, %v3445
  %v3478 = vadd.f32 %v3374, %v3446
  %v3479 = vadd.f32 %v3375, %v3447
  %v3480 = vadd.f32 %v3376, %v3448
  %v3481 = vadd.f32 %v3377, %v3449
  %v3482 = vadd.f32 %v3378, %v3450
  %v3483 = vadd.f32 %v3379, %v3451
  %v3484 = vld [vmem:[%s3067 + $0x4] sm:$0xff]
  %v3485 = vld [vmem:[%s3067 + $0xc] sm:$0xff]
  %v3486 = vld [vmem:[%s3067 + $0x1c] sm:$0xff]
  %v3487 = vld [vmem:[%s3067 + $0x24] sm:$0xff]
  %v3488 = vld [vmem:[%s3067 + $0x34] sm:$0xff]
  %v3489 = vld [vmem:[%s3067 + $0x3c] sm:$0xff]
  %v3490 = vld [vmem:[%s3067 + $0x4c] sm:$0xff]
  %v3491 = vld [vmem:[%s3067 + $0x54] sm:$0xff]
  %v3492 = vld [vmem:[%s3067 + $0x64] sm:$0xff]
  %v3493 = vld [vmem:[%s3067 + $0x6c] sm:$0xff]
  %v3494 = vld [vmem:[%s3067 + $0x7c] sm:$0xff]
  %v3495 = vld [vmem:[%s3067 + $0x84] sm:$0xff]
  %v3496 = vld [vmem:[%s3067 + $0x94] sm:$0xff]
  %v3497 = vld [vmem:[%s3067 + $0x9c] sm:$0xff]
  %v3498 = vld [vmem:[%s3067 + $0xac] sm:$0xff]
  %v3499 = vld [vmem:[%s3067 + $0xb4] sm:$0xff]
  %v3500 = vld [vmem:[%s3067 + $0xc4] sm:$0xff]
  %v3501 = vld [vmem:[%s3067 + $0xcc] sm:$0xff]
  %v3502 = vld [vmem:[%s3067 + $0xdc] sm:$0xff]
  %v3503 = vld [vmem:[%s3067 + $0xe4] sm:$0xff]
  %v3504 = vld [vmem:[%s3067 + $0xf4] sm:$0xff]
  %v3505 = vld [vmem:[%s3067 + $0xfc] sm:$0xff]
  %v3506 = vld [vmem:[%s3067 + $0x10c] sm:$0xff]
  %v3507 = vld [vmem:[%s3067 + $0x114] sm:$0xff]
  %v3508 = vld [vmem:[%s3067 + $0x124] sm:$0xff]
  %v3509 = vld [vmem:[%s3067 + $0x12c] sm:$0xff]
  %v3510 = vld [vmem:[%s3067 + $0x13c] sm:$0xff]
  %v3511 = vld [vmem:[%s3067 + $0x144] sm:$0xff]
  %v3512 = vld [vmem:[%s3067 + $0x154] sm:$0xff]
  %v3513 = vld [vmem:[%s3067 + $0x15c] sm:$0xff]
  %v3514 = vld [vmem:[%s3067 + $0x16c] sm:$0xff]
  %v3515 = vld [vmem:[%s3067 + $0x174] sm:$0xff]
  %s3516 = scalar_lea.vmem %s0, 32
  %v3517 = vld [vmem:[%s3516] sm:$0x1]
  %v3519 = vlaneseq
  %v3520 = vshrl.u32 %v3519, 7
  %v3521 = vsub.s32 0, %v3520
  %v3522 = vrot.slane %v3517, %v3521
  %v3524 = vmul.f32 %v3484, %v3522
  %v3525 = vmul.f32 %v3485, %v3522
  %v3526 = vmul.f32 %v3486, %v3522
  %v3527 = vmul.f32 %v3487, %v3522
  %v3528 = vmul.f32 %v3488, %v3522
  %v3529 = vmul.f32 %v3489, %v3522
  %v3530 = vmul.f32 %v3490, %v3522
  %v3531 = vmul.f32 %v3491, %v3522
  %v3532 = vmul.f32 %v3492, %v3522
  %v3533 = vmul.f32 %v3493, %v3522
  %v3534 = vmul.f32 %v3494, %v3522
  %v3535 = vmul.f32 %v3495, %v3522
  %v3536 = vmul.f32 %v3496, %v3522
  %v3537 = vmul.f32 %v3497, %v3522
  %v3538 = vmul.f32 %v3498, %v3522
  %v3539 = vmul.f32 %v3499, %v3522
  %v3540 = vmul.f32 %v3500, %v3522
  %v3541 = vmul.f32 %v3501, %v3522
  %v3542 = vmul.f32 %v3502, %v3522
  %v3543 = vmul.f32 %v3503, %v3522
  %v3544 = vmul.f32 %v3504, %v3522
  %v3545 = vmul.f32 %v3505, %v3522
  %v3546 = vmul.f32 %v3506, %v3522
  %v3547 = vmul.f32 %v3507, %v3522
  %v3548 = vmul.f32 %v3508, %v3522
  %v3549 = vmul.f32 %v3509, %v3522
  %v3550 = vmul.f32 %v3510, %v3522
  %v3551 = vmul.f32 %v3511, %v3522
  %v3552 = vmul.f32 %v3512, %v3522
  %v3553 = vmul.f32 %v3513, %v3522
  %v3554 = vmul.f32 %v3514, %v3522
  %v3555 = vmul.f32 %v3515, %v3522
  %v3556 = vadd.f32 %v3452, %v3524
  %v3557 = vadd.f32 %v3453, %v3525
  %v3558 = vadd.f32 %v3454, %v3526
  %v3559 = vadd.f32 %v3455, %v3527
  %v3560 = vadd.f32 %v3456, %v3528
  %v3561 = vadd.f32 %v3457, %v3529
  %v3562 = vadd.f32 %v3458, %v3530
  %v3563 = vadd.f32 %v3459, %v3531
  %v3564 = vadd.f32 %v3460, %v3532
  %v3565 = vadd.f32 %v3461, %v3533
  %v3566 = vadd.f32 %v3462, %v3534
  %v3567 = vadd.f32 %v3463, %v3535
  %v3568 = vadd.f32 %v3464, %v3536
  %v3569 = vadd.f32 %v3465, %v3537
  %v3570 = vadd.f32 %v3466, %v3538
  %v3571 = vadd.f32 %v3467, %v3539
  %v3572 = vadd.f32 %v3468, %v3540
  %v3573 = vadd.f32 %v3469, %v3541
  %v3574 = vadd.f32 %v3470, %v3542
  %v3575 = vadd.f32 %v3471, %v3543
  %v3576 = vadd.f32 %v3472, %v3544
  %v3577 = vadd.f32 %v3473, %v3545
  %v3578 = vadd.f32 %v3474, %v3546
  %v3579 = vadd.f32 %v3475, %v3547
  %v3580 = vadd.f32 %v3476, %v3548
  %v3581 = vadd.f32 %v3477, %v3549
  %v3582 = vadd.f32 %v3478, %v3550
  %v3583 = vadd.f32 %v3479, %v3551
  %v3584 = vadd.f32 %v3480, %v3552
  %v3585 = vadd.f32 %v3481, %v3553
  %v3586 = vadd.f32 %v3482, %v3554
  %v3587 = vadd.f32 %v3483, %v3555
  %v3588 = vld [vmem:[%s3067 + $0x5] sm:$0xff]
  %v3589 = vld [vmem:[%s3067 + $0xd] sm:$0xff]
  %v3590 = vld [vmem:[%s3067 + $0x1d] sm:$0xff]
  %v3591 = vld [vmem:[%s3067 + $0x25] sm:$0xff]
  %v3592 = vld [vmem:[%s3067 + $0x35] sm:$0xff]
  %v3593 = vld [vmem:[%s3067 + $0x3d] sm:$0xff]
  %v3594 = vld [vmem:[%s3067 + $0x4d] sm:$0xff]
  %v3595 = vld [vmem:[%s3067 + $0x55] sm:$0xff]
  %v3596 = vld [vmem:[%s3067 + $0x65] sm:$0xff]
  %v3597 = vld [vmem:[%s3067 + $0x6d] sm:$0xff]
  %v3598 = vld [vmem:[%s3067 + $0x7d] sm:$0xff]
  %v3599 = vld [vmem:[%s3067 + $0x85] sm:$0xff]
  %v3600 = vld [vmem:[%s3067 + $0x95] sm:$0xff]
  %v3601 = vld [vmem:[%s3067 + $0x9d] sm:$0xff]
  %v3602 = vld [vmem:[%s3067 + $0xad] sm:$0xff]
  %v3603 = vld [vmem:[%s3067 + $0xb5] sm:$0xff]
  %v3604 = vld [vmem:[%s3067 + $0xc5] sm:$0xff]
  %v3605 = vld [vmem:[%s3067 + $0xcd] sm:$0xff]
  %v3606 = vld [vmem:[%s3067 + $0xdd] sm:$0xff]
  %v3607 = vld [vmem:[%s3067 + $0xe5] sm:$0xff]
  %v3608 = vld [vmem:[%s3067 + $0xf5] sm:$0xff]
  %v3609 = vld [vmem:[%s3067 + $0xfd] sm:$0xff]
  %v3610 = vld [vmem:[%s3067 + $0x10d] sm:$0xff]
  %v3611 = vld [vmem:[%s3067 + $0x115] sm:$0xff]
  %v3612 = vld [vmem:[%s3067 + $0x125] sm:$0xff]
  %v3613 = vld [vmem:[%s3067 + $0x12d] sm:$0xff]
  %v3614 = vld [vmem:[%s3067 + $0x13d] sm:$0xff]
  %v3615 = vld [vmem:[%s3067 + $0x145] sm:$0xff]
  %v3616 = vld [vmem:[%s3067 + $0x155] sm:$0xff]
  %v3617 = vld [vmem:[%s3067 + $0x15d] sm:$0xff]
  %v3618 = vld [vmem:[%s3067 + $0x16d] sm:$0xff]
  %v3619 = vld [vmem:[%s3067 + $0x175] sm:$0xff]
  %s3620 = scalar_lea.vmem %s0, 33
  %v3621 = vld [vmem:[%s3620] sm:$0x1]
  %v3623 = vlaneseq
  %v3624 = vshrl.u32 %v3623, 7
  %v3625 = vsub.s32 0, %v3624
  %v3626 = vrot.slane %v3621, %v3625
  %v3628 = vmul.f32 %v3588, %v3626
  %v3629 = vmul.f32 %v3589, %v3626
  %v3630 = vmul.f32 %v3590, %v3626
  %v3631 = vmul.f32 %v3591, %v3626
  %v3632 = vmul.f32 %v3592, %v3626
  %v3633 = vmul.f32 %v3593, %v3626
  %v3634 = vmul.f32 %v3594, %v3626
  %v3635 = vmul.f32 %v3595, %v3626
  %v3636 = vmul.f32 %v3596, %v3626
  %v3637 = vmul.f32 %v3597, %v3626
  %v3638 = vmul.f32 %v3598, %v3626
  %v3639 = vmul.f32 %v3599, %v3626
  %v3640 = vmul.f32 %v3600, %v3626
  %v3641 = vmul.f32 %v3601, %v3626
  %v3642 = vmul.f32 %v3602, %v3626
  %v3643 = vmul.f32 %v3603, %v3626
  %v3644 = vmul.f32 %v3604, %v3626
  %v3645 = vmul.f32 %v3605, %v3626
  %v3646 = vmul.f32 %v3606, %v3626
  %v3647 = vmul.f32 %v3607, %v3626
  %v3648 = vmul.f32 %v3608, %v3626
  %v3649 = vmul.f32 %v3609, %v3626
  %v3650 = vmul.f32 %v3610, %v3626
  %v3651 = vmul.f32 %v3611, %v3626
  %v3652 = vmul.f32 %v3612, %v3626
  %v3653 = vmul.f32 %v3613, %v3626
  %v3654 = vmul.f32 %v3614, %v3626
  %v3655 = vmul.f32 %v3615, %v3626
  %v3656 = vmul.f32 %v3616, %v3626
  %v3657 = vmul.f32 %v3617, %v3626
  %v3658 = vmul.f32 %v3618, %v3626
  %v3659 = vmul.f32 %v3619, %v3626
  %v3660 = vadd.f32 %v3556, %v3628
  %v3661 = vadd.f32 %v3557, %v3629
  %v3662 = vadd.f32 %v3558, %v3630
  %v3663 = vadd.f32 %v3559, %v3631
  %v3664 = vadd.f32 %v3560, %v3632
  %v3665 = vadd.f32 %v3561, %v3633
  %v3666 = vadd.f32 %v3562, %v3634
  %v3667 = vadd.f32 %v3563, %v3635
  %v3668 = vadd.f32 %v3564, %v3636
  %v3669 = vadd.f32 %v3565, %v3637
  %v3670 = vadd.f32 %v3566, %v3638
  %v3671 = vadd.f32 %v3567, %v3639
  %v3672 = vadd.f32 %v3568, %v3640
  %v3673 = vadd.f32 %v3569, %v3641
  %v3674 = vadd.f32 %v3570, %v3642
  %v3675 = vadd.f32 %v3571, %v3643
  %v3676 = vadd.f32 %v3572, %v3644
  %v3677 = vadd.f32 %v3573, %v3645
  %v3678 = vadd.f32 %v3574, %v3646
  %v3679 = vadd.f32 %v3575, %v3647
  %v3680 = vadd.f32 %v3576, %v3648
  %v3681 = vadd.f32 %v3577, %v3649
  %v3682 = vadd.f32 %v3578, %v3650
  %v3683 = vadd.f32 %v3579, %v3651
  %v3684 = vadd.f32 %v3580, %v3652
  %v3685 = vadd.f32 %v3581, %v3653
  %v3686 = vadd.f32 %v3582, %v3654
  %v3687 = vadd.f32 %v3583, %v3655
  %v3688 = vadd.f32 %v3584, %v3656
  %v3689 = vadd.f32 %v3585, %v3657
  %v3690 = vadd.f32 %v3586, %v3658
  %v3691 = vadd.f32 %v3587, %v3659
  %v3692 = vld [vmem:[%s3067 + $0x6] sm:$0xff]
  %v3693 = vld [vmem:[%s3067 + $0xe] sm:$0xff]
  %v3694 = vld [vmem:[%s3067 + $0x1e] sm:$0xff]
  %v3695 = vld [vmem:[%s3067 + $0x26] sm:$0xff]
  %v3696 = vld [vmem:[%s3067 + $0x36] sm:$0xff]
  %v3697 = vld [vmem:[%s3067 + $0x3e] sm:$0xff]
  %v3698 = vld [vmem:[%s3067 + $0x4e] sm:$0xff]
  %v3699 = vld [vmem:[%s3067 + $0x56] sm:$0xff]
  %v3700 = vld [vmem:[%s3067 + $0x66] sm:$0xff]
  %v3701 = vld [vmem:[%s3067 + $0x6e] sm:$0xff]
  %v3702 = vld [vmem:[%s3067 + $0x7e] sm:$0xff]
  %v3703 = vld [vmem:[%s3067 + $0x86] sm:$0xff]
  %v3704 = vld [vmem:[%s3067 + $0x96] sm:$0xff]
  %v3705 = vld [vmem:[%s3067 + $0x9e] sm:$0xff]
  %v3706 = vld [vmem:[%s3067 + $0xae] sm:$0xff]
  %v3707 = vld [vmem:[%s3067 + $0xb6] sm:$0xff]
  %v3708 = vld [vmem:[%s3067 + $0xc6] sm:$0xff]
  %v3709 = vld [vmem:[%s3067 + $0xce] sm:$0xff]
  %v3710 = vld [vmem:[%s3067 + $0xde] sm:$0xff]
  %v3711 = vld [vmem:[%s3067 + $0xe6] sm:$0xff]
  %v3712 = vld [vmem:[%s3067 + $0xf6] sm:$0xff]
  %v3713 = vld [vmem:[%s3067 + $0xfe] sm:$0xff]
  %v3714 = vld [vmem:[%s3067 + $0x10e] sm:$0xff]
  %v3715 = vld [vmem:[%s3067 + $0x116] sm:$0xff]
  %v3716 = vld [vmem:[%s3067 + $0x126] sm:$0xff]
  %v3717 = vld [vmem:[%s3067 + $0x12e] sm:$0xff]
  %v3718 = vld [vmem:[%s3067 + $0x13e] sm:$0xff]
  %v3719 = vld [vmem:[%s3067 + $0x146] sm:$0xff]
  %v3720 = vld [vmem:[%s3067 + $0x156] sm:$0xff]
  %v3721 = vld [vmem:[%s3067 + $0x15e] sm:$0xff]
  %v3722 = vld [vmem:[%s3067 + $0x16e] sm:$0xff]
  %v3723 = vld [vmem:[%s3067 + $0x176] sm:$0xff]
  %s3724 = scalar_lea.vmem %s0, 34
  %v3725 = vld [vmem:[%s3724] sm:$0x1]
  %v3727 = vlaneseq
  %v3728 = vshrl.u32 %v3727, 7
  %v3729 = vsub.s32 0, %v3728
  %v3730 = vrot.slane %v3725, %v3729
  %v3732 = vmul.f32 %v3692, %v3730
  %v3733 = vmul.f32 %v3693, %v3730
  %v3734 = vmul.f32 %v3694, %v3730
  %v3735 = vmul.f32 %v3695, %v3730
  %v3736 = vmul.f32 %v3696, %v3730
  %v3737 = vmul.f32 %v3697, %v3730
  %v3738 = vmul.f32 %v3698, %v3730
  %v3739 = vmul.f32 %v3699, %v3730
  %v3740 = vmul.f32 %v3700, %v3730
  %v3741 = vmul.f32 %v3701, %v3730
  %v3742 = vmul.f32 %v3702, %v3730
  %v3743 = vmul.f32 %v3703, %v3730
  %v3744 = vmul.f32 %v3704, %v3730
  %v3745 = vmul.f32 %v3705, %v3730
  %v3746 = vmul.f32 %v3706, %v3730
  %v3747 = vmul.f32 %v3707, %v3730
  %v3748 = vmul.f32 %v3708, %v3730
  %v3749 = vmul.f32 %v3709, %v3730
  %v3750 = vmul.f32 %v3710, %v3730
  %v3751 = vmul.f32 %v3711, %v3730
  %v3752 = vmul.f32 %v3712, %v3730
  %v3753 = vmul.f32 %v3713, %v3730
  %v3754 = vmul.f32 %v3714, %v3730
  %v3755 = vmul.f32 %v3715, %v3730
  %v3756 = vmul.f32 %v3716, %v3730
  %v3757 = vmul.f32 %v3717, %v3730
  %v3758 = vmul.f32 %v3718, %v3730
  %v3759 = vmul.f32 %v3719, %v3730
  %v3760 = vmul.f32 %v3720, %v3730
  %v3761 = vmul.f32 %v3721, %v3730
  %v3762 = vmul.f32 %v3722, %v3730
  %v3763 = vmul.f32 %v3723, %v3730
  %v3764 = vadd.f32 %v3660, %v3732
  %v3765 = vadd.f32 %v3661, %v3733
  %v3766 = vadd.f32 %v3662, %v3734
  %v3767 = vadd.f32 %v3663, %v3735
  %v3768 = vadd.f32 %v3664, %v3736
  %v3769 = vadd.f32 %v3665, %v3737
  %v3770 = vadd.f32 %v3666, %v3738
  %v3771 = vadd.f32 %v3667, %v3739
  %v3772 = vadd.f32 %v3668, %v3740
  %v3773 = vadd.f32 %v3669, %v3741
  %v3774 = vadd.f32 %v3670, %v3742
  %v3775 = vadd.f32 %v3671, %v3743
  %v3776 = vadd.f32 %v3672, %v3744
  %v3777 = vadd.f32 %v3673, %v3745
  %v3778 = vadd.f32 %v3674, %v3746
  %v3779 = vadd.f32 %v3675, %v3747
  %v3780 = vadd.f32 %v3676, %v3748
  %v3781 = vadd.f32 %v3677, %v3749
  %v3782 = vadd.f32 %v3678, %v3750
  %v3783 = vadd.f32 %v3679, %v3751
  %v3784 = vadd.f32 %v3680, %v3752
  %v3785 = vadd.f32 %v3681, %v3753
  %v3786 = vadd.f32 %v3682, %v3754
  %v3787 = vadd.f32 %v3683, %v3755
  %v3788 = vadd.f32 %v3684, %v3756
  %v3789 = vadd.f32 %v3685, %v3757
  %v3790 = vadd.f32 %v3686, %v3758
  %v3791 = vadd.f32 %v3687, %v3759
  %v3792 = vadd.f32 %v3688, %v3760
  %v3793 = vadd.f32 %v3689, %v3761
  %v3794 = vadd.f32 %v3690, %v3762
  %v3795 = vadd.f32 %v3691, %v3763
  %s3796 = scalar_lea.vmem [#allocation2], 120
  %v3797 = vld [vmem:[%s3796] sm:$0xff]
  %v3798 = vld [vmem:[%s3796 + $0x8] sm:$0xff]
  %v3799 = vld [vmem:[%s3796 + $0x18] sm:$0xff]
  %v3800 = vld [vmem:[%s3796 + $0x20] sm:$0xff]
  %v3801 = vld [vmem:[%s3796 + $0x30] sm:$0xff]
  %v3802 = vld [vmem:[%s3796 + $0x38] sm:$0xff]
  %v3803 = vld [vmem:[%s3796 + $0x48] sm:$0xff]
  %v3804 = vld [vmem:[%s3796 + $0x50] sm:$0xff]
  %v3805 = vld [vmem:[%s3796 + $0x60] sm:$0xff]
  %v3806 = vld [vmem:[%s3796 + $0x68] sm:$0xff]
  %v3807 = vld [vmem:[%s3796 + $0x78] sm:$0xff]
  %v3808 = vld [vmem:[%s3796 + $0x80] sm:$0xff]
  %v3809 = vld [vmem:[%s3796 + $0x90] sm:$0xff]
  %v3810 = vld [vmem:[%s3796 + $0x98] sm:$0xff]
  %v3811 = vld [vmem:[%s3796 + $0xa8] sm:$0xff]
  %v3812 = vld [vmem:[%s3796 + $0xb0] sm:$0xff]
  %v3813 = vld [vmem:[%s3796 + $0xc0] sm:$0xff]
  %v3814 = vld [vmem:[%s3796 + $0xc8] sm:$0xff]
  %v3815 = vld [vmem:[%s3796 + $0xd8] sm:$0xff]
  %v3816 = vld [vmem:[%s3796 + $0xe0] sm:$0xff]
  %v3817 = vld [vmem:[%s3796 + $0xf0] sm:$0xff]
  %v3818 = vld [vmem:[%s3796 + $0xf8] sm:$0xff]
  %v3819 = vld [vmem:[%s3796 + $0x108] sm:$0xff]
  %v3820 = vld [vmem:[%s3796 + $0x110] sm:$0xff]
  %v3821 = vld [vmem:[%s3796 + $0x120] sm:$0xff]
  %v3822 = vld [vmem:[%s3796 + $0x128] sm:$0xff]
  %v3823 = vld [vmem:[%s3796 + $0x138] sm:$0xff]
  %v3824 = vld [vmem:[%s3796 + $0x140] sm:$0xff]
  %v3825 = vld [vmem:[%s3796 + $0x150] sm:$0xff]
  %v3826 = vld [vmem:[%s3796 + $0x158] sm:$0xff]
  %v3827 = vld [vmem:[%s3796 + $0x168] sm:$0xff]
  %v3828 = vld [vmem:[%s3796 + $0x170] sm:$0xff]
  %s3829 = scalar_lea.vmem %s0, 35
  %v3830 = vld [vmem:[%s3829] sm:$0x1]
  %v3832 = vlaneseq
  %v3833 = vshrl.u32 %v3832, 7
  %v3834 = vsub.s32 0, %v3833
  %v3835 = vrot.slane %v3830, %v3834
  %v3837 = vmul.f32 %v3797, %v3835
  %v3838 = vmul.f32 %v3798, %v3835
  %v3839 = vmul.f32 %v3799, %v3835
  %v3840 = vmul.f32 %v3800, %v3835
  %v3841 = vmul.f32 %v3801, %v3835
  %v3842 = vmul.f32 %v3802, %v3835
  %v3843 = vmul.f32 %v3803, %v3835
  %v3844 = vmul.f32 %v3804, %v3835
  %v3845 = vmul.f32 %v3805, %v3835
  %v3846 = vmul.f32 %v3806, %v3835
  %v3847 = vmul.f32 %v3807, %v3835
  %v3848 = vmul.f32 %v3808, %v3835
  %v3849 = vmul.f32 %v3809, %v3835
  %v3850 = vmul.f32 %v3810, %v3835
  %v3851 = vmul.f32 %v3811, %v3835
  %v3852 = vmul.f32 %v3812, %v3835
  %v3853 = vmul.f32 %v3813, %v3835
  %v3854 = vmul.f32 %v3814, %v3835
  %v3855 = vmul.f32 %v3815, %v3835
  %v3856 = vmul.f32 %v3816, %v3835
  %v3857 = vmul.f32 %v3817, %v3835
  %v3858 = vmul.f32 %v3818, %v3835
  %v3859 = vmul.f32 %v3819, %v3835
  %v3860 = vmul.f32 %v3820, %v3835
  %v3861 = vmul.f32 %v3821, %v3835
  %v3862 = vmul.f32 %v3822, %v3835
  %v3863 = vmul.f32 %v3823, %v3835
  %v3864 = vmul.f32 %v3824, %v3835
  %v3865 = vmul.f32 %v3825, %v3835
  %v3866 = vmul.f32 %v3826, %v3835
  %v3867 = vmul.f32 %v3827, %v3835
  %v3868 = vmul.f32 %v3828, %v3835
  %v3869 = vadd.f32 %v3764, %v3837
  %v3870 = vadd.f32 %v3765, %v3838
  %v3871 = vadd.f32 %v3766, %v3839
  %v3872 = vadd.f32 %v3767, %v3840
  %v3873 = vadd.f32 %v3768, %v3841
  %v3874 = vadd.f32 %v3769, %v3842
  %v3875 = vadd.f32 %v3770, %v3843
  %v3876 = vadd.f32 %v3771, %v3844
  %v3877 = vadd.f32 %v3772, %v3845
  %v3878 = vadd.f32 %v3773, %v3846
  %v3879 = vadd.f32 %v3774, %v3847
  %v3880 = vadd.f32 %v3775, %v3848
  %v3881 = vadd.f32 %v3776, %v3849
  %v3882 = vadd.f32 %v3777, %v3850
  %v3883 = vadd.f32 %v3778, %v3851
  %v3884 = vadd.f32 %v3779, %v3852
  %v3885 = vadd.f32 %v3780, %v3853
  %v3886 = vadd.f32 %v3781, %v3854
  %v3887 = vadd.f32 %v3782, %v3855
  %v3888 = vadd.f32 %v3783, %v3856
  %v3889 = vadd.f32 %v3784, %v3857
  %v3890 = vadd.f32 %v3785, %v3858
  %v3891 = vadd.f32 %v3786, %v3859
  %v3892 = vadd.f32 %v3787, %v3860
  %v3893 = vadd.f32 %v3788, %v3861
  %v3894 = vadd.f32 %v3789, %v3862
  %v3895 = vadd.f32 %v3790, %v3863
  %v3896 = vadd.f32 %v3791, %v3864
  %v3897 = vadd.f32 %v3792, %v3865
  %v3898 = vadd.f32 %v3793, %v3866
  %v3899 = vadd.f32 %v3794, %v3867
  %v3900 = vadd.f32 %v3795, %v3868
  %v3901 = vld [vmem:[%s3796 + $0x1] sm:$0xff]
  %v3902 = vld [vmem:[%s3796 + $0x9] sm:$0xff]
  %v3903 = vld [vmem:[%s3796 + $0x19] sm:$0xff]
  %v3904 = vld [vmem:[%s3796 + $0x21] sm:$0xff]
  %v3905 = vld [vmem:[%s3796 + $0x31] sm:$0xff]
  %v3906 = vld [vmem:[%s3796 + $0x39] sm:$0xff]
  %v3907 = vld [vmem:[%s3796 + $0x49] sm:$0xff]
  %v3908 = vld [vmem:[%s3796 + $0x51] sm:$0xff]
  %v3909 = vld [vmem:[%s3796 + $0x61] sm:$0xff]
  %v3910 = vld [vmem:[%s3796 + $0x69] sm:$0xff]
  %v3911 = vld [vmem:[%s3796 + $0x79] sm:$0xff]
  %v3912 = vld [vmem:[%s3796 + $0x81] sm:$0xff]
  %v3913 = vld [vmem:[%s3796 + $0x91] sm:$0xff]
  %v3914 = vld [vmem:[%s3796 + $0x99] sm:$0xff]
  %v3915 = vld [vmem:[%s3796 + $0xa9] sm:$0xff]
  %v3916 = vld [vmem:[%s3796 + $0xb1] sm:$0xff]
  %v3917 = vld [vmem:[%s3796 + $0xc1] sm:$0xff]
  %v3918 = vld [vmem:[%s3796 + $0xc9] sm:$0xff]
  %v3919 = vld [vmem:[%s3796 + $0xd9] sm:$0xff]
  %v3920 = vld [vmem:[%s3796 + $0xe1] sm:$0xff]
  %v3921 = vld [vmem:[%s3796 + $0xf1] sm:$0xff]
  %v3922 = vld [vmem:[%s3796 + $0xf9] sm:$0xff]
  %v3923 = vld [vmem:[%s3796 + $0x109] sm:$0xff]
  %v3924 = vld [vmem:[%s3796 + $0x111] sm:$0xff]
  %v3925 = vld [vmem:[%s3796 + $0x121] sm:$0xff]
  %v3926 = vld [vmem:[%s3796 + $0x129] sm:$0xff]
  %v3927 = vld [vmem:[%s3796 + $0x139] sm:$0xff]
  %v3928 = vld [vmem:[%s3796 + $0x141] sm:$0xff]
  %v3929 = vld [vmem:[%s3796 + $0x151] sm:$0xff]
  %v3930 = vld [vmem:[%s3796 + $0x159] sm:$0xff]
  %v3931 = vld [vmem:[%s3796 + $0x169] sm:$0xff]
  %v3932 = vld [vmem:[%s3796 + $0x171] sm:$0xff]
  %s3933 = scalar_lea.vmem %s0, 36
  %v3934 = vld [vmem:[%s3933] sm:$0x1]
  %v3936 = vlaneseq
  %v3937 = vshrl.u32 %v3936, 7
  %v3938 = vsub.s32 0, %v3937
  %v3939 = vrot.slane %v3934, %v3938
  %v3941 = vmul.f32 %v3901, %v3939
  %v3942 = vmul.f32 %v3902, %v3939
  %v3943 = vmul.f32 %v3903, %v3939
  %v3944 = vmul.f32 %v3904, %v3939
  %v3945 = vmul.f32 %v3905, %v3939
  %v3946 = vmul.f32 %v3906, %v3939
  %v3947 = vmul.f32 %v3907, %v3939
  %v3948 = vmul.f32 %v3908, %v3939
  %v3949 = vmul.f32 %v3909, %v3939
  %v3950 = vmul.f32 %v3910, %v3939
  %v3951 = vmul.f32 %v3911, %v3939
  %v3952 = vmul.f32 %v3912, %v3939
  %v3953 = vmul.f32 %v3913, %v3939
  %v3954 = vmul.f32 %v3914, %v3939
  %v3955 = vmul.f32 %v3915, %v3939
  %v3956 = vmul.f32 %v3916, %v3939
  %v3957 = vmul.f32 %v3917, %v3939
  %v3958 = vmul.f32 %v3918, %v3939
  %v3959 = vmul.f32 %v3919, %v3939
  %v3960 = vmul.f32 %v3920, %v3939
  %v3961 = vmul.f32 %v3921, %v3939
  %v3962 = vmul.f32 %v3922, %v3939
  %v3963 = vmul.f32 %v3923, %v3939
  %v3964 = vmul.f32 %v3924, %v3939
  %v3965 = vmul.f32 %v3925, %v3939
  %v3966 = vmul.f32 %v3926, %v3939
  %v3967 = vmul.f32 %v3927, %v3939
  %v3968 = vmul.f32 %v3928, %v3939
  %v3969 = vmul.f32 %v3929, %v3939
  %v3970 = vmul.f32 %v3930, %v3939
  %v3971 = vmul.f32 %v3931, %v3939
  %v3972 = vmul.f32 %v3932, %v3939
  %v3973 = vadd.f32 %v3869, %v3941
  %v3974 = vadd.f32 %v3870, %v3942
  %v3975 = vadd.f32 %v3871, %v3943
  %v3976 = vadd.f32 %v3872, %v3944
  %v3977 = vadd.f32 %v3873, %v3945
  %v3978 = vadd.f32 %v3874, %v3946
  %v3979 = vadd.f32 %v3875, %v3947
  %v3980 = vadd.f32 %v3876, %v3948
  %v3981 = vadd.f32 %v3877, %v3949
  %v3982 = vadd.f32 %v3878, %v3950
  %v3983 = vadd.f32 %v3879, %v3951
  %v3984 = vadd.f32 %v3880, %v3952
  %v3985 = vadd.f32 %v3881, %v3953
  %v3986 = vadd.f32 %v3882, %v3954
  %v3987 = vadd.f32 %v3883, %v3955
  %v3988 = vadd.f32 %v3884, %v3956
  %v3989 = vadd.f32 %v3885, %v3957
  %v3990 = vadd.f32 %v3886, %v3958
  %v3991 = vadd.f32 %v3887, %v3959
  %v3992 = vadd.f32 %v3888, %v3960
  %v3993 = vadd.f32 %v3889, %v3961
  %v3994 = vadd.f32 %v3890, %v3962
  %v3995 = vadd.f32 %v3891, %v3963
  %v3996 = vadd.f32 %v3892, %v3964
  %v3997 = vadd.f32 %v3893, %v3965
  %v3998 = vadd.f32 %v3894, %v3966
  %v3999 = vadd.f32 %v3895, %v3967
  %v4000 = vadd.f32 %v3896, %v3968
  %v4001 = vadd.f32 %v3897, %v3969
  %v4002 = vadd.f32 %v3898, %v3970
  %v4003 = vadd.f32 %v3899, %v3971
  %v4004 = vadd.f32 %v3900, %v3972
  %v4005 = vld [vmem:[%s3796 + $0x2] sm:$0xff]
  %v4006 = vld [vmem:[%s3796 + $0xa] sm:$0xff]
  %v4007 = vld [vmem:[%s3796 + $0x1a] sm:$0xff]
  %v4008 = vld [vmem:[%s3796 + $0x22] sm:$0xff]
  %v4009 = vld [vmem:[%s3796 + $0x32] sm:$0xff]
  %v4010 = vld [vmem:[%s3796 + $0x3a] sm:$0xff]
  %v4011 = vld [vmem:[%s3796 + $0x4a] sm:$0xff]
  %v4012 = vld [vmem:[%s3796 + $0x52] sm:$0xff]
  %v4013 = vld [vmem:[%s3796 + $0x62] sm:$0xff]
  %v4014 = vld [vmem:[%s3796 + $0x6a] sm:$0xff]
  %v4015 = vld [vmem:[%s3796 + $0x7a] sm:$0xff]
  %v4016 = vld [vmem:[%s3796 + $0x82] sm:$0xff]
  %v4017 = vld [vmem:[%s3796 + $0x92] sm:$0xff]
  %v4018 = vld [vmem:[%s3796 + $0x9a] sm:$0xff]
  %v4019 = vld [vmem:[%s3796 + $0xaa] sm:$0xff]
  %v4020 = vld [vmem:[%s3796 + $0xb2] sm:$0xff]
  %v4021 = vld [vmem:[%s3796 + $0xc2] sm:$0xff]
  %v4022 = vld [vmem:[%s3796 + $0xca] sm:$0xff]
  %v4023 = vld [vmem:[%s3796 + $0xda] sm:$0xff]
  %v4024 = vld [vmem:[%s3796 + $0xe2] sm:$0xff]
  %v4025 = vld [vmem:[%s3796 + $0xf2] sm:$0xff]
  %v4026 = vld [vmem:[%s3796 + $0xfa] sm:$0xff]
  %v4027 = vld [vmem:[%s3796 + $0x10a] sm:$0xff]
  %v4028 = vld [vmem:[%s3796 + $0x112] sm:$0xff]
  %v4029 = vld [vmem:[%s3796 + $0x122] sm:$0xff]
  %v4030 = vld [vmem:[%s3796 + $0x12a] sm:$0xff]
  %v4031 = vld [vmem:[%s3796 + $0x13a] sm:$0xff]
  %v4032 = vld [vmem:[%s3796 + $0x142] sm:$0xff]
  %v4033 = vld [vmem:[%s3796 + $0x152] sm:$0xff]
  %v4034 = vld [vmem:[%s3796 + $0x15a] sm:$0xff]
  %v4035 = vld [vmem:[%s3796 + $0x16a] sm:$0xff]
  %v4036 = vld [vmem:[%s3796 + $0x172] sm:$0xff]
  %s4037 = scalar_lea.vmem %s0, 37
  %v4038 = vld [vmem:[%s4037] sm:$0x1]
  %v4040 = vlaneseq
  %v4041 = vshrl.u32 %v4040, 7
  %v4042 = vsub.s32 0, %v4041
  %v4043 = vrot.slane %v4038, %v4042
  %v4045 = vmul.f32 %v4005, %v4043
  %v4046 = vmul.f32 %v4006, %v4043
  %v4047 = vmul.f32 %v4007, %v4043
  %v4048 = vmul.f32 %v4008, %v4043
  %v4049 = vmul.f32 %v4009, %v4043
  %v4050 = vmul.f32 %v4010, %v4043
  %v4051 = vmul.f32 %v4011, %v4043
  %v4052 = vmul.f32 %v4012, %v4043
  %v4053 = vmul.f32 %v4013, %v4043
  %v4054 = vmul.f32 %v4014, %v4043
  %v4055 = vmul.f32 %v4015, %v4043
  %v4056 = vmul.f32 %v4016, %v4043
  %v4057 = vmul.f32 %v4017, %v4043
  %v4058 = vmul.f32 %v4018, %v4043
  %v4059 = vmul.f32 %v4019, %v4043
  %v4060 = vmul.f32 %v4020, %v4043
  %v4061 = vmul.f32 %v4021, %v4043
  %v4062 = vmul.f32 %v4022, %v4043
  %v4063 = vmul.f32 %v4023, %v4043
  %v4064 = vmul.f32 %v4024, %v4043
  %v4065 = vmul.f32 %v4025, %v4043
  %v4066 = vmul.f32 %v4026, %v4043
  %v4067 = vmul.f32 %v4027, %v4043
  %v4068 = vmul.f32 %v4028, %v4043
  %v4069 = vmul.f32 %v4029, %v4043
  %v4070 = vmul.f32 %v4030, %v4043
  %v4071 = vmul.f32 %v4031, %v4043
  %v4072 = vmul.f32 %v4032, %v4043
  %v4073 = vmul.f32 %v4033, %v4043
  %v4074 = vmul.f32 %v4034, %v4043
  %v4075 = vmul.f32 %v4035, %v4043
  %v4076 = vmul.f32 %v4036, %v4043
  %v4077 = vadd.f32 %v3973, %v4045
  %v4078 = vadd.f32 %v3974, %v4046
  %v4079 = vadd.f32 %v3975, %v4047
  %v4080 = vadd.f32 %v3976, %v4048
  %v4081 = vadd.f32 %v3977, %v4049
  %v4082 = vadd.f32 %v3978, %v4050
  %v4083 = vadd.f32 %v3979, %v4051
  %v4084 = vadd.f32 %v3980, %v4052
  %v4085 = vadd.f32 %v3981, %v4053
  %v4086 = vadd.f32 %v3982, %v4054
  %v4087 = vadd.f32 %v3983, %v4055
  %v4088 = vadd.f32 %v3984, %v4056
  %v4089 = vadd.f32 %v3985, %v4057
  %v4090 = vadd.f32 %v3986, %v4058
  %v4091 = vadd.f32 %v3987, %v4059
  %v4092 = vadd.f32 %v3988, %v4060
  %v4093 = vadd.f32 %v3989, %v4061
  %v4094 = vadd.f32 %v3990, %v4062
  %v4095 = vadd.f32 %v3991, %v4063
  %v4096 = vadd.f32 %v3992, %v4064
  %v4097 = vadd.f32 %v3993, %v4065
  %v4098 = vadd.f32 %v3994, %v4066
  %v4099 = vadd.f32 %v3995, %v4067
  %v4100 = vadd.f32 %v3996, %v4068
  %v4101 = vadd.f32 %v3997, %v4069
  %v4102 = vadd.f32 %v3998, %v4070
  %v4103 = vadd.f32 %v3999, %v4071
  %v4104 = vadd.f32 %v4000, %v4072
  %v4105 = vadd.f32 %v4001, %v4073
  %v4106 = vadd.f32 %v4002, %v4074
  %v4107 = vadd.f32 %v4003, %v4075
  %v4108 = vadd.f32 %v4004, %v4076
  %v4109 = vld [vmem:[%s3796 + $0x3] sm:$0xff]
  %v4110 = vld [vmem:[%s3796 + $0xb] sm:$0xff]
  %v4111 = vld [vmem:[%s3796 + $0x1b] sm:$0xff]
  %v4112 = vld [vmem:[%s3796 + $0x23] sm:$0xff]
  %v4113 = vld [vmem:[%s3796 + $0x33] sm:$0xff]
  %v4114 = vld [vmem:[%s3796 + $0x3b] sm:$0xff]
  %v4115 = vld [vmem:[%s3796 + $0x4b] sm:$0xff]
  %v4116 = vld [vmem:[%s3796 + $0x53] sm:$0xff]
  %v4117 = vld [vmem:[%s3796 + $0x63] sm:$0xff]
  %v4118 = vld [vmem:[%s3796 + $0x6b] sm:$0xff]
  %v4119 = vld [vmem:[%s3796 + $0x7b] sm:$0xff]
  %v4120 = vld [vmem:[%s3796 + $0x83] sm:$0xff]
  %v4121 = vld [vmem:[%s3796 + $0x93] sm:$0xff]
  %v4122 = vld [vmem:[%s3796 + $0x9b] sm:$0xff]
  %v4123 = vld [vmem:[%s3796 + $0xab] sm:$0xff]
  %v4124 = vld [vmem:[%s3796 + $0xb3] sm:$0xff]
  %v4125 = vld [vmem:[%s3796 + $0xc3] sm:$0xff]
  %v4126 = vld [vmem:[%s3796 + $0xcb] sm:$0xff]
  %v4127 = vld [vmem:[%s3796 + $0xdb] sm:$0xff]
  %v4128 = vld [vmem:[%s3796 + $0xe3] sm:$0xff]
  %v4129 = vld [vmem:[%s3796 + $0xf3] sm:$0xff]
  %v4130 = vld [vmem:[%s3796 + $0xfb] sm:$0xff]
  %v4131 = vld [vmem:[%s3796 + $0x10b] sm:$0xff]
  %v4132 = vld [vmem:[%s3796 + $0x113] sm:$0xff]
  %v4133 = vld [vmem:[%s3796 + $0x123] sm:$0xff]
  %v4134 = vld [vmem:[%s3796 + $0x12b] sm:$0xff]
  %v4135 = vld [vmem:[%s3796 + $0x13b] sm:$0xff]
  %v4136 = vld [vmem:[%s3796 + $0x143] sm:$0xff]
  %v4137 = vld [vmem:[%s3796 + $0x153] sm:$0xff]
  %v4138 = vld [vmem:[%s3796 + $0x15b] sm:$0xff]
  %v4139 = vld [vmem:[%s3796 + $0x16b] sm:$0xff]
  %v4140 = vld [vmem:[%s3796 + $0x173] sm:$0xff]
  %s4141 = scalar_lea.vmem %s0, 38
  %v4142 = vld [vmem:[%s4141] sm:$0x1]
  %v4144 = vlaneseq
  %v4145 = vshrl.u32 %v4144, 7
  %v4146 = vsub.s32 0, %v4145
  %v4147 = vrot.slane %v4142, %v4146
  %v4149 = vmul.f32 %v4109, %v4147
  %v4150 = vmul.f32 %v4110, %v4147
  %v4151 = vmul.f32 %v4111, %v4147
  %v4152 = vmul.f32 %v4112, %v4147
  %v4153 = vmul.f32 %v4113, %v4147
  %v4154 = vmul.f32 %v4114, %v4147
  %v4155 = vmul.f32 %v4115, %v4147
  %v4156 = vmul.f32 %v4116, %v4147
  %v4157 = vmul.f32 %v4117, %v4147
  %v4158 = vmul.f32 %v4118, %v4147
  %v4159 = vmul.f32 %v4119, %v4147
  %v4160 = vmul.f32 %v4120, %v4147
  %v4161 = vmul.f32 %v4121, %v4147
  %v4162 = vmul.f32 %v4122, %v4147
  %v4163 = vmul.f32 %v4123, %v4147
  %v4164 = vmul.f32 %v4124, %v4147
  %v4165 = vmul.f32 %v4125, %v4147
  %v4166 = vmul.f32 %v4126, %v4147
  %v4167 = vmul.f32 %v4127, %v4147
  %v4168 = vmul.f32 %v4128, %v4147
  %v4169 = vmul.f32 %v4129, %v4147
  %v4170 = vmul.f32 %v4130, %v4147
  %v4171 = vmul.f32 %v4131, %v4147
  %v4172 = vmul.f32 %v4132, %v4147
  %v4173 = vmul.f32 %v4133, %v4147
  %v4174 = vmul.f32 %v4134, %v4147
  %v4175 = vmul.f32 %v4135, %v4147
  %v4176 = vmul.f32 %v4136, %v4147
  %v4177 = vmul.f32 %v4137, %v4147
  %v4178 = vmul.f32 %v4138, %v4147
  %v4179 = vmul.f32 %v4139, %v4147
  %v4180 = vmul.f32 %v4140, %v4147
  %v4181 = vadd.f32 %v4077, %v4149
  %v4182 = vadd.f32 %v4078, %v4150
  %v4183 = vadd.f32 %v4079, %v4151
  %v4184 = vadd.f32 %v4080, %v4152
  %v4185 = vadd.f32 %v4081, %v4153
  %v4186 = vadd.f32 %v4082, %v4154
  %v4187 = vadd.f32 %v4083, %v4155
  %v4188 = vadd.f32 %v4084, %v4156
  %v4189 = vadd.f32 %v4085, %v4157
  %v4190 = vadd.f32 %v4086, %v4158
  %v4191 = vadd.f32 %v4087, %v4159
  %v4192 = vadd.f32 %v4088, %v4160
  %v4193 = vadd.f32 %v4089, %v4161
  %v4194 = vadd.f32 %v4090, %v4162
  %v4195 = vadd.f32 %v4091, %v4163
  %v4196 = vadd.f32 %v4092, %v4164
  %v4197 = vadd.f32 %v4093, %v4165
  %v4198 = vadd.f32 %v4094, %v4166
  %v4199 = vadd.f32 %v4095, %v4167
  %v4200 = vadd.f32 %v4096, %v4168
  %v4201 = vadd.f32 %v4097, %v4169
  %v4202 = vadd.f32 %v4098, %v4170
  %v4203 = vadd.f32 %v4099, %v4171
  %v4204 = vadd.f32 %v4100, %v4172
  %v4205 = vadd.f32 %v4101, %v4173
  %v4206 = vadd.f32 %v4102, %v4174
  %v4207 = vadd.f32 %v4103, %v4175
  %v4208 = vadd.f32 %v4104, %v4176
  %v4209 = vadd.f32 %v4105, %v4177
  %v4210 = vadd.f32 %v4106, %v4178
  %v4211 = vadd.f32 %v4107, %v4179
  %v4212 = vadd.f32 %v4108, %v4180
  %v4213 = vld [vmem:[%s3796 + $0x4] sm:$0xff]
  %v4214 = vld [vmem:[%s3796 + $0xc] sm:$0xff]
  %v4215 = vld [vmem:[%s3796 + $0x1c] sm:$0xff]
  %v4216 = vld [vmem:[%s3796 + $0x24] sm:$0xff]
  %v4217 = vld [vmem:[%s3796 + $0x34] sm:$0xff]
  %v4218 = vld [vmem:[%s3796 + $0x3c] sm:$0xff]
  %v4219 = vld [vmem:[%s3796 + $0x4c] sm:$0xff]
  %v4220 = vld [vmem:[%s3796 + $0x54] sm:$0xff]
  %v4221 = vld [vmem:[%s3796 + $0x64] sm:$0xff]
  %v4222 = vld [vmem:[%s3796 + $0x6c] sm:$0xff]
  %v4223 = vld [vmem:[%s3796 + $0x7c] sm:$0xff]
  %v4224 = vld [vmem:[%s3796 + $0x84] sm:$0xff]
  %v4225 = vld [vmem:[%s3796 + $0x94] sm:$0xff]
  %v4226 = vld [vmem:[%s3796 + $0x9c] sm:$0xff]
  %v4227 = vld [vmem:[%s3796 + $0xac] sm:$0xff]
  %v4228 = vld [vmem:[%s3796 + $0xb4] sm:$0xff]
  %v4229 = vld [vmem:[%s3796 + $0xc4] sm:$0xff]
  %v4230 = vld [vmem:[%s3796 + $0xcc] sm:$0xff]
  %v4231 = vld [vmem:[%s3796 + $0xdc] sm:$0xff]
  %v4232 = vld [vmem:[%s3796 + $0xe4] sm:$0xff]
  %v4233 = vld [vmem:[%s3796 + $0xf4] sm:$0xff]
  %v4234 = vld [vmem:[%s3796 + $0xfc] sm:$0xff]
  %v4235 = vld [vmem:[%s3796 + $0x10c] sm:$0xff]
  %v4236 = vld [vmem:[%s3796 + $0x114] sm:$0xff]
  %v4237 = vld [vmem:[%s3796 + $0x124] sm:$0xff]
  %v4238 = vld [vmem:[%s3796 + $0x12c] sm:$0xff]
  %v4239 = vld [vmem:[%s3796 + $0x13c] sm:$0xff]
  %v4240 = vld [vmem:[%s3796 + $0x144] sm:$0xff]
  %v4241 = vld [vmem:[%s3796 + $0x154] sm:$0xff]
  %v4242 = vld [vmem:[%s3796 + $0x15c] sm:$0xff]
  %v4243 = vld [vmem:[%s3796 + $0x16c] sm:$0xff]
  %v4244 = vld [vmem:[%s3796 + $0x174] sm:$0xff]
  %s4245 = scalar_lea.vmem %s0, 39
  %v4246 = vld [vmem:[%s4245] sm:$0x1]
  %v4248 = vlaneseq
  %v4249 = vshrl.u32 %v4248, 7
  %v4250 = vsub.s32 0, %v4249
  %v4251 = vrot.slane %v4246, %v4250
  %v4253 = vmul.f32 %v4213, %v4251
  %v4254 = vmul.f32 %v4214, %v4251
  %v4255 = vmul.f32 %v4215, %v4251
  %v4256 = vmul.f32 %v4216, %v4251
  %v4257 = vmul.f32 %v4217, %v4251
  %v4258 = vmul.f32 %v4218, %v4251
  %v4259 = vmul.f32 %v4219, %v4251
  %v4260 = vmul.f32 %v4220, %v4251
  %v4261 = vmul.f32 %v4221, %v4251
  %v4262 = vmul.f32 %v4222, %v4251
  %v4263 = vmul.f32 %v4223, %v4251
  %v4264 = vmul.f32 %v4224, %v4251
  %v4265 = vmul.f32 %v4225, %v4251
  %v4266 = vmul.f32 %v4226, %v4251
  %v4267 = vmul.f32 %v4227, %v4251
  %v4268 = vmul.f32 %v4228, %v4251
  %v4269 = vmul.f32 %v4229, %v4251
  %v4270 = vmul.f32 %v4230, %v4251
  %v4271 = vmul.f32 %v4231, %v4251
  %v4272 = vmul.f32 %v4232, %v4251
  %v4273 = vmul.f32 %v4233, %v4251
  %v4274 = vmul.f32 %v4234, %v4251
  %v4275 = vmul.f32 %v4235, %v4251
  %v4276 = vmul.f32 %v4236, %v4251
  %v4277 = vmul.f32 %v4237, %v4251
  %v4278 = vmul.f32 %v4238, %v4251
  %v4279 = vmul.f32 %v4239, %v4251
  %v4280 = vmul.f32 %v4240, %v4251
  %v4281 = vmul.f32 %v4241, %v4251
  %v4282 = vmul.f32 %v4242, %v4251
  %v4283 = vmul.f32 %v4243, %v4251
  %v4284 = vmul.f32 %v4244, %v4251
  %v4285 = vadd.f32 %v4181, %v4253
  %v4286 = vadd.f32 %v4182, %v4254
  %v4287 = vadd.f32 %v4183, %v4255
  %v4288 = vadd.f32 %v4184, %v4256
  %v4289 = vadd.f32 %v4185, %v4257
  %v4290 = vadd.f32 %v4186, %v4258
  %v4291 = vadd.f32 %v4187, %v4259
  %v4292 = vadd.f32 %v4188, %v4260
  %v4293 = vadd.f32 %v4189, %v4261
  %v4294 = vadd.f32 %v4190, %v4262
  %v4295 = vadd.f32 %v4191, %v4263
  %v4296 = vadd.f32 %v4192, %v4264
  %v4297 = vadd.f32 %v4193, %v4265
  %v4298 = vadd.f32 %v4194, %v4266
  %v4299 = vadd.f32 %v4195, %v4267
  %v4300 = vadd.f32 %v4196, %v4268
  %v4301 = vadd.f32 %v4197, %v4269
  %v4302 = vadd.f32 %v4198, %v4270
  %v4303 = vadd.f32 %v4199, %v4271
  %v4304 = vadd.f32 %v4200, %v4272
  %v4305 = vadd.f32 %v4201, %v4273
  %v4306 = vadd.f32 %v4202, %v4274
  %v4307 = vadd.f32 %v4203, %v4275
  %v4308 = vadd.f32 %v4204, %v4276
  %v4309 = vadd.f32 %v4205, %v4277
  %v4310 = vadd.f32 %v4206, %v4278
  %v4311 = vadd.f32 %v4207, %v4279
  %v4312 = vadd.f32 %v4208, %v4280
  %v4313 = vadd.f32 %v4209, %v4281
  %v4314 = vadd.f32 %v4210, %v4282
  %v4315 = vadd.f32 %v4211, %v4283
  %v4316 = vadd.f32 %v4212, %v4284
  %v4317 = vld [vmem:[%s3796 + $0x5] sm:$0xff]
  %v4318 = vld [vmem:[%s3796 + $0xd] sm:$0xff]
  %v4319 = vld [vmem:[%s3796 + $0x1d] sm:$0xff]
  %v4320 = vld [vmem:[%s3796 + $0x25] sm:$0xff]
  %v4321 = vld [vmem:[%s3796 + $0x35] sm:$0xff]
  %v4322 = vld [vmem:[%s3796 + $0x3d] sm:$0xff]
  %v4323 = vld [vmem:[%s3796 + $0x4d] sm:$0xff]
  %v4324 = vld [vmem:[%s3796 + $0x55] sm:$0xff]
  %v4325 = vld [vmem:[%s3796 + $0x65] sm:$0xff]
  %v4326 = vld [vmem:[%s3796 + $0x6d] sm:$0xff]
  %v4327 = vld [vmem:[%s3796 + $0x7d] sm:$0xff]
  %v4328 = vld [vmem:[%s3796 + $0x85] sm:$0xff]
  %v4329 = vld [vmem:[%s3796 + $0x95] sm:$0xff]
  %v4330 = vld [vmem:[%s3796 + $0x9d] sm:$0xff]
  %v4331 = vld [vmem:[%s3796 + $0xad] sm:$0xff]
  %v4332 = vld [vmem:[%s3796 + $0xb5] sm:$0xff]
  %v4333 = vld [vmem:[%s3796 + $0xc5] sm:$0xff]
  %v4334 = vld [vmem:[%s3796 + $0xcd] sm:$0xff]
  %v4335 = vld [vmem:[%s3796 + $0xdd] sm:$0xff]
  %v4336 = vld [vmem:[%s3796 + $0xe5] sm:$0xff]
  %v4337 = vld [vmem:[%s3796 + $0xf5] sm:$0xff]
  %v4338 = vld [vmem:[%s3796 + $0xfd] sm:$0xff]
  %v4339 = vld [vmem:[%s3796 + $0x10d] sm:$0xff]
  %v4340 = vld [vmem:[%s3796 + $0x115] sm:$0xff]
  %v4341 = vld [vmem:[%s3796 + $0x125] sm:$0xff]
  %v4342 = vld [vmem:[%s3796 + $0x12d] sm:$0xff]
  %v4343 = vld [vmem:[%s3796 + $0x13d] sm:$0xff]
  %v4344 = vld [vmem:[%s3796 + $0x145] sm:$0xff]
  %v4345 = vld [vmem:[%s3796 + $0x155] sm:$0xff]
  %v4346 = vld [vmem:[%s3796 + $0x15d] sm:$0xff]
  %v4347 = vld [vmem:[%s3796 + $0x16d] sm:$0xff]
  %v4348 = vld [vmem:[%s3796 + $0x175] sm:$0xff]
  %s4349 = scalar_lea.vmem %s0, 40
  %v4350 = vld [vmem:[%s4349] sm:$0x1]
  %v4352 = vlaneseq
  %v4353 = vshrl.u32 %v4352, 7
  %v4354 = vsub.s32 0, %v4353
  %v4355 = vrot.slane %v4350, %v4354
  %v4357 = vmul.f32 %v4317, %v4355
  %v4358 = vmul.f32 %v4318, %v4355
  %v4359 = vmul.f32 %v4319, %v4355
  %v4360 = vmul.f32 %v4320, %v4355
  %v4361 = vmul.f32 %v4321, %v4355
  %v4362 = vmul.f32 %v4322, %v4355
  %v4363 = vmul.f32 %v4323, %v4355
  %v4364 = vmul.f32 %v4324, %v4355
  %v4365 = vmul.f32 %v4325, %v4355
  %v4366 = vmul.f32 %v4326, %v4355
  %v4367 = vmul.f32 %v4327, %v4355
  %v4368 = vmul.f32 %v4328, %v4355
  %v4369 = vmul.f32 %v4329, %v4355
  %v4370 = vmul.f32 %v4330, %v4355
  %v4371 = vmul.f32 %v4331, %v4355
  %v4372 = vmul.f32 %v4332, %v4355
  %v4373 = vmul.f32 %v4333, %v4355
  %v4374 = vmul.f32 %v4334, %v4355
  %v4375 = vmul.f32 %v4335, %v4355
  %v4376 = vmul.f32 %v4336, %v4355
  %v4377 = vmul.f32 %v4337, %v4355
  %v4378 = vmul.f32 %v4338, %v4355
  %v4379 = vmul.f32 %v4339, %v4355
  %v4380 = vmul.f32 %v4340, %v4355
  %v4381 = vmul.f32 %v4341, %v4355
  %v4382 = vmul.f32 %v4342, %v4355
  %v4383 = vmul.f32 %v4343, %v4355
  %v4384 = vmul.f32 %v4344, %v4355
  %v4385 = vmul.f32 %v4345, %v4355
  %v4386 = vmul.f32 %v4346, %v4355
  %v4387 = vmul.f32 %v4347, %v4355
  %v4388 = vmul.f32 %v4348, %v4355
  %v4389 = vadd.f32 %v4285, %v4357
  %v4390 = vadd.f32 %v4286, %v4358
  %v4391 = vadd.f32 %v4287, %v4359
  %v4392 = vadd.f32 %v4288, %v4360
  %v4393 = vadd.f32 %v4289, %v4361
  %v4394 = vadd.f32 %v4290, %v4362
  %v4395 = vadd.f32 %v4291, %v4363
  %v4396 = vadd.f32 %v4292, %v4364
  %v4397 = vadd.f32 %v4293, %v4365
  %v4398 = vadd.f32 %v4294, %v4366
  %v4399 = vadd.f32 %v4295, %v4367
  %v4400 = vadd.f32 %v4296, %v4368
  %v4401 = vadd.f32 %v4297, %v4369
  %v4402 = vadd.f32 %v4298, %v4370
  %v4403 = vadd.f32 %v4299, %v4371
  %v4404 = vadd.f32 %v4300, %v4372
  %v4405 = vadd.f32 %v4301, %v4373
  %v4406 = vadd.f32 %v4302, %v4374
  %v4407 = vadd.f32 %v4303, %v4375
  %v4408 = vadd.f32 %v4304, %v4376
  %v4409 = vadd.f32 %v4305, %v4377
  %v4410 = vadd.f32 %v4306, %v4378
  %v4411 = vadd.f32 %v4307, %v4379
  %v4412 = vadd.f32 %v4308, %v4380
  %v4413 = vadd.f32 %v4309, %v4381
  %v4414 = vadd.f32 %v4310, %v4382
  %v4415 = vadd.f32 %v4311, %v4383
  %v4416 = vadd.f32 %v4312, %v4384
  %v4417 = vadd.f32 %v4313, %v4385
  %v4418 = vadd.f32 %v4314, %v4386
  %v4419 = vadd.f32 %v4315, %v4387
  %v4420 = vadd.f32 %v4316, %v4388
  %v4421 = vld [vmem:[%s3796 + $0x6] sm:$0xff]
  %v4422 = vld [vmem:[%s3796 + $0xe] sm:$0xff]
  %v4423 = vld [vmem:[%s3796 + $0x1e] sm:$0xff]
  %v4424 = vld [vmem:[%s3796 + $0x26] sm:$0xff]
  %v4425 = vld [vmem:[%s3796 + $0x36] sm:$0xff]
  %v4426 = vld [vmem:[%s3796 + $0x3e] sm:$0xff]
  %v4427 = vld [vmem:[%s3796 + $0x4e] sm:$0xff]
  %v4428 = vld [vmem:[%s3796 + $0x56] sm:$0xff]
  %v4429 = vld [vmem:[%s3796 + $0x66] sm:$0xff]
  %v4430 = vld [vmem:[%s3796 + $0x6e] sm:$0xff]
  %v4431 = vld [vmem:[%s3796 + $0x7e] sm:$0xff]
  %v4432 = vld [vmem:[%s3796 + $0x86] sm:$0xff]
  %v4433 = vld [vmem:[%s3796 + $0x96] sm:$0xff]
  %v4434 = vld [vmem:[%s3796 + $0x9e] sm:$0xff]
  %v4435 = vld [vmem:[%s3796 + $0xae] sm:$0xff]
  %v4436 = vld [vmem:[%s3796 + $0xb6] sm:$0xff]
  %v4437 = vld [vmem:[%s3796 + $0xc6] sm:$0xff]
  %v4438 = vld [vmem:[%s3796 + $0xce] sm:$0xff]
  %v4439 = vld [vmem:[%s3796 + $0xde] sm:$0xff]
  %v4440 = vld [vmem:[%s3796 + $0xe6] sm:$0xff]
  %v4441 = vld [vmem:[%s3796 + $0xf6] sm:$0xff]
  %v4442 = vld [vmem:[%s3796 + $0xfe] sm:$0xff]
  %v4443 = vld [vmem:[%s3796 + $0x10e] sm:$0xff]
  %v4444 = vld [vmem:[%s3796 + $0x116] sm:$0xff]
  %v4445 = vld [vmem:[%s3796 + $0x126] sm:$0xff]
  %v4446 = vld [vmem:[%s3796 + $0x12e] sm:$0xff]
  %v4447 = vld [vmem:[%s3796 + $0x13e] sm:$0xff]
  %v4448 = vld [vmem:[%s3796 + $0x146] sm:$0xff]
  %v4449 = vld [vmem:[%s3796 + $0x156] sm:$0xff]
  %v4450 = vld [vmem:[%s3796 + $0x15e] sm:$0xff]
  %v4451 = vld [vmem:[%s3796 + $0x16e] sm:$0xff]
  %v4452 = vld [vmem:[%s3796 + $0x176] sm:$0xff]
  %s4453 = scalar_lea.vmem %s0, 41
  %v4454 = vld [vmem:[%s4453] sm:$0x1]
  %v4456 = vlaneseq
  %v4457 = vshrl.u32 %v4456, 7
  %v4458 = vsub.s32 0, %v4457
  %v4459 = vrot.slane %v4454, %v4458
  %v4461 = vmul.f32 %v4421, %v4459
  %v4462 = vmul.f32 %v4422, %v4459
  %v4463 = vmul.f32 %v4423, %v4459
  %v4464 = vmul.f32 %v4424, %v4459
  %v4465 = vmul.f32 %v4425, %v4459
  %v4466 = vmul.f32 %v4426, %v4459
  %v4467 = vmul.f32 %v4427, %v4459
  %v4468 = vmul.f32 %v4428, %v4459
  %v4469 = vmul.f32 %v4429, %v4459
  %v4470 = vmul.f32 %v4430, %v4459
  %v4471 = vmul.f32 %v4431, %v4459
  %v4472 = vmul.f32 %v4432, %v4459
  %v4473 = vmul.f32 %v4433, %v4459
  %v4474 = vmul.f32 %v4434, %v4459
  %v4475 = vmul.f32 %v4435, %v4459
  %v4476 = vmul.f32 %v4436, %v4459
  %v4477 = vmul.f32 %v4437, %v4459
  %v4478 = vmul.f32 %v4438, %v4459
  %v4479 = vmul.f32 %v4439, %v4459
  %v4480 = vmul.f32 %v4440, %v4459
  %v4481 = vmul.f32 %v4441, %v4459
  %v4482 = vmul.f32 %v4442, %v4459
  %v4483 = vmul.f32 %v4443, %v4459
  %v4484 = vmul.f32 %v4444, %v4459
  %v4485 = vmul.f32 %v4445, %v4459
  %v4486 = vmul.f32 %v4446, %v4459
  %v4487 = vmul.f32 %v4447, %v4459
  %v4488 = vmul.f32 %v4448, %v4459
  %v4489 = vmul.f32 %v4449, %v4459
  %v4490 = vmul.f32 %v4450, %v4459
  %v4491 = vmul.f32 %v4451, %v4459
  %v4492 = vmul.f32 %v4452, %v4459
  %v4493 = vadd.f32 %v4389, %v4461
  %v4494 = vadd.f32 %v4390, %v4462
  %v4495 = vadd.f32 %v4391, %v4463
  %v4496 = vadd.f32 %v4392, %v4464
  %v4497 = vadd.f32 %v4393, %v4465
  %v4498 = vadd.f32 %v4394, %v4466
  %v4499 = vadd.f32 %v4395, %v4467
  %v4500 = vadd.f32 %v4396, %v4468
  %v4501 = vadd.f32 %v4397, %v4469
  %v4502 = vadd.f32 %v4398, %v4470
  %v4503 = vadd.f32 %v4399, %v4471
  %v4504 = vadd.f32 %v4400, %v4472
  %v4505 = vadd.f32 %v4401, %v4473
  %v4506 = vadd.f32 %v4402, %v4474
  %v4507 = vadd.f32 %v4403, %v4475
  %v4508 = vadd.f32 %v4404, %v4476
  %v4509 = vadd.f32 %v4405, %v4477
  %v4510 = vadd.f32 %v4406, %v4478
  %v4511 = vadd.f32 %v4407, %v4479
  %v4512 = vadd.f32 %v4408, %v4480
  %v4513 = vadd.f32 %v4409, %v4481
  %v4514 = vadd.f32 %v4410, %v4482
  %v4515 = vadd.f32 %v4411, %v4483
  %v4516 = vadd.f32 %v4412, %v4484
  %v4517 = vadd.f32 %v4413, %v4485
  %v4518 = vadd.f32 %v4414, %v4486
  %v4519 = vadd.f32 %v4415, %v4487
  %v4520 = vadd.f32 %v4416, %v4488
  %v4521 = vadd.f32 %v4417, %v4489
  %v4522 = vadd.f32 %v4418, %v4490
  %v4523 = vadd.f32 %v4419, %v4491
  %v4524 = vadd.f32 %v4420, %v4492
  %s4525 = scalar_lea.vmem [#allocation2], 144
  %v4526 = vld [vmem:[%s4525] sm:$0xff]
  %v4527 = vld [vmem:[%s4525 + $0x8] sm:$0xff]
  %v4528 = vld [vmem:[%s4525 + $0x18] sm:$0xff]
  %v4529 = vld [vmem:[%s4525 + $0x20] sm:$0xff]
  %v4530 = vld [vmem:[%s4525 + $0x30] sm:$0xff]
  %v4531 = vld [vmem:[%s4525 + $0x38] sm:$0xff]
  %v4532 = vld [vmem:[%s4525 + $0x48] sm:$0xff]
  %v4533 = vld [vmem:[%s4525 + $0x50] sm:$0xff]
  %v4534 = vld [vmem:[%s4525 + $0x60] sm:$0xff]
  %v4535 = vld [vmem:[%s4525 + $0x68] sm:$0xff]
  %v4536 = vld [vmem:[%s4525 + $0x78] sm:$0xff]
  %v4537 = vld [vmem:[%s4525 + $0x80] sm:$0xff]
  %v4538 = vld [vmem:[%s4525 + $0x90] sm:$0xff]
  %v4539 = vld [vmem:[%s4525 + $0x98] sm:$0xff]
  %v4540 = vld [vmem:[%s4525 + $0xa8] sm:$0xff]
  %v4541 = vld [vmem:[%s4525 + $0xb0] sm:$0xff]
  %v4542 = vld [vmem:[%s4525 + $0xc0] sm:$0xff]
  %v4543 = vld [vmem:[%s4525 + $0xc8] sm:$0xff]
  %v4544 = vld [vmem:[%s4525 + $0xd8] sm:$0xff]
  %v4545 = vld [vmem:[%s4525 + $0xe0] sm:$0xff]
  %v4546 = vld [vmem:[%s4525 + $0xf0] sm:$0xff]
  %v4547 = vld [vmem:[%s4525 + $0xf8] sm:$0xff]
  %v4548 = vld [vmem:[%s4525 + $0x108] sm:$0xff]
  %v4549 = vld [vmem:[%s4525 + $0x110] sm:$0xff]
  %v4550 = vld [vmem:[%s4525 + $0x120] sm:$0xff]
  %v4551 = vld [vmem:[%s4525 + $0x128] sm:$0xff]
  %v4552 = vld [vmem:[%s4525 + $0x138] sm:$0xff]
  %v4553 = vld [vmem:[%s4525 + $0x140] sm:$0xff]
  %v4554 = vld [vmem:[%s4525 + $0x150] sm:$0xff]
  %v4555 = vld [vmem:[%s4525 + $0x158] sm:$0xff]
  %v4556 = vld [vmem:[%s4525 + $0x168] sm:$0xff]
  %v4557 = vld [vmem:[%s4525 + $0x170] sm:$0xff]
  %s4558 = scalar_lea.vmem %s0, 42
  %v4559 = vld [vmem:[%s4558] sm:$0x1]
  %v4561 = vlaneseq
  %v4562 = vshrl.u32 %v4561, 7
  %v4563 = vsub.s32 0, %v4562
  %v4564 = vrot.slane %v4559, %v4563
  %v4566 = vmul.f32 %v4526, %v4564
  %v4567 = vmul.f32 %v4527, %v4564
  %v4568 = vmul.f32 %v4528, %v4564
  %v4569 = vmul.f32 %v4529, %v4564
  %v4570 = vmul.f32 %v4530, %v4564
  %v4571 = vmul.f32 %v4531, %v4564
  %v4572 = vmul.f32 %v4532, %v4564
  %v4573 = vmul.f32 %v4533, %v4564
  %v4574 = vmul.f32 %v4534, %v4564
  %v4575 = vmul.f32 %v4535, %v4564
  %v4576 = vmul.f32 %v4536, %v4564
  %v4577 = vmul.f32 %v4537, %v4564
  %v4578 = vmul.f32 %v4538, %v4564
  %v4579 = vmul.f32 %v4539, %v4564
  %v4580 = vmul.f32 %v4540, %v4564
  %v4581 = vmul.f32 %v4541, %v4564
  %v4582 = vmul.f32 %v4542, %v4564
  %v4583 = vmul.f32 %v4543, %v4564
  %v4584 = vmul.f32 %v4544, %v4564
  %v4585 = vmul.f32 %v4545, %v4564
  %v4586 = vmul.f32 %v4546, %v4564
  %v4587 = vmul.f32 %v4547, %v4564
  %v4588 = vmul.f32 %v4548, %v4564
  %v4589 = vmul.f32 %v4549, %v4564
  %v4590 = vmul.f32 %v4550, %v4564
  %v4591 = vmul.f32 %v4551, %v4564
  %v4592 = vmul.f32 %v4552, %v4564
  %v4593 = vmul.f32 %v4553, %v4564
  %v4594 = vmul.f32 %v4554, %v4564
  %v4595 = vmul.f32 %v4555, %v4564
  %v4596 = vmul.f32 %v4556, %v4564
  %v4597 = vmul.f32 %v4557, %v4564
  %v4598 = vadd.f32 %v4493, %v4566
  %v4599 = vadd.f32 %v4494, %v4567
  %v4600 = vadd.f32 %v4495, %v4568
  %v4601 = vadd.f32 %v4496, %v4569
  %v4602 = vadd.f32 %v4497, %v4570
  %v4603 = vadd.f32 %v4498, %v4571
  %v4604 = vadd.f32 %v4499, %v4572
  %v4605 = vadd.f32 %v4500, %v4573
  %v4606 = vadd.f32 %v4501, %v4574
  %v4607 = vadd.f32 %v4502, %v4575
  %v4608 = vadd.f32 %v4503, %v4576
  %v4609 = vadd.f32 %v4504, %v4577
  %v4610 = vadd.f32 %v4505, %v4578
  %v4611 = vadd.f32 %v4506, %v4579
  %v4612 = vadd.f32 %v4507, %v4580
  %v4613 = vadd.f32 %v4508, %v4581
  %v4614 = vadd.f32 %v4509, %v4582
  %v4615 = vadd.f32 %v4510, %v4583
  %v4616 = vadd.f32 %v4511, %v4584
  %v4617 = vadd.f32 %v4512, %v4585
  %v4618 = vadd.f32 %v4513, %v4586
  %v4619 = vadd.f32 %v4514, %v4587
  %v4620 = vadd.f32 %v4515, %v4588
  %v4621 = vadd.f32 %v4516, %v4589
  %v4622 = vadd.f32 %v4517, %v4590
  %v4623 = vadd.f32 %v4518, %v4591
  %v4624 = vadd.f32 %v4519, %v4592
  %v4625 = vadd.f32 %v4520, %v4593
  %v4626 = vadd.f32 %v4521, %v4594
  %v4627 = vadd.f32 %v4522, %v4595
  %v4628 = vadd.f32 %v4523, %v4596
  %v4629 = vadd.f32 %v4524, %v4597
  %v4630 = vld [vmem:[%s4525 + $0x1] sm:$0xff]
  %v4631 = vld [vmem:[%s4525 + $0x9] sm:$0xff]
  %v4632 = vld [vmem:[%s4525 + $0x19] sm:$0xff]
  %v4633 = vld [vmem:[%s4525 + $0x21] sm:$0xff]
  %v4634 = vld [vmem:[%s4525 + $0x31] sm:$0xff]
  %v4635 = vld [vmem:[%s4525 + $0x39] sm:$0xff]
  %v4636 = vld [vmem:[%s4525 + $0x49] sm:$0xff]
  %v4637 = vld [vmem:[%s4525 + $0x51] sm:$0xff]
  %v4638 = vld [vmem:[%s4525 + $0x61] sm:$0xff]
  %v4639 = vld [vmem:[%s4525 + $0x69] sm:$0xff]
  %v4640 = vld [vmem:[%s4525 + $0x79] sm:$0xff]
  %v4641 = vld [vmem:[%s4525 + $0x81] sm:$0xff]
  %v4642 = vld [vmem:[%s4525 + $0x91] sm:$0xff]
  %v4643 = vld [vmem:[%s4525 + $0x99] sm:$0xff]
  %v4644 = vld [vmem:[%s4525 + $0xa9] sm:$0xff]
  %v4645 = vld [vmem:[%s4525 + $0xb1] sm:$0xff]
  %v4646 = vld [vmem:[%s4525 + $0xc1] sm:$0xff]
  %v4647 = vld [vmem:[%s4525 + $0xc9] sm:$0xff]
  %v4648 = vld [vmem:[%s4525 + $0xd9] sm:$0xff]
  %v4649 = vld [vmem:[%s4525 + $0xe1] sm:$0xff]
  %v4650 = vld [vmem:[%s4525 + $0xf1] sm:$0xff]
  %v4651 = vld [vmem:[%s4525 + $0xf9] sm:$0xff]
  %v4652 = vld [vmem:[%s4525 + $0x109] sm:$0xff]
  %v4653 = vld [vmem:[%s4525 + $0x111] sm:$0xff]
  %v4654 = vld [vmem:[%s4525 + $0x121] sm:$0xff]
  %v4655 = vld [vmem:[%s4525 + $0x129] sm:$0xff]
  %v4656 = vld [vmem:[%s4525 + $0x139] sm:$0xff]
  %v4657 = vld [vmem:[%s4525 + $0x141] sm:$0xff]
  %v4658 = vld [vmem:[%s4525 + $0x151] sm:$0xff]
  %v4659 = vld [vmem:[%s4525 + $0x159] sm:$0xff]
  %v4660 = vld [vmem:[%s4525 + $0x169] sm:$0xff]
  %v4661 = vld [vmem:[%s4525 + $0x171] sm:$0xff]
  %s4662 = scalar_lea.vmem %s0, 43
  %v4663 = vld [vmem:[%s4662] sm:$0x1]
  %v4665 = vlaneseq
  %v4666 = vshrl.u32 %v4665, 7
  %v4667 = vsub.s32 0, %v4666
  %v4668 = vrot.slane %v4663, %v4667
  %v4670 = vmul.f32 %v4630, %v4668
  %v4671 = vmul.f32 %v4631, %v4668
  %v4672 = vmul.f32 %v4632, %v4668
  %v4673 = vmul.f32 %v4633, %v4668
  %v4674 = vmul.f32 %v4634, %v4668
  %v4675 = vmul.f32 %v4635, %v4668
  %v4676 = vmul.f32 %v4636, %v4668
  %v4677 = vmul.f32 %v4637, %v4668
  %v4678 = vmul.f32 %v4638, %v4668
  %v4679 = vmul.f32 %v4639, %v4668
  %v4680 = vmul.f32 %v4640, %v4668
  %v4681 = vmul.f32 %v4641, %v4668
  %v4682 = vmul.f32 %v4642, %v4668
  %v4683 = vmul.f32 %v4643, %v4668
  %v4684 = vmul.f32 %v4644, %v4668
  %v4685 = vmul.f32 %v4645, %v4668
  %v4686 = vmul.f32 %v4646, %v4668
  %v4687 = vmul.f32 %v4647, %v4668
  %v4688 = vmul.f32 %v4648, %v4668
  %v4689 = vmul.f32 %v4649, %v4668
  %v4690 = vmul.f32 %v4650, %v4668
  %v4691 = vmul.f32 %v4651, %v4668
  %v4692 = vmul.f32 %v4652, %v4668
  %v4693 = vmul.f32 %v4653, %v4668
  %v4694 = vmul.f32 %v4654, %v4668
  %v4695 = vmul.f32 %v4655, %v4668
  %v4696 = vmul.f32 %v4656, %v4668
  %v4697 = vmul.f32 %v4657, %v4668
  %v4698 = vmul.f32 %v4658, %v4668
  %v4699 = vmul.f32 %v4659, %v4668
  %v4700 = vmul.f32 %v4660, %v4668
  %v4701 = vmul.f32 %v4661, %v4668
  %v4702 = vadd.f32 %v4598, %v4670
  %v4703 = vadd.f32 %v4599, %v4671
  %v4704 = vadd.f32 %v4600, %v4672
  %v4705 = vadd.f32 %v4601, %v4673
  %v4706 = vadd.f32 %v4602, %v4674
  %v4707 = vadd.f32 %v4603, %v4675
  %v4708 = vadd.f32 %v4604, %v4676
  %v4709 = vadd.f32 %v4605, %v4677
  %v4710 = vadd.f32 %v4606, %v4678
  %v4711 = vadd.f32 %v4607, %v4679
  %v4712 = vadd.f32 %v4608, %v4680
  %v4713 = vadd.f32 %v4609, %v4681
  %v4714 = vadd.f32 %v4610, %v4682
  %v4715 = vadd.f32 %v4611, %v4683
  %v4716 = vadd.f32 %v4612, %v4684
  %v4717 = vadd.f32 %v4613, %v4685
  %v4718 = vadd.f32 %v4614, %v4686
  %v4719 = vadd.f32 %v4615, %v4687
  %v4720 = vadd.f32 %v4616, %v4688
  %v4721 = vadd.f32 %v4617, %v4689
  %v4722 = vadd.f32 %v4618, %v4690
  %v4723 = vadd.f32 %v4619, %v4691
  %v4724 = vadd.f32 %v4620, %v4692
  %v4725 = vadd.f32 %v4621, %v4693
  %v4726 = vadd.f32 %v4622, %v4694
  %v4727 = vadd.f32 %v4623, %v4695
  %v4728 = vadd.f32 %v4624, %v4696
  %v4729 = vadd.f32 %v4625, %v4697
  %v4730 = vadd.f32 %v4626, %v4698
  %v4731 = vadd.f32 %v4627, %v4699
  %v4732 = vadd.f32 %v4628, %v4700
  %v4733 = vadd.f32 %v4629, %v4701
  %v4734 = vld [vmem:[%s4525 + $0x2] sm:$0xff]
  %v4735 = vld [vmem:[%s4525 + $0xa] sm:$0xff]
  %v4736 = vld [vmem:[%s4525 + $0x1a] sm:$0xff]
  %v4737 = vld [vmem:[%s4525 + $0x22] sm:$0xff]
  %v4738 = vld [vmem:[%s4525 + $0x32] sm:$0xff]
  %v4739 = vld [vmem:[%s4525 + $0x3a] sm:$0xff]
  %v4740 = vld [vmem:[%s4525 + $0x4a] sm:$0xff]
  %v4741 = vld [vmem:[%s4525 + $0x52] sm:$0xff]
  %v4742 = vld [vmem:[%s4525 + $0x62] sm:$0xff]
  %v4743 = vld [vmem:[%s4525 + $0x6a] sm:$0xff]
  %v4744 = vld [vmem:[%s4525 + $0x7a] sm:$0xff]
  %v4745 = vld [vmem:[%s4525 + $0x82] sm:$0xff]
  %v4746 = vld [vmem:[%s4525 + $0x92] sm:$0xff]
  %v4747 = vld [vmem:[%s4525 + $0x9a] sm:$0xff]
  %v4748 = vld [vmem:[%s4525 + $0xaa] sm:$0xff]
  %v4749 = vld [vmem:[%s4525 + $0xb2] sm:$0xff]
  %v4750 = vld [vmem:[%s4525 + $0xc2] sm:$0xff]
  %v4751 = vld [vmem:[%s4525 + $0xca] sm:$0xff]
  %v4752 = vld [vmem:[%s4525 + $0xda] sm:$0xff]
  %v4753 = vld [vmem:[%s4525 + $0xe2] sm:$0xff]
  %v4754 = vld [vmem:[%s4525 + $0xf2] sm:$0xff]
  %v4755 = vld [vmem:[%s4525 + $0xfa] sm:$0xff]
  %v4756 = vld [vmem:[%s4525 + $0x10a] sm:$0xff]
  %v4757 = vld [vmem:[%s4525 + $0x112] sm:$0xff]
  %v4758 = vld [vmem:[%s4525 + $0x122] sm:$0xff]
  %v4759 = vld [vmem:[%s4525 + $0x12a] sm:$0xff]
  %v4760 = vld [vmem:[%s4525 + $0x13a] sm:$0xff]
  %v4761 = vld [vmem:[%s4525 + $0x142] sm:$0xff]
  %v4762 = vld [vmem:[%s4525 + $0x152] sm:$0xff]
  %v4763 = vld [vmem:[%s4525 + $0x15a] sm:$0xff]
  %v4764 = vld [vmem:[%s4525 + $0x16a] sm:$0xff]
  %v4765 = vld [vmem:[%s4525 + $0x172] sm:$0xff]
  %s4766 = scalar_lea.vmem %s0, 44
  %v4767 = vld [vmem:[%s4766] sm:$0x1]
  %v4769 = vlaneseq
  %v4770 = vshrl.u32 %v4769, 7
  %v4771 = vsub.s32 0, %v4770
  %v4772 = vrot.slane %v4767, %v4771
  %v4774 = vmul.f32 %v4734, %v4772
  %v4775 = vmul.f32 %v4735, %v4772
  %v4776 = vmul.f32 %v4736, %v4772
  %v4777 = vmul.f32 %v4737, %v4772
  %v4778 = vmul.f32 %v4738, %v4772
  %v4779 = vmul.f32 %v4739, %v4772
  %v4780 = vmul.f32 %v4740, %v4772
  %v4781 = vmul.f32 %v4741, %v4772
  %v4782 = vmul.f32 %v4742, %v4772
  %v4783 = vmul.f32 %v4743, %v4772
  %v4784 = vmul.f32 %v4744, %v4772
  %v4785 = vmul.f32 %v4745, %v4772
  %v4786 = vmul.f32 %v4746, %v4772
  %v4787 = vmul.f32 %v4747, %v4772
  %v4788 = vmul.f32 %v4748, %v4772
  %v4789 = vmul.f32 %v4749, %v4772
  %v4790 = vmul.f32 %v4750, %v4772
  %v4791 = vmul.f32 %v4751, %v4772
  %v4792 = vmul.f32 %v4752, %v4772
  %v4793 = vmul.f32 %v4753, %v4772
  %v4794 = vmul.f32 %v4754, %v4772
  %v4795 = vmul.f32 %v4755, %v4772
  %v4796 = vmul.f32 %v4756, %v4772
  %v4797 = vmul.f32 %v4757, %v4772
  %v4798 = vmul.f32 %v4758, %v4772
  %v4799 = vmul.f32 %v4759, %v4772
  %v4800 = vmul.f32 %v4760, %v4772
  %v4801 = vmul.f32 %v4761, %v4772
  %v4802 = vmul.f32 %v4762, %v4772
  %v4803 = vmul.f32 %v4763, %v4772
  %v4804 = vmul.f32 %v4764, %v4772
  %v4805 = vmul.f32 %v4765, %v4772
  %v4806 = vadd.f32 %v4702, %v4774
  %v4807 = vadd.f32 %v4703, %v4775
  %v4808 = vadd.f32 %v4704, %v4776
  %v4809 = vadd.f32 %v4705, %v4777
  %v4810 = vadd.f32 %v4706, %v4778
  %v4811 = vadd.f32 %v4707, %v4779
  %v4812 = vadd.f32 %v4708, %v4780
  %v4813 = vadd.f32 %v4709, %v4781
  %v4814 = vadd.f32 %v4710, %v4782
  %v4815 = vadd.f32 %v4711, %v4783
  %v4816 = vadd.f32 %v4712, %v4784
  %v4817 = vadd.f32 %v4713, %v4785
  %v4818 = vadd.f32 %v4714, %v4786
  %v4819 = vadd.f32 %v4715, %v4787
  %v4820 = vadd.f32 %v4716, %v4788
  %v4821 = vadd.f32 %v4717, %v4789
  %v4822 = vadd.f32 %v4718, %v4790
  %v4823 = vadd.f32 %v4719, %v4791
  %v4824 = vadd.f32 %v4720, %v4792
  %v4825 = vadd.f32 %v4721, %v4793
  %v4826 = vadd.f32 %v4722, %v4794
  %v4827 = vadd.f32 %v4723, %v4795
  %v4828 = vadd.f32 %v4724, %v4796
  %v4829 = vadd.f32 %v4725, %v4797
  %v4830 = vadd.f32 %v4726, %v4798
  %v4831 = vadd.f32 %v4727, %v4799
  %v4832 = vadd.f32 %v4728, %v4800
  %v4833 = vadd.f32 %v4729, %v4801
  %v4834 = vadd.f32 %v4730, %v4802
  %v4835 = vadd.f32 %v4731, %v4803
  %v4836 = vadd.f32 %v4732, %v4804
  %v4837 = vadd.f32 %v4733, %v4805
  %v4838 = vld [vmem:[%s4525 + $0x3] sm:$0xff]
  %v4839 = vld [vmem:[%s4525 + $0xb] sm:$0xff]
  %v4840 = vld [vmem:[%s4525 + $0x1b] sm:$0xff]
  %v4841 = vld [vmem:[%s4525 + $0x23] sm:$0xff]
  %v4842 = vld [vmem:[%s4525 + $0x33] sm:$0xff]
  %v4843 = vld [vmem:[%s4525 + $0x3b] sm:$0xff]
  %v4844 = vld [vmem:[%s4525 + $0x4b] sm:$0xff]
  %v4845 = vld [vmem:[%s4525 + $0x53] sm:$0xff]
  %v4846 = vld [vmem:[%s4525 + $0x63] sm:$0xff]
  %v4847 = vld [vmem:[%s4525 + $0x6b] sm:$0xff]
  %v4848 = vld [vmem:[%s4525 + $0x7b] sm:$0xff]
  %v4849 = vld [vmem:[%s4525 + $0x83] sm:$0xff]
  %v4850 = vld [vmem:[%s4525 + $0x93] sm:$0xff]
  %v4851 = vld [vmem:[%s4525 + $0x9b] sm:$0xff]
  %v4852 = vld [vmem:[%s4525 + $0xab] sm:$0xff]
  %v4853 = vld [vmem:[%s4525 + $0xb3] sm:$0xff]
  %v4854 = vld [vmem:[%s4525 + $0xc3] sm:$0xff]
  %v4855 = vld [vmem:[%s4525 + $0xcb] sm:$0xff]
  %v4856 = vld [vmem:[%s4525 + $0xdb] sm:$0xff]
  %v4857 = vld [vmem:[%s4525 + $0xe3] sm:$0xff]
  %v4858 = vld [vmem:[%s4525 + $0xf3] sm:$0xff]
  %v4859 = vld [vmem:[%s4525 + $0xfb] sm:$0xff]
  %v4860 = vld [vmem:[%s4525 + $0x10b] sm:$0xff]
  %v4861 = vld [vmem:[%s4525 + $0x113] sm:$0xff]
  %v4862 = vld [vmem:[%s4525 + $0x123] sm:$0xff]
  %v4863 = vld [vmem:[%s4525 + $0x12b] sm:$0xff]
  %v4864 = vld [vmem:[%s4525 + $0x13b] sm:$0xff]
  %v4865 = vld [vmem:[%s4525 + $0x143] sm:$0xff]
  %v4866 = vld [vmem:[%s4525 + $0x153] sm:$0xff]
  %v4867 = vld [vmem:[%s4525 + $0x15b] sm:$0xff]
  %v4868 = vld [vmem:[%s4525 + $0x16b] sm:$0xff]
  %v4869 = vld [vmem:[%s4525 + $0x173] sm:$0xff]
  %s4870 = scalar_lea.vmem %s0, 45
  %v4871 = vld [vmem:[%s4870] sm:$0x1]
  %v4873 = vlaneseq
  %v4874 = vshrl.u32 %v4873, 7
  %v4875 = vsub.s32 0, %v4874
  %v4876 = vrot.slane %v4871, %v4875
  %v4878 = vmul.f32 %v4838, %v4876
  %v4879 = vmul.f32 %v4839, %v4876
  %v4880 = vmul.f32 %v4840, %v4876
  %v4881 = vmul.f32 %v4841, %v4876
  %v4882 = vmul.f32 %v4842, %v4876
  %v4883 = vmul.f32 %v4843, %v4876
  %v4884 = vmul.f32 %v4844, %v4876
  %v4885 = vmul.f32 %v4845, %v4876
  %v4886 = vmul.f32 %v4846, %v4876
  %v4887 = vmul.f32 %v4847, %v4876
  %v4888 = vmul.f32 %v4848, %v4876
  %v4889 = vmul.f32 %v4849, %v4876
  %v4890 = vmul.f32 %v4850, %v4876
  %v4891 = vmul.f32 %v4851, %v4876
  %v4892 = vmul.f32 %v4852, %v4876
  %v4893 = vmul.f32 %v4853, %v4876
  %v4894 = vmul.f32 %v4854, %v4876
  %v4895 = vmul.f32 %v4855, %v4876
  %v4896 = vmul.f32 %v4856, %v4876
  %v4897 = vmul.f32 %v4857, %v4876
  %v4898 = vmul.f32 %v4858, %v4876
  %v4899 = vmul.f32 %v4859, %v4876
  %v4900 = vmul.f32 %v4860, %v4876
  %v4901 = vmul.f32 %v4861, %v4876
  %v4902 = vmul.f32 %v4862, %v4876
  %v4903 = vmul.f32 %v4863, %v4876
  %v4904 = vmul.f32 %v4864, %v4876
  %v4905 = vmul.f32 %v4865, %v4876
  %v4906 = vmul.f32 %v4866, %v4876
  %v4907 = vmul.f32 %v4867, %v4876
  %v4908 = vmul.f32 %v4868, %v4876
  %v4909 = vmul.f32 %v4869, %v4876
  %v4910 = vadd.f32 %v4806, %v4878
  %v4911 = vadd.f32 %v4807, %v4879
  %v4912 = vadd.f32 %v4808, %v4880
  %v4913 = vadd.f32 %v4809, %v4881
  %v4914 = vadd.f32 %v4810, %v4882
  %v4915 = vadd.f32 %v4811, %v4883
  %v4916 = vadd.f32 %v4812, %v4884
  %v4917 = vadd.f32 %v4813, %v4885
  %v4918 = vadd.f32 %v4814, %v4886
  %v4919 = vadd.f32 %v4815, %v4887
  %v4920 = vadd.f32 %v4816, %v4888
  %v4921 = vadd.f32 %v4817, %v4889
  %v4922 = vadd.f32 %v4818, %v4890
  %v4923 = vadd.f32 %v4819, %v4891
  %v4924 = vadd.f32 %v4820, %v4892
  %v4925 = vadd.f32 %v4821, %v4893
  %v4926 = vadd.f32 %v4822, %v4894
  %v4927 = vadd.f32 %v4823, %v4895
  %v4928 = vadd.f32 %v4824, %v4896
  %v4929 = vadd.f32 %v4825, %v4897
  %v4930 = vadd.f32 %v4826, %v4898
  %v4931 = vadd.f32 %v4827, %v4899
  %v4932 = vadd.f32 %v4828, %v4900
  %v4933 = vadd.f32 %v4829, %v4901
  %v4934 = vadd.f32 %v4830, %v4902
  %v4935 = vadd.f32 %v4831, %v4903
  %v4936 = vadd.f32 %v4832, %v4904
  %v4937 = vadd.f32 %v4833, %v4905
  %v4938 = vadd.f32 %v4834, %v4906
  %v4939 = vadd.f32 %v4835, %v4907
  %v4940 = vadd.f32 %v4836, %v4908
  %v4941 = vadd.f32 %v4837, %v4909
  %v4942 = vld [vmem:[%s4525 + $0x4] sm:$0xff]
  %v4943 = vld [vmem:[%s4525 + $0xc] sm:$0xff]
  %v4944 = vld [vmem:[%s4525 + $0x1c] sm:$0xff]
  %v4945 = vld [vmem:[%s4525 + $0x24] sm:$0xff]
  %v4946 = vld [vmem:[%s4525 + $0x34] sm:$0xff]
  %v4947 = vld [vmem:[%s4525 + $0x3c] sm:$0xff]
  %v4948 = vld [vmem:[%s4525 + $0x4c] sm:$0xff]
  %v4949 = vld [vmem:[%s4525 + $0x54] sm:$0xff]
  %v4950 = vld [vmem:[%s4525 + $0x64] sm:$0xff]
  %v4951 = vld [vmem:[%s4525 + $0x6c] sm:$0xff]
  %v4952 = vld [vmem:[%s4525 + $0x7c] sm:$0xff]
  %v4953 = vld [vmem:[%s4525 + $0x84] sm:$0xff]
  %v4954 = vld [vmem:[%s4525 + $0x94] sm:$0xff]
  %v4955 = vld [vmem:[%s4525 + $0x9c] sm:$0xff]
  %v4956 = vld [vmem:[%s4525 + $0xac] sm:$0xff]
  %v4957 = vld [vmem:[%s4525 + $0xb4] sm:$0xff]
  %v4958 = vld [vmem:[%s4525 + $0xc4] sm:$0xff]
  %v4959 = vld [vmem:[%s4525 + $0xcc] sm:$0xff]
  %v4960 = vld [vmem:[%s4525 + $0xdc] sm:$0xff]
  %v4961 = vld [vmem:[%s4525 + $0xe4] sm:$0xff]
  %v4962 = vld [vmem:[%s4525 + $0xf4] sm:$0xff]
  %v4963 = vld [vmem:[%s4525 + $0xfc] sm:$0xff]
  %v4964 = vld [vmem:[%s4525 + $0x10c] sm:$0xff]
  %v4965 = vld [vmem:[%s4525 + $0x114] sm:$0xff]
  %v4966 = vld [vmem:[%s4525 + $0x124] sm:$0xff]
  %v4967 = vld [vmem:[%s4525 + $0x12c] sm:$0xff]
  %v4968 = vld [vmem:[%s4525 + $0x13c] sm:$0xff]
  %v4969 = vld [vmem:[%s4525 + $0x144] sm:$0xff]
  %v4970 = vld [vmem:[%s4525 + $0x154] sm:$0xff]
  %v4971 = vld [vmem:[%s4525 + $0x15c] sm:$0xff]
  %v4972 = vld [vmem:[%s4525 + $0x16c] sm:$0xff]
  %v4973 = vld [vmem:[%s4525 + $0x174] sm:$0xff]
  %s4974 = scalar_lea.vmem %s0, 46
  %v4975 = vld [vmem:[%s4974] sm:$0x1]
  %v4977 = vlaneseq
  %v4978 = vshrl.u32 %v4977, 7
  %v4979 = vsub.s32 0, %v4978
  %v4980 = vrot.slane %v4975, %v4979
  %v4982 = vmul.f32 %v4942, %v4980
  %v4983 = vmul.f32 %v4943, %v4980
  %v4984 = vmul.f32 %v4944, %v4980
  %v4985 = vmul.f32 %v4945, %v4980
  %v4986 = vmul.f32 %v4946, %v4980
  %v4987 = vmul.f32 %v4947, %v4980
  %v4988 = vmul.f32 %v4948, %v4980
  %v4989 = vmul.f32 %v4949, %v4980
  %v4990 = vmul.f32 %v4950, %v4980
  %v4991 = vmul.f32 %v4951, %v4980
  %v4992 = vmul.f32 %v4952, %v4980
  %v4993 = vmul.f32 %v4953, %v4980
  %v4994 = vmul.f32 %v4954, %v4980
  %v4995 = vmul.f32 %v4955, %v4980
  %v4996 = vmul.f32 %v4956, %v4980
  %v4997 = vmul.f32 %v4957, %v4980
  %v4998 = vmul.f32 %v4958, %v4980
  %v4999 = vmul.f32 %v4959, %v4980
  %v5000 = vmul.f32 %v4960, %v4980
  %v5001 = vmul.f32 %v4961, %v4980
  %v5002 = vmul.f32 %v4962, %v4980
  %v5003 = vmul.f32 %v4963, %v4980
  %v5004 = vmul.f32 %v4964, %v4980
  %v5005 = vmul.f32 %v4965, %v4980
  %v5006 = vmul.f32 %v4966, %v4980
  %v5007 = vmul.f32 %v4967, %v4980
  %v5008 = vmul.f32 %v4968, %v4980
  %v5009 = vmul.f32 %v4969, %v4980
  %v5010 = vmul.f32 %v4970, %v4980
  %v5011 = vmul.f32 %v4971, %v4980
  %v5012 = vmul.f32 %v4972, %v4980
  %v5013 = vmul.f32 %v4973, %v4980
  %v5014 = vadd.f32 %v4910, %v4982
  %v5015 = vadd.f32 %v4911, %v4983
  %v5016 = vadd.f32 %v4912, %v4984
  %v5017 = vadd.f32 %v4913, %v4985
  %v5018 = vadd.f32 %v4914, %v4986
  %v5019 = vadd.f32 %v4915, %v4987
  %v5020 = vadd.f32 %v4916, %v4988
  %v5021 = vadd.f32 %v4917, %v4989
  %v5022 = vadd.f32 %v4918, %v4990
  %v5023 = vadd.f32 %v4919, %v4991
  %v5024 = vadd.f32 %v4920, %v4992
  %v5025 = vadd.f32 %v4921, %v4993
  %v5026 = vadd.f32 %v4922, %v4994
  %v5027 = vadd.f32 %v4923, %v4995
  %v5028 = vadd.f32 %v4924, %v4996
  %v5029 = vadd.f32 %v4925, %v4997
  %v5030 = vadd.f32 %v4926, %v4998
  %v5031 = vadd.f32 %v4927, %v4999
  %v5032 = vadd.f32 %v4928, %v5000
  %v5033 = vadd.f32 %v4929, %v5001
  %v5034 = vadd.f32 %v4930, %v5002
  %v5035 = vadd.f32 %v4931, %v5003
  %v5036 = vadd.f32 %v4932, %v5004
  %v5037 = vadd.f32 %v4933, %v5005
  %v5038 = vadd.f32 %v4934, %v5006
  %v5039 = vadd.f32 %v4935, %v5007
  %v5040 = vadd.f32 %v4936, %v5008
  %v5041 = vadd.f32 %v4937, %v5009
  %v5042 = vadd.f32 %v4938, %v5010
  %v5043 = vadd.f32 %v4939, %v5011
  %v5044 = vadd.f32 %v4940, %v5012
  %v5045 = vadd.f32 %v4941, %v5013
  %v5046 = vld [vmem:[%s4525 + $0x5] sm:$0xff]
  %v5047 = vld [vmem:[%s4525 + $0xd] sm:$0xff]
  %v5048 = vld [vmem:[%s4525 + $0x1d] sm:$0xff]
  %v5049 = vld [vmem:[%s4525 + $0x25] sm:$0xff]
  %v5050 = vld [vmem:[%s4525 + $0x35] sm:$0xff]
  %v5051 = vld [vmem:[%s4525 + $0x3d] sm:$0xff]
  %v5052 = vld [vmem:[%s4525 + $0x4d] sm:$0xff]
  %v5053 = vld [vmem:[%s4525 + $0x55] sm:$0xff]
  %v5054 = vld [vmem:[%s4525 + $0x65] sm:$0xff]
  %v5055 = vld [vmem:[%s4525 + $0x6d] sm:$0xff]
  %v5056 = vld [vmem:[%s4525 + $0x7d] sm:$0xff]
  %v5057 = vld [vmem:[%s4525 + $0x85] sm:$0xff]
  %v5058 = vld [vmem:[%s4525 + $0x95] sm:$0xff]
  %v5059 = vld [vmem:[%s4525 + $0x9d] sm:$0xff]
  %v5060 = vld [vmem:[%s4525 + $0xad] sm:$0xff]
  %v5061 = vld [vmem:[%s4525 + $0xb5] sm:$0xff]
  %v5062 = vld [vmem:[%s4525 + $0xc5] sm:$0xff]
  %v5063 = vld [vmem:[%s4525 + $0xcd] sm:$0xff]
  %v5064 = vld [vmem:[%s4525 + $0xdd] sm:$0xff]
  %v5065 = vld [vmem:[%s4525 + $0xe5] sm:$0xff]
  %v5066 = vld [vmem:[%s4525 + $0xf5] sm:$0xff]
  %v5067 = vld [vmem:[%s4525 + $0xfd] sm:$0xff]
  %v5068 = vld [vmem:[%s4525 + $0x10d] sm:$0xff]
  %v5069 = vld [vmem:[%s4525 + $0x115] sm:$0xff]
  %v5070 = vld [vmem:[%s4525 + $0x125] sm:$0xff]
  %v5071 = vld [vmem:[%s4525 + $0x12d] sm:$0xff]
  %v5072 = vld [vmem:[%s4525 + $0x13d] sm:$0xff]
  %v5073 = vld [vmem:[%s4525 + $0x145] sm:$0xff]
  %v5074 = vld [vmem:[%s4525 + $0x155] sm:$0xff]
  %v5075 = vld [vmem:[%s4525 + $0x15d] sm:$0xff]
  %v5076 = vld [vmem:[%s4525 + $0x16d] sm:$0xff]
  %v5077 = vld [vmem:[%s4525 + $0x175] sm:$0xff]
  %s5078 = scalar_lea.vmem %s0, 47
  %v5079 = vld [vmem:[%s5078] sm:$0x1]
  %v5081 = vlaneseq
  %v5082 = vshrl.u32 %v5081, 7
  %v5083 = vsub.s32 0, %v5082
  %v5084 = vrot.slane %v5079, %v5083
  %v5086 = vmul.f32 %v5046, %v5084
  %v5087 = vmul.f32 %v5047, %v5084
  %v5088 = vmul.f32 %v5048, %v5084
  %v5089 = vmul.f32 %v5049, %v5084
  %v5090 = vmul.f32 %v5050, %v5084
  %v5091 = vmul.f32 %v5051, %v5084
  %v5092 = vmul.f32 %v5052, %v5084
  %v5093 = vmul.f32 %v5053, %v5084
  %v5094 = vmul.f32 %v5054, %v5084
  %v5095 = vmul.f32 %v5055, %v5084
  %v5096 = vmul.f32 %v5056, %v5084
  %v5097 = vmul.f32 %v5057, %v5084
  %v5098 = vmul.f32 %v5058, %v5084
  %v5099 = vmul.f32 %v5059, %v5084
  %v5100 = vmul.f32 %v5060, %v5084
  %v5101 = vmul.f32 %v5061, %v5084
  %v5102 = vmul.f32 %v5062, %v5084
  %v5103 = vmul.f32 %v5063, %v5084
  %v5104 = vmul.f32 %v5064, %v5084
  %v5105 = vmul.f32 %v5065, %v5084
  %v5106 = vmul.f32 %v5066, %v5084
  %v5107 = vmul.f32 %v5067, %v5084
  %v5108 = vmul.f32 %v5068, %v5084
  %v5109 = vmul.f32 %v5069, %v5084
  %v5110 = vmul.f32 %v5070, %v5084
  %v5111 = vmul.f32 %v5071, %v5084
  %v5112 = vmul.f32 %v5072, %v5084
  %v5113 = vmul.f32 %v5073, %v5084
  %v5114 = vmul.f32 %v5074, %v5084
  %v5115 = vmul.f32 %v5075, %v5084
  %v5116 = vmul.f32 %v5076, %v5084
  %v5117 = vmul.f32 %v5077, %v5084
  %v5118 = vadd.f32 %v5014, %v5086
  %v5119 = vadd.f32 %v5015, %v5087
  %v5120 = vadd.f32 %v5016, %v5088
  %v5121 = vadd.f32 %v5017, %v5089
  %v5122 = vadd.f32 %v5018, %v5090
  %v5123 = vadd.f32 %v5019, %v5091
  %v5124 = vadd.f32 %v5020, %v5092
  %v5125 = vadd.f32 %v5021, %v5093
  %v5126 = vadd.f32 %v5022, %v5094
  %v5127 = vadd.f32 %v5023, %v5095
  %v5128 = vadd.f32 %v5024, %v5096
  %v5129 = vadd.f32 %v5025, %v5097
  %v5130 = vadd.f32 %v5026, %v5098
  %v5131 = vadd.f32 %v5027, %v5099
  %v5132 = vadd.f32 %v5028, %v5100
  %v5133 = vadd.f32 %v5029, %v5101
  %v5134 = vadd.f32 %v5030, %v5102
  %v5135 = vadd.f32 %v5031, %v5103
  %v5136 = vadd.f32 %v5032, %v5104
  %v5137 = vadd.f32 %v5033, %v5105
  %v5138 = vadd.f32 %v5034, %v5106
  %v5139 = vadd.f32 %v5035, %v5107
  %v5140 = vadd.f32 %v5036, %v5108
  %v5141 = vadd.f32 %v5037, %v5109
  %v5142 = vadd.f32 %v5038, %v5110
  %v5143 = vadd.f32 %v5039, %v5111
  %v5144 = vadd.f32 %v5040, %v5112
  %v5145 = vadd.f32 %v5041, %v5113
  %v5146 = vadd.f32 %v5042, %v5114
  %v5147 = vadd.f32 %v5043, %v5115
  %v5148 = vadd.f32 %v5044, %v5116
  %v5149 = vadd.f32 %v5045, %v5117
  %v5150 = vld [vmem:[%s4525 + $0x6] sm:$0xff]
  %v5151 = vld [vmem:[%s4525 + $0xe] sm:$0xff]
  %v5152 = vld [vmem:[%s4525 + $0x1e] sm:$0xff]
  %v5153 = vld [vmem:[%s4525 + $0x26] sm:$0xff]
  %v5154 = vld [vmem:[%s4525 + $0x36] sm:$0xff]
  %v5155 = vld [vmem:[%s4525 + $0x3e] sm:$0xff]
  %v5156 = vld [vmem:[%s4525 + $0x4e] sm:$0xff]
  %v5157 = vld [vmem:[%s4525 + $0x56] sm:$0xff]
  %v5158 = vld [vmem:[%s4525 + $0x66] sm:$0xff]
  %v5159 = vld [vmem:[%s4525 + $0x6e] sm:$0xff]
  %v5160 = vld [vmem:[%s4525 + $0x7e] sm:$0xff]
  %v5161 = vld [vmem:[%s4525 + $0x86] sm:$0xff]
  %v5162 = vld [vmem:[%s4525 + $0x96] sm:$0xff]
  %v5163 = vld [vmem:[%s4525 + $0x9e] sm:$0xff]
  %v5164 = vld [vmem:[%s4525 + $0xae] sm:$0xff]
  %v5165 = vld [vmem:[%s4525 + $0xb6] sm:$0xff]
  %v5166 = vld [vmem:[%s4525 + $0xc6] sm:$0xff]
  %v5167 = vld [vmem:[%s4525 + $0xce] sm:$0xff]
  %v5168 = vld [vmem:[%s4525 + $0xde] sm:$0xff]
  %v5169 = vld [vmem:[%s4525 + $0xe6] sm:$0xff]
  %v5170 = vld [vmem:[%s4525 + $0xf6] sm:$0xff]
  %v5171 = vld [vmem:[%s4525 + $0xfe] sm:$0xff]
  %v5172 = vld [vmem:[%s4525 + $0x10e] sm:$0xff]
  %v5173 = vld [vmem:[%s4525 + $0x116] sm:$0xff]
  %v5174 = vld [vmem:[%s4525 + $0x126] sm:$0xff]
  %v5175 = vld [vmem:[%s4525 + $0x12e] sm:$0xff]
  %v5176 = vld [vmem:[%s4525 + $0x13e] sm:$0xff]
  %v5177 = vld [vmem:[%s4525 + $0x146] sm:$0xff]
  %v5178 = vld [vmem:[%s4525 + $0x156] sm:$0xff]
  %v5179 = vld [vmem:[%s4525 + $0x15e] sm:$0xff]
  %v5180 = vld [vmem:[%s4525 + $0x16e] sm:$0xff]
  %v5181 = vld [vmem:[%s4525 + $0x176] sm:$0xff]
  %s5182 = scalar_lea.vmem %s0, 48
  %v5183 = vld [vmem:[%s5182] sm:$0x1]
  %v5185 = vlaneseq
  %v5186 = vshrl.u32 %v5185, 7
  %v5187 = vsub.s32 0, %v5186
  %v5188 = vrot.slane %v5183, %v5187
  %v5190 = vmul.f32 %v5150, %v5188
  %v5191 = vmul.f32 %v5151, %v5188
  %v5192 = vmul.f32 %v5152, %v5188
  %v5193 = vmul.f32 %v5153, %v5188
  %v5194 = vmul.f32 %v5154, %v5188
  %v5195 = vmul.f32 %v5155, %v5188
  %v5196 = vmul.f32 %v5156, %v5188
  %v5197 = vmul.f32 %v5157, %v5188
  %v5198 = vmul.f32 %v5158, %v5188
  %v5199 = vmul.f32 %v5159, %v5188
  %v5200 = vmul.f32 %v5160, %v5188
  %v5201 = vmul.f32 %v5161, %v5188
  %v5202 = vmul.f32 %v5162, %v5188
  %v5203 = vmul.f32 %v5163, %v5188
  %v5204 = vmul.f32 %v5164, %v5188
  %v5205 = vmul.f32 %v5165, %v5188
  %v5206 = vmul.f32 %v5166, %v5188
  %v5207 = vmul.f32 %v5167, %v5188
  %v5208 = vmul.f32 %v5168, %v5188
  %v5209 = vmul.f32 %v5169, %v5188
  %v5210 = vmul.f32 %v5170, %v5188
  %v5211 = vmul.f32 %v5171, %v5188
  %v5212 = vmul.f32 %v5172, %v5188
  %v5213 = vmul.f32 %v5173, %v5188
  %v5214 = vmul.f32 %v5174, %v5188
  %v5215 = vmul.f32 %v5175, %v5188
  %v5216 = vmul.f32 %v5176, %v5188
  %v5217 = vmul.f32 %v5177, %v5188
  %v5218 = vmul.f32 %v5178, %v5188
  %v5219 = vmul.f32 %v5179, %v5188
  %v5220 = vmul.f32 %v5180, %v5188
  %v5221 = vmul.f32 %v5181, %v5188
  %v5222 = vadd.f32 %v5118, %v5190
  %v5223 = vadd.f32 %v5119, %v5191
  %v5224 = vadd.f32 %v5120, %v5192
  %v5225 = vadd.f32 %v5121, %v5193
  %v5226 = vadd.f32 %v5122, %v5194
  %v5227 = vadd.f32 %v5123, %v5195
  %v5228 = vadd.f32 %v5124, %v5196
  %v5229 = vadd.f32 %v5125, %v5197
  %v5230 = vadd.f32 %v5126, %v5198
  %v5231 = vadd.f32 %v5127, %v5199
  %v5232 = vadd.f32 %v5128, %v5200
  %v5233 = vadd.f32 %v5129, %v5201
  %v5234 = vadd.f32 %v5130, %v5202
  %v5235 = vadd.f32 %v5131, %v5203
  %v5236 = vadd.f32 %v5132, %v5204
  %v5237 = vadd.f32 %v5133, %v5205
  %v5238 = vadd.f32 %v5134, %v5206
  %v5239 = vadd.f32 %v5135, %v5207
  %v5240 = vadd.f32 %v5136, %v5208
  %v5241 = vadd.f32 %v5137, %v5209
  %v5242 = vadd.f32 %v5138, %v5210
  %v5243 = vadd.f32 %v5139, %v5211
  %v5244 = vadd.f32 %v5140, %v5212
  %v5245 = vadd.f32 %v5141, %v5213
  %v5246 = vadd.f32 %v5142, %v5214
  %v5247 = vadd.f32 %v5143, %v5215
  %v5248 = vadd.f32 %v5144, %v5216
  %v5249 = vadd.f32 %v5145, %v5217
  %v5250 = vadd.f32 %v5146, %v5218
  %v5251 = vadd.f32 %v5147, %v5219
  %v5252 = vadd.f32 %v5148, %v5220
  %v5253 = vadd.f32 %v5149, %v5221
  %5254 = vst.msk [vmem:[%s3] sm:$0xff] %vm14, %v5222
  %5255 = vst.msk [vmem:[%s3 + $0x8] sm:$0xff] %vm14, %v5223
  %5256 = vst.msk [vmem:[%s3 + $0x10] sm:$0xff] %vm14, %v5224
  %5257 = vst.msk [vmem:[%s3 + $0x18] sm:$0xff] %vm14, %v5225
  %5258 = vst.msk [vmem:[%s3 + $0x20] sm:$0xff] %vm14, %v5226
  %5259 = vst.msk [vmem:[%s3 + $0x28] sm:$0xff] %vm14, %v5227
  %5260 = vst.msk [vmem:[%s3 + $0x30] sm:$0xff] %vm14, %v5228
  %5261 = vst.msk [vmem:[%s3 + $0x38] sm:$0xff] %vm14, %v5229
  %5262 = vst.msk [vmem:[%s3 + $0x40] sm:$0xff] %vm14, %v5230
  %5263 = vst.msk [vmem:[%s3 + $0x48] sm:$0xff] %vm14, %v5231
  %5264 = vst.msk [vmem:[%s3 + $0x50] sm:$0xff] %vm14, %v5232
  %5265 = vst.msk [vmem:[%s3 + $0x58] sm:$0xff] %vm14, %v5233
  %5266 = vst.msk [vmem:[%s3 + $0x60] sm:$0xff] %vm14, %v5234
  %5267 = vst.msk [vmem:[%s3 + $0x68] sm:$0xff] %vm14, %v5235
  %5268 = vst.msk [vmem:[%s3 + $0x70] sm:$0xff] %vm14, %v5236
  %5269 = vst.msk [vmem:[%s3 + $0x78] sm:$0xff] %vm14, %v5237
  %5270 = vst.msk [vmem:[%s3 + $0x80] sm:$0xff] %vm14, %v5238
  %5271 = vst.msk [vmem:[%s3 + $0x88] sm:$0xff] %vm14, %v5239
  %5272 = vst.msk [vmem:[%s3 + $0x90] sm:$0xff] %vm14, %v5240
  %5273 = vst.msk [vmem:[%s3 + $0x98] sm:$0xff] %vm14, %v5241
  %5274 = vst.msk [vmem:[%s3 + $0xa0] sm:$0xff] %vm14, %v5242
  %5275 = vst.msk [vmem:[%s3 + $0xa8] sm:$0xff] %vm14, %v5243
  %5276 = vst.msk [vmem:[%s3 + $0xb0] sm:$0xff] %vm14, %v5244
  %5277 = vst.msk [vmem:[%s3 + $0xb8] sm:$0xff] %vm14, %v5245
  %5278 = vst.msk [vmem:[%s3 + $0xc0] sm:$0xff] %vm14, %v5246
  %5279 = vst.msk [vmem:[%s3 + $0xc8] sm:$0xff] %vm14, %v5247
  %5280 = vst.msk [vmem:[%s3 + $0xd0] sm:$0xff] %vm14, %v5248
  %5281 = vst.msk [vmem:[%s3 + $0xd8] sm:$0xff] %vm14, %v5249
  %5282 = vst.msk [vmem:[%s3 + $0xe0] sm:$0xff] %vm14, %v5250
  %5283 = vst.msk [vmem:[%s3 + $0xe8] sm:$0xff] %vm14, %v5251
  %5284 = vst.msk [vmem:[%s3 + $0xf0] sm:$0xff] %vm14, %v5252
  %5285 = vst.msk [vmem:[%s3 + $0xf8] sm:$0xff] %vm14, %v5253
  %5286 = vst.msk [vmem:[%s1610 + $0x2] sm:$0xff] %vm14, -inf
  %5287 = vst.msk [vmem:[%s1610 + $0xa] sm:$0xff] %vm14, -inf
  %vm5288 = vcmask 58368
  %5289 = vst.msk [vmem:[%s1610 + $0x12] sm:$0x3] %vm5288, -inf
  %s5290 = scalar_lea.vmem [#allocation2], 456
  %5291 = vst.msk [vmem:[%s5290 + $0x2] sm:$0xff] %vm14, -inf
  %5292 = vst.msk [vmem:[%s5290 + $0xa] sm:$0xff] %vm14, -inf
  %5293 = vst.msk [vmem:[%s5290 + $0x12] sm:$0x3] %vm5288, -inf
  %vm5294 = vcmask 57344
  %5295 = vst.msk [vmem:[%s1610 + $0x2] sm:$0x1] %vm5294, -inf
  %5296 = vst.msk [vmem:[%s1610 + $0x1a] sm:$0x1] %vm5294, -inf
  %5297 = vst.msk [vmem:[%s1610 + $0x32] sm:$0x1] %vm5294, -inf
  %5298 = vst.msk [vmem:[%s1610 + $0x4a] sm:$0x1] %vm5294, -inf
  %5299 = vst.msk [vmem:[%s1610 + $0x62] sm:$0x1] %vm5294, -inf
  %5300 = vst.msk [vmem:[%s1610 + $0x7a] sm:$0x1] %vm5294, -inf
  %5301 = vst.msk [vmem:[%s1610 + $0x92] sm:$0x1] %vm5294, -inf
  %5302 = vst.msk [vmem:[%s1610 + $0xaa] sm:$0x1] %vm5294, -inf
  %5303 = vst.msk [vmem:[%s1610 + $0xc2] sm:$0x1] %vm5294, -inf
  %5304 = vst.msk [vmem:[%s1610 + $0xda] sm:$0x1] %vm5294, -inf
  %5305 = vst.msk [vmem:[%s1610 + $0xf2] sm:$0x1] %vm5294, -inf
  %5306 = vst.msk [vmem:[%s1610 + $0x10a] sm:$0x1] %vm5294, -inf
  %5307 = vst.msk [vmem:[%s1610 + $0x122] sm:$0x1] %vm5294, -inf
  %5308 = vst.msk [vmem:[%s1610 + $0x13a] sm:$0x1] %vm5294, -inf
  %5309 = vst.msk [vmem:[%s1610 + $0x152] sm:$0x1] %vm5294, -inf
  %5310 = vst.msk [vmem:[%s1610 + $0x16a] sm:$0x1] %vm5294, -inf
  %5311 = vst.msk [vmem:[%s1610 + $0x182] sm:$0x1] %vm5294, -inf
  %5312 = vst.msk [vmem:[%s1610 + $0x19a] sm:$0x1] %vm5294, -inf
  %5313 = vst.msk [vmem:[%s1610 + $0x13] sm:$0x1] %vm5294, -inf
  %5314 = vst.msk [vmem:[%s1610 + $0x2b] sm:$0x1] %vm5294, -inf
  %5315 = vst.msk [vmem:[%s1610 + $0x43] sm:$0x1] %vm5294, -inf
  %5316 = vst.msk [vmem:[%s1610 + $0x5b] sm:$0x1] %vm5294, -inf
  %5317 = vst.msk [vmem:[%s1610 + $0x73] sm:$0x1] %vm5294, -inf
  %5318 = vst.msk [vmem:[%s1610 + $0x8b] sm:$0x1] %vm5294, -inf
  %5319 = vst.msk [vmem:[%s1610 + $0xa3] sm:$0x1] %vm5294, -inf
  %5320 = vst.msk [vmem:[%s1610 + $0xbb] sm:$0x1] %vm5294, -inf
  %5321 = vst.msk [vmem:[%s1610 + $0xd3] sm:$0x1] %vm5294, -inf
  %5322 = vst.msk [vmem:[%s1610 + $0xeb] sm:$0x1] %vm5294, -inf
  %5323 = vst.msk [vmem:[%s1610 + $0x103] sm:$0x1] %vm5294, -inf
  %5324 = vst.msk [vmem:[%s1610 + $0x11b] sm:$0x1] %vm5294, -inf
  %5325 = vst.msk [vmem:[%s1610 + $0x133] sm:$0x1] %vm5294, -inf
  %5326 = vst.msk [vmem:[%s1610 + $0x14b] sm:$0x1] %vm5294, -inf
  %5327 = vst.msk [vmem:[%s1610 + $0x163] sm:$0x1] %vm5294, -inf
  %5328 = vst.msk [vmem:[%s1610 + $0x17b] sm:$0x1] %vm5294, -inf
  %5329 = vst.msk [vmem:[%s1610 + $0x193] sm:$0x1] %vm5294, -inf
  %5330 = vst.msk [vmem:[%s1610 + $0x1ab] sm:$0x1] %vm5294, -inf
  %v5331 = vld [vmem:[%s1610 + $0x2] sm:$0xff]
  %v5332 = vld [vmem:[%s1610 + $0xa] sm:$0xff]
  %v5333 = vld [vmem:[%s1610 + $0x1a] sm:$0xff]
  %v5334 = vld [vmem:[%s1610 + $0x22] sm:$0xff]
  %v5335 = vld [vmem:[%s1610 + $0x32] sm:$0xff]
  %v5336 = vld [vmem:[%s1610 + $0x3a] sm:$0xff]
  %v5337 = vld [vmem:[%s1610 + $0x4a] sm:$0xff]
  %v5338 = vld [vmem:[%s1610 + $0x52] sm:$0xff]
  %v5339 = vld [vmem:[%s1610 + $0x62] sm:$0xff]
  %v5340 = vld [vmem:[%s1610 + $0x6a] sm:$0xff]
  %v5341 = vld [vmem:[%s1610 + $0x7a] sm:$0xff]
  %v5342 = vld [vmem:[%s1610 + $0x82] sm:$0xff]
  %v5343 = vld [vmem:[%s1610 + $0x92] sm:$0xff]
  %v5344 = vld [vmem:[%s1610 + $0x9a] sm:$0xff]
  %v5345 = vld [vmem:[%s1610 + $0xaa] sm:$0xff]
  %v5346 = vld [vmem:[%s1610 + $0xb2] sm:$0xff]
  %v5347 = vld [vmem:[%s1610 + $0xc2] sm:$0xff]
  %v5348 = vld [vmem:[%s1610 + $0xca] sm:$0xff]
  %v5349 = vld [vmem:[%s1610 + $0xda] sm:$0xff]
  %v5350 = vld [vmem:[%s1610 + $0xe2] sm:$0xff]
  %v5351 = vld [vmem:[%s1610 + $0xf2] sm:$0xff]
  %v5352 = vld [vmem:[%s1610 + $0xfa] sm:$0xff]
  %v5353 = vld [vmem:[%s1610 + $0x10a] sm:$0xff]
  %v5354 = vld [vmem:[%s1610 + $0x112] sm:$0xff]
  %v5355 = vld [vmem:[%s1610 + $0x122] sm:$0xff]
  %v5356 = vld [vmem:[%s1610 + $0x12a] sm:$0xff]
  %v5357 = vld [vmem:[%s1610 + $0x13a] sm:$0xff]
  %v5358 = vld [vmem:[%s1610 + $0x142] sm:$0xff]
  %v5359 = vld [vmem:[%s1610 + $0x152] sm:$0xff]
  %v5360 = vld [vmem:[%s1610 + $0x15a] sm:$0xff]
  %v5361 = vld [vmem:[%s1610 + $0x16a] sm:$0xff]
  %v5362 = vld [vmem:[%s1610 + $0x172] sm:$0xff]
  %v5363 = vld [vmem:[%s1610 + $0x182] sm:$0xff]
  %v5364 = vld [vmem:[%s1610 + $0x18a] sm:$0xff]
  %v5365 = vld [vmem:[%s1610 + $0x19a] sm:$0xff]
  %v5366 = vld [vmem:[%s1610 + $0x1a2] sm:$0xff]
  %v5367 = vld [vmem:[%s1610 + $0x3] sm:$0xff]
  %v5368 = vld [vmem:[%s1610 + $0xb] sm:$0xff]
  %v5369 = vld [vmem:[%s1610 + $0x1b] sm:$0xff]
  %v5370 = vld [vmem:[%s1610 + $0x23] sm:$0xff]
  %v5371 = vld [vmem:[%s1610 + $0x33] sm:$0xff]
  %v5372 = vld [vmem:[%s1610 + $0x3b] sm:$0xff]
  %v5373 = vld [vmem:[%s1610 + $0x4b] sm:$0xff]
  %v5374 = vld [vmem:[%s1610 + $0x53] sm:$0xff]
  %v5375 = vld [vmem:[%s1610 + $0x63] sm:$0xff]
  %v5376 = vld [vmem:[%s1610 + $0x6b] sm:$0xff]
  %v5377 = vld [vmem:[%s1610 + $0x7b] sm:$0xff]
  %v5378 = vld [vmem:[%s1610 + $0x83] sm:$0xff]
  %v5379 = vld [vmem:[%s1610 + $0x93] sm:$0xff]
  %v5380 = vld [vmem:[%s1610 + $0x9b] sm:$0xff]
  %v5381 = vld [vmem:[%s1610 + $0xab] sm:$0xff]
  %v5382 = vld [vmem:[%s1610 + $0xb3] sm:$0xff]
  %v5383 = vld [vmem:[%s1610 + $0xc3] sm:$0xff]
  %v5384 = vld [vmem:[%s1610 + $0xcb] sm:$0xff]
  %v5385 = vld [vmem:[%s1610 + $0xdb] sm:$0xff]
  %v5386 = vld [vmem:[%s1610 + $0xe3] sm:$0xff]
  %v5387 = vld [vmem:[%s1610 + $0xf3] sm:$0xff]
  %v5388 = vld [vmem:[%s1610 + $0xfb] sm:$0xff]
  %v5389 = vld [vmem:[%s1610 + $0x10b] sm:$0xff]
  %v5390 = vld [vmem:[%s1610 + $0x113] sm:$0xff]
  %v5391 = vld [vmem:[%s1610 + $0x123] sm:$0xff]
  %v5392 = vld [vmem:[%s1610 + $0x12b] sm:$0xff]
  %v5393 = vld [vmem:[%s1610 + $0x13b] sm:$0xff]
  %v5394 = vld [vmem:[%s1610 + $0x143] sm:$0xff]
  %v5395 = vld [vmem:[%s1610 + $0x153] sm:$0xff]
  %v5396 = vld [vmem:[%s1610 + $0x15b] sm:$0xff]
  %v5397 = vld [vmem:[%s1610 + $0x16b] sm:$0xff]
  %v5398 = vld [vmem:[%s1610 + $0x173] sm:$0xff]
  %v5399 = vld [vmem:[%s1610 + $0x183] sm:$0xff]
  %v5400 = vld [vmem:[%s1610 + $0x18b] sm:$0xff]
  %v5401 = vld [vmem:[%s1610 + $0x19b] sm:$0xff]
  %v5402 = vld [vmem:[%s1610 + $0x1a3] sm:$0xff]
  %v5403 = vmax.f32 %v5331, %v5367
  %v5404 = vmax.f32 %v5332, %v5368
  %v5405 = vmax.f32 %v5333, %v5369
  %v5406 = vmax.f32 %v5334, %v5370
  %v5407 = vmax.f32 %v5335, %v5371
  %v5408 = vmax.f32 %v5336, %v5372
  %v5409 = vmax.f32 %v5337, %v5373
  %v5410 = vmax.f32 %v5338, %v5374
  %v5411 = vmax.f32 %v5339, %v5375
  %v5412 = vmax.f32 %v5340, %v5376
  %v5413 = vmax.f32 %v5341, %v5377
  %v5414 = vmax.f32 %v5342, %v5378
  %v5415 = vmax.f32 %v5343, %v5379
  %v5416 = vmax.f32 %v5344, %v5380
  %v5417 = vmax.f32 %v5345, %v5381
  %v5418 = vmax.f32 %v5346, %v5382
  %v5419 = vmax.f32 %v5347, %v5383
  %v5420 = vmax.f32 %v5348, %v5384
  %v5421 = vmax.f32 %v5349, %v5385
  %v5422 = vmax.f32 %v5350, %v5386
  %v5423 = vmax.f32 %v5351, %v5387
  %v5424 = vmax.f32 %v5352, %v5388
  %v5425 = vmax.f32 %v5353, %v5389
  %v5426 = vmax.f32 %v5354, %v5390
  %v5427 = vmax.f32 %v5355, %v5391
  %v5428 = vmax.f32 %v5356, %v5392
  %v5429 = vmax.f32 %v5357, %v5393
  %v5430 = vmax.f32 %v5358, %v5394
  %v5431 = vmax.f32 %v5359, %v5395
  %v5432 = vmax.f32 %v5360, %v5396
  %v5433 = vmax.f32 %v5361, %v5397
  %v5434 = vmax.f32 %v5362, %v5398
  %v5435 = vmax.f32 %v5363, %v5399
  %v5436 = vmax.f32 %v5364, %v5400
  %v5437 = vmax.f32 %v5365, %v5401
  %v5438 = vmax.f32 %v5366, %v5402
  %v5439 = vld [vmem:[%s1610 + $0x4] sm:$0xff]
  %v5440 = vld [vmem:[%s1610 + $0xc] sm:$0xff]
  %v5441 = vld [vmem:[%s1610 + $0x1c] sm:$0xff]
  %v5442 = vld [vmem:[%s1610 + $0x24] sm:$0xff]
  %v5443 = vld [vmem:[%s1610 + $0x34] sm:$0xff]
  %v5444 = vld [vmem:[%s1610 + $0x3c] sm:$0xff]
  %v5445 = vld [vmem:[%s1610 + $0x4c] sm:$0xff]
  %v5446 = vld [vmem:[%s1610 + $0x54] sm:$0xff]
  %v5447 = vld [vmem:[%s1610 + $0x64] sm:$0xff]
  %v5448 = vld [vmem:[%s1610 + $0x6c] sm:$0xff]
  %v5449 = vld [vmem:[%s1610 + $0x7c] sm:$0xff]
  %v5450 = vld [vmem:[%s1610 + $0x84] sm:$0xff]
  %v5451 = vld [vmem:[%s1610 + $0x94] sm:$0xff]
  %v5452 = vld [vmem:[%s1610 + $0x9c] sm:$0xff]
  %v5453 = vld [vmem:[%s1610 + $0xac] sm:$0xff]
  %v5454 = vld [vmem:[%s1610 + $0xb4] sm:$0xff]
  %v5455 = vld [vmem:[%s1610 + $0xc4] sm:$0xff]
  %v5456 = vld [vmem:[%s1610 + $0xcc] sm:$0xff]
  %v5457 = vld [vmem:[%s1610 + $0xdc] sm:$0xff]
  %v5458 = vld [vmem:[%s1610 + $0xe4] sm:$0xff]
  %v5459 = vld [vmem:[%s1610 + $0xf4] sm:$0xff]
  %v5460 = vld [vmem:[%s1610 + $0xfc] sm:$0xff]
  %v5461 = vld [vmem:[%s1610 + $0x10c] sm:$0xff]
  %v5462 = vld [vmem:[%s1610 + $0x114] sm:$0xff]
  %v5463 = vld [vmem:[%s1610 + $0x124] sm:$0xff]
  %v5464 = vld [vmem:[%s1610 + $0x12c] sm:$0xff]
  %v5465 = vld [vmem:[%s1610 + $0x13c] sm:$0xff]
  %v5466 = vld [vmem:[%s1610 + $0x144] sm:$0xff]
  %v5467 = vld [vmem:[%s1610 + $0x154] sm:$0xff]
  %v5468 = vld [vmem:[%s1610 + $0x15c] sm:$0xff]
  %v5469 = vld [vmem:[%s1610 + $0x16c] sm:$0xff]
  %v5470 = vld [vmem:[%s1610 + $0x174] sm:$0xff]
  %v5471 = vld [vmem:[%s1610 + $0x184] sm:$0xff]
  %v5472 = vld [vmem:[%s1610 + $0x18c] sm:$0xff]
  %v5473 = vld [vmem:[%s1610 + $0x19c] sm:$0xff]
  %v5474 = vld [vmem:[%s1610 + $0x1a4] sm:$0xff]
  %v5475 = vmax.f32 %v5403, %v5439
  %v5476 = vmax.f32 %v5404, %v5440
  %v5477 = vmax.f32 %v5405, %v5441
  %v5478 = vmax.f32 %v5406, %v5442
  %v5479 = vmax.f32 %v5407, %v5443
  %v5480 = vmax.f32 %v5408, %v5444
  %v5481 = vmax.f32 %v5409, %v5445
  %v5482 = vmax.f32 %v5410, %v5446
  %v5483 = vmax.f32 %v5411, %v5447
  %v5484 = vmax.f32 %v5412, %v5448
  %v5485 = vmax.f32 %v5413, %v5449
  %v5486 = vmax.f32 %v5414, %v5450
  %v5487 = vmax.f32 %v5415, %v5451
  %v5488 = vmax.f32 %v5416, %v5452
  %v5489 = vmax.f32 %v5417, %v5453
  %v5490 = vmax.f32 %v5418, %v5454
  %v5491 = vmax.f32 %v5419, %v5455
  %v5492 = vmax.f32 %v5420, %v5456
  %v5493 = vmax.f32 %v5421, %v5457
  %v5494 = vmax.f32 %v5422, %v5458
  %v5495 = vmax.f32 %v5423, %v5459
  %v5496 = vmax.f32 %v5424, %v5460
  %v5497 = vmax.f32 %v5425, %v5461
  %v5498 = vmax.f32 %v5426, %v5462
  %v5499 = vmax.f32 %v5427, %v5463
  %v5500 = vmax.f32 %v5428, %v5464
  %v5501 = vmax.f32 %v5429, %v5465
  %v5502 = vmax.f32 %v5430, %v5466
  %v5503 = vmax.f32 %v5431, %v5467
  %v5504 = vmax.f32 %v5432, %v5468
  %v5505 = vmax.f32 %v5433, %v5469
  %v5506 = vmax.f32 %v5434, %v5470
  %v5507 = vmax.f32 %v5435, %v5471
  %v5508 = vmax.f32 %v5436, %v5472
  %v5509 = vmax.f32 %v5437, %v5473
  %v5510 = vmax.f32 %v5438, %v5474
  %v5511 = vmax.f32 %v5475, %v5477
  %v5512 = vmax.f32 %v5476, %v5478
  %v5513 = vmax.f32 %v5477, %v5479
  %v5514 = vmax.f32 %v5478, %v5480
  %v5515 = vmax.f32 %v5479, %v5481
  %v5516 = vmax.f32 %v5480, %v5482
  %v5517 = vmax.f32 %v5481, %v5483
  %v5518 = vmax.f32 %v5482, %v5484
  %v5519 = vmax.f32 %v5483, %v5485
  %v5520 = vmax.f32 %v5484, %v5486
  %v5521 = vmax.f32 %v5485, %v5487
  %v5522 = vmax.f32 %v5486, %v5488
  %v5523 = vmax.f32 %v5487, %v5489
  %v5524 = vmax.f32 %v5488, %v5490
  %v5525 = vmax.f32 %v5489, %v5491
  %v5526 = vmax.f32 %v5490, %v5492
  %v5527 = vmax.f32 %v5491, %v5493
  %v5528 = vmax.f32 %v5492, %v5494
  %v5529 = vmax.f32 %v5493, %v5495
  %v5530 = vmax.f32 %v5494, %v5496
  %v5531 = vmax.f32 %v5495, %v5497
  %v5532 = vmax.f32 %v5496, %v5498
  %v5533 = vmax.f32 %v5497, %v5499
  %v5534 = vmax.f32 %v5498, %v5500
  %v5535 = vmax.f32 %v5499, %v5501
  %v5536 = vmax.f32 %v5500, %v5502
  %v5537 = vmax.f32 %v5501, %v5503
  %v5538 = vmax.f32 %v5502, %v5504
  %v5539 = vmax.f32 %v5503, %v5505
  %v5540 = vmax.f32 %v5504, %v5506
  %v5541 = vmax.f32 %v5505, %v5507
  %v5542 = vmax.f32 %v5506, %v5508
  %v5543 = vmax.f32 %v5511, %v5479
  %v5544 = vmax.f32 %v5512, %v5480
  %v5545 = vmax.f32 %v5513, %v5481
  %v5546 = vmax.f32 %v5514, %v5482
  %v5547 = vmax.f32 %v5515, %v5483
  %v5548 = vmax.f32 %v5516, %v5484
  %v5549 = vmax.f32 %v5517, %v5485
  %v5550 = vmax.f32 %v5518, %v5486
  %v5551 = vmax.f32 %v5519, %v5487
  %v5552 = vmax.f32 %v5520, %v5488
  %v5553 = vmax.f32 %v5521, %v5489
  %v5554 = vmax.f32 %v5522, %v5490
  %v5555 = vmax.f32 %v5523, %v5491
  %v5556 = vmax.f32 %v5524, %v5492
  %v5557 = vmax.f32 %v5525, %v5493
  %v5558 = vmax.f32 %v5526, %v5494
  %v5559 = vmax.f32 %v5527, %v5495
  %v5560 = vmax.f32 %v5528, %v5496
  %v5561 = vmax.f32 %v5529, %v5497
  %v5562 = vmax.f32 %v5530, %v5498
  %v5563 = vmax.f32 %v5531, %v5499
  %v5564 = vmax.f32 %v5532, %v5500
  %v5565 = vmax.f32 %v5533, %v5501
  %v5566 = vmax.f32 %v5534, %v5502
  %v5567 = vmax.f32 %v5535, %v5503
  %v5568 = vmax.f32 %v5536, %v5504
  %v5569 = vmax.f32 %v5537, %v5505
  %v5570 = vmax.f32 %v5538, %v5506
  %v5571 = vmax.f32 %v5539, %v5507
  %v5572 = vmax.f32 %v5540, %v5508
  %v5573 = vmax.f32 %v5541, %v5509
  %v5574 = vmax.f32 %v5542, %v5510
  %v5575 = vld [vmem:[%s3] sm:$0xff]
  %v5576 = vld [vmem:[%s3 + $0x8] sm:$0xff]
  %v5577 = vld [vmem:[%s3 + $0x10] sm:$0xff]
  %v5578 = vld [vmem:[%s3 + $0x18] sm:$0xff]
  %v5579 = vld [vmem:[%s3 + $0x20] sm:$0xff]
  %v5580 = vld [vmem:[%s3 + $0x28] sm:$0xff]
  %v5581 = vld [vmem:[%s3 + $0x30] sm:$0xff]
  %v5582 = vld [vmem:[%s3 + $0x38] sm:$0xff]
  %v5583 = vld [vmem:[%s3 + $0x40] sm:$0xff]
  %v5584 = vld [vmem:[%s3 + $0x48] sm:$0xff]
  %v5585 = vld [vmem:[%s3 + $0x50] sm:$0xff]
  %v5586 = vld [vmem:[%s3 + $0x58] sm:$0xff]
  %v5587 = vld [vmem:[%s3 + $0x60] sm:$0xff]
  %v5588 = vld [vmem:[%s3 + $0x68] sm:$0xff]
  %v5589 = vld [vmem:[%s3 + $0x70] sm:$0xff]
  %v5590 = vld [vmem:[%s3 + $0x78] sm:$0xff]
  %v5591 = vld [vmem:[%s3 + $0x80] sm:$0xff]
  %v5592 = vld [vmem:[%s3 + $0x88] sm:$0xff]
  %v5593 = vld [vmem:[%s3 + $0x90] sm:$0xff]
  %v5594 = vld [vmem:[%s3 + $0x98] sm:$0xff]
  %v5595 = vld [vmem:[%s3 + $0xa0] sm:$0xff]
  %v5596 = vld [vmem:[%s3 + $0xa8] sm:$0xff]
  %v5597 = vld [vmem:[%s3 + $0xb0] sm:$0xff]
  %v5598 = vld [vmem:[%s3 + $0xb8] sm:$0xff]
  %v5599 = vld [vmem:[%s3 + $0xc0] sm:$0xff]
  %v5600 = vld [vmem:[%s3 + $0xc8] sm:$0xff]
  %v5601 = vld [vmem:[%s3 + $0xd0] sm:$0xff]
  %v5602 = vld [vmem:[%s3 + $0xd8] sm:$0xff]
  %v5603 = vld [vmem:[%s3 + $0xe0] sm:$0xff]
  %v5604 = vld [vmem:[%s3 + $0xe8] sm:$0xff]
  %v5605 = vld [vmem:[%s3 + $0xf0] sm:$0xff]
  %v5606 = vld [vmem:[%s3 + $0xf8] sm:$0xff]
  %v5607 = vadd.f32 %v5575, %v5543
  %v5608 = vadd.f32 %v5576, %v5544
  %v5609 = vadd.f32 %v5577, %v5545
  %v5610 = vadd.f32 %v5578, %v5546
  %v5611 = vadd.f32 %v5579, %v5547
  %v5612 = vadd.f32 %v5580, %v5548
  %v5613 = vadd.f32 %v5581, %v5549
  %v5614 = vadd.f32 %v5582, %v5550
  %v5615 = vadd.f32 %v5583, %v5551
  %v5616 = vadd.f32 %v5584, %v5552
  %v5617 = vadd.f32 %v5585, %v5553
  %v5618 = vadd.f32 %v5586, %v5554
  %v5619 = vadd.f32 %v5587, %v5555
  %v5620 = vadd.f32 %v5588, %v5556
  %v5621 = vadd.f32 %v5589, %v5557
  %v5622 = vadd.f32 %v5590, %v5558
  %v5623 = vadd.f32 %v5591, %v5559
  %v5624 = vadd.f32 %v5592, %v5560
  %v5625 = vadd.f32 %v5593, %v5561
  %v5626 = vadd.f32 %v5594, %v5562
  %v5627 = vadd.f32 %v5595, %v5563
  %v5628 = vadd.f32 %v5596, %v5564
  %v5629 = vadd.f32 %v5597, %v5565
  %v5630 = vadd.f32 %v5598, %v5566
  %v5631 = vadd.f32 %v5599, %v5567
  %v5632 = vadd.f32 %v5600, %v5568
  %v5633 = vadd.f32 %v5601, %v5569
  %v5634 = vadd.f32 %v5602, %v5570
  %v5635 = vadd.f32 %v5603, %v5571
  %v5636 = vadd.f32 %v5604, %v5572
  %v5637 = vadd.f32 %v5605, %v5573
  %v5638 = vadd.f32 %v5606, %v5574
  %v5639 = vmax.f32 %v5607, 0.0
  %v5640 = vmax.f32 %v5608, 0.0
  %v5641 = vmax.f32 %v5609, 0.0
  %v5642 = vmax.f32 %v5610, 0.0
  %v5643 = vmax.f32 %v5611, 0.0
  %v5644 = vmax.f32 %v5612, 0.0
  %v5645 = vmax.f32 %v5613, 0.0
  %v5646 = vmax.f32 %v5614, 0.0
  %v5647 = vmax.f32 %v5615, 0.0
  %v5648 = vmax.f32 %v5616, 0.0
  %v5649 = vmax.f32 %v5617, 0.0
  %v5650 = vmax.f32 %v5618, 0.0
  %v5651 = vmax.f32 %v5619, 0.0
  %v5652 = vmax.f32 %v5620, 0.0
  %v5653 = vmax.f32 %v5621, 0.0
  %v5654 = vmax.f32 %v5622, 0.0
  %v5655 = vmax.f32 %v5623, 0.0
  %v5656 = vmax.f32 %v5624, 0.0
  %v5657 = vmax.f32 %v5625, 0.0
  %v5658 = vmax.f32 %v5626, 0.0
  %v5659 = vmax.f32 %v5627, 0.0
  %v5660 = vmax.f32 %v5628, 0.0
  %v5661 = vmax.f32 %v5629, 0.0
  %v5662 = vmax.f32 %v5630, 0.0
  %v5663 = vmax.f32 %v5631, 0.0
  %v5664 = vmax.f32 %v5632, 0.0
  %v5665 = vmax.f32 %v5633, 0.0
  %v5666 = vmax.f32 %v5634, 0.0
  %v5667 = vmax.f32 %v5635, 0.0
  %v5668 = vmax.f32 %v5636, 0.0
  %v5669 = vmax.f32 %v5637, 0.0
  %v5670 = vmax.f32 %v5638, 0.0
  %5671 = vst.msk [vmem:[%s3] sm:$0xff] %vm14, %v5639
  %5672 = vst.msk [vmem:[%s3 + $0x8] sm:$0xff] %vm14, %v5640
  %5673 = vst.msk [vmem:[%s3 + $0x10] sm:$0xff] %vm14, %v5641
  %5674 = vst.msk [vmem:[%s3 + $0x18] sm:$0xff] %vm14, %v5642
  %5675 = vst.msk [vmem:[%s3 + $0x20] sm:$0xff] %vm14, %v5643
  %5676 = vst.msk [vmem:[%s3 + $0x28] sm:$0xff] %vm14, %v5644
  %5677 = vst.msk [vmem:[%s3 + $0x30] sm:$0xff] %vm14, %v5645
  %5678 = vst.msk [vmem:[%s3 + $0x38] sm:$0xff] %vm14, %v5646
  %5679 = vst.msk [vmem:[%s3 + $0x40] sm:$0xff] %vm14, %v5647
  %5680 = vst.msk [vmem:[%s3 + $0x48] sm:$0xff] %vm14, %v5648
  %5681 = vst.msk [vmem:[%s3 + $0x50] sm:$0xff] %vm14, %v5649
  %5682 = vst.msk [vmem:[%s3 + $0x58] sm:$0xff] %vm14, %v5650
  %5683 = vst.msk [vmem:[%s3 + $0x60] sm:$0xff] %vm14, %v5651
  %5684 = vst.msk [vmem:[%s3 + $0x68] sm:$0xff] %vm14, %v5652
  %5685 = vst.msk [vmem:[%s3 + $0x70] sm:$0xff] %vm14, %v5653
  %5686 = vst.msk [vmem:[%s3 + $0x78] sm:$0xff] %vm14, %v5654
  %5687 = vst.msk [vmem:[%s3 + $0x80] sm:$0xff] %vm14, %v5655
  %5688 = vst.msk [vmem:[%s3 + $0x88] sm:$0xff] %vm14, %v5656
  %5689 = vst.msk [vmem:[%s3 + $0x90] sm:$0xff] %vm14, %v5657
  %5690 = vst.msk [vmem:[%s3 + $0x98] sm:$0xff] %vm14, %v5658
  %5691 = vst.msk [vmem:[%s3 + $0xa0] sm:$0xff] %vm14, %v5659
  %5692 = vst.msk [vmem:[%s3 + $0xa8] sm:$0xff] %vm14, %v5660
  %5693 = vst.msk [vmem:[%s3 + $0xb0] sm:$0xff] %vm14, %v5661
  %5694 = vst.msk [vmem:[%s3 + $0xb8] sm:$0xff] %vm14, %v5662
  %5695 = vst.msk [vmem:[%s3 + $0xc0] sm:$0xff] %vm14, %v5663
  %5696 = vst.msk [vmem:[%s3 + $0xc8] sm:$0xff] %vm14, %v5664
  %5697 = vst.msk [vmem:[%s3 + $0xd0] sm:$0xff] %vm14, %v5665
  %5698 = vst.msk [vmem:[%s3 + $0xd8] sm:$0xff] %vm14, %v5666
  %5699 = vst.msk [vmem:[%s3 + $0xe0] sm:$0xff] %vm14, %v5667
  %5700 = vst.msk [vmem:[%s3 + $0xe8] sm:$0xff] %vm14, %v5668
  %5701 = vst.msk [vmem:[%s3 + $0xf0] sm:$0xff] %vm14, %v5669
  %5702 = vst.msk [vmem:[%s3 + $0xf8] sm:$0xff] %vm14, %v5670
  // Predicated region
  $region14: #{cella_forward.1} parent=0 // pred_check
    _
  $region15: #{cella_forward.1} parent=0 // pred_check_branch
    %5704 = sbr.rel (0) target = $region17
  $region16: #{cella_forward.1} parent=0 // pred_region
    _
  $region17: #{cella_forward.1} parent=0 // pred_fallthru
    _
  // Predicated region
  $region18: #{cella_forward.1} parent=0 // pred_check
    _
  $region19: #{cella_forward.1} parent=0 // pred_check_branch
    %5706 = sbr.rel (0) target = $region21
  $region20: #{cella_forward.1} parent=0 // pred_region
    _
  $region21: #{cella_forward.1} parent=0 // pred_fallthru
    _

</llo_original>
